<compile_context>
chip_gen: v7x
topology: tpu7x:2x2x1
jax: 0.10.0
libtpu: 0.0.40
codegen_flags: <defaults>
</compile_context>

<pallas_src>
import jax
import jax.numpy as jnp
from jax import lax
from jax.experimental import pallas as pl
from jax.experimental.pallas import tpu as pltpu


def _full(shape):
    nd = len(shape)
    return pl.BlockSpec(shape, lambda i, _nd=nd: (0,) * _nd)


def _fused_traffic_cnn_kernel(q_ref, w1y_ref, b1t_ref, w2p_ref, b2_ref,
                              wc_ref, bc_ref, wl1_ref, bl1_ref, wl2_ref, bl2_ref,
                              pay_ref, pred_ref):
    # q_ref   : (3, B*76, 675) bf16   Q[j][(b,w), 25*m+k] = pay[b, 9w + 3m + j + k]
    # w1y_ref : (675, 864)     bf16   block-diag(w1t): rows (m,k) -> cols (m,c)
    # b1t_ref : (1, 864)       f32    b1 tiled over the 27 m-blocks
    # w2p_ref : (3, 864, 64)   bf16   W2pad[j2][(m,c), o] = W2[o, c, m-j2] (zero padded)
    # b2_ref  : (1, 64)        f32
    # wc_ref  : (64, 1)   bc_ref : (1, 1)
    # wl1_ref : (1024, 76)  bl1_ref : (1024, 1)      (native PyTorch layouts)
    # wl2_ref : (T, 1024)   bl2_ref : (T, 1)
    # pay_ref : (B*76, 64) f32  (NWC, rows b*76+w)    pred_ref : (T, B) f32
    B = pred_ref.shape[1]
    P2 = wl1_ref.shape[1]          # 76

    # ---- Stage 1: Conv1d(1->32, 25) + ReLU + MaxPool(3), emitted directly in the
    # stage-2 im2col layout Y[(b,w), 32*m+c] = pool1[b, 3w+m, c].  3 MXU matmuls + max.
    w1y = w1y_ref[...]
    z = jnp.dot(q_ref[0], w1y, preferred_element_type=jnp.float32)
    z = jnp.maximum(z, jnp.dot(q_ref[1], w1y, preferred_element_type=jnp.float32))
    z = jnp.maximum(z, jnp.dot(q_ref[2], w1y, preferred_element_type=jnp.float32))
    y = jnp.maximum(z + b1t_ref[...], 0.0)                      # (B*76, 864) f32
    yb = y.astype(jnp.bfloat16)

    # ---- Stage 2: Conv1d(32->64, 25) + ReLU + MaxPool(3) (+ eval Dropout + ReLU) as
    # 3 contraction-864 matmuls (one per pool-2 phase) followed by a max.
    c = jnp.dot(yb, w2p_ref[0], preferred_element_type=jnp.float32)
    c = jnp.maximum(c, jnp.dot(yb, w2p_ref[1], preferred_element_type=jnp.float32))
    c = jnp.maximum(c, jnp.dot(yb, w2p_ref[2], preferred_element_type=jnp.float32))
    p = jnp.maximum(c + b2_ref[...], 0.0)                       # (B*76, 64) = SM_PAY out
    # TODO(synk): nn.Dropout(0.2) is inference-mode identity; no stochastic mask.
    pay_ref[...] = p

    # ---- Head: Conv1d(64->1, 1) + Linear(76,1024) + ReLU + Linear(1024,T), computed
    # transposed so weights are used as-is and no in-kernel transpose is needed.
    t_col = jnp.dot(p, wc_ref[...], preferred_element_type=jnp.float32) + bc_ref[...]
    t2t = jnp.concatenate([t_col[b * P2:(b + 1) * P2, :] for b in range(B)], axis=1)
    h = jnp.dot(wl1_ref[...], t2t, preferred_element_type=jnp.float32) + bl1_ref[...]
    h = jnp.maximum(h, 0.0)                                      # (1024, B)
    pred_ref[...] = (jnp.dot(wl2_ref[...], h, preferred_element_type=jnp.float32)
                     + bl2_ref[...])


def init_params(key, target=3):
    ks = jax.random.split(key, 10)

    def w(k, shape, fan_in):
        return jax.random.normal(k, shape, jnp.float32) / jnp.sqrt(jnp.float32(fan_in))

    return dict(
        W1=w(ks[0], (32, 1, 25), 25.0),        b1=w(ks[1], (32,), 25.0),
        W2=w(ks[2], (64, 32, 25), 800.0),      b2=w(ks[3], (64,), 800.0),
        Wc=w(ks[4], (1, 64, 1), 64.0),         bc=w(ks[5], (1,), 64.0),
        Wl1=w(ks[6], (1024, 76), 76.0),        bl1=w(ks[7], (1024,), 76.0),
        Wl2=w(ks[8], (target, 1024), 1024.0),  bl2=w(ks[9], (target,), 1024.0),
    )


@jax.jit
def traffic_cnn_forward(P, hdr, pay):
    B, L = pay.shape
    K = 25
    L1 = L - (K - 1)          # conv1 length (756)
    P1 = L1 // 3              # pool1 length (252)
    L2 = P1 - (K - 1)         # conv2 length (228)
    P2 = L2 // 3              # pool2 length (76) -- pinned by Linear(76, 1024)
    NM = K + 2                # pool1 taps touched per pool2 window (27)
    # The fused index arithmetic assumes the canonical 780-sample payload; anything else
    # would silently diverge from PyTorch's floor-mode pooling.
    assert P2 == 76 and P['Wl1'].shape[1] == P2, "traffic_CNN requires pay length 780"
    assert 9 * (P2 - 1) + 3 * (NM - 1) + 2 + (K - 1) <= L - 1
    target = P['Wl2'].shape[0]

    # ---- wrapper-side re-layouts (cheap static XLA slices/pads, no gathers) ----
    # stride-1 im2col of pay: G[b, x, k] = pay[b, x + k]
    G = jnp.stack([pay[:, k:k + L1] for k in range(K)], axis=-1)          # (B, 756, 25)
    # Q[j][(b,w), 25*m + k] = pay[b, 9w + 3m + j + k]
    qs = []
    for j in range(3):
        cols = [lax.slice_in_dim(G, j + 3 * m, j + 3 * m + 9 * (P2 - 1) + 1,
                                 stride=9, axis=1) for m in range(NM)]    # (B, 76, 25)
        qs.append(jnp.concatenate(cols, axis=-1))                         # (B, 76, 675)
    Q = jnp.stack(qs, axis=0).reshape(3, B * P2, NM * K).astype(jnp.bfloat16)

    w1t = jnp.transpose(P['W1'][:, 0, :])                                 # (25, 32)
    W1Y = jnp.kron(jnp.eye(NM, dtype=jnp.float32), w1t).astype(jnp.bfloat16)  # (675, 864)
    b1t = jnp.tile(P['b1'], NM)[None, :]                                  # (1, 864)

    w2flat = jnp.transpose(P['W2'], (2, 1, 0)).reshape(K * 32, 64)        # (800, 64)
    W2pad = jnp.stack([jnp.pad(w2flat, ((32 * j2, 32 * (2 - j2)), (0, 0)))
                       for j2 in range(3)], axis=0).astype(jnp.bfloat16)  # (3, 864, 64)
    b2 = P['b2'][None, :]                                                 # (1, 64)

    wc = P['Wc'][0]                                                       # (64, 1)
    bc = P['bc'][None, :]                                                 # (1, 1)
    wl1 = P['Wl1']                                                        # (1024, 76)
    bl1 = P['bl1'][:, None]                                               # (1024, 1)
    wl2 = P['Wl2']                                                        # (target, 1024)
    bl2 = P['bl2'][:, None]                                               # (target, 1)

    pay_nwc, pred_t = pl.pallas_call(
        _fused_traffic_cnn_kernel,
        grid=(1,),
        in_specs=[_full(Q.shape), _full(W1Y.shape), _full(b1t.shape),
                  _full(W2pad.shape), _full(b2.shape),
                  _full(wc.shape), _full(bc.shape),
                  _full(wl1.shape), _full(bl1.shape),
                  _full(wl2.shape), _full(bl2.shape)],
        out_specs=(_full((B * P2, 64)), _full((target, B))),
        out_shape=(jax.ShapeDtypeStruct((B * P2, 64), jnp.float32),
                   jax.ShapeDtypeStruct((target, B), jnp.float32)),
        compiler_params=pltpu.CompilerParams(
            dimension_semantics=("arbitrary",),
            vmem_limit_bytes=32 * 1024 * 1024),
    )(Q, W1Y, b1t, W2pad, b2, wc, bc, wl1, bl1, wl2, bl2)

    # NWC -> NCW and (T, B) -> (B, T): layout plumbing outside the kernel.
    pay_out = jnp.transpose(pay_nwc.reshape(B, P2, 64), (0, 2, 1))        # (B, 64, 76)
    pred = jnp.squeeze(jnp.transpose(pred_t))                             # torch .squeeze()
    return pred, hdr, pay_out


def _ref_forward(P, hdr, pay):
    """Pure-JAX reference (XLA conv/reduce_window), NCW layout like PyTorch."""
    dn = ('NCH', 'OIH', 'NCH')
    x = pay[:, None, :]
    y = lax.conv_general_dilated(x, P['W1'], (1,), 'VALID', dimension_numbers=dn)
    y = jnp.maximum(y + P['b1'][None, :, None], 0.0)
    y = lax.reduce_window(y, -jnp.inf, lax.max, (1, 1, 3), (1, 1, 3), 'VALID')
    y = lax.conv_general_dilated(y, P['W2'], (1,), 'VALID', dimension_numbers=dn)
    y = jnp.maximum(y + P['b2'][None, :, None], 0.0)
    y = lax.reduce_window(y, -jnp.inf, lax.max, (1, 1, 3), (1, 1, 3), 'VALID')
    pay_out = jnp.maximum(y, 0.0)
    t = lax.conv_general_dilated(pay_out, P['Wc'], (1,), 'VALID', dimension_numbers=dn)
    t = t + P['bc'][None, :, None]                          # (B, 1, 76)
    h = jnp.maximum(t @ P['Wl1'].T + P['bl1'], 0.0)         # (B, 1, 1024)
    pred = h @ P['Wl2'].T + P['bl2']                        # (B, 1, target)
    return jnp.squeeze(pred), hdr, pay_out


if __name__ == "__main__":
    B, L = 2, 780                  # 780 -> 756 -> 252 -> 228 -> 76 (required by Linear(76, .))
    key = jax.random.PRNGKey(0)
    kp, kh, kw = jax.random.split(key, 3)
    pay = jax.random.normal(kp, (B, L), jnp.float32)
    hdr = jax.random.normal(kh, (B, 16), jnp.float32)
    params = init_params(kw)

    pred, hdr_out, pay_out = traffic_cnn_forward(params, hdr, pay)
    jax.block_until_ready((pred, hdr_out, pay_out))

    assert pred.shape == (B, 3), pred.shape
    assert pay_out.shape == (B, 64, 76), pay_out.shape
    assert hdr_out.shape == hdr.shape

    rpred, _, rpay = _ref_forward(params, hdr, pay)
    assert jnp.allclose(pred, rpred, atol=2e-2, rtol=2e-2), float(jnp.max(jnp.abs(pred - rpred)))
    assert jnp.allclose(pay_out, rpay, atol=2e-2, rtol=2e-2), float(jnp.max(jnp.abs(pay_out - rpay)))

    print("KERNEL_OK")
</pallas_src>

<mosaic_0001>
module attributes {stable_mosaic.version = 11 : i64} {
  func.func @_fused_traffic_cnn_kernel(%arg0: i32, %arg1: memref<3x152x675xbf16, #tpu.memory_space<vmem>>, %arg2: memref<675x864xbf16, #tpu.memory_space<vmem>>, %arg3: memref<1x864xf32, #tpu.memory_space<vmem>>, %arg4: memref<3x864x64xbf16, #tpu.memory_space<vmem>>, %arg5: memref<1x64xf32, #tpu.memory_space<vmem>>, %arg6: memref<64x1xf32, #tpu.memory_space<vmem>>, %arg7: memref<1x1xf32, #tpu.memory_space<vmem>>, %arg8: memref<1024x76xf32, #tpu.memory_space<vmem>>, %arg9: memref<1024x1xf32, #tpu.memory_space<vmem>>, %arg10: memref<3x1024xf32, #tpu.memory_space<vmem>>, %arg11: memref<3x1xf32, #tpu.memory_space<vmem>>, %arg12: memref<152x64xf32, #tpu.memory_space<vmem>>, %arg13: memref<3x2xf32, #tpu.memory_space<vmem>>) attributes {dimension_semantics = [#tpu.dimension_semantics<arbitrary>], iteration_bounds = array<i64: 1>, scalar_prefetch = 0 : i64, scratch_operands = 0 : i64, tpu.core_type = #tpu.core_type<tc>, window_params = [{pipeline_mode = #tpu.pipeline_mode<synchronous>, transform_indices = @transform_0, window_bounds = array<i64: 3, 152, 675>}, {pipeline_mode = #tpu.pipeline_mode<synchronous>, transform_indices = @transform_1, window_bounds = array<i64: 675, 864>}, {pipeline_mode = #tpu.pipeline_mode<synchronous>, transform_indices = @transform_2, window_bounds = array<i64: 1, 864>}, {pipeline_mode = #tpu.pipeline_mode<synchronous>, transform_indices = @transform_3, window_bounds = array<i64: 3, 864, 64>}, {pipeline_mode = #tpu.pipeline_mode<synchronous>, transform_indices = @transform_4, window_bounds = array<i64: 1, 64>}, {pipeline_mode = #tpu.pipeline_mode<synchronous>, transform_indices = @transform_5, window_bounds = array<i64: 64, 1>}, {pipeline_mode = #tpu.pipeline_mode<synchronous>, transform_indices = @transform_6, window_bounds = array<i64: 1, 1>}, {pipeline_mode = #tpu.pipeline_mode<synchronous>, transform_indices = @transform_7, window_bounds = array<i64: 1024, 76>}, {pipeline_mode = #tpu.pipeline_mode<synchronous>, transform_indices = @transform_8, window_bounds = array<i64: 1024, 1>}, {pipeline_mode = #tpu.pipeline_mode<synchronous>, transform_indices = @transform_9, window_bounds = array<i64: 3, 1024>}, {pipeline_mode = #tpu.pipeline_mode<synchronous>, transform_indices = @transform_10, window_bounds = array<i64: 3, 1>}, {pipeline_mode = #tpu.pipeline_mode<synchronous>, transform_indices = @transform_11, window_bounds = array<i64: 152, 64>}, {pipeline_mode = #tpu.pipeline_mode<synchronous>, transform_indices = @transform_12, window_bounds = array<i64: 3, 2>}]} {
    %c0 = arith.constant 0 : index
    %c0_0 = arith.constant 0 : index
    %0 = vector.load %arg2[%c0, %c0_0] : memref<675x864xbf16, #tpu.memory_space<vmem>>, vector<675x864xbf16>
    %c0_1 = arith.constant 0 : index
    %c0_2 = arith.constant 0 : index
    %c0_3 = arith.constant 0 : index
    %1 = vector.load %arg1[%c0_1, %c0_2, %c0_3] : memref<3x152x675xbf16, #tpu.memory_space<vmem>>, vector<1x152x675xbf16>
    %2 = vector.shape_cast %1 : vector<1x152x675xbf16> to vector<152x675xbf16>
    %cst = arith.constant dense<0.000000e+00> : vector<152x864xf32>
    %3 = tpu.matmul %2, %0, %cst {dimension_numbers = #tpu.dot_dimension_numbers<[1], [0], [0], [1], [0, 0, 1, 1], [], []>} : vector<152x675xbf16>, vector<675x864xbf16>, vector<152x864xf32> -> vector<152x864xf32>
    %c1 = arith.constant 1 : index
    %c0_4 = arith.constant 0 : index
    %c0_5 = arith.constant 0 : index
    %4 = vector.load %arg1[%c1, %c0_4, %c0_5] : memref<3x152x675xbf16, #tpu.memory_space<vmem>>, vector<1x152x675xbf16>
    %5 = vector.shape_cast %4 : vector<1x152x675xbf16> to vector<152x675xbf16>
    %cst_6 = arith.constant dense<0.000000e+00> : vector<152x864xf32>
    %6 = tpu.matmul %5, %0, %cst_6 {dimension_numbers = #tpu.dot_dimension_numbers<[1], [0], [0], [1], [0, 0, 1, 1], [], []>} : vector<152x675xbf16>, vector<675x864xbf16>, vector<152x864xf32> -> vector<152x864xf32>
    %7 = arith.maximumf %3, %6 : vector<152x864xf32>
    %c2 = arith.constant 2 : index
    %c0_7 = arith.constant 0 : index
    %c0_8 = arith.constant 0 : index
    %8 = vector.load %arg1[%c2, %c0_7, %c0_8] : memref<3x152x675xbf16, #tpu.memory_space<vmem>>, vector<1x152x675xbf16>
    %9 = vector.shape_cast %8 : vector<1x152x675xbf16> to vector<152x675xbf16>
    %cst_9 = arith.constant dense<0.000000e+00> : vector<152x864xf32>
    %10 = tpu.matmul %9, %0, %cst_9 {dimension_numbers = #tpu.dot_dimension_numbers<[1], [0], [0], [1], [0, 0, 1, 1], [], []>} : vector<152x675xbf16>, vector<675x864xbf16>, vector<152x864xf32> -> vector<152x864xf32>
    %11 = arith.maximumf %7, %10 : vector<152x864xf32>
    %c0_10 = arith.constant 0 : index
    %c0_11 = arith.constant 0 : index
    %12 = vector.load %arg3[%c0_10, %c0_11] : memref<1x864xf32, #tpu.memory_space<vmem>>, vector<1x864xf32>
    %13 = vector.broadcast %12 : vector<1x864xf32> to vector<152x864xf32>
    %14 = arith.addf %11, %13 : vector<152x864xf32>
    %cst_12 = arith.constant 0.000000e+00 : f32
    %15 = vector.broadcast %cst_12 : f32 to vector<152x864xf32>
    %16 = arith.maximumf %14, %15 : vector<152x864xf32>
    %17 = arith.truncf %16 : vector<152x864xf32> to vector<152x864xbf16>
    %c0_13 = arith.constant 0 : index
    %c0_14 = arith.constant 0 : index
    %c0_15 = arith.constant 0 : index
    %18 = vector.load %arg4[%c0_13, %c0_14, %c0_15] : memref<3x864x64xbf16, #tpu.memory_space<vmem>>, vector<1x864x64xbf16>
    %19 = vector.shape_cast %18 : vector<1x864x64xbf16> to vector<864x64xbf16>
    %cst_16 = arith.constant dense<0.000000e+00> : vector<152x64xf32>
    %20 = tpu.matmul %17, %19, %cst_16 {dimension_numbers = #tpu.dot_dimension_numbers<[1], [0], [0], [1], [0, 0, 1, 1], [], []>} : vector<152x864xbf16>, vector<864x64xbf16>, vector<152x64xf32> -> vector<152x64xf32>
    %c1_17 = arith.constant 1 : index
    %c0_18 = arith.constant 0 : index
    %c0_19 = arith.constant 0 : index
    %21 = vector.load %arg4[%c1_17, %c0_18, %c0_19] : memref<3x864x64xbf16, #tpu.memory_space<vmem>>, vector<1x864x64xbf16>
    %22 = vector.shape_cast %21 : vector<1x864x64xbf16> to vector<864x64xbf16>
    %cst_20 = arith.constant dense<0.000000e+00> : vector<152x64xf32>
    %23 = tpu.matmul %17, %22, %cst_20 {dimension_numbers = #tpu.dot_dimension_numbers<[1], [0], [0], [1], [0, 0, 1, 1], [], []>} : vector<152x864xbf16>, vector<864x64xbf16>, vector<152x64xf32> -> vector<152x64xf32>
    %24 = arith.maximumf %20, %23 : vector<152x64xf32>
    %c2_21 = arith.constant 2 : index
    %c0_22 = arith.constant 0 : index
    %c0_23 = arith.constant 0 : index
    %25 = vector.load %arg4[%c2_21, %c0_22, %c0_23] : memref<3x864x64xbf16, #tpu.memory_space<vmem>>, vector<1x864x64xbf16>
    %26 = vector.shape_cast %25 : vector<1x864x64xbf16> to vector<864x64xbf16>
    %cst_24 = arith.constant dense<0.000000e+00> : vector<152x64xf32>
    %27 = tpu.matmul %17, %26, %cst_24 {dimension_numbers = #tpu.dot_dimension_numbers<[1], [0], [0], [1], [0, 0, 1, 1], [], []>} : vector<152x864xbf16>, vector<864x64xbf16>, vector<152x64xf32> -> vector<152x64xf32>
    %28 = arith.maximumf %24, %27 : vector<152x64xf32>
    %c0_25 = arith.constant 0 : index
    %c0_26 = arith.constant 0 : index
    %29 = vector.load %arg5[%c0_25, %c0_26] : memref<1x64xf32, #tpu.memory_space<vmem>>, vector<1x64xf32>
    %30 = vector.broadcast %29 : vector<1x64xf32> to vector<152x64xf32>
    %31 = arith.addf %28, %30 : vector<152x64xf32>
    %cst_27 = arith.constant 0.000000e+00 : f32
    %32 = vector.broadcast %cst_27 : f32 to vector<152x64xf32>
    %33 = arith.maximumf %31, %32 : vector<152x64xf32>
    %c0_28 = arith.constant 0 : index
    %c0_29 = arith.constant 0 : index
    %34 = vector.load %arg12[%c0_28, %c0_29] : memref<152x64xf32, #tpu.memory_space<vmem>>, vector<152x64xf32>
    tpu.vector_store %arg12[%c0_28, %c0_29], %33 {strides = array<i32>} : memref<152x64xf32, #tpu.memory_space<vmem>>, vector<152x64xf32>,
    %c0_30 = arith.constant 0 : index
    %c0_31 = arith.constant 0 : index
    %35 = vector.load %arg6[%c0_30, %c0_31] : memref<64x1xf32, #tpu.memory_space<vmem>>, vector<64x1xf32>
    %cst_32 = arith.constant dense<0.000000e+00> : vector<152x1xf32>
    %36 = tpu.matmul %33, %35, %cst_32 {dimension_numbers = #tpu.dot_dimension_numbers<[1], [0], [0], [1], [0, 0, 1, 1], [], []>} : vector<152x64xf32>, vector<64x1xf32>, vector<152x1xf32> -> vector<152x1xf32>
    %c0_33 = arith.constant 0 : index
    %c0_34 = arith.constant 0 : index
    %37 = vector.load %arg7[%c0_33, %c0_34] : memref<1x1xf32, #tpu.memory_space<vmem>>, vector<1x1xf32>
    %38 = vector.broadcast %37 : vector<1x1xf32> to vector<152x1xf32>
    %39 = arith.addf %36, %38 : vector<152x1xf32>
    %40 = vector.extract_strided_slice %39 {offsets = [0, 0], sizes = [76, 1], strides = [1, 1]} : vector<152x1xf32> to vector<76x1xf32>
    %41 = vector.extract_strided_slice %39 {offsets = [76, 0], sizes = [76, 1], strides = [1, 1]} : vector<152x1xf32> to vector<76x1xf32>
    %42 = tpu.concatenate %40, %41 in 1 : vector<76x1xf32>, vector<76x1xf32> -> vector<76x2xf32>
    %c0_35 = arith.constant 0 : index
    %c0_36 = arith.constant 0 : index
    %43 = vector.load %arg8[%c0_35, %c0_36] : memref<1024x76xf32, #tpu.memory_space<vmem>>, vector<1024x76xf32>
    %cst_37 = arith.constant dense<0.000000e+00> : vector<1024x2xf32>
    %44 = tpu.matmul %43, %42, %cst_37 {dimension_numbers = #tpu.dot_dimension_numbers<[1], [0], [0], [1], [0, 0, 1, 1], [], []>} : vector<1024x76xf32>, vector<76x2xf32>, vector<1024x2xf32> -> vector<1024x2xf32>
    %c0_38 = arith.constant 0 : index
    %c0_39 = arith.constant 0 : index
    %45 = vector.load %arg9[%c0_38, %c0_39] : memref<1024x1xf32, #tpu.memory_space<vmem>>, vector<1024x1xf32>
    %46 = vector.broadcast %45 : vector<1024x1xf32> to vector<1024x2xf32>
    %47 = arith.addf %44, %46 : vector<1024x2xf32>
    %cst_40 = arith.constant 0.000000e+00 : f32
    %48 = vector.broadcast %cst_40 : f32 to vector<1024x2xf32>
    %49 = arith.maximumf %47, %48 : vector<1024x2xf32>
    %c0_41 = arith.constant 0 : index
    %c0_42 = arith.constant 0 : index
    %50 = vector.load %arg10[%c0_41, %c0_42] : memref<3x1024xf32, #tpu.memory_space<vmem>>, vector<3x1024xf32>
    %cst_43 = arith.constant dense<0.000000e+00> : vector<3x2xf32>
    %51 = tpu.matmul %50, %49, %cst_43 {dimension_numbers = #tpu.dot_dimension_numbers<[1], [0], [0], [1], [0, 0, 1, 1], [], []>} : vector<3x1024xf32>, vector<1024x2xf32>, vector<3x2xf32> -> vector<3x2xf32>
    %c0_44 = arith.constant 0 : index
    %c0_45 = arith.constant 0 : index
    %52 = vector.load %arg11[%c0_44, %c0_45] : memref<3x1xf32, #tpu.memory_space<vmem>>, vector<3x1xf32>
    %53 = vector.broadcast %52 : vector<3x1xf32> to vector<3x2xf32>
    %54 = arith.addf %51, %53 : vector<3x2xf32>
    %c0_46 = arith.constant 0 : index
    %c0_47 = arith.constant 0 : index
    %55 = vector.load %arg13[%c0_46, %c0_47] : memref<3x2xf32, #tpu.memory_space<vmem>>, vector<3x2xf32>
    tpu.vector_store %arg13[%c0_46, %c0_47], %54 {strides = array<i32>} : memref<3x2xf32, #tpu.memory_space<vmem>>, vector<3x2xf32>,
    return
  }
  func.func @transform_0(%arg0: i32) -> (i32, i32, i32) {
    %c0_i32 = arith.constant 0 : i32
    %c0_i32_0 = arith.constant 0 : i32
    %c0_i32_1 = arith.constant 0 : i32
    %c0_i32_2 = arith.constant 0 : i32
    return %c0_i32, %c0_i32_0, %c0_i32_1 : i32, i32, i32
  }
  func.func @transform_1(%arg0: i32) -> (i32, i32) {
    %c0_i32 = arith.constant 0 : i32
    %c0_i32_0 = arith.constant 0 : i32
    %c0_i32_1 = arith.constant 0 : i32
    return %c0_i32, %c0_i32_0 : i32, i32
  }
  func.func @transform_2(%arg0: i32) -> (i32, i32) {
    %c0_i32 = arith.constant 0 : i32
    %c0_i32_0 = arith.constant 0 : i32
    %c0_i32_1 = arith.constant 0 : i32
    return %c0_i32, %c0_i32_0 : i32, i32
  }
  func.func @transform_3(%arg0: i32) -> (i32, i32, i32) {
    %c0_i32 = arith.constant 0 : i32
    %c0_i32_0 = arith.constant 0 : i32
    %c0_i32_1 = arith.constant 0 : i32
    %c0_i32_2 = arith.constant 0 : i32
    return %c0_i32, %c0_i32_0, %c0_i32_1 : i32, i32, i32
  }
  func.func @transform_4(%arg0: i32) -> (i32, i32) {
    %c0_i32 = arith.constant 0 : i32
    %c0_i32_0 = arith.constant 0 : i32
    %c0_i32_1 = arith.constant 0 : i32
    return %c0_i32, %c0_i32_0 : i32, i32
  }
  func.func @transform_5(%arg0: i32) -> (i32, i32) {
    %c0_i32 = arith.constant 0 : i32
    %c0_i32_0 = arith.constant 0 : i32
    %c0_i32_1 = arith.constant 0 : i32
    return %c0_i32, %c0_i32_0 : i32, i32
  }
  func.func @transform_6(%arg0: i32) -> (i32, i32) {
    %c0_i32 = arith.constant 0 : i32
    %c0_i32_0 = arith.constant 0 : i32
    %c0_i32_1 = arith.constant 0 : i32
    return %c0_i32, %c0_i32_0 : i32, i32
  }
  func.func @transform_7(%arg0: i32) -> (i32, i32) {
    %c0_i32 = arith.constant 0 : i32
    %c0_i32_0 = arith.constant 0 : i32
    %c0_i32_1 = arith.constant 0 : i32
    return %c0_i32, %c0_i32_0 : i32, i32
  }
  func.func @transform_8(%arg0: i32) -> (i32, i32) {
    %c0_i32 = arith.constant 0 : i32
    %c0_i32_0 = arith.constant 0 : i32
    %c0_i32_1 = arith.constant 0 : i32
    return %c0_i32, %c0_i32_0 : i32, i32
  }
  func.func @transform_9(%arg0: i32) -> (i32, i32) {
    %c0_i32 = arith.constant 0 : i32
    %c0_i32_0 = arith.constant 0 : i32
    %c0_i32_1 = arith.constant 0 : i32
    return %c0_i32, %c0_i32_0 : i32, i32
  }
  func.func @transform_10(%arg0: i32) -> (i32, i32) {
    %c0_i32 = arith.constant 0 : i32
    %c0_i32_0 = arith.constant 0 : i32
    %c0_i32_1 = arith.constant 0 : i32
    return %c0_i32, %c0_i32_0 : i32, i32
  }
  func.func @transform_11(%arg0: i32) -> (i32, i32) {
    %c0_i32 = arith.constant 0 : i32
    %c0_i32_0 = arith.constant 0 : i32
    %c0_i32_1 = arith.constant 0 : i32
    return %c0_i32, %c0_i32_0 : i32, i32
  }
  func.func @transform_12(%arg0: i32) -> (i32, i32) {
    %c0_i32 = arith.constant 0 : i32
    %c0_i32_0 = arith.constant 0 : i32
    %c0_i32_1 = arith.constant 0 : i32
    return %c0_i32, %c0_i32_0 : i32, i32
  }
}

</mosaic_0001>

<llo_original>
// kernel: tile.8
$region0: #{tile.8}
  #allocation0 [shape = 's32[1]{0}', space=sflag, size = 0x4, scoped, tag = 'scoped memory for tile.8']
  %s0 = inlined_call_operand.vmem [shape: f32[32], index: 0, kind: input, shape index: {}]
  %s1 = inlined_call_operand.vmem [shape: f32[27,32], index: 1, kind: output, shape index: {}]
  // Predicated region
  $region2: #{tile.8} parent=0 // pred_check
    _
  $region3: #{tile.8} parent=0 // pred_check_branch
    %3 = sbr.rel (0) target = $region5
  $region4: #{tile.8} parent=0 // pred_region
    _
  $region5: #{tile.8} parent=0 // pred_fallthru
    _
  %v4 = vld [vmem:[%s0] ss:$0 sm:$0xff]
  %5 = vst [vmem:[%s1] sm:$0xff] %v4
  %s6 = scalar_lea.vmem %s1, 8
  %7 = vst [vmem:[%s6] sm:$0xff] %v4
  %s8 = scalar_lea.vmem %s1, 16
  %9 = vst [vmem:[%s8] sm:$0xff] %v4
  %s10 = scalar_lea.vmem %s1, 24
  %11 = vst [vmem:[%s10] sm:$0xff] %v4

// kernel: tile.9
$region0: #{tile.9}
  %s0 = inlined_call_operand.vmem [shape: f32[27,32], index: 0, kind: input, shape index: {}]
  %s1 = inlined_call_operand.vmem [shape: f32[1,864], index: 1, kind: output, shape index: {}]
  $region1: #{tile.9} parent=0
    #allocation0 [shape = 'u8[28672]{0}', space=vmem, size = 0x7000, scoped, tag = 'scoped mem for output reshape']
    %v2 = vld [vmem:[%s0] ss:$4 sm:$0x7f]
    %vm3 = vcmask 261120
    %4 = vst.msk [vmem:[#allocation0] ss:$8 sm:$0xf] %vm3, %v2
    %5 = vst.msk [vmem:[#allocation0] ss:$8 sm:$0x70] %vm3, %v2
    %s6 = scalar_lea.vmem %s0, 3
    %v7 = vld [vmem:[%s6] ss:$4 sm:$0x3f]
    %8 = vrot.lane.b32.xlu0 %v7, 96
    %v9 = vpop.permute.xlu0 %8
    %vm10 = vcmask 1048320
    %11 = vst.msk [vmem:[#allocation0] ss:$8 sm:$0xf] %vm10, %v9
    %12 = vst.msk [vmem:[#allocation0] ss:$8 sm:$0x30] %vm10, %v9
    %s13 = scalar_lea.vmem %s0, 2
    %v14 = vld [vmem:[%s13] ss:$4 sm:$0x7f]
    %15 = vrot.lane.b32.xlu0 %v14, 64
    %v16 = vpop.permute.xlu0 %15
    %vm17 = vcmask 785920
    %18 = vst.msk [vmem:[#allocation0] ss:$8 sm:$0xf] %vm17, %v16
    %19 = vst.msk [vmem:[#allocation0] ss:$8 sm:$0x70] %vm17, %v16
    %s20 = scalar_lea.vmem %s0, 1
    %v21 = vld [vmem:[%s20] ss:$4 sm:$0x7f]
    %22 = vrot.lane.b32.xlu0 %v21, 32
    %v23 = vpop.permute.xlu0 %22
    %vm24 = vcmask 523520
    %25 = vst.msk [vmem:[#allocation0] ss:$8 sm:$0xf] %vm24, %v23
    %26 = vst.msk [vmem:[#allocation0] ss:$8 sm:$0x70] %vm24, %v23
    %s28 = sshllo.u32 0, 1
    %v30 = vld [vmem:[#allocation0] sm:%s28]
    %s31 = sshllo.u32 0, 1
    %32 = vst [vmem:[%s1] sm:%s31] %v30
    %s33 = scalar_lea.vmem [#allocation0], 8
    %v34 = vld [vmem:[%s33] sm:%s28]
    %s35 = sshllo.u32 0, 1
    %s36 = scalar_lea.vmem %s1, 1
    %37 = vst [vmem:[%s36] sm:%s35] %v34
    %s38 = scalar_lea.vmem [#allocation0], 16
    %v39 = vld [vmem:[%s38] sm:%s28]
    %s40 = sshllo.u32 0, 1
    %s41 = smul.addr 1, 2
    %s42 = scalar_lea.vmem %s1, %s41
    %43 = vst [vmem:[%s42] sm:%s40] %v39
    %s44 = scalar_lea.vmem [#allocation0], 24
    %v45 = vld [vmem:[%s44] sm:%s28]
    %s46 = sshllo.u32 0, 1
    %s47 = smul.addr 1, 3
    %s48 = scalar_lea.vmem %s1, %s47
    %49 = vst [vmem:[%s48] sm:%s46] %v45
    %s50 = scalar_lea.vmem [#allocation0], 32
    %v51 = vld [vmem:[%s50] sm:%s28]
    %s52 = sshllo.u32 0, 1
    %s53 = smul.addr 1, 4
    %s54 = scalar_lea.vmem %s1, %s53
    %55 = vst [vmem:[%s54] sm:%s52] %v51
    %s56 = scalar_lea.vmem [#allocation0], 40
    %v57 = vld [vmem:[%s56] sm:%s28]
    %s58 = sshllo.u32 0, 1
    %s59 = smul.addr 1, 5
    %s60 = scalar_lea.vmem %s1, %s59
    %61 = vst [vmem:[%s60] sm:%s58] %v57
    %s62 = scalar_lea.vmem [#allocation0], 48
    %v63 = vld [vmem:[%s62] sm:%s28]
    %s64 = sshllo.u32 0, 1
    %s65 = smul.addr 1, 6
    %s66 = scalar_lea.vmem %s1, %s65
    %67 = vst [vmem:[%s66] sm:%s64] %v63

// kernel: traffic_cnn_forward.1
$region0: #{traffic_cnn_forward.1}
  #allocation0 [shape = 'u32[]', space=smem, size = 0x4, offset = 0x4, fixed_abs, tag = 'smem constant byte address 0x4 - core index']
  #allocation1 [shape = 'u32[144,128]{1,0:T(1,128)}', space=vmem, size = 0x12000, scoped, tag = 'internal scratch']
  #allocation2 [shape = 'f32[1,1]{1,0:T(1,128)S(1)}', space=vmem, size = 0x200, scoped, tag = 'scoped memory for traffic_cnn_forward.1']
  %s0 = inlined_call_operand.vmem [shape: bf16[3,152,675], index: 0, kind: input, shape index: {}]
  %s1 = inlined_call_operand.vmem [shape: bf16[675,864], index: 1, kind: input, shape index: {}]
  %s2 = inlined_call_operand.vmem [shape: f32[1,864], index: 2, kind: input, shape index: {}]
  %s3 = inlined_call_operand.vmem [shape: bf16[3,864,64], index: 3, kind: input, shape index: {}]
  %s4 = inlined_call_operand.vmem [shape: f32[1,64], index: 4, kind: input, shape index: {}]
  %s5 = inlined_call_operand.vmem [shape: f32[64,1], index: 5, kind: input, shape index: {}]
  %s6 = inlined_call_operand.<no memory space> [shape: f32[1,1], index: 6, kind: input, shape index: {}]
  %s7 = inlined_call_operand.vmem [shape: f32[1024,76], index: 7, kind: input, shape index: {}]
  %s8 = inlined_call_operand.vmem [shape: f32[1024,1], index: 8, kind: input, shape index: {}]
  %s9 = inlined_call_operand.vmem [shape: f32[3,1024], index: 9, kind: input, shape index: {}]
  %s10 = inlined_call_operand.vmem [shape: f32[3,1], index: 10, kind: input, shape index: {}]
  %s11 = inlined_call_operand.vmem [shape: f32[152,64], index: 11, kind: output, shape index: {0}]
  %s12 = inlined_call_operand.vmem [shape: f32[3,2], index: 12, kind: output, shape index: {1}]
  %13 = xla_tuple %s11, %s12
  %s14 = sld [smem:[#allocation0]]
  $region62: #{traffic_cnn_forward.1} parent=0
    _
  %s16 = ssub.s32 1, %s14
  %s17 = scalar_select 0, %s16, %s14
  %v18 = vstv %s6
  %19 = vst [vmem:[#allocation2] sm:$0x1] %v18
  // Predicated region
  $region2: #{traffic_cnn_forward.1} parent=0 // pred_check
    _
  $region3: #{traffic_cnn_forward.1} parent=0 // pred_check_branch
    %21 = sbr.rel (0) target = $region5
  $region4: #{traffic_cnn_forward.1} parent=0 // pred_region
    _
  $region5: #{traffic_cnn_forward.1} parent=0 // pred_fallthru
    _
  // Predicated region
  $region6: #{traffic_cnn_forward.1} parent=0 // pred_check
    _
  $region7: #{traffic_cnn_forward.1} parent=0 // pred_check_branch
    %23 = sbr.rel (0) target = $region9
  $region8: #{traffic_cnn_forward.1} parent=0 // pred_region
    _
  $region9: #{traffic_cnn_forward.1} parent=0 // pred_fallthru
    _
  // Predicated region
  $region10: #{traffic_cnn_forward.1} parent=0 // pred_check
    _
  $region11: #{traffic_cnn_forward.1} parent=0 // pred_check_branch
    %25 = sbr.rel (0) target = $region13
  $region12: #{traffic_cnn_forward.1} parent=0 // pred_region
    _
  $region13: #{traffic_cnn_forward.1} parent=0 // pred_fallthru
    _
  // Predicated region
  $region14: #{traffic_cnn_forward.1} parent=0 // pred_check
    _
  $region15: #{traffic_cnn_forward.1} parent=0 // pred_check_branch
    %27 = sbr.rel (0) target = $region17
  $region16: #{traffic_cnn_forward.1} parent=0 // pred_region
    _
  $region17: #{traffic_cnn_forward.1} parent=0 // pred_fallthru
    _
  // Predicated region
  $region18: #{traffic_cnn_forward.1} parent=0 // pred_check
    _
  $region19: #{traffic_cnn_forward.1} parent=0 // pred_check_branch
    %29 = sbr.rel (0) target = $region21
  $region20: #{traffic_cnn_forward.1} parent=0 // pred_region
    _
  $region21: #{traffic_cnn_forward.1} parent=0 // pred_fallthru
    _
  // Predicated region
  $region22: #{traffic_cnn_forward.1} parent=0 // pred_check
    _
  $region23: #{traffic_cnn_forward.1} parent=0 // pred_check_branch
    %31 = sbr.rel (0) target = $region25
  $region24: #{traffic_cnn_forward.1} parent=0 // pred_region
    _
  $region25: #{traffic_cnn_forward.1} parent=0 // pred_fallthru
    _
  // Predicated region
  $region26: #{traffic_cnn_forward.1} parent=0 // pred_check
    _
  $region27: #{traffic_cnn_forward.1} parent=0 // pred_check_branch
    %33 = sbr.rel (0) target = $region29
  $region28: #{traffic_cnn_forward.1} parent=0 // pred_region
    _
  $region29: #{traffic_cnn_forward.1} parent=0 // pred_fallthru
    _
  // Predicated region
  $region30: #{traffic_cnn_forward.1} parent=0 // pred_check
    _
  $region31: #{traffic_cnn_forward.1} parent=0 // pred_check_branch
    %35 = sbr.rel (0) target = $region33
  $region32: #{traffic_cnn_forward.1} parent=0 // pred_region
    _
  $region33: #{traffic_cnn_forward.1} parent=0 // pred_fallthru
    _
  // Predicated region
  $region34: #{traffic_cnn_forward.1} parent=0 // pred_check
    _
  $region35: #{traffic_cnn_forward.1} parent=0 // pred_check_branch
    %37 = sbr.rel (0) target = $region37
  $region36: #{traffic_cnn_forward.1} parent=0 // pred_region
    _
  $region37: #{traffic_cnn_forward.1} parent=0 // pred_fallthru
    _
  // Predicated region
  $region38: #{traffic_cnn_forward.1} parent=0 // pred_check
    _
  $region39: #{traffic_cnn_forward.1} parent=0 // pred_check_branch
    %39 = sbr.rel (0) target = $region41
  $region40: #{traffic_cnn_forward.1} parent=0 // pred_region
    _
  $region41: #{traffic_cnn_forward.1} parent=0 // pred_fallthru
    _
  // Predicated region
  $region42: #{traffic_cnn_forward.1} parent=0 // pred_check
    _
  $region43: #{traffic_cnn_forward.1} parent=0 // pred_check_branch
    %41 = sbr.rel (0) target = $region45
  $region44: #{traffic_cnn_forward.1} parent=0 // pred_region
    _
  $region45: #{traffic_cnn_forward.1} parent=0 // pred_fallthru
    _
  %v43 = vld [vmem:[%s1] sm:$0xff]
  %v44 = vld [vmem:[%s1 + $0x8] sm:$0xff]
  %v45 = vld [vmem:[%s1 + $0x10] sm:$0xff]
  %v46 = vld [vmem:[%s1 + $0x18] sm:$0xf]
  %v47 = vld [vmem:[%s1 + $0x1c] sm:$0xff]
  %v48 = vld [vmem:[%s1 + $0x24] sm:$0xff]
  %v49 = vld [vmem:[%s1 + $0x2c] sm:$0xff]
  %v50 = vld [vmem:[%s1 + $0x34] sm:$0xf]
  %v51 = vld [vmem:[%s1 + $0x38] sm:$0xff]
  %v52 = vld [vmem:[%s1 + $0x40] sm:$0xff]
  %v53 = vld [vmem:[%s1 + $0x48] sm:$0xff]
  %v54 = vld [vmem:[%s1 + $0x50] sm:$0xf]
  %v55 = vld [vmem:[%s1 + $0x54] sm:$0xff]
  %v56 = vld [vmem:[%s1 + $0x5c] sm:$0xff]
  %v57 = vld [vmem:[%s1 + $0x64] sm:$0xff]
  %v58 = vld [vmem:[%s1 + $0x6c] sm:$0xf]
  %v59 = vld [vmem:[%s1 + $0x70] sm:$0xff]
  %v60 = vld [vmem:[%s1 + $0x78] sm:$0xff]
  %v61 = vld [vmem:[%s1 + $0x80] sm:$0xff]
  %v62 = vld [vmem:[%s1 + $0x88] sm:$0xf]
  %v63 = vld [vmem:[%s1 + $0x8c] sm:$0xff]
  %v64 = vld [vmem:[%s1 + $0x94] sm:$0xff]
  %v65 = vld [vmem:[%s1 + $0x9c] sm:$0xff]
  %v66 = vld [vmem:[%s1 + $0xa4] sm:$0xf]
  %v67 = vld [vmem:[%s1 + $0xa8] sm:$0xff]
  %v68 = vld [vmem:[%s1 + $0xb0] sm:$0xff]
  %v69 = vld [vmem:[%s1 + $0xb8] sm:$0xff]
  %v70 = vld [vmem:[%s1 + $0xc0] sm:$0xf]
  %v71 = vld [vmem:[%s1 + $0xc4] sm:$0xff]
  %v72 = vld [vmem:[%s1 + $0xcc] sm:$0xff]
  %v73 = vld [vmem:[%s1 + $0xd4] sm:$0xff]
  %v74 = vld [vmem:[%s1 + $0xdc] sm:$0xf]
  %v75 = vld [vmem:[%s1 + $0xe0] sm:$0xff]
  %v76 = vld [vmem:[%s1 + $0xe8] sm:$0xff]
  %v77 = vld [vmem:[%s1 + $0xf0] sm:$0xff]
  %v78 = vld [vmem:[%s1 + $0xf8] sm:$0xf]
  %v79 = vld [vmem:[%s1 + $0xfc] sm:$0xff]
  %v80 = vld [vmem:[%s1 + $0x104] sm:$0xff]
  %v81 = vld [vmem:[%s1 + $0x10c] sm:$0xff]
  %v82 = vld [vmem:[%s1 + $0x114] sm:$0xf]
  %v83 = vld [vmem:[%s1 + $0x118] sm:$0xff]
  %v84 = vld [vmem:[%s1 + $0x120] sm:$0xff]
  %v85 = vld [vmem:[%s1 + $0x128] sm:$0xff]
  %v86 = vld [vmem:[%s1 + $0x130] sm:$0xf]
  %v87 = vld [vmem:[%s1 + $0x134] sm:$0xff]
  %v88 = vld [vmem:[%s1 + $0x13c] sm:$0xff]
  %v89 = vld [vmem:[%s1 + $0x144] sm:$0xff]
  %v90 = vld [vmem:[%s1 + $0x14c] sm:$0xf]
  %v91 = vld [vmem:[%s1 + $0x150] sm:$0xff]
  %v92 = vld [vmem:[%s1 + $0x158] sm:$0xff]
  %v93 = vld [vmem:[%s1 + $0x160] sm:$0xff]
  %v94 = vld [vmem:[%s1 + $0x168] sm:$0xf]
  %v95 = vld [vmem:[%s1 + $0x16c] sm:$0xff]
  %v96 = vld [vmem:[%s1 + $0x174] sm:$0xff]
  %v97 = vld [vmem:[%s1 + $0x17c] sm:$0xff]
  %v98 = vld [vmem:[%s1 + $0x184] sm:$0xf]
  %v99 = vld [vmem:[%s1 + $0x188] sm:$0xff]
  %v100 = vld [vmem:[%s1 + $0x190] sm:$0xff]
  %v101 = vld [vmem:[%s1 + $0x198] sm:$0xff]
  %v102 = vld [vmem:[%s1 + $0x1a0] sm:$0xf]
  %v103 = vld [vmem:[%s1 + $0x1a4] sm:$0xff]
  %v104 = vld [vmem:[%s1 + $0x1ac] sm:$0xff]
  %v105 = vld [vmem:[%s1 + $0x1b4] sm:$0xff]
  %v106 = vld [vmem:[%s1 + $0x1bc] sm:$0xf]
  %v107 = vld [vmem:[%s1 + $0x1c0] sm:$0xff]
  %v108 = vld [vmem:[%s1 + $0x1c8] sm:$0xff]
  %v109 = vld [vmem:[%s1 + $0x1d0] sm:$0xff]
  %v110 = vld [vmem:[%s1 + $0x1d8] sm:$0xf]
  %v111 = vld [vmem:[%s1 + $0x1dc] sm:$0xff]
  %v112 = vld [vmem:[%s1 + $0x1e4] sm:$0xff]
  %v113 = vld [vmem:[%s1 + $0x1ec] sm:$0xff]
  %v114 = vld [vmem:[%s1 + $0x1f4] sm:$0xf]
  %v115 = vld [vmem:[%s1 + $0x1f8] sm:$0xff]
  %v116 = vld [vmem:[%s1 + $0x200] sm:$0xff]
  %v117 = vld [vmem:[%s1 + $0x208] sm:$0xff]
  %v118 = vld [vmem:[%s1 + $0x210] sm:$0xf]
  %v119 = vld [vmem:[%s1 + $0x214] sm:$0xff]
  %v120 = vld [vmem:[%s1 + $0x21c] sm:$0xff]
  %v121 = vld [vmem:[%s1 + $0x224] sm:$0xff]
  %v122 = vld [vmem:[%s1 + $0x22c] sm:$0xf]
  %v123 = vld [vmem:[%s1 + $0x230] sm:$0xff]
  %v124 = vld [vmem:[%s1 + $0x238] sm:$0xff]
  %v125 = vld [vmem:[%s1 + $0x240] sm:$0xff]
  %v126 = vld [vmem:[%s1 + $0x248] sm:$0xf]
  %v127 = vld [vmem:[%s1 + $0x24c] sm:$0xff]
  %v128 = vld [vmem:[%s1 + $0x254] sm:$0xff]
  %v129 = vld [vmem:[%s1 + $0x25c] sm:$0xff]
  %v130 = vld [vmem:[%s1 + $0x264] sm:$0xf]
  %v131 = vld [vmem:[%s1 + $0x268] sm:$0xff]
  %v132 = vld [vmem:[%s1 + $0x270] sm:$0xff]
  %v133 = vld [vmem:[%s1 + $0x278] sm:$0xff]
  %v134 = vld [vmem:[%s1 + $0x280] sm:$0xf]
  %v135 = vld [vmem:[%s1 + $0x284] sm:$0xff]
  %v136 = vld [vmem:[%s1 + $0x28c] sm:$0xff]
  %v137 = vld [vmem:[%s1 + $0x294] sm:$0xff]
  %v138 = vld [vmem:[%s1 + $0x29c] sm:$0xf]
  %v139 = vld [vmem:[%s1 + $0x2a0] sm:$0xff]
  %v140 = vld [vmem:[%s1 + $0x2a8] sm:$0xff]
  %v141 = vld [vmem:[%s1 + $0x2b0] sm:$0xff]
  %v142 = vld [vmem:[%s1 + $0x2b8] sm:$0xf]
  %v143 = vld [vmem:[%s1 + $0x2bc] sm:$0xff]
  %v144 = vld [vmem:[%s1 + $0x2c4] sm:$0xff]
  %v145 = vld [vmem:[%s1 + $0x2cc] sm:$0xff]
  %v146 = vld [vmem:[%s1 + $0x2d4] sm:$0xf]
  %v147 = vld [vmem:[%s1 + $0x2d8] sm:$0xff]
  %v148 = vld [vmem:[%s1 + $0x2e0] sm:$0xff]
  %v149 = vld [vmem:[%s1 + $0x2e8] sm:$0xff]
  %v150 = vld [vmem:[%s1 + $0x2f0] sm:$0xf]
  %v151 = vld [vmem:[%s1 + $0x2f4] sm:$0xff]
  %v152 = vld [vmem:[%s1 + $0x2fc] sm:$0xff]
  %v153 = vld [vmem:[%s1 + $0x304] sm:$0xff]
  %v154 = vld [vmem:[%s1 + $0x30c] sm:$0xf]
  %v155 = vld [vmem:[%s1 + $0x310] sm:$0xff]
  %v156 = vld [vmem:[%s1 + $0x318] sm:$0xff]
  %v157 = vld [vmem:[%s1 + $0x320] sm:$0xff]
  %v158 = vld [vmem:[%s1 + $0x328] sm:$0xf]
  %v159 = vld [vmem:[%s1 + $0x32c] sm:$0xff]
  %v160 = vld [vmem:[%s1 + $0x334] sm:$0xff]
  %v161 = vld [vmem:[%s1 + $0x33c] sm:$0xff]
  %v162 = vld [vmem:[%s1 + $0x344] sm:$0xf]
  %v163 = vld [vmem:[%s1 + $0x348] sm:$0xff]
  %v164 = vld [vmem:[%s1 + $0x350] sm:$0xff]
  %v165 = vld [vmem:[%s1 + $0x358] sm:$0xff]
  %v166 = vld [vmem:[%s1 + $0x360] sm:$0xf]
  %v167 = vld [vmem:[%s1 + $0x364] sm:$0xff]
  %v168 = vld [vmem:[%s1 + $0x36c] sm:$0xff]
  %v169 = vld [vmem:[%s1 + $0x374] sm:$0xff]
  %v170 = vld [vmem:[%s1 + $0x37c] sm:$0xf]
  %v171 = vld [vmem:[%s1 + $0x380] sm:$0xff]
  %v172 = vld [vmem:[%s1 + $0x388] sm:$0xff]
  %v173 = vld [vmem:[%s1 + $0x390] sm:$0xff]
  %v174 = vld [vmem:[%s1 + $0x398] sm:$0xf]
  %v175 = vld [vmem:[%s1 + $0x39c] sm:$0xff]
  %v176 = vld [vmem:[%s1 + $0x3a4] sm:$0xff]
  %v177 = vld [vmem:[%s1 + $0x3ac] sm:$0xff]
  %v178 = vld [vmem:[%s1 + $0x3b4] sm:$0xf]
  %v179 = vld [vmem:[%s1 + $0x3b8] sm:$0xff]
  %v180 = vld [vmem:[%s1 + $0x3c0] sm:$0xff]
  %v181 = vld [vmem:[%s1 + $0x3c8] sm:$0xff]
  %v182 = vld [vmem:[%s1 + $0x3d0] sm:$0xf]
  %v183 = vld [vmem:[%s1 + $0x3d4] sm:$0xff]
  %v184 = vld [vmem:[%s1 + $0x3dc] sm:$0xff]
  %v185 = vld [vmem:[%s1 + $0x3e4] sm:$0xff]
  %v186 = vld [vmem:[%s1 + $0x3ec] sm:$0xf]
  %v187 = vld [vmem:[%s1 + $0x3f0] sm:$0xff]
  %v188 = vld [vmem:[%s1 + $0x3f8] sm:$0xff]
  %v189 = vld [vmem:[%s1 + $0x400] sm:$0xff]
  %v190 = vld [vmem:[%s1 + $0x408] sm:$0xf]
  %v191 = vld [vmem:[%s1 + $0x40c] sm:$0xff]
  %v192 = vld [vmem:[%s1 + $0x414] sm:$0xff]
  %v193 = vld [vmem:[%s1 + $0x41c] sm:$0xff]
  %v194 = vld [vmem:[%s1 + $0x424] sm:$0xf]
  %v195 = vld [vmem:[%s1 + $0x428] sm:$0xff]
  %v196 = vld [vmem:[%s1 + $0x430] sm:$0xff]
  %v197 = vld [vmem:[%s1 + $0x438] sm:$0xff]
  %v198 = vld [vmem:[%s1 + $0x440] sm:$0xf]
  %v199 = vld [vmem:[%s1 + $0x444] sm:$0xff]
  %v200 = vld [vmem:[%s1 + $0x44c] sm:$0xff]
  %v201 = vld [vmem:[%s1 + $0x454] sm:$0xff]
  %v202 = vld [vmem:[%s1 + $0x45c] sm:$0xf]
  %v203 = vld [vmem:[%s1 + $0x460] sm:$0xff]
  %v204 = vld [vmem:[%s1 + $0x468] sm:$0xff]
  %v205 = vld [vmem:[%s1 + $0x470] sm:$0xff]
  %v206 = vld [vmem:[%s1 + $0x478] sm:$0xf]
  %v207 = vld [vmem:[%s1 + $0x47c] sm:$0xff]
  %v208 = vld [vmem:[%s1 + $0x484] sm:$0xff]
  %v209 = vld [vmem:[%s1 + $0x48c] sm:$0xff]
  %v210 = vld [vmem:[%s1 + $0x494] sm:$0xf]
  %v211 = vld [vmem:[%s1 + $0x498] sm:$0xff]
  %v212 = vld [vmem:[%s1 + $0x4a0] sm:$0xff]
  %v213 = vld [vmem:[%s1 + $0x4a8] sm:$0xff]
  %v214 = vld [vmem:[%s1 + $0x4b0] sm:$0xf]
  %v215 = vld [vmem:[%s1 + $0x4b4] sm:$0xff]
  %v216 = vld [vmem:[%s1 + $0x4bc] sm:$0xff]
  %v217 = vld [vmem:[%s1 + $0x4c4] sm:$0xff]
  %v218 = vld [vmem:[%s1 + $0x4cc] sm:$0xf]
  %v219 = vld [vmem:[%s1 + $0x4d0] sm:$0xff]
  %v220 = vld [vmem:[%s1 + $0x4d8] sm:$0xff]
  %v221 = vld [vmem:[%s1 + $0x4e0] sm:$0xff]
  %v222 = vld [vmem:[%s1 + $0x4e8] sm:$0xf]
  %v223 = vld [vmem:[%s1 + $0x4ec] sm:$0xff]
  %v224 = vld [vmem:[%s1 + $0x4f4] sm:$0xff]
  %v225 = vld [vmem:[%s1 + $0x4fc] sm:$0xff]
  %v226 = vld [vmem:[%s1 + $0x504] sm:$0xf]
  %v227 = vld [vmem:[%s1 + $0x508] sm:$0xff]
  %v228 = vld [vmem:[%s1 + $0x510] sm:$0xff]
  %v229 = vld [vmem:[%s1 + $0x518] sm:$0xff]
  %v230 = vld [vmem:[%s1 + $0x520] sm:$0xf]
  %v231 = vld [vmem:[%s1 + $0x524] sm:$0xff]
  %v232 = vld [vmem:[%s1 + $0x52c] sm:$0xff]
  %v233 = vld [vmem:[%s1 + $0x534] sm:$0xff]
  %v234 = vld [vmem:[%s1 + $0x53c] sm:$0xf]
  %v235 = vld [vmem:[%s1 + $0x540] sm:$0xff]
  %v236 = vld [vmem:[%s1 + $0x548] sm:$0xff]
  %v237 = vld [vmem:[%s1 + $0x550] sm:$0xff]
  %v238 = vld [vmem:[%s1 + $0x558] sm:$0xf]
  %v239 = vld [vmem:[%s1 + $0x55c] sm:$0xff]
  %v240 = vld [vmem:[%s1 + $0x564] sm:$0xff]
  %v241 = vld [vmem:[%s1 + $0x56c] sm:$0xff]
  %v242 = vld [vmem:[%s1 + $0x574] sm:$0xf]
  %v243 = vld [vmem:[%s1 + $0x578] sm:$0xff]
  %v244 = vld [vmem:[%s1 + $0x580] sm:$0xff]
  %v245 = vld [vmem:[%s1 + $0x588] sm:$0xff]
  %v246 = vld [vmem:[%s1 + $0x590] sm:$0xf]
  %v247 = vld [vmem:[%s1 + $0x594] sm:$0xff]
  %v248 = vld [vmem:[%s1 + $0x59c] sm:$0xff]
  %v249 = vld [vmem:[%s1 + $0x5a4] sm:$0xff]
  %v250 = vld [vmem:[%s1 + $0x5ac] sm:$0xf]
  %v251 = vld [vmem:[%s1 + $0x5b0] sm:$0xff]
  %v252 = vld [vmem:[%s1 + $0x5b8] sm:$0xff]
  %v253 = vld [vmem:[%s1 + $0x5c0] sm:$0xff]
  %v254 = vld [vmem:[%s1 + $0x5c8] sm:$0xf]
  %v255 = vld [vmem:[%s1 + $0x5cc] sm:$0xff]
  %v256 = vld [vmem:[%s1 + $0x5d4] sm:$0xff]
  %v257 = vld [vmem:[%s1 + $0x5dc] sm:$0xff]
  %v258 = vld [vmem:[%s1 + $0x5e4] sm:$0xf]
  %v259 = vld [vmem:[%s1 + $0x5e8] sm:$0xff]
  %v260 = vld [vmem:[%s1 + $0x5f0] sm:$0xff]
  %v261 = vld [vmem:[%s1 + $0x5f8] sm:$0xff]
  %v262 = vld [vmem:[%s1 + $0x600] sm:$0xf]
  %v263 = vld [vmem:[%s1 + $0x604] sm:$0xff]
  %v264 = vld [vmem:[%s1 + $0x60c] sm:$0xff]
  %v265 = vld [vmem:[%s1 + $0x614] sm:$0xff]
  %v266 = vld [vmem:[%s1 + $0x61c] sm:$0xf]
  %v267 = vld [vmem:[%s1 + $0x620] sm:$0xff]
  %v268 = vld [vmem:[%s1 + $0x628] sm:$0xff]
  %v269 = vld [vmem:[%s1 + $0x630] sm:$0xff]
  %v270 = vld [vmem:[%s1 + $0x638] sm:$0xf]
  %v271 = vld [vmem:[%s1 + $0x63c] sm:$0xff]
  %v272 = vld [vmem:[%s1 + $0x644] sm:$0xff]
  %v273 = vld [vmem:[%s1 + $0x64c] sm:$0xff]
  %v274 = vld [vmem:[%s1 + $0x654] sm:$0xf]
  %v275 = vld [vmem:[%s1 + $0x658] sm:$0xff]
  %v276 = vld [vmem:[%s1 + $0x660] sm:$0xff]
  %v277 = vld [vmem:[%s1 + $0x668] sm:$0xff]
  %v278 = vld [vmem:[%s1 + $0x670] sm:$0xf]
  %v279 = vld [vmem:[%s1 + $0x674] sm:$0xff]
  %v280 = vld [vmem:[%s1 + $0x67c] sm:$0xff]
  %v281 = vld [vmem:[%s1 + $0x684] sm:$0xff]
  %v282 = vld [vmem:[%s1 + $0x68c] sm:$0xf]
  %v283 = vld [vmem:[%s1 + $0x690] sm:$0xff]
  %v284 = vld [vmem:[%s1 + $0x698] sm:$0xff]
  %v285 = vld [vmem:[%s1 + $0x6a0] sm:$0xff]
  %v286 = vld [vmem:[%s1 + $0x6a8] sm:$0xf]
  %v287 = vld [vmem:[%s1 + $0x6ac] sm:$0xff]
  %v288 = vld [vmem:[%s1 + $0x6b4] sm:$0xff]
  %v289 = vld [vmem:[%s1 + $0x6bc] sm:$0xff]
  %v290 = vld [vmem:[%s1 + $0x6c4] sm:$0xf]
  %v291 = vld [vmem:[%s1 + $0x6c8] sm:$0xff]
  %v292 = vld [vmem:[%s1 + $0x6d0] sm:$0xff]
  %v293 = vld [vmem:[%s1 + $0x6d8] sm:$0xff]
  %v294 = vld [vmem:[%s1 + $0x6e0] sm:$0xf]
  %v295 = vld [vmem:[%s1 + $0x6e4] sm:$0xff]
  %v296 = vld [vmem:[%s1 + $0x6ec] sm:$0xff]
  %v297 = vld [vmem:[%s1 + $0x6f4] sm:$0xff]
  %v298 = vld [vmem:[%s1 + $0x6fc] sm:$0xf]
  %v299 = vld [vmem:[%s1 + $0x700] sm:$0xff]
  %v300 = vld [vmem:[%s1 + $0x708] sm:$0xff]
  %v301 = vld [vmem:[%s1 + $0x710] sm:$0xff]
  %v302 = vld [vmem:[%s1 + $0x718] sm:$0xf]
  %v303 = vld [vmem:[%s1 + $0x71c] sm:$0xff]
  %v304 = vld [vmem:[%s1 + $0x724] sm:$0xff]
  %v305 = vld [vmem:[%s1 + $0x72c] sm:$0xff]
  %v306 = vld [vmem:[%s1 + $0x734] sm:$0xf]
  %v307 = vld [vmem:[%s1 + $0x738] sm:$0xff]
  %v308 = vld [vmem:[%s1 + $0x740] sm:$0xff]
  %v309 = vld [vmem:[%s1 + $0x748] sm:$0xff]
  %v310 = vld [vmem:[%s1 + $0x750] sm:$0xf]
  %v311 = vld [vmem:[%s1 + $0x754] sm:$0xff]
  %v312 = vld [vmem:[%s1 + $0x75c] sm:$0xff]
  %v313 = vld [vmem:[%s1 + $0x764] sm:$0xff]
  %v314 = vld [vmem:[%s1 + $0x76c] sm:$0xf]
  %v315 = vld [vmem:[%s1 + $0x770] sm:$0xff]
  %v316 = vld [vmem:[%s1 + $0x778] sm:$0xff]
  %v317 = vld [vmem:[%s1 + $0x780] sm:$0xff]
  %v318 = vld [vmem:[%s1 + $0x788] sm:$0xf]
  %v319 = vld [vmem:[%s1 + $0x78c] sm:$0xff]
  %v320 = vld [vmem:[%s1 + $0x794] sm:$0xff]
  %v321 = vld [vmem:[%s1 + $0x79c] sm:$0xff]
  %v322 = vld [vmem:[%s1 + $0x7a4] sm:$0xf]
  %v323 = vld [vmem:[%s1 + $0x7a8] sm:$0xff]
  %v324 = vld [vmem:[%s1 + $0x7b0] sm:$0xff]
  %v325 = vld [vmem:[%s1 + $0x7b8] sm:$0xff]
  %v326 = vld [vmem:[%s1 + $0x7c0] sm:$0xf]
  %v327 = vld [vmem:[%s1 + $0x7c4] sm:$0xff]
  %v328 = vld [vmem:[%s1 + $0x7cc] sm:$0xff]
  %v329 = vld [vmem:[%s1 + $0x7d4] sm:$0xff]
  %v330 = vld [vmem:[%s1 + $0x7dc] sm:$0xf]
  %v331 = vld [vmem:[%s1 + $0x7e0] sm:$0xff]
  %v332 = vld [vmem:[%s1 + $0x7e8] sm:$0xff]
  %v333 = vld [vmem:[%s1 + $0x7f0] sm:$0xff]
  %v334 = vld [vmem:[%s1 + $0x7f8] sm:$0xf]
  %v335 = vld [vmem:[%s1 + $0x7fc] sm:$0xff]
  %v336 = vld [vmem:[%s1 + $0x804] sm:$0xff]
  %v337 = vld [vmem:[%s1 + $0x80c] sm:$0xff]
  %v338 = vld [vmem:[%s1 + $0x814] sm:$0xf]
  %v339 = vld [vmem:[%s1 + $0x818] sm:$0xff]
  %v340 = vld [vmem:[%s1 + $0x820] sm:$0xff]
  %v341 = vld [vmem:[%s1 + $0x828] sm:$0xff]
  %v342 = vld [vmem:[%s1 + $0x830] sm:$0xf]
  %v343 = vld [vmem:[%s1 + $0x834] sm:$0xff]
  %v344 = vld [vmem:[%s1 + $0x83c] sm:$0xff]
  %v345 = vld [vmem:[%s1 + $0x844] sm:$0xff]
  %v346 = vld [vmem:[%s1 + $0x84c] sm:$0xf]
  %v347 = vld [vmem:[%s1 + $0x850] sm:$0xff]
  %v348 = vld [vmem:[%s1 + $0x858] sm:$0xff]
  %v349 = vld [vmem:[%s1 + $0x860] sm:$0xff]
  %v350 = vld [vmem:[%s1 + $0x868] sm:$0xf]
  %v351 = vld [vmem:[%s1 + $0x86c] sm:$0xff]
  %v352 = vld [vmem:[%s1 + $0x874] sm:$0xff]
  %v353 = vld [vmem:[%s1 + $0x87c] sm:$0xff]
  %v354 = vld [vmem:[%s1 + $0x884] sm:$0xf]
  %v355 = vld [vmem:[%s1 + $0x888] sm:$0xff]
  %v356 = vld [vmem:[%s1 + $0x890] sm:$0xff]
  %v357 = vld [vmem:[%s1 + $0x898] sm:$0xff]
  %v358 = vld [vmem:[%s1 + $0x8a0] sm:$0xf]
  %v359 = vld [vmem:[%s1 + $0x8a4] sm:$0xff]
  %v360 = vld [vmem:[%s1 + $0x8ac] sm:$0xff]
  %v361 = vld [vmem:[%s1 + $0x8b4] sm:$0xff]
  %v362 = vld [vmem:[%s1 + $0x8bc] sm:$0xf]
  %v363 = vld [vmem:[%s1 + $0x8c0] sm:$0xff]
  %v364 = vld [vmem:[%s1 + $0x8c8] sm:$0xff]
  %v365 = vld [vmem:[%s1 + $0x8d0] sm:$0xff]
  %v366 = vld [vmem:[%s1 + $0x8d8] sm:$0xf]
  %v367 = vld [vmem:[%s1 + $0x8dc] sm:$0xff]
  %v368 = vld [vmem:[%s1 + $0x8e4] sm:$0xff]
  %v369 = vld [vmem:[%s1 + $0x8ec] sm:$0xff]
  %v370 = vld [vmem:[%s1 + $0x8f4] sm:$0xf]
  %v371 = vld [vmem:[%s1 + $0x8f8] sm:$0xff]
  %v372 = vld [vmem:[%s1 + $0x900] sm:$0xff]
  %v373 = vld [vmem:[%s1 + $0x908] sm:$0xff]
  %v374 = vld [vmem:[%s1 + $0x910] sm:$0xf]
  %v375 = vld [vmem:[%s1 + $0x914] sm:$0xff]
  %v376 = vld [vmem:[%s1 + $0x91c] sm:$0xff]
  %v377 = vld [vmem:[%s1 + $0x924] sm:$0xff]
  %v378 = vld [vmem:[%s1 + $0x92c] sm:$0xf]
  %v379 = vld [vmem:[%s1 + $0x930] sm:$0x33]
  %v380 = vld [vmem:[%s1 + $0x938] sm:$0x33]
  %v381 = vld [vmem:[%s1 + $0x940] sm:$0x33]
  %v382 = vld [vmem:[%s1 + $0x948] sm:$0x3]
  %v383 = vld [vmem:[%s0] sm:$0xff]
  %v384 = vld [vmem:[%s0 + $0x8] sm:$0xff]
  %v385 = vld [vmem:[%s0 + $0x10] sm:$0xff]
  %v386 = vld [vmem:[%s0 + $0x18] sm:$0xff]
  %v387 = vld [vmem:[%s0 + $0x20] sm:$0xff]
  %v388 = vld [vmem:[%s0 + $0x28] sm:$0xff]
  %v389 = vld [vmem:[%s0 + $0x30] sm:$0xff]
  %v390 = vld [vmem:[%s0 + $0x38] sm:$0xff]
  %v391 = vld [vmem:[%s0 + $0x40] sm:$0xff]
  %v392 = vld [vmem:[%s0 + $0x48] sm:$0xff]
  %v393 = vld [vmem:[%s0 + $0x50] sm:$0xff]
  %v394 = vld [vmem:[%s0 + $0x58] sm:$0xff]
  %v395 = vld [vmem:[%s0 + $0x60] sm:$0xff]
  %v396 = vld [vmem:[%s0 + $0x68] sm:$0xff]
  %v397 = vld [vmem:[%s0 + $0x70] sm:$0xff]
  %v398 = vld [vmem:[%s0 + $0x78] sm:$0xff]
  %v399 = vld [vmem:[%s0 + $0x80] sm:$0xff]
  %v400 = vld [vmem:[%s0 + $0x88] sm:$0xff]
  %v401 = vld [vmem:[%s0 + $0x90] sm:$0xff]
  %v402 = vld [vmem:[%s0 + $0x98] sm:$0xff]
  %v403 = vld [vmem:[%s0 + $0xa0] sm:$0xff]
  %v404 = vld [vmem:[%s0 + $0xa8] sm:$0xff]
  %v405 = vld [vmem:[%s0 + $0xb0] sm:$0xff]
  %v406 = vld [vmem:[%s0 + $0xb8] sm:$0xff]
  %v407 = vld [vmem:[%s0 + $0xc0] sm:$0xff]
  %v408 = vld [vmem:[%s0 + $0xc8] sm:$0xff]
  %v409 = vld [vmem:[%s0 + $0xd0] sm:$0xff]
  %v410 = vld [vmem:[%s0 + $0xd8] sm:$0xff]
  %v411 = vld [vmem:[%s0 + $0xe0] sm:$0xff]
  %v412 = vld [vmem:[%s0 + $0xe8] sm:$0xff]
  %v413 = vld [vmem:[%s0 + $0xf0] sm:$0xff]
  %v414 = vld [vmem:[%s0 + $0xf8] sm:$0xff]
  %v415 = vld [vmem:[%s0 + $0x100] sm:$0xff]
  %v416 = vld [vmem:[%s0 + $0x108] sm:$0xff]
  %v417 = vld [vmem:[%s0 + $0x110] sm:$0xff]
  %v418 = vld [vmem:[%s0 + $0x118] sm:$0xff]
  %v419 = vld [vmem:[%s0 + $0x120] sm:$0xff]
  %v420 = vld [vmem:[%s0 + $0x128] sm:$0xff]
  %v421 = vld [vmem:[%s0 + $0x130] sm:$0xff]
  %v422 = vld [vmem:[%s0 + $0x138] sm:$0xff]
  %v423 = vld [vmem:[%s0 + $0x140] sm:$0xff]
  %v424 = vld [vmem:[%s0 + $0x148] sm:$0xff]
  %v425 = vld [vmem:[%s0 + $0x150] sm:$0xff]
  %v426 = vld [vmem:[%s0 + $0x158] sm:$0xff]
  %v427 = vld [vmem:[%s0 + $0x160] sm:$0xff]
  %v428 = vld [vmem:[%s0 + $0x168] sm:$0xff]
  %v429 = vld [vmem:[%s0 + $0x170] sm:$0xff]
  %v430 = vld [vmem:[%s0 + $0x178] sm:$0xff]
  %v431 = vld [vmem:[%s0 + $0x180] sm:$0xff]
  %v432 = vld [vmem:[%s0 + $0x188] sm:$0xff]
  %v433 = vld [vmem:[%s0 + $0x190] sm:$0xff]
  %v434 = vld [vmem:[%s0 + $0x198] sm:$0xff]
  %v435 = vld [vmem:[%s0 + $0x1a0] sm:$0xff]
  %v436 = vld [vmem:[%s0 + $0x1a8] sm:$0xff]
  %v437 = vld [vmem:[%s0 + $0x1b0] sm:$0xff]
  %v438 = vld [vmem:[%s0 + $0x1b8] sm:$0xff]
  %v439 = vld [vmem:[%s0 + $0x1c0] sm:$0xff]
  %v497 = vunpack.c.l.b16 %v383
  %v498 = vunpack.c.h.b16 %v383
  %v499 = vunpack.c.l.b16 %v384
  %v500 = vunpack.c.h.b16 %v384
  %v501 = vunpack.c.l.b16 %v385
  %v502 = vunpack.c.h.b16 %v385
  %v503 = vunpack.c.l.b16 %v386
  %v504 = vunpack.c.h.b16 %v386
  %v505 = vunpack.c.l.b16 %v387
  %v506 = vunpack.c.h.b16 %v387
  %v507 = vunpack.c.l.b16 %v388
  %v508 = vunpack.c.h.b16 %v388
  %v509 = vunpack.c.l.b16 %v389
  %v510 = vunpack.c.h.b16 %v389
  %v511 = vunpack.c.l.b16 %v390
  %v512 = vunpack.c.h.b16 %v390
  %v513 = vunpack.c.l.b16 %v391
  %v514 = vunpack.c.h.b16 %v391
  %v515 = vunpack.c.l.b16 %v392
  %v516 = vunpack.c.h.b16 %v392
  %v517 = vunpack.c.l.b16 %v393
  %v518 = vunpack.c.h.b16 %v393
  %v519 = vunpack.c.l.b16 %v394
  %v520 = vunpack.c.h.b16 %v394
  %v521 = vunpack.c.l.b16 %v395
  %v522 = vunpack.c.h.b16 %v395
  %v523 = vunpack.c.l.b16 %v396
  %v524 = vunpack.c.h.b16 %v396
  %v525 = vunpack.c.l.b16 %v397
  %v526 = vunpack.c.h.b16 %v397
  %v527 = vunpack.c.l.b16 %v398
  %v528 = vunpack.c.h.b16 %v398
  %v529 = vunpack.c.l.b16 %v399
  %v530 = vunpack.c.h.b16 %v399
  %v531 = vunpack.c.l.b16 %v400
  %v532 = vunpack.c.h.b16 %v400
  %v533 = vunpack.c.l.b16 %v401
  %v534 = vunpack.c.h.b16 %v401
  %v535 = vunpack.c.l.b16 %v402
  %v536 = vunpack.c.h.b16 %v402
  %v537 = vunpack.c.l.b16 %v403
  %v538 = vunpack.c.h.b16 %v403
  %v539 = vunpack.c.l.b16 %v404
  %v540 = vunpack.c.h.b16 %v404
  %v541 = vunpack.c.l.b16 %v405
  %v542 = vunpack.c.h.b16 %v405
  %v543 = vunpack.c.l.b16 %v406
  %v544 = vunpack.c.h.b16 %v406
  %v545 = vunpack.c.l.b16 %v407
  %v546 = vunpack.c.h.b16 %v407
  %v547 = vunpack.c.l.b16 %v408
  %v548 = vunpack.c.h.b16 %v408
  %v549 = vunpack.c.l.b16 %v409
  %v550 = vunpack.c.h.b16 %v409
  %v551 = vunpack.c.l.b16 %v410
  %v552 = vunpack.c.h.b16 %v410
  %v553 = vunpack.c.l.b16 %v411
  %v554 = vunpack.c.h.b16 %v411
  %v555 = vunpack.c.l.b16 %v412
  %v556 = vunpack.c.h.b16 %v412
  %v557 = vunpack.c.l.b16 %v413
  %v558 = vunpack.c.h.b16 %v413
  %v559 = vunpack.c.l.b16 %v414
  %v560 = vunpack.c.h.b16 %v414
  %v561 = vunpack.c.l.b16 %v415
  %v562 = vunpack.c.h.b16 %v415
  %v563 = vunpack.c.l.b16 %v416
  %v564 = vunpack.c.h.b16 %v416
  %v565 = vunpack.c.l.b16 %v417
  %v566 = vunpack.c.h.b16 %v417
  %v567 = vunpack.c.l.b16 %v418
  %v568 = vunpack.c.h.b16 %v418
  %v569 = vunpack.c.l.b16 %v419
  %v570 = vunpack.c.h.b16 %v419
  %v571 = vunpack.c.l.b16 %v420
  %v572 = vunpack.c.h.b16 %v420
  %v573 = vunpack.c.l.b16 %v421
  %v574 = vunpack.c.h.b16 %v421
  %v575 = vunpack.c.l.b16 %v422
  %v576 = vunpack.c.h.b16 %v422
  %v577 = vunpack.c.l.b16 %v423
  %v578 = vunpack.c.h.b16 %v423
  %v579 = vunpack.c.l.b16 %v424
  %v580 = vunpack.c.h.b16 %v424
  %v581 = vunpack.c.l.b16 %v425
  %v582 = vunpack.c.h.b16 %v425
  %v583 = vunpack.c.l.b16 %v426
  %v584 = vunpack.c.h.b16 %v426
  %v585 = vunpack.c.l.b16 %v427
  %v586 = vunpack.c.h.b16 %v427
  %v587 = vunpack.c.l.b16 %v428
  %v588 = vunpack.c.h.b16 %v428
  %v589 = vunpack.c.l.b16 %v429
  %v590 = vunpack.c.h.b16 %v429
  %v591 = vunpack.c.l.b16 %v430
  %v592 = vunpack.c.h.b16 %v430
  %v593 = vunpack.c.l.b16 %v431
  %v594 = vunpack.c.h.b16 %v431
  %v595 = vunpack.c.l.b16 %v432
  %v596 = vunpack.c.h.b16 %v432
  %v597 = vunpack.c.l.b16 %v433
  %v598 = vunpack.c.h.b16 %v433
  %v599 = vunpack.c.l.b16 %v434
  %v600 = vunpack.c.h.b16 %v434
  %v601 = vunpack.c.l.b16 %v435
  %v602 = vunpack.c.h.b16 %v435
  %v603 = vunpack.c.l.b16 %v436
  %v604 = vunpack.c.h.b16 %v436
  %v605 = vunpack.c.l.b16 %v437
  %v606 = vunpack.c.h.b16 %v437
  %v607 = vunpack.c.l.b16 %v438
  %v608 = vunpack.c.h.b16 %v438
  %v609 = vunpack.c.l.b16 %v439
  %v610 = vunpack.c.h.b16 %v439
  %v611 = vpack.c.b16 %v503, %v497
  %v612 = vpack.c.b16 %v504, %v498
  %v613 = vpack.c.b16 %v505, %v499
  %v614 = vpack.c.b16 %v506, %v500
  %v615 = vpack.c.b16 %v507, %v501
  %v616 = vpack.c.b16 %v508, %v502
  %v617 = vpack.c.b16 %v515, %v509
  %v618 = vpack.c.b16 %v516, %v510
  %v619 = vpack.c.b16 %v517, %v511
  %v620 = vpack.c.b16 %v518, %v512
  %v621 = vpack.c.b16 %v519, %v513
  %v622 = vpack.c.b16 %v520, %v514
  %v623 = vpack.c.b16 %v527, %v521
  %v624 = vpack.c.b16 %v528, %v522
  %v625 = vpack.c.b16 %v529, %v523
  %v626 = vpack.c.b16 %v530, %v524
  %v627 = vpack.c.b16 %v531, %v525
  %v628 = vpack.c.b16 %v532, %v526
  %v629 = vpack.c.b16 %v539, %v533
  %v630 = vpack.c.b16 %v540, %v534
  %v631 = vpack.c.b16 %v541, %v535
  %v632 = vpack.c.b16 %v542, %v536
  %v633 = vpack.c.b16 %v543, %v537
  %v634 = vpack.c.b16 %v544, %v538
  %v635 = vpack.c.b16 %v551, %v545
  %v636 = vpack.c.b16 %v552, %v546
  %v637 = vpack.c.b16 %v553, %v547
  %v638 = vpack.c.b16 %v554, %v548
  %v639 = vpack.c.b16 %v555, %v549
  %v640 = vpack.c.b16 %v556, %v550
  %v641 = vpack.c.b16 %v563, %v557
  %v642 = vpack.c.b16 %v564, %v558
  %v643 = vpack.c.b16 %v565, %v559
  %v644 = vpack.c.b16 %v566, %v560
  %v645 = vpack.c.b16 %v567, %v561
  %v646 = vpack.c.b16 %v568, %v562
  %v647 = vpack.c.b16 %v575, %v569
  %v648 = vpack.c.b16 %v576, %v570
  %v649 = vpack.c.b16 %v577, %v571
  %v650 = vpack.c.b16 %v578, %v572
  %v651 = vpack.c.b16 %v579, %v573
  %v652 = vpack.c.b16 %v580, %v574
  %v653 = vpack.c.b16 %v587, %v581
  %v654 = vpack.c.b16 %v588, %v582
  %v655 = vpack.c.b16 %v589, %v583
  %v656 = vpack.c.b16 %v590, %v584
  %v657 = vpack.c.b16 %v591, %v585
  %v658 = vpack.c.b16 %v592, %v586
  %v659 = vpack.c.b16 %v599, %v593
  %v660 = vpack.c.b16 %v600, %v594
  %v661 = vpack.c.b16 %v601, %v595
  %v662 = vpack.c.b16 %v602, %v596
  %v663 = vpack.c.b16 %v603, %v597
  %v664 = vpack.c.b16 %v604, %v598
  %v665 = vpack.c.b16 %v605, %v605
  %v666 = vpack.c.b16 %v606, %v606
  %v667 = vpack.c.b16 %v607, %v607
  %v668 = vpack.c.b16 %v608, %v608
  %v669 = vpack.c.b16 %v609, %v609
  %v670 = vpack.c.b16 %v610, %v610
  %v1061 = vunpack.c.l.b16 %v43
  %v1062 = vunpack.c.h.b16 %v43
  %v1063 = vunpack.c.l.b16 %v44
  %v1064 = vunpack.c.h.b16 %v44
  %v1065 = vunpack.c.l.b16 %v45
  %v1066 = vunpack.c.h.b16 %v45
  %v1067 = vunpack.c.l.b16 %v46
  %v1068 = vunpack.c.l.b16 %v47
  %v1069 = vunpack.c.h.b16 %v47
  %v1070 = vunpack.c.l.b16 %v48
  %v1071 = vunpack.c.h.b16 %v48
  %v1072 = vunpack.c.l.b16 %v49
  %v1073 = vunpack.c.h.b16 %v49
  %v1074 = vunpack.c.l.b16 %v50
  %v1075 = vunpack.c.l.b16 %v51
  %v1076 = vunpack.c.h.b16 %v51
  %v1077 = vunpack.c.l.b16 %v52
  %v1078 = vunpack.c.h.b16 %v52
  %v1079 = vunpack.c.l.b16 %v53
  %v1080 = vunpack.c.h.b16 %v53
  %v1081 = vunpack.c.l.b16 %v54
  %v1082 = vunpack.c.l.b16 %v55
  %v1083 = vunpack.c.h.b16 %v55
  %v1084 = vunpack.c.l.b16 %v56
  %v1085 = vunpack.c.h.b16 %v56
  %v1086 = vunpack.c.l.b16 %v57
  %v1087 = vunpack.c.h.b16 %v57
  %v1088 = vunpack.c.l.b16 %v58
  %v1089 = vunpack.c.l.b16 %v59
  %v1090 = vunpack.c.h.b16 %v59
  %v1091 = vunpack.c.l.b16 %v60
  %v1092 = vunpack.c.h.b16 %v60
  %v1093 = vunpack.c.l.b16 %v61
  %v1094 = vunpack.c.h.b16 %v61
  %v1095 = vunpack.c.l.b16 %v62
  %v1096 = vunpack.c.l.b16 %v63
  %v1097 = vunpack.c.h.b16 %v63
  %v1098 = vunpack.c.l.b16 %v64
  %v1099 = vunpack.c.h.b16 %v64
  %v1100 = vunpack.c.l.b16 %v65
  %v1101 = vunpack.c.h.b16 %v65
  %v1102 = vunpack.c.l.b16 %v66
  %v1103 = vunpack.c.l.b16 %v67
  %v1104 = vunpack.c.h.b16 %v67
  %v1105 = vunpack.c.l.b16 %v68
  %v1106 = vunpack.c.h.b16 %v68
  %v1107 = vunpack.c.l.b16 %v69
  %v1108 = vunpack.c.h.b16 %v69
  %v1109 = vunpack.c.l.b16 %v70
  %v1110 = vunpack.c.l.b16 %v71
  %v1111 = vunpack.c.h.b16 %v71
  %v1112 = vunpack.c.l.b16 %v72
  %v1113 = vunpack.c.h.b16 %v72
  %v1114 = vunpack.c.l.b16 %v73
  %v1115 = vunpack.c.h.b16 %v73
  %v1116 = vunpack.c.l.b16 %v74
  %v1117 = vunpack.c.l.b16 %v75
  %v1118 = vunpack.c.h.b16 %v75
  %v1119 = vunpack.c.l.b16 %v76
  %v1120 = vunpack.c.h.b16 %v76
  %v1121 = vunpack.c.l.b16 %v77
  %v1122 = vunpack.c.h.b16 %v77
  %v1123 = vunpack.c.l.b16 %v78
  %v1124 = vunpack.c.l.b16 %v79
  %v1125 = vunpack.c.h.b16 %v79
  %v1126 = vunpack.c.l.b16 %v80
  %v1127 = vunpack.c.h.b16 %v80
  %v1128 = vunpack.c.l.b16 %v81
  %v1129 = vunpack.c.h.b16 %v81
  %v1130 = vunpack.c.l.b16 %v82
  %v1131 = vunpack.c.l.b16 %v83
  %v1132 = vunpack.c.h.b16 %v83
  %v1133 = vunpack.c.l.b16 %v84
  %v1134 = vunpack.c.h.b16 %v84
  %v1135 = vunpack.c.l.b16 %v85
  %v1136 = vunpack.c.h.b16 %v85
  %v1137 = vunpack.c.l.b16 %v86
  %v1138 = vunpack.c.l.b16 %v87
  %v1139 = vunpack.c.h.b16 %v87
  %v1140 = vunpack.c.l.b16 %v88
  %v1141 = vunpack.c.h.b16 %v88
  %v1142 = vunpack.c.l.b16 %v89
  %v1143 = vunpack.c.h.b16 %v89
  %v1144 = vunpack.c.l.b16 %v90
  %v1145 = vunpack.c.l.b16 %v91
  %v1146 = vunpack.c.h.b16 %v91
  %v1147 = vunpack.c.l.b16 %v92
  %v1148 = vunpack.c.h.b16 %v92
  %v1149 = vunpack.c.l.b16 %v93
  %v1150 = vunpack.c.h.b16 %v93
  %v1151 = vunpack.c.l.b16 %v94
  %v1152 = vunpack.c.l.b16 %v95
  %v1153 = vunpack.c.h.b16 %v95
  %v1154 = vunpack.c.l.b16 %v96
  %v1155 = vunpack.c.h.b16 %v96
  %v1156 = vunpack.c.l.b16 %v97
  %v1157 = vunpack.c.h.b16 %v97
  %v1158 = vunpack.c.l.b16 %v98
  %v1159 = vunpack.c.l.b16 %v99
  %v1160 = vunpack.c.h.b16 %v99
  %v1161 = vunpack.c.l.b16 %v100
  %v1162 = vunpack.c.h.b16 %v100
  %v1163 = vunpack.c.l.b16 %v101
  %v1164 = vunpack.c.h.b16 %v101
  %v1165 = vunpack.c.l.b16 %v102
  %v1166 = vunpack.c.l.b16 %v103
  %v1167 = vunpack.c.h.b16 %v103
  %v1168 = vunpack.c.l.b16 %v104
  %v1169 = vunpack.c.h.b16 %v104
  %v1170 = vunpack.c.l.b16 %v105
  %v1171 = vunpack.c.h.b16 %v105
  %v1172 = vunpack.c.l.b16 %v106
  %v1173 = vunpack.c.l.b16 %v107
  %v1174 = vunpack.c.h.b16 %v107
  %v1175 = vunpack.c.l.b16 %v108
  %v1176 = vunpack.c.h.b16 %v108
  %v1177 = vunpack.c.l.b16 %v109
  %v1178 = vunpack.c.h.b16 %v109
  %v1179 = vunpack.c.l.b16 %v110
  %v1180 = vunpack.c.l.b16 %v111
  %v1181 = vunpack.c.h.b16 %v111
  %v1182 = vunpack.c.l.b16 %v112
  %v1183 = vunpack.c.h.b16 %v112
  %v1184 = vunpack.c.l.b16 %v113
  %v1185 = vunpack.c.h.b16 %v113
  %v1186 = vunpack.c.l.b16 %v114
  %v1187 = vunpack.c.l.b16 %v115
  %v1188 = vunpack.c.h.b16 %v115
  %v1189 = vunpack.c.l.b16 %v116
  %v1190 = vunpack.c.h.b16 %v116
  %v1191 = vunpack.c.l.b16 %v117
  %v1192 = vunpack.c.h.b16 %v117
  %v1193 = vunpack.c.l.b16 %v118
  %v1194 = vunpack.c.l.b16 %v119
  %v1195 = vunpack.c.h.b16 %v119
  %v1196 = vunpack.c.l.b16 %v120
  %v1197 = vunpack.c.h.b16 %v120
  %v1198 = vunpack.c.l.b16 %v121
  %v1199 = vunpack.c.h.b16 %v121
  %v1200 = vunpack.c.l.b16 %v122
  %v1201 = vunpack.c.l.b16 %v123
  %v1202 = vunpack.c.h.b16 %v123
  %v1203 = vunpack.c.l.b16 %v124
  %v1204 = vunpack.c.h.b16 %v124
  %v1205 = vunpack.c.l.b16 %v125
  %v1206 = vunpack.c.h.b16 %v125
  %v1207 = vunpack.c.l.b16 %v126
  %v1208 = vunpack.c.l.b16 %v127
  %v1209 = vunpack.c.h.b16 %v127
  %v1210 = vunpack.c.l.b16 %v128
  %v1211 = vunpack.c.h.b16 %v128
  %v1212 = vunpack.c.l.b16 %v129
  %v1213 = vunpack.c.h.b16 %v129
  %v1214 = vunpack.c.l.b16 %v130
  %v1215 = vunpack.c.l.b16 %v131
  %v1216 = vunpack.c.h.b16 %v131
  %v1217 = vunpack.c.l.b16 %v132
  %v1218 = vunpack.c.h.b16 %v132
  %v1219 = vunpack.c.l.b16 %v133
  %v1220 = vunpack.c.h.b16 %v133
  %v1221 = vunpack.c.l.b16 %v134
  %v1222 = vunpack.c.l.b16 %v135
  %v1223 = vunpack.c.h.b16 %v135
  %v1224 = vunpack.c.l.b16 %v136
  %v1225 = vunpack.c.h.b16 %v136
  %v1226 = vunpack.c.l.b16 %v137
  %v1227 = vunpack.c.h.b16 %v137
  %v1228 = vunpack.c.l.b16 %v138
  %v1229 = vunpack.c.l.b16 %v139
  %v1230 = vunpack.c.h.b16 %v139
  %v1231 = vunpack.c.l.b16 %v140
  %v1232 = vunpack.c.h.b16 %v140
  %v1233 = vunpack.c.l.b16 %v141
  %v1234 = vunpack.c.h.b16 %v141
  %v1235 = vunpack.c.l.b16 %v142
  %v1236 = vunpack.c.l.b16 %v143
  %v1237 = vunpack.c.h.b16 %v143
  %v1238 = vunpack.c.l.b16 %v144
  %v1239 = vunpack.c.h.b16 %v144
  %v1240 = vunpack.c.l.b16 %v145
  %v1241 = vunpack.c.h.b16 %v145
  %v1242 = vunpack.c.l.b16 %v146
  %v1243 = vunpack.c.l.b16 %v147
  %v1244 = vunpack.c.h.b16 %v147
  %v1245 = vunpack.c.l.b16 %v148
  %v1246 = vunpack.c.h.b16 %v148
  %v1247 = vunpack.c.l.b16 %v149
  %v1248 = vunpack.c.h.b16 %v149
  %v1249 = vunpack.c.l.b16 %v150
  %v1250 = vunpack.c.l.b16 %v151
  %v1251 = vunpack.c.h.b16 %v151
  %v1252 = vunpack.c.l.b16 %v152
  %v1253 = vunpack.c.h.b16 %v152
  %v1254 = vunpack.c.l.b16 %v153
  %v1255 = vunpack.c.h.b16 %v153
  %v1256 = vunpack.c.l.b16 %v154
  %v1257 = vunpack.c.l.b16 %v155
  %v1258 = vunpack.c.h.b16 %v155
  %v1259 = vunpack.c.l.b16 %v156
  %v1260 = vunpack.c.h.b16 %v156
  %v1261 = vunpack.c.l.b16 %v157
  %v1262 = vunpack.c.h.b16 %v157
  %v1263 = vunpack.c.l.b16 %v158
  %v1264 = vunpack.c.l.b16 %v159
  %v1265 = vunpack.c.h.b16 %v159
  %v1266 = vunpack.c.l.b16 %v160
  %v1267 = vunpack.c.h.b16 %v160
  %v1268 = vunpack.c.l.b16 %v161
  %v1269 = vunpack.c.h.b16 %v161
  %v1270 = vunpack.c.l.b16 %v162
  %v1271 = vunpack.c.l.b16 %v163
  %v1272 = vunpack.c.h.b16 %v163
  %v1273 = vunpack.c.l.b16 %v164
  %v1274 = vunpack.c.h.b16 %v164
  %v1275 = vunpack.c.l.b16 %v165
  %v1276 = vunpack.c.h.b16 %v165
  %v1277 = vunpack.c.l.b16 %v166
  %v1278 = vunpack.c.l.b16 %v167
  %v1279 = vunpack.c.h.b16 %v167
  %v1280 = vunpack.c.l.b16 %v168
  %v1281 = vunpack.c.h.b16 %v168
  %v1282 = vunpack.c.l.b16 %v169
  %v1283 = vunpack.c.h.b16 %v169
  %v1284 = vunpack.c.l.b16 %v170
  %v1285 = vunpack.c.l.b16 %v171
  %v1286 = vunpack.c.h.b16 %v171
  %v1287 = vunpack.c.l.b16 %v172
  %v1288 = vunpack.c.h.b16 %v172
  %v1289 = vunpack.c.l.b16 %v173
  %v1290 = vunpack.c.h.b16 %v173
  %v1291 = vunpack.c.l.b16 %v174
  %v1292 = vunpack.c.l.b16 %v175
  %v1293 = vunpack.c.h.b16 %v175
  %v1294 = vunpack.c.l.b16 %v176
  %v1295 = vunpack.c.h.b16 %v176
  %v1296 = vunpack.c.l.b16 %v177
  %v1297 = vunpack.c.h.b16 %v177
  %v1298 = vunpack.c.l.b16 %v178
  %v1299 = vunpack.c.l.b16 %v179
  %v1300 = vunpack.c.h.b16 %v179
  %v1301 = vunpack.c.l.b16 %v180
  %v1302 = vunpack.c.h.b16 %v180
  %v1303 = vunpack.c.l.b16 %v181
  %v1304 = vunpack.c.h.b16 %v181
  %v1305 = vunpack.c.l.b16 %v182
  %v1306 = vunpack.c.l.b16 %v183
  %v1307 = vunpack.c.h.b16 %v183
  %v1308 = vunpack.c.l.b16 %v184
  %v1309 = vunpack.c.h.b16 %v184
  %v1310 = vunpack.c.l.b16 %v185
  %v1311 = vunpack.c.h.b16 %v185
  %v1312 = vunpack.c.l.b16 %v186
  %v1313 = vunpack.c.l.b16 %v187
  %v1314 = vunpack.c.h.b16 %v187
  %v1315 = vunpack.c.l.b16 %v188
  %v1316 = vunpack.c.h.b16 %v188
  %v1317 = vunpack.c.l.b16 %v189
  %v1318 = vunpack.c.h.b16 %v189
  %v1319 = vunpack.c.l.b16 %v190
  %v1320 = vunpack.c.l.b16 %v191
  %v1321 = vunpack.c.h.b16 %v191
  %v1322 = vunpack.c.l.b16 %v192
  %v1323 = vunpack.c.h.b16 %v192
  %v1324 = vunpack.c.l.b16 %v193
  %v1325 = vunpack.c.h.b16 %v193
  %v1326 = vunpack.c.l.b16 %v194
  %v1327 = vunpack.c.l.b16 %v195
  %v1328 = vunpack.c.h.b16 %v195
  %v1329 = vunpack.c.l.b16 %v196
  %v1330 = vunpack.c.h.b16 %v196
  %v1331 = vunpack.c.l.b16 %v197
  %v1332 = vunpack.c.h.b16 %v197
  %v1333 = vunpack.c.l.b16 %v198
  %v1334 = vunpack.c.l.b16 %v199
  %v1335 = vunpack.c.h.b16 %v199
  %v1336 = vunpack.c.l.b16 %v200
  %v1337 = vunpack.c.h.b16 %v200
  %v1338 = vunpack.c.l.b16 %v201
  %v1339 = vunpack.c.h.b16 %v201
  %v1340 = vunpack.c.l.b16 %v202
  %v1341 = vunpack.c.l.b16 %v203
  %v1342 = vunpack.c.h.b16 %v203
  %v1343 = vunpack.c.l.b16 %v204
  %v1344 = vunpack.c.h.b16 %v204
  %v1345 = vunpack.c.l.b16 %v205
  %v1346 = vunpack.c.h.b16 %v205
  %v1347 = vunpack.c.l.b16 %v206
  %v1348 = vunpack.c.l.b16 %v207
  %v1349 = vunpack.c.h.b16 %v207
  %v1350 = vunpack.c.l.b16 %v208
  %v1351 = vunpack.c.h.b16 %v208
  %v1352 = vunpack.c.l.b16 %v209
  %v1353 = vunpack.c.h.b16 %v209
  %v1354 = vunpack.c.l.b16 %v210
  %v1355 = vunpack.c.l.b16 %v211
  %v1356 = vunpack.c.h.b16 %v211
  %v1357 = vunpack.c.l.b16 %v212
  %v1358 = vunpack.c.h.b16 %v212
  %v1359 = vunpack.c.l.b16 %v213
  %v1360 = vunpack.c.h.b16 %v213
  %v1361 = vunpack.c.l.b16 %v214
  %v1362 = vunpack.c.l.b16 %v215
  %v1363 = vunpack.c.h.b16 %v215
  %v1364 = vunpack.c.l.b16 %v216
  %v1365 = vunpack.c.h.b16 %v216
  %v1366 = vunpack.c.l.b16 %v217
  %v1367 = vunpack.c.h.b16 %v217
  %v1368 = vunpack.c.l.b16 %v218
  %v1369 = vunpack.c.l.b16 %v219
  %v1370 = vunpack.c.h.b16 %v219
  %v1371 = vunpack.c.l.b16 %v220
  %v1372 = vunpack.c.h.b16 %v220
  %v1373 = vunpack.c.l.b16 %v221
  %v1374 = vunpack.c.h.b16 %v221
  %v1375 = vunpack.c.l.b16 %v222
  %v1376 = vunpack.c.l.b16 %v223
  %v1377 = vunpack.c.h.b16 %v223
  %v1378 = vunpack.c.l.b16 %v224
  %v1379 = vunpack.c.h.b16 %v224
  %v1380 = vunpack.c.l.b16 %v225
  %v1381 = vunpack.c.h.b16 %v225
  %v1382 = vunpack.c.l.b16 %v226
  %v1383 = vunpack.c.l.b16 %v227
  %v1384 = vunpack.c.h.b16 %v227
  %v1385 = vunpack.c.l.b16 %v228
  %v1386 = vunpack.c.h.b16 %v228
  %v1387 = vunpack.c.l.b16 %v229
  %v1388 = vunpack.c.h.b16 %v229
  %v1389 = vunpack.c.l.b16 %v230
  %v1390 = vunpack.c.l.b16 %v231
  %v1391 = vunpack.c.h.b16 %v231
  %v1392 = vunpack.c.l.b16 %v232
  %v1393 = vunpack.c.h.b16 %v232
  %v1394 = vunpack.c.l.b16 %v233
  %v1395 = vunpack.c.h.b16 %v233
  %v1396 = vunpack.c.l.b16 %v234
  %v1397 = vunpack.c.l.b16 %v235
  %v1398 = vunpack.c.h.b16 %v235
  %v1399 = vunpack.c.l.b16 %v236
  %v1400 = vunpack.c.h.b16 %v236
  %v1401 = vunpack.c.l.b16 %v237
  %v1402 = vunpack.c.h.b16 %v237
  %v1403 = vunpack.c.l.b16 %v238
  %v1404 = vunpack.c.l.b16 %v239
  %v1405 = vunpack.c.h.b16 %v239
  %v1406 = vunpack.c.l.b16 %v240
  %v1407 = vunpack.c.h.b16 %v240
  %v1408 = vunpack.c.l.b16 %v241
  %v1409 = vunpack.c.h.b16 %v241
  %v1410 = vunpack.c.l.b16 %v242
  %v1411 = vunpack.c.l.b16 %v243
  %v1412 = vunpack.c.h.b16 %v243
  %v1413 = vunpack.c.l.b16 %v244
  %v1414 = vunpack.c.h.b16 %v244
  %v1415 = vunpack.c.l.b16 %v245
  %v1416 = vunpack.c.h.b16 %v245
  %v1417 = vunpack.c.l.b16 %v246
  %v1418 = vunpack.c.l.b16 %v247
  %v1419 = vunpack.c.h.b16 %v247
  %v1420 = vunpack.c.l.b16 %v248
  %v1421 = vunpack.c.h.b16 %v248
  %v1422 = vunpack.c.l.b16 %v249
  %v1423 = vunpack.c.h.b16 %v249
  %v1424 = vunpack.c.l.b16 %v250
  %v1425 = vunpack.c.l.b16 %v251
  %v1426 = vunpack.c.h.b16 %v251
  %v1427 = vunpack.c.l.b16 %v252
  %v1428 = vunpack.c.h.b16 %v252
  %v1429 = vunpack.c.l.b16 %v253
  %v1430 = vunpack.c.h.b16 %v253
  %v1431 = vunpack.c.l.b16 %v254
  %v1432 = vunpack.c.l.b16 %v255
  %v1433 = vunpack.c.h.b16 %v255
  %v1434 = vunpack.c.l.b16 %v256
  %v1435 = vunpack.c.h.b16 %v256
  %v1436 = vunpack.c.l.b16 %v257
  %v1437 = vunpack.c.h.b16 %v257
  %v1438 = vunpack.c.l.b16 %v258
  %v1439 = vunpack.c.l.b16 %v259
  %v1440 = vunpack.c.h.b16 %v259
  %v1441 = vunpack.c.l.b16 %v260
  %v1442 = vunpack.c.h.b16 %v260
  %v1443 = vunpack.c.l.b16 %v261
  %v1444 = vunpack.c.h.b16 %v261
  %v1445 = vunpack.c.l.b16 %v262
  %v1446 = vunpack.c.l.b16 %v263
  %v1447 = vunpack.c.h.b16 %v263
  %v1448 = vunpack.c.l.b16 %v264
  %v1449 = vunpack.c.h.b16 %v264
  %v1450 = vunpack.c.l.b16 %v265
  %v1451 = vunpack.c.h.b16 %v265
  %v1452 = vunpack.c.l.b16 %v266
  %v1453 = vunpack.c.l.b16 %v267
  %v1454 = vunpack.c.h.b16 %v267
  %v1455 = vunpack.c.l.b16 %v268
  %v1456 = vunpack.c.h.b16 %v268
  %v1457 = vunpack.c.l.b16 %v269
  %v1458 = vunpack.c.h.b16 %v269
  %v1459 = vunpack.c.l.b16 %v270
  %v1460 = vunpack.c.l.b16 %v271
  %v1461 = vunpack.c.h.b16 %v271
  %v1462 = vunpack.c.l.b16 %v272
  %v1463 = vunpack.c.h.b16 %v272
  %v1464 = vunpack.c.l.b16 %v273
  %v1465 = vunpack.c.h.b16 %v273
  %v1466 = vunpack.c.l.b16 %v274
  %v1467 = vunpack.c.l.b16 %v275
  %v1468 = vunpack.c.h.b16 %v275
  %v1469 = vunpack.c.l.b16 %v276
  %v1470 = vunpack.c.h.b16 %v276
  %v1471 = vunpack.c.l.b16 %v277
  %v1472 = vunpack.c.h.b16 %v277
  %v1473 = vunpack.c.l.b16 %v278
  %v1474 = vunpack.c.l.b16 %v279
  %v1475 = vunpack.c.h.b16 %v279
  %v1476 = vunpack.c.l.b16 %v280
  %v1477 = vunpack.c.h.b16 %v280
  %v1478 = vunpack.c.l.b16 %v281
  %v1479 = vunpack.c.h.b16 %v281
  %v1480 = vunpack.c.l.b16 %v282
  %v1481 = vunpack.c.l.b16 %v283
  %v1482 = vunpack.c.h.b16 %v283
  %v1483 = vunpack.c.l.b16 %v284
  %v1484 = vunpack.c.h.b16 %v284
  %v1485 = vunpack.c.l.b16 %v285
  %v1486 = vunpack.c.h.b16 %v285
  %v1487 = vunpack.c.l.b16 %v286
  %v1488 = vunpack.c.l.b16 %v287
  %v1489 = vunpack.c.h.b16 %v287
  %v1490 = vunpack.c.l.b16 %v288
  %v1491 = vunpack.c.h.b16 %v288
  %v1492 = vunpack.c.l.b16 %v289
  %v1493 = vunpack.c.h.b16 %v289
  %v1494 = vunpack.c.l.b16 %v290
  %v1495 = vunpack.c.l.b16 %v291
  %v1496 = vunpack.c.h.b16 %v291
  %v1497 = vunpack.c.l.b16 %v292
  %v1498 = vunpack.c.h.b16 %v292
  %v1499 = vunpack.c.l.b16 %v293
  %v1500 = vunpack.c.h.b16 %v293
  %v1501 = vunpack.c.l.b16 %v294
  %v1502 = vunpack.c.l.b16 %v295
  %v1503 = vunpack.c.h.b16 %v295
  %v1504 = vunpack.c.l.b16 %v296
  %v1505 = vunpack.c.h.b16 %v296
  %v1506 = vunpack.c.l.b16 %v297
  %v1507 = vunpack.c.h.b16 %v297
  %v1508 = vunpack.c.l.b16 %v298
  %v1509 = vunpack.c.l.b16 %v299
  %v1510 = vunpack.c.h.b16 %v299
  %v1511 = vunpack.c.l.b16 %v300
  %v1512 = vunpack.c.h.b16 %v300
  %v1513 = vunpack.c.l.b16 %v301
  %v1514 = vunpack.c.h.b16 %v301
  %v1515 = vunpack.c.l.b16 %v302
  %v1516 = vunpack.c.l.b16 %v303
  %v1517 = vunpack.c.h.b16 %v303
  %v1518 = vunpack.c.l.b16 %v304
  %v1519 = vunpack.c.h.b16 %v304
  %v1520 = vunpack.c.l.b16 %v305
  %v1521 = vunpack.c.h.b16 %v305
  %v1522 = vunpack.c.l.b16 %v306
  %v1523 = vunpack.c.l.b16 %v307
  %v1524 = vunpack.c.h.b16 %v307
  %v1525 = vunpack.c.l.b16 %v308
  %v1526 = vunpack.c.h.b16 %v308
  %v1527 = vunpack.c.l.b16 %v309
  %v1528 = vunpack.c.h.b16 %v309
  %v1529 = vunpack.c.l.b16 %v310
  %v1530 = vunpack.c.l.b16 %v311
  %v1531 = vunpack.c.h.b16 %v311
  %v1532 = vunpack.c.l.b16 %v312
  %v1533 = vunpack.c.h.b16 %v312
  %v1534 = vunpack.c.l.b16 %v313
  %v1535 = vunpack.c.h.b16 %v313
  %v1536 = vunpack.c.l.b16 %v314
  %v1537 = vunpack.c.l.b16 %v315
  %v1538 = vunpack.c.h.b16 %v315
  %v1539 = vunpack.c.l.b16 %v316
  %v1540 = vunpack.c.h.b16 %v316
  %v1541 = vunpack.c.l.b16 %v317
  %v1542 = vunpack.c.h.b16 %v317
  %v1543 = vunpack.c.l.b16 %v318
  %v1544 = vunpack.c.l.b16 %v319
  %v1545 = vunpack.c.h.b16 %v319
  %v1546 = vunpack.c.l.b16 %v320
  %v1547 = vunpack.c.h.b16 %v320
  %v1548 = vunpack.c.l.b16 %v321
  %v1549 = vunpack.c.h.b16 %v321
  %v1550 = vunpack.c.l.b16 %v322
  %v1551 = vunpack.c.l.b16 %v323
  %v1552 = vunpack.c.h.b16 %v323
  %v1553 = vunpack.c.l.b16 %v324
  %v1554 = vunpack.c.h.b16 %v324
  %v1555 = vunpack.c.l.b16 %v325
  %v1556 = vunpack.c.h.b16 %v325
  %v1557 = vunpack.c.l.b16 %v326
  %v1558 = vunpack.c.l.b16 %v327
  %v1559 = vunpack.c.h.b16 %v327
  %v1560 = vunpack.c.l.b16 %v328
  %v1561 = vunpack.c.h.b16 %v328
  %v1562 = vunpack.c.l.b16 %v329
  %v1563 = vunpack.c.h.b16 %v329
  %v1564 = vunpack.c.l.b16 %v330
  %v1565 = vunpack.c.l.b16 %v331
  %v1566 = vunpack.c.h.b16 %v331
  %v1567 = vunpack.c.l.b16 %v332
  %v1568 = vunpack.c.h.b16 %v332
  %v1569 = vunpack.c.l.b16 %v333
  %v1570 = vunpack.c.h.b16 %v333
  %v1571 = vunpack.c.l.b16 %v334
  %v1572 = vunpack.c.l.b16 %v335
  %v1573 = vunpack.c.h.b16 %v335
  %v1574 = vunpack.c.l.b16 %v336
  %v1575 = vunpack.c.h.b16 %v336
  %v1576 = vunpack.c.l.b16 %v337
  %v1577 = vunpack.c.h.b16 %v337
  %v1578 = vunpack.c.l.b16 %v338
  %v1579 = vunpack.c.l.b16 %v339
  %v1580 = vunpack.c.h.b16 %v339
  %v1581 = vunpack.c.l.b16 %v340
  %v1582 = vunpack.c.h.b16 %v340
  %v1583 = vunpack.c.l.b16 %v341
  %v1584 = vunpack.c.h.b16 %v341
  %v1585 = vunpack.c.l.b16 %v342
  %v1586 = vunpack.c.l.b16 %v343
  %v1587 = vunpack.c.h.b16 %v343
  %v1588 = vunpack.c.l.b16 %v344
  %v1589 = vunpack.c.h.b16 %v344
  %v1590 = vunpack.c.l.b16 %v345
  %v1591 = vunpack.c.h.b16 %v345
  %v1592 = vunpack.c.l.b16 %v346
  %v1593 = vunpack.c.l.b16 %v347
  %v1594 = vunpack.c.h.b16 %v347
  %v1595 = vunpack.c.l.b16 %v348
  %v1596 = vunpack.c.h.b16 %v348
  %v1597 = vunpack.c.l.b16 %v349
  %v1598 = vunpack.c.h.b16 %v349
  %v1599 = vunpack.c.l.b16 %v350
  %v1600 = vunpack.c.l.b16 %v351
  %v1601 = vunpack.c.h.b16 %v351
  %v1602 = vunpack.c.l.b16 %v352
  %v1603 = vunpack.c.h.b16 %v352
  %v1604 = vunpack.c.l.b16 %v353
  %v1605 = vunpack.c.h.b16 %v353
  %v1606 = vunpack.c.l.b16 %v354
  %v1607 = vunpack.c.l.b16 %v355
  %v1608 = vunpack.c.h.b16 %v355
  %v1609 = vunpack.c.l.b16 %v356
  %v1610 = vunpack.c.h.b16 %v356
  %v1611 = vunpack.c.l.b16 %v357
  %v1612 = vunpack.c.h.b16 %v357
  %v1613 = vunpack.c.l.b16 %v358
  %v1614 = vunpack.c.l.b16 %v359
  %v1615 = vunpack.c.h.b16 %v359
  %v1616 = vunpack.c.l.b16 %v360
  %v1617 = vunpack.c.h.b16 %v360
  %v1618 = vunpack.c.l.b16 %v361
  %v1619 = vunpack.c.h.b16 %v361
  %v1620 = vunpack.c.l.b16 %v362
  %v1621 = vunpack.c.l.b16 %v363
  %v1622 = vunpack.c.h.b16 %v363
  %v1623 = vunpack.c.l.b16 %v364
  %v1624 = vunpack.c.h.b16 %v364
  %v1625 = vunpack.c.l.b16 %v365
  %v1626 = vunpack.c.h.b16 %v365
  %v1627 = vunpack.c.l.b16 %v366
  %v1628 = vunpack.c.l.b16 %v367
  %v1629 = vunpack.c.h.b16 %v367
  %v1630 = vunpack.c.l.b16 %v368
  %v1631 = vunpack.c.h.b16 %v368
  %v1632 = vunpack.c.l.b16 %v369
  %v1633 = vunpack.c.h.b16 %v369
  %v1634 = vunpack.c.l.b16 %v370
  %v1635 = vunpack.c.l.b16 %v371
  %v1636 = vunpack.c.h.b16 %v371
  %v1637 = vunpack.c.l.b16 %v372
  %v1638 = vunpack.c.h.b16 %v372
  %v1639 = vunpack.c.l.b16 %v373
  %v1640 = vunpack.c.h.b16 %v373
  %v1641 = vunpack.c.l.b16 %v374
  %v1642 = vunpack.c.l.b16 %v375
  %v1643 = vunpack.c.h.b16 %v375
  %v1644 = vunpack.c.l.b16 %v376
  %v1645 = vunpack.c.h.b16 %v376
  %v1646 = vunpack.c.l.b16 %v377
  %v1647 = vunpack.c.h.b16 %v377
  %v1648 = vunpack.c.l.b16 %v378
  %v1649 = vunpack.c.l.b16 %v379
  %v1650 = vunpack.c.h.b16 %v379
  %v1651 = vunpack.c.l.b16 %v380
  %v1652 = vunpack.c.h.b16 %v380
  %v1653 = vunpack.c.l.b16 %v381
  %v1654 = vunpack.c.h.b16 %v381
  %v1655 = vunpack.c.l.b16 %v382
  %v1656 = vpack.c.b16 %v1068, %v1061
  %v1657 = vpack.c.b16 %v1069, %v1062
  %v1658 = vpack.c.b16 %v1070, %v1063
  %v1659 = vpack.c.b16 %v1071, %v1064
  %v1660 = vpack.c.b16 %v1072, %v1065
  %v1661 = vpack.c.b16 %v1073, %v1066
  %v1662 = vpack.c.b16 %v1074, %v1067
  %v1663 = vpack.c.b16 %v1082, %v1075
  %v1664 = vpack.c.b16 %v1083, %v1076
  %v1665 = vpack.c.b16 %v1084, %v1077
  %v1666 = vpack.c.b16 %v1085, %v1078
  %v1667 = vpack.c.b16 %v1086, %v1079
  %v1668 = vpack.c.b16 %v1087, %v1080
  %v1669 = vpack.c.b16 %v1088, %v1081
  %v1670 = vpack.c.b16 %v1096, %v1089
  %v1671 = vpack.c.b16 %v1097, %v1090
  %v1672 = vpack.c.b16 %v1098, %v1091
  %v1673 = vpack.c.b16 %v1099, %v1092
  %v1674 = vpack.c.b16 %v1100, %v1093
  %v1675 = vpack.c.b16 %v1101, %v1094
  %v1676 = vpack.c.b16 %v1102, %v1095
  %v1677 = vpack.c.b16 %v1110, %v1103
  %v1678 = vpack.c.b16 %v1111, %v1104
  %v1679 = vpack.c.b16 %v1112, %v1105
  %v1680 = vpack.c.b16 %v1113, %v1106
  %v1681 = vpack.c.b16 %v1114, %v1107
  %v1682 = vpack.c.b16 %v1115, %v1108
  %v1683 = vpack.c.b16 %v1116, %v1109
  %v1684 = vpack.c.b16 %v1124, %v1117
  %v1685 = vpack.c.b16 %v1125, %v1118
  %v1686 = vpack.c.b16 %v1126, %v1119
  %v1687 = vpack.c.b16 %v1127, %v1120
  %v1688 = vpack.c.b16 %v1128, %v1121
  %v1689 = vpack.c.b16 %v1129, %v1122
  %v1690 = vpack.c.b16 %v1130, %v1123
  %v1691 = vpack.c.b16 %v1138, %v1131
  %v1692 = vpack.c.b16 %v1139, %v1132
  %v1693 = vpack.c.b16 %v1140, %v1133
  %v1694 = vpack.c.b16 %v1141, %v1134
  %v1695 = vpack.c.b16 %v1142, %v1135
  %v1696 = vpack.c.b16 %v1143, %v1136
  %v1697 = vpack.c.b16 %v1144, %v1137
  %v1698 = vpack.c.b16 %v1152, %v1145
  %v1699 = vpack.c.b16 %v1153, %v1146
  %v1700 = vpack.c.b16 %v1154, %v1147
  %v1701 = vpack.c.b16 %v1155, %v1148
  %v1702 = vpack.c.b16 %v1156, %v1149
  %v1703 = vpack.c.b16 %v1157, %v1150
  %v1704 = vpack.c.b16 %v1158, %v1151
  %v1705 = vpack.c.b16 %v1166, %v1159
  %v1706 = vpack.c.b16 %v1167, %v1160
  %v1707 = vpack.c.b16 %v1168, %v1161
  %v1708 = vpack.c.b16 %v1169, %v1162
  %v1709 = vpack.c.b16 %v1170, %v1163
  %v1710 = vpack.c.b16 %v1171, %v1164
  %v1711 = vpack.c.b16 %v1172, %v1165
  %v1712 = vpack.c.b16 %v1180, %v1173
  %v1713 = vpack.c.b16 %v1181, %v1174
  %v1714 = vpack.c.b16 %v1182, %v1175
  %v1715 = vpack.c.b16 %v1183, %v1176
  %v1716 = vpack.c.b16 %v1184, %v1177
  %v1717 = vpack.c.b16 %v1185, %v1178
  %v1718 = vpack.c.b16 %v1186, %v1179
  %v1719 = vpack.c.b16 %v1194, %v1187
  %v1720 = vpack.c.b16 %v1195, %v1188
  %v1721 = vpack.c.b16 %v1196, %v1189
  %v1722 = vpack.c.b16 %v1197, %v1190
  %v1723 = vpack.c.b16 %v1198, %v1191
  %v1724 = vpack.c.b16 %v1199, %v1192
  %v1725 = vpack.c.b16 %v1200, %v1193
  %v1726 = vpack.c.b16 %v1208, %v1201
  %v1727 = vpack.c.b16 %v1209, %v1202
  %v1728 = vpack.c.b16 %v1210, %v1203
  %v1729 = vpack.c.b16 %v1211, %v1204
  %v1730 = vpack.c.b16 %v1212, %v1205
  %v1731 = vpack.c.b16 %v1213, %v1206
  %v1732 = vpack.c.b16 %v1214, %v1207
  %v1733 = vpack.c.b16 %v1222, %v1215
  %v1734 = vpack.c.b16 %v1223, %v1216
  %v1735 = vpack.c.b16 %v1224, %v1217
  %v1736 = vpack.c.b16 %v1225, %v1218
  %v1737 = vpack.c.b16 %v1226, %v1219
  %v1738 = vpack.c.b16 %v1227, %v1220
  %v1739 = vpack.c.b16 %v1228, %v1221
  %v1740 = vpack.c.b16 %v1236, %v1229
  %v1741 = vpack.c.b16 %v1237, %v1230
  %v1742 = vpack.c.b16 %v1238, %v1231
  %v1743 = vpack.c.b16 %v1239, %v1232
  %v1744 = vpack.c.b16 %v1240, %v1233
  %v1745 = vpack.c.b16 %v1241, %v1234
  %v1746 = vpack.c.b16 %v1242, %v1235
  %v1747 = vpack.c.b16 %v1250, %v1243
  %v1748 = vpack.c.b16 %v1251, %v1244
  %v1749 = vpack.c.b16 %v1252, %v1245
  %v1750 = vpack.c.b16 %v1253, %v1246
  %v1751 = vpack.c.b16 %v1254, %v1247
  %v1752 = vpack.c.b16 %v1255, %v1248
  %v1753 = vpack.c.b16 %v1256, %v1249
  %v1754 = vpack.c.b16 %v1264, %v1257
  %v1755 = vpack.c.b16 %v1265, %v1258
  %v1756 = vpack.c.b16 %v1266, %v1259
  %v1757 = vpack.c.b16 %v1267, %v1260
  %v1758 = vpack.c.b16 %v1268, %v1261
  %v1759 = vpack.c.b16 %v1269, %v1262
  %v1760 = vpack.c.b16 %v1270, %v1263
  %v1761 = vpack.c.b16 %v1278, %v1271
  %v1762 = vpack.c.b16 %v1279, %v1272
  %v1763 = vpack.c.b16 %v1280, %v1273
  %v1764 = vpack.c.b16 %v1281, %v1274
  %v1765 = vpack.c.b16 %v1282, %v1275
  %v1766 = vpack.c.b16 %v1283, %v1276
  %v1767 = vpack.c.b16 %v1284, %v1277
  %v1768 = vpack.c.b16 %v1292, %v1285
  %v1769 = vpack.c.b16 %v1293, %v1286
  %v1770 = vpack.c.b16 %v1294, %v1287
  %v1771 = vpack.c.b16 %v1295, %v1288
  %v1772 = vpack.c.b16 %v1296, %v1289
  %v1773 = vpack.c.b16 %v1297, %v1290
  %v1774 = vpack.c.b16 %v1298, %v1291
  %v1775 = vpack.c.b16 %v1306, %v1299
  %v1776 = vpack.c.b16 %v1307, %v1300
  %v1777 = vpack.c.b16 %v1308, %v1301
  %v1778 = vpack.c.b16 %v1309, %v1302
  %v1779 = vpack.c.b16 %v1310, %v1303
  %v1780 = vpack.c.b16 %v1311, %v1304
  %v1781 = vpack.c.b16 %v1312, %v1305
  %v1782 = vpack.c.b16 %v1320, %v1313
  %v1783 = vpack.c.b16 %v1321, %v1314
  %v1784 = vpack.c.b16 %v1322, %v1315
  %v1785 = vpack.c.b16 %v1323, %v1316
  %v1786 = vpack.c.b16 %v1324, %v1317
  %v1787 = vpack.c.b16 %v1325, %v1318
  %v1788 = vpack.c.b16 %v1326, %v1319
  %v1789 = vpack.c.b16 %v1334, %v1327
  %v1790 = vpack.c.b16 %v1335, %v1328
  %v1791 = vpack.c.b16 %v1336, %v1329
  %v1792 = vpack.c.b16 %v1337, %v1330
  %v1793 = vpack.c.b16 %v1338, %v1331
  %v1794 = vpack.c.b16 %v1339, %v1332
  %v1795 = vpack.c.b16 %v1340, %v1333
  %v1796 = vpack.c.b16 %v1348, %v1341
  %v1797 = vpack.c.b16 %v1349, %v1342
  %v1798 = vpack.c.b16 %v1350, %v1343
  %v1799 = vpack.c.b16 %v1351, %v1344
  %v1800 = vpack.c.b16 %v1352, %v1345
  %v1801 = vpack.c.b16 %v1353, %v1346
  %v1802 = vpack.c.b16 %v1354, %v1347
  %v1803 = vpack.c.b16 %v1362, %v1355
  %v1804 = vpack.c.b16 %v1363, %v1356
  %v1805 = vpack.c.b16 %v1364, %v1357
  %v1806 = vpack.c.b16 %v1365, %v1358
  %v1807 = vpack.c.b16 %v1366, %v1359
  %v1808 = vpack.c.b16 %v1367, %v1360
  %v1809 = vpack.c.b16 %v1368, %v1361
  %v1810 = vpack.c.b16 %v1376, %v1369
  %v1811 = vpack.c.b16 %v1377, %v1370
  %v1812 = vpack.c.b16 %v1378, %v1371
  %v1813 = vpack.c.b16 %v1379, %v1372
  %v1814 = vpack.c.b16 %v1380, %v1373
  %v1815 = vpack.c.b16 %v1381, %v1374
  %v1816 = vpack.c.b16 %v1382, %v1375
  %v1817 = vpack.c.b16 %v1390, %v1383
  %v1818 = vpack.c.b16 %v1391, %v1384
  %v1819 = vpack.c.b16 %v1392, %v1385
  %v1820 = vpack.c.b16 %v1393, %v1386
  %v1821 = vpack.c.b16 %v1394, %v1387
  %v1822 = vpack.c.b16 %v1395, %v1388
  %v1823 = vpack.c.b16 %v1396, %v1389
  %v1824 = vpack.c.b16 %v1404, %v1397
  %v1825 = vpack.c.b16 %v1405, %v1398
  %v1826 = vpack.c.b16 %v1406, %v1399
  %v1827 = vpack.c.b16 %v1407, %v1400
  %v1828 = vpack.c.b16 %v1408, %v1401
  %v1829 = vpack.c.b16 %v1409, %v1402
  %v1830 = vpack.c.b16 %v1410, %v1403
  %v1831 = vpack.c.b16 %v1418, %v1411
  %v1832 = vpack.c.b16 %v1419, %v1412
  %v1833 = vpack.c.b16 %v1420, %v1413
  %v1834 = vpack.c.b16 %v1421, %v1414
  %v1835 = vpack.c.b16 %v1422, %v1415
  %v1836 = vpack.c.b16 %v1423, %v1416
  %v1837 = vpack.c.b16 %v1424, %v1417
  %v1838 = vpack.c.b16 %v1432, %v1425
  %v1839 = vpack.c.b16 %v1433, %v1426
  %v1840 = vpack.c.b16 %v1434, %v1427
  %v1841 = vpack.c.b16 %v1435, %v1428
  %v1842 = vpack.c.b16 %v1436, %v1429
  %v1843 = vpack.c.b16 %v1437, %v1430
  %v1844 = vpack.c.b16 %v1438, %v1431
  %v1845 = vpack.c.b16 %v1446, %v1439
  %v1846 = vpack.c.b16 %v1447, %v1440
  %v1847 = vpack.c.b16 %v1448, %v1441
  %v1848 = vpack.c.b16 %v1449, %v1442
  %v1849 = vpack.c.b16 %v1450, %v1443
  %v1850 = vpack.c.b16 %v1451, %v1444
  %v1851 = vpack.c.b16 %v1452, %v1445
  %v1852 = vpack.c.b16 %v1460, %v1453
  %v1853 = vpack.c.b16 %v1461, %v1454
  %v1854 = vpack.c.b16 %v1462, %v1455
  %v1855 = vpack.c.b16 %v1463, %v1456
  %v1856 = vpack.c.b16 %v1464, %v1457
  %v1857 = vpack.c.b16 %v1465, %v1458
  %v1858 = vpack.c.b16 %v1466, %v1459
  %v1859 = vpack.c.b16 %v1474, %v1467
  %v1860 = vpack.c.b16 %v1475, %v1468
  %v1861 = vpack.c.b16 %v1476, %v1469
  %v1862 = vpack.c.b16 %v1477, %v1470
  %v1863 = vpack.c.b16 %v1478, %v1471
  %v1864 = vpack.c.b16 %v1479, %v1472
  %v1865 = vpack.c.b16 %v1480, %v1473
  %v1866 = vpack.c.b16 %v1488, %v1481
  %v1867 = vpack.c.b16 %v1489, %v1482
  %v1868 = vpack.c.b16 %v1490, %v1483
  %v1869 = vpack.c.b16 %v1491, %v1484
  %v1870 = vpack.c.b16 %v1492, %v1485
  %v1871 = vpack.c.b16 %v1493, %v1486
  %v1872 = vpack.c.b16 %v1494, %v1487
  %v1873 = vpack.c.b16 %v1502, %v1495
  %v1874 = vpack.c.b16 %v1503, %v1496
  %v1875 = vpack.c.b16 %v1504, %v1497
  %v1876 = vpack.c.b16 %v1505, %v1498
  %v1877 = vpack.c.b16 %v1506, %v1499
  %v1878 = vpack.c.b16 %v1507, %v1500
  %v1879 = vpack.c.b16 %v1508, %v1501
  %v1880 = vpack.c.b16 %v1516, %v1509
  %v1881 = vpack.c.b16 %v1517, %v1510
  %v1882 = vpack.c.b16 %v1518, %v1511
  %v1883 = vpack.c.b16 %v1519, %v1512
  %v1884 = vpack.c.b16 %v1520, %v1513
  %v1885 = vpack.c.b16 %v1521, %v1514
  %v1886 = vpack.c.b16 %v1522, %v1515
  %v1887 = vpack.c.b16 %v1530, %v1523
  %v1888 = vpack.c.b16 %v1531, %v1524
  %v1889 = vpack.c.b16 %v1532, %v1525
  %v1890 = vpack.c.b16 %v1533, %v1526
  %v1891 = vpack.c.b16 %v1534, %v1527
  %v1892 = vpack.c.b16 %v1535, %v1528
  %v1893 = vpack.c.b16 %v1536, %v1529
  %v1894 = vpack.c.b16 %v1544, %v1537
  %v1895 = vpack.c.b16 %v1545, %v1538
  %v1896 = vpack.c.b16 %v1546, %v1539
  %v1897 = vpack.c.b16 %v1547, %v1540
  %v1898 = vpack.c.b16 %v1548, %v1541
  %v1899 = vpack.c.b16 %v1549, %v1542
  %v1900 = vpack.c.b16 %v1550, %v1543
  %v1901 = vpack.c.b16 %v1558, %v1551
  %v1902 = vpack.c.b16 %v1559, %v1552
  %v1903 = vpack.c.b16 %v1560, %v1553
  %v1904 = vpack.c.b16 %v1561, %v1554
  %v1905 = vpack.c.b16 %v1562, %v1555
  %v1906 = vpack.c.b16 %v1563, %v1556
  %v1907 = vpack.c.b16 %v1564, %v1557
  %v1908 = vpack.c.b16 %v1572, %v1565
  %v1909 = vpack.c.b16 %v1573, %v1566
  %v1910 = vpack.c.b16 %v1574, %v1567
  %v1911 = vpack.c.b16 %v1575, %v1568
  %v1912 = vpack.c.b16 %v1576, %v1569
  %v1913 = vpack.c.b16 %v1577, %v1570
  %v1914 = vpack.c.b16 %v1578, %v1571
  %v1915 = vpack.c.b16 %v1586, %v1579
  %v1916 = vpack.c.b16 %v1587, %v1580
  %v1917 = vpack.c.b16 %v1588, %v1581
  %v1918 = vpack.c.b16 %v1589, %v1582
  %v1919 = vpack.c.b16 %v1590, %v1583
  %v1920 = vpack.c.b16 %v1591, %v1584
  %v1921 = vpack.c.b16 %v1592, %v1585
  %v1922 = vpack.c.b16 %v1600, %v1593
  %v1923 = vpack.c.b16 %v1601, %v1594
  %v1924 = vpack.c.b16 %v1602, %v1595
  %v1925 = vpack.c.b16 %v1603, %v1596
  %v1926 = vpack.c.b16 %v1604, %v1597
  %v1927 = vpack.c.b16 %v1605, %v1598
  %v1928 = vpack.c.b16 %v1606, %v1599
  %v1929 = vpack.c.b16 %v1614, %v1607
  %v1930 = vpack.c.b16 %v1615, %v1608
  %v1931 = vpack.c.b16 %v1616, %v1609
  %v1932 = vpack.c.b16 %v1617, %v1610
  %v1933 = vpack.c.b16 %v1618, %v1611
  %v1934 = vpack.c.b16 %v1619, %v1612
  %v1935 = vpack.c.b16 %v1620, %v1613
  %v1936 = vpack.c.b16 %v1628, %v1621
  %v1937 = vpack.c.b16 %v1629, %v1622
  %v1938 = vpack.c.b16 %v1630, %v1623
  %v1939 = vpack.c.b16 %v1631, %v1624
  %v1940 = vpack.c.b16 %v1632, %v1625
  %v1941 = vpack.c.b16 %v1633, %v1626
  %v1942 = vpack.c.b16 %v1634, %v1627
  %v1943 = vpack.c.b16 %v1642, %v1635
  %v1944 = vpack.c.b16 %v1643, %v1636
  %v1945 = vpack.c.b16 %v1644, %v1637
  %v1946 = vpack.c.b16 %v1645, %v1638
  %v1947 = vpack.c.b16 %v1646, %v1639
  %v1948 = vpack.c.b16 %v1647, %v1640
  %v1949 = vpack.c.b16 %v1648, %v1641
  %v1950 = vpack.c.b16 %v1649, %v1649
  %v1951 = vpack.c.b16 %v1650, %v1650
  %v1952 = vpack.c.b16 %v1651, %v1651
  %v1953 = vpack.c.b16 %v1652, %v1652
  %v1954 = vpack.c.b16 %v1653, %v1653
  %v1955 = vpack.c.b16 %v1654, %v1654
  %v1956 = vpack.c.b16 %v1655, %v1655
  %vm2251 = vcmask 285696
  %v2253 = vsel %vm2251, %v616, 0
  %v2256 = vsel %vm2251, %v622, 0
  %v2259 = vsel %vm2251, %v628, 0
  %v2262 = vsel %vm2251, %v634, 0
  %v2265 = vsel %vm2251, %v640, 0
  %v2268 = vsel %vm2251, %v646, 0
  %v2271 = vsel %vm2251, %v652, 0
  %v2274 = vsel %vm2251, %v658, 0
  %v2277 = vsel %vm2251, %v664, 0
  %v2280 = vsel %vm2251, %v670, 0
  %vm2282 = vcmask 1040384
  %vm2283 = vcmask 1041408
  %v2284 = vsel %vm2282, 4294967295, 65535
  %v2285 = vsel %vm2283, %v2284, 0
  %v2287 = vand.u32 %v1950, %v2285
  %v2290 = vand.u32 %v1951, %v2285
  %v2293 = vand.u32 %v1952, %v2285
  %v2296 = vand.u32 %v1953, %v2285
  %v2299 = vand.u32 %v1954, %v2285
  %v2302 = vand.u32 %v1955, %v2285
  %v2305 = vand.u32 %v1956, %v2285
  %2307 = vmatprep.subr.bf16.mxu0 %v1657
  %2308 = vmatpush1.bf16.msra.mxu0 %v1656
  %2309 = vmatprep.subr.bf16.mxu0 %v1664
  %2310 = vmatpush1.bf16.msra.mxu0 %v1663
  %2311 = vmatprep.subr.bf16.mxu0 %v1671
  %2312 = vmatpush1.bf16.msra.mxu0 %v1670
  %2313 = vmatprep.subr.bf16.mxu0 %v1678
  %2314 = vmatpush1.bf16.msra.mxu0 %v1677
  %2315 = vmatprep.subr.bf16.mxu0 %v1685
  %2316 = vmatpush1.bf16.msra.mxu0 %v1684
  %2317 = vmatprep.subr.bf16.mxu0 %v1692
  %2318 = vmatpush1.bf16.msra.mxu0 %v1691
  %2319 = vmatprep.subr.bf16.mxu0 %v1699
  %2320 = vmatpush1.bf16.msra.mxu0 %v1698
  %2321 = vmatprep.subr.bf16.mxu0 %v1706
  %2322 = vmatpush1.bf16.msra.mxu0 %v1705
  %2323 = vmatprep.subr.bf16.mxu0 %v1713
  %2324 = vmatpush1.bf16.msra.mxu0 %v1712
  %2325 = vmatprep.subr.bf16.mxu0 %v1720
  %2326 = vmatpush1.bf16.msra.mxu0 %v1719
  %2327 = vmatprep.subr.bf16.mxu0 %v1727
  %2328 = vmatpush1.bf16.msra.mxu0 %v1726
  %2329 = vmatprep.subr.bf16.mxu0 %v1734
  %2330 = vmatpush1.bf16.msra.mxu0 %v1733
  %2331 = vmatprep.subr.bf16.mxu0 %v1741
  %2332 = vmatpush1.bf16.msra.mxu0 %v1740
  %2333 = vmatprep.subr.bf16.mxu0 %v1748
  %2334 = vmatpush1.bf16.msra.mxu0 %v1747
  %2335 = vmatprep.subr.bf16.mxu0 %v1755
  %2336 = vmatpush1.bf16.msra.mxu0 %v1754
  %2337 = vmatprep.subr.bf16.mxu0 %v1762
  %2338 = vmatpush1.bf16.msra.mxu0 %v1761
  %2339 = vmatprep.mubr.bf16.mxu0 %v612
  %2340 = vmatmul.mubr.bf16.gmra.mrb[0].mxu0 %v611
  %v2341 = vpop.f32.mrb[0].mxu0
  %v2342 = vadd.f32 0.0, %v2341
  %v2343 = vpop.f32.mrb[0].mxu0
  %v2344 = vadd.f32 0.0, %v2343
  %v2345 = vpop.f32.mrb[0].mxu0
  %v2346 = vadd.f32 0.0, %v2345
  %v2347 = vpop.f32.mrb[0].mxu0
  %v2348 = vadd.f32 0.0, %v2347
  %2349 = vmatprep.mubr.bf16.mxu0 %v618
  %2350 = vmatmul.mubr.bf16.gmra.mrb[0].mxu0 %v617
  %v2351 = vpop.f32.mrb[0].mxu0
  %v2352 = vadd.f32 0.0, %v2351
  %v2353 = vpop.f32.mrb[0].mxu0
  %v2354 = vadd.f32 0.0, %v2353
  %v2355 = vpop.f32.mrb[0].mxu0
  %v2356 = vadd.f32 0.0, %v2355
  %v2357 = vpop.f32.mrb[0].mxu0
  %v2358 = vadd.f32 0.0, %v2357
  %2359 = vmatprep.mubr.bf16.mxu0 %v624
  %2360 = vmatmul.mubr.bf16.gmra.mrb[0].mxu0 %v623
  %v2361 = vpop.f32.mrb[0].mxu0
  %v2362 = vadd.f32 0.0, %v2361
  %v2363 = vpop.f32.mrb[0].mxu0
  %v2364 = vadd.f32 0.0, %v2363
  %v2365 = vpop.f32.mrb[0].mxu0
  %v2366 = vadd.f32 0.0, %v2365
  %v2367 = vpop.f32.mrb[0].mxu0
  %v2368 = vadd.f32 0.0, %v2367
  %2369 = vmatprep.mubr.bf16.mxu0 %v630
  %2370 = vmatmul.mubr.bf16.gmra.mrb[0].mxu0 %v629
  %v2371 = vpop.f32.mrb[0].mxu0
  %v2372 = vadd.f32 0.0, %v2371
  %v2373 = vpop.f32.mrb[0].mxu0
  %v2374 = vadd.f32 0.0, %v2373
  %v2375 = vpop.f32.mrb[0].mxu0
  %v2376 = vadd.f32 0.0, %v2375
  %v2377 = vpop.f32.mrb[0].mxu0
  %v2378 = vadd.f32 0.0, %v2377
  %2379 = vmatprep.mubr.bf16.mxu0 %v636
  %2380 = vmatmul.mubr.bf16.gmra.mrb[0].mxu0 %v635
  %v2381 = vpop.f32.mrb[0].mxu0
  %v2382 = vadd.f32 0.0, %v2381
  %v2383 = vpop.f32.mrb[0].mxu0
  %v2384 = vadd.f32 0.0, %v2383
  %v2385 = vpop.f32.mrb[0].mxu0
  %v2386 = vadd.f32 0.0, %v2385
  %v2387 = vpop.f32.mrb[0].mxu0
  %v2388 = vadd.f32 0.0, %v2387
  %2389 = vmatprep.mubr.bf16.mxu0 %v642
  %2390 = vmatmul.mubr.bf16.gmra.mrb[0].mxu0 %v641
  %v2391 = vpop.f32.mrb[0].mxu0
  %v2392 = vadd.f32 0.0, %v2391
  %v2393 = vpop.f32.mrb[0].mxu0
  %v2394 = vadd.f32 0.0, %v2393
  %v2395 = vpop.f32.mrb[0].mxu0
  %v2396 = vadd.f32 0.0, %v2395
  %v2397 = vpop.f32.mrb[0].mxu0
  %v2398 = vadd.f32 0.0, %v2397
  %2399 = vmatprep.mubr.bf16.mxu0 %v648
  %2400 = vmatmul.mubr.bf16.gmra.mrb[0].mxu0 %v647
  %v2401 = vpop.f32.mrb[0].mxu0
  %v2402 = vadd.f32 0.0, %v2401
  %v2403 = vpop.f32.mrb[0].mxu0
  %v2404 = vadd.f32 0.0, %v2403
  %v2405 = vpop.f32.mrb[0].mxu0
  %v2406 = vadd.f32 0.0, %v2405
  %v2407 = vpop.f32.mrb[0].mxu0
  %v2408 = vadd.f32 0.0, %v2407
  %2409 = vmatprep.mubr.bf16.mxu0 %v654
  %2410 = vmatmul.mubr.bf16.gmra.mrb[0].mxu0 %v653
  %v2411 = vpop.f32.mrb[0].mxu0
  %v2412 = vadd.f32 0.0, %v2411
  %v2413 = vpop.f32.mrb[0].mxu0
  %v2414 = vadd.f32 0.0, %v2413
  %v2415 = vpop.f32.mrb[0].mxu0
  %v2416 = vadd.f32 0.0, %v2415
  %v2417 = vpop.f32.mrb[0].mxu0
  %v2418 = vadd.f32 0.0, %v2417
  %2419 = vmatprep.mubr.bf16.mxu0 %v660
  %2420 = vmatmul.mubr.bf16.gmra.mrb[0].mxu0 %v659
  %v2421 = vpop.f32.mrb[0].mxu0
  %v2422 = vadd.f32 0.0, %v2421
  %v2423 = vpop.f32.mrb[0].mxu0
  %v2424 = vadd.f32 0.0, %v2423
  %v2425 = vpop.f32.mrb[0].mxu0
  %v2426 = vadd.f32 0.0, %v2425
  %v2427 = vpop.f32.mrb[0].mxu0
  %v2428 = vadd.f32 0.0, %v2427
  %2429 = vmatprep.mubr.bf16.mxu0 %v666
  %2430 = vmatmul.mubr.bf16.gmra.mrb[0].mxu0 %v665
  %v2431 = vpop.f32.mrb[0].mxu0
  %v2432 = vadd.f32 0.0, %v2431
  %v2433 = vpop.f32.mrb[0].mxu0
  %v2434 = vadd.f32 0.0, %v2433
  %v2435 = vpop.f32.mrb[0].mxu0
  %v2436 = vpop.f32.mrb[0].mxu0
  %2437 = vdwg.mxu0
  %2438 = vmatprep.subr.bf16.mxu0 %v1769
  %2439 = vmatpush1.bf16.msra.mxu0 %v1768
  %2440 = vmatprep.subr.bf16.mxu0 %v1776
  %2441 = vmatpush1.bf16.msra.mxu0 %v1775
  %2442 = vmatprep.subr.bf16.mxu0 %v1783
  %2443 = vmatpush1.bf16.msra.mxu0 %v1782
  %2444 = vmatprep.subr.bf16.mxu0 %v1790
  %2445 = vmatpush1.bf16.msra.mxu0 %v1789
  %2446 = vmatprep.subr.bf16.mxu0 %v1797
  %2447 = vmatpush1.bf16.msra.mxu0 %v1796
  %2448 = vmatprep.subr.bf16.mxu0 %v1804
  %2449 = vmatpush1.bf16.msra.mxu0 %v1803
  %2450 = vmatprep.subr.bf16.mxu0 %v1811
  %2451 = vmatpush1.bf16.msra.mxu0 %v1810
  %2452 = vmatprep.subr.bf16.mxu0 %v1818
  %2453 = vmatpush1.bf16.msra.mxu0 %v1817
  %2454 = vmatprep.subr.bf16.mxu0 %v1825
  %2455 = vmatpush1.bf16.msra.mxu0 %v1824
  %2456 = vmatprep.subr.bf16.mxu0 %v1832
  %2457 = vmatpush1.bf16.msra.mxu0 %v1831
  %2458 = vmatprep.subr.bf16.mxu0 %v1839
  %2459 = vmatpush1.bf16.msra.mxu0 %v1838
  %2460 = vmatprep.subr.bf16.mxu0 %v1846
  %2461 = vmatpush1.bf16.msra.mxu0 %v1845
  %2462 = vmatprep.subr.bf16.mxu0 %v1853
  %2463 = vmatpush1.bf16.msra.mxu0 %v1852
  %2464 = vmatprep.subr.bf16.mxu0 %v1860
  %2465 = vmatpush1.bf16.msra.mxu0 %v1859
  %2466 = vmatprep.subr.bf16.mxu0 %v1867
  %2467 = vmatpush1.bf16.msra.mxu0 %v1866
  %2468 = vmatprep.subr.bf16.mxu0 %v1874
  %2469 = vmatpush1.bf16.msra.mxu0 %v1873
  %2470 = vmatprep.mubr.bf16.mxu0 %v614
  %2471 = vmatmul.mubr.bf16.gmra.mrb[0].mxu0 %v613
  %v2472 = vpop.f32.mrb[0].mxu0
  %v2473 = vadd.f32 %v2342, %v2472
  %v2474 = vpop.f32.mrb[0].mxu0
  %v2475 = vadd.f32 %v2344, %v2474
  %v2476 = vpop.f32.mrb[0].mxu0
  %v2477 = vadd.f32 %v2346, %v2476
  %v2478 = vpop.f32.mrb[0].mxu0
  %v2479 = vadd.f32 %v2348, %v2478
  %2480 = vmatprep.mubr.bf16.mxu0 %v620
  %2481 = vmatmul.mubr.bf16.gmra.mrb[0].mxu0 %v619
  %v2482 = vpop.f32.mrb[0].mxu0
  %v2483 = vadd.f32 %v2352, %v2482
  %v2484 = vpop.f32.mrb[0].mxu0
  %v2485 = vadd.f32 %v2354, %v2484
  %v2486 = vpop.f32.mrb[0].mxu0
  %v2487 = vadd.f32 %v2356, %v2486
  %v2488 = vpop.f32.mrb[0].mxu0
  %v2489 = vadd.f32 %v2358, %v2488
  %2490 = vmatprep.mubr.bf16.mxu0 %v626
  %2491 = vmatmul.mubr.bf16.gmra.mrb[0].mxu0 %v625
  %v2492 = vpop.f32.mrb[0].mxu0
  %v2493 = vadd.f32 %v2362, %v2492
  %v2494 = vpop.f32.mrb[0].mxu0
  %v2495 = vadd.f32 %v2364, %v2494
  %v2496 = vpop.f32.mrb[0].mxu0
  %v2497 = vadd.f32 %v2366, %v2496
  %v2498 = vpop.f32.mrb[0].mxu0
  %v2499 = vadd.f32 %v2368, %v2498
  %2500 = vmatprep.mubr.bf16.mxu0 %v632
  %2501 = vmatmul.mubr.bf16.gmra.mrb[0].mxu0 %v631
  %v2502 = vpop.f32.mrb[0].mxu0
  %v2503 = vadd.f32 %v2372, %v2502
  %v2504 = vpop.f32.mrb[0].mxu0
  %v2505 = vadd.f32 %v2374, %v2504
  %v2506 = vpop.f32.mrb[0].mxu0
  %v2507 = vadd.f32 %v2376, %v2506
  %v2508 = vpop.f32.mrb[0].mxu0
  %v2509 = vadd.f32 %v2378, %v2508
  %2510 = vmatprep.mubr.bf16.mxu0 %v638
  %2511 = vmatmul.mubr.bf16.gmra.mrb[0].mxu0 %v637
  %v2512 = vpop.f32.mrb[0].mxu0
  %v2513 = vadd.f32 %v2382, %v2512
  %v2514 = vpop.f32.mrb[0].mxu0
  %v2515 = vadd.f32 %v2384, %v2514
  %v2516 = vpop.f32.mrb[0].mxu0
  %v2517 = vadd.f32 %v2386, %v2516
  %v2518 = vpop.f32.mrb[0].mxu0
  %v2519 = vadd.f32 %v2388, %v2518
  %2520 = vmatprep.mubr.bf16.mxu0 %v644
  %2521 = vmatmul.mubr.bf16.gmra.mrb[0].mxu0 %v643
  %v2522 = vpop.f32.mrb[0].mxu0
  %v2523 = vadd.f32 %v2392, %v2522
  %v2524 = vpop.f32.mrb[0].mxu0
  %v2525 = vadd.f32 %v2394, %v2524
  %v2526 = vpop.f32.mrb[0].mxu0
  %v2527 = vadd.f32 %v2396, %v2526
  %v2528 = vpop.f32.mrb[0].mxu0
  %v2529 = vadd.f32 %v2398, %v2528
  %2530 = vmatprep.mubr.bf16.mxu0 %v650
  %2531 = vmatmul.mubr.bf16.gmra.mrb[0].mxu0 %v649
  %v2532 = vpop.f32.mrb[0].mxu0
  %v2533 = vadd.f32 %v2402, %v2532
  %v2534 = vpop.f32.mrb[0].mxu0
  %v2535 = vadd.f32 %v2404, %v2534
  %v2536 = vpop.f32.mrb[0].mxu0
  %v2537 = vadd.f32 %v2406, %v2536
  %v2538 = vpop.f32.mrb[0].mxu0
  %v2539 = vadd.f32 %v2408, %v2538
  %2540 = vmatprep.mubr.bf16.mxu0 %v656
  %2541 = vmatmul.mubr.bf16.gmra.mrb[0].mxu0 %v655
  %v2542 = vpop.f32.mrb[0].mxu0
  %v2543 = vadd.f32 %v2412, %v2542
  %v2544 = vpop.f32.mrb[0].mxu0
  %v2545 = vadd.f32 %v2414, %v2544
  %v2546 = vpop.f32.mrb[0].mxu0
  %v2547 = vadd.f32 %v2416, %v2546
  %v2548 = vpop.f32.mrb[0].mxu0
  %v2549 = vadd.f32 %v2418, %v2548
  %2550 = vmatprep.mubr.bf16.mxu0 %v662
  %2551 = vmatmul.mubr.bf16.gmra.mrb[0].mxu0 %v661
  %v2552 = vpop.f32.mrb[0].mxu0
  %v2553 = vadd.f32 %v2422, %v2552
  %v2554 = vpop.f32.mrb[0].mxu0
  %v2555 = vadd.f32 %v2424, %v2554
  %v2556 = vpop.f32.mrb[0].mxu0
  %v2557 = vadd.f32 %v2426, %v2556
  %v2558 = vpop.f32.mrb[0].mxu0
  %v2559 = vadd.f32 %v2428, %v2558
  %2560 = vmatprep.mubr.bf16.mxu0 %v668
  %2561 = vmatmul.mubr.bf16.gmra.mrb[0].mxu0 %v667
  %v2562 = vpop.f32.mrb[0].mxu0
  %v2563 = vadd.f32 %v2432, %v2562
  %v2564 = vpop.f32.mrb[0].mxu0
  %v2565 = vadd.f32 %v2434, %v2564
  %v2566 = vpop.f32.mrb[0].mxu0
  %v2567 = vpop.f32.mrb[0].mxu0
  %2568 = vdwg.mxu0
  %2569 = vmatprep.subr.bf16.mxu0 %v1881
  %2570 = vmatpush1.bf16.msra.mxu0 %v1880
  %2571 = vmatprep.subr.bf16.mxu0 %v1888
  %2572 = vmatpush1.bf16.msra.mxu0 %v1887
  %2573 = vmatprep.subr.bf16.mxu0 %v1895
  %2574 = vmatpush1.bf16.msra.mxu0 %v1894
  %2575 = vmatprep.subr.bf16.mxu0 %v1902
  %2576 = vmatpush1.bf16.msra.mxu0 %v1901
  %2577 = vmatprep.subr.bf16.mxu0 %v1909
  %2578 = vmatpush1.bf16.msra.mxu0 %v1908
  %2579 = vmatprep.subr.bf16.mxu0 %v1916
  %2580 = vmatpush1.bf16.msra.mxu0 %v1915
  %2581 = vmatprep.subr.bf16.mxu0 %v1923
  %2582 = vmatpush1.bf16.msra.mxu0 %v1922
  %2583 = vmatprep.subr.bf16.mxu0 %v1930
  %2584 = vmatpush1.bf16.msra.mxu0 %v1929
  %2585 = vmatprep.subr.bf16.mxu0 %v1937
  %2586 = vmatpush1.bf16.msra.mxu0 %v1936
  %2587 = vmatprep.subr.bf16.mxu0 %v1944
  %2588 = vmatpush1.bf16.msra.mxu0 %v1943
  %2589 = vmatprep.subr.bf16.mxu0 %v2290
  %2590 = vmatpush1.bf16.msra.mxu0 %v2287
  %2591 = vmatprep.subr.bf16.mxu0 0
  %2592 = vmatpush1.bf16.msra.mxu0 0
  %2593 = vmatprep.subr.bf16.mxu0 0
  %2594 = vmatpush1.bf16.msra.mxu0 0
  %2595 = vmatprep.subr.bf16.mxu0 0
  %2596 = vmatpush1.bf16.msra.mxu0 0
  %2597 = vmatprep.subr.bf16.mxu0 0
  %2598 = vmatpush1.bf16.msra.mxu0 0
  %2599 = vmatprep.subr.bf16.mxu0 0
  %2600 = vmatpush1.bf16.msra.mxu0 0
  %2601 = vmatprep.mubr.bf16.mxu0 %v2253
  %2602 = vmatmul.mubr.bf16.gmra.mrb[0].mxu0 %v615
  %v2603 = vpop.f32.mrb[0].mxu0
  %v2604 = vadd.f32 %v2473, %v2603
  %v2605 = vpop.f32.mrb[0].mxu0
  %v2606 = vadd.f32 %v2475, %v2605
  %v2607 = vpop.f32.mrb[0].mxu0
  %v2608 = vadd.f32 %v2477, %v2607
  %v2609 = vpop.f32.mrb[0].mxu0
  %v2610 = vadd.f32 %v2479, %v2609
  %2611 = vmatprep.mubr.bf16.mxu0 %v2256
  %2612 = vmatmul.mubr.bf16.gmra.mrb[0].mxu0 %v621
  %v2613 = vpop.f32.mrb[0].mxu0
  %v2614 = vadd.f32 %v2483, %v2613
  %v2615 = vpop.f32.mrb[0].mxu0
  %v2616 = vadd.f32 %v2485, %v2615
  %v2617 = vpop.f32.mrb[0].mxu0
  %v2618 = vadd.f32 %v2487, %v2617
  %v2619 = vpop.f32.mrb[0].mxu0
  %v2620 = vadd.f32 %v2489, %v2619
  %2621 = vmatprep.mubr.bf16.mxu0 %v2259
  %2622 = vmatmul.mubr.bf16.gmra.mrb[0].mxu0 %v627
  %v2623 = vpop.f32.mrb[0].mxu0
  %v2624 = vadd.f32 %v2493, %v2623
  %v2625 = vpop.f32.mrb[0].mxu0
  %v2626 = vadd.f32 %v2495, %v2625
  %v2627 = vpop.f32.mrb[0].mxu0
  %v2628 = vadd.f32 %v2497, %v2627
  %v2629 = vpop.f32.mrb[0].mxu0
  %v2630 = vadd.f32 %v2499, %v2629
  %2631 = vmatprep.mubr.bf16.mxu0 %v2262
  %2632 = vmatmul.mubr.bf16.gmra.mrb[0].mxu0 %v633
  %v2633 = vpop.f32.mrb[0].mxu0
  %v2634 = vadd.f32 %v2503, %v2633
  %v2635 = vpop.f32.mrb[0].mxu0
  %v2636 = vadd.f32 %v2505, %v2635
  %v2637 = vpop.f32.mrb[0].mxu0
  %v2638 = vadd.f32 %v2507, %v2637
  %v2639 = vpop.f32.mrb[0].mxu0
  %v2640 = vadd.f32 %v2509, %v2639
  %2641 = vmatprep.mubr.bf16.mxu0 %v2265
  %2642 = vmatmul.mubr.bf16.gmra.mrb[0].mxu0 %v639
  %v2643 = vpop.f32.mrb[0].mxu0
  %v2644 = vadd.f32 %v2513, %v2643
  %v2645 = vpop.f32.mrb[0].mxu0
  %v2646 = vadd.f32 %v2515, %v2645
  %v2647 = vpop.f32.mrb[0].mxu0
  %v2648 = vadd.f32 %v2517, %v2647
  %v2649 = vpop.f32.mrb[0].mxu0
  %v2650 = vadd.f32 %v2519, %v2649
  %2651 = vmatprep.mubr.bf16.mxu0 %v2268
  %2652 = vmatmul.mubr.bf16.gmra.mrb[0].mxu0 %v645
  %v2653 = vpop.f32.mrb[0].mxu0
  %v2654 = vadd.f32 %v2523, %v2653
  %v2655 = vpop.f32.mrb[0].mxu0
  %v2656 = vadd.f32 %v2525, %v2655
  %v2657 = vpop.f32.mrb[0].mxu0
  %v2658 = vadd.f32 %v2527, %v2657
  %v2659 = vpop.f32.mrb[0].mxu0
  %v2660 = vadd.f32 %v2529, %v2659
  %2661 = vmatprep.mubr.bf16.mxu0 %v2271
  %2662 = vmatmul.mubr.bf16.gmra.mrb[0].mxu0 %v651
  %v2663 = vpop.f32.mrb[0].mxu0
  %v2664 = vadd.f32 %v2533, %v2663
  %v2665 = vpop.f32.mrb[0].mxu0
  %v2666 = vadd.f32 %v2535, %v2665
  %v2667 = vpop.f32.mrb[0].mxu0
  %v2668 = vadd.f32 %v2537, %v2667
  %v2669 = vpop.f32.mrb[0].mxu0
  %v2670 = vadd.f32 %v2539, %v2669
  %2671 = vmatprep.mubr.bf16.mxu0 %v2274
  %2672 = vmatmul.mubr.bf16.gmra.mrb[0].mxu0 %v657
  %v2673 = vpop.f32.mrb[0].mxu0
  %v2674 = vadd.f32 %v2543, %v2673
  %v2675 = vpop.f32.mrb[0].mxu0
  %v2676 = vadd.f32 %v2545, %v2675
  %v2677 = vpop.f32.mrb[0].mxu0
  %v2678 = vadd.f32 %v2547, %v2677
  %v2679 = vpop.f32.mrb[0].mxu0
  %v2680 = vadd.f32 %v2549, %v2679
  %2681 = vmatprep.mubr.bf16.mxu0 %v2277
  %2682 = vmatmul.mubr.bf16.gmra.mrb[0].mxu0 %v663
  %v2683 = vpop.f32.mrb[0].mxu0
  %v2684 = vadd.f32 %v2553, %v2683
  %v2685 = vpop.f32.mrb[0].mxu0
  %v2686 = vadd.f32 %v2555, %v2685
  %v2687 = vpop.f32.mrb[0].mxu0
  %v2688 = vadd.f32 %v2557, %v2687
  %v2689 = vpop.f32.mrb[0].mxu0
  %v2690 = vadd.f32 %v2559, %v2689
  %2691 = vmatprep.mubr.bf16.mxu0 %v2280
  %2692 = vmatmul.mubr.bf16.gmra.mrb[0].mxu0 %v669
  %v2693 = vpop.f32.mrb[0].mxu0
  %v2694 = vadd.f32 %v2563, %v2693
  %v2695 = vpop.f32.mrb[0].mxu0
  %v2696 = vadd.f32 %v2565, %v2695
  %v2697 = vpop.f32.mrb[0].mxu0
  %v2698 = vpop.f32.mrb[0].mxu0
  %2699 = vdwg.mxu0
  %2700 = vmatprep.subr.bf16.mxu0 %v1659
  %2701 = vmatpush1.bf16.msra.mxu0 %v1658
  %2702 = vmatprep.subr.bf16.mxu0 %v1666
  %2703 = vmatpush1.bf16.msra.mxu0 %v1665
  %2704 = vmatprep.subr.bf16.mxu0 %v1673
  %2705 = vmatpush1.bf16.msra.mxu0 %v1672
  %2706 = vmatprep.subr.bf16.mxu0 %v1680
  %2707 = vmatpush1.bf16.msra.mxu0 %v1679
  %2708 = vmatprep.subr.bf16.mxu0 %v1687
  %2709 = vmatpush1.bf16.msra.mxu0 %v1686
  %2710 = vmatprep.subr.bf16.mxu0 %v1694
  %2711 = vmatpush1.bf16.msra.mxu0 %v1693
  %2712 = vmatprep.subr.bf16.mxu0 %v1701
  %2713 = vmatpush1.bf16.msra.mxu0 %v1700
  %2714 = vmatprep.subr.bf16.mxu0 %v1708
  %2715 = vmatpush1.bf16.msra.mxu0 %v1707
  %2716 = vmatprep.subr.bf16.mxu0 %v1715
  %2717 = vmatpush1.bf16.msra.mxu0 %v1714
  %2718 = vmatprep.subr.bf16.mxu0 %v1722
  %2719 = vmatpush1.bf16.msra.mxu0 %v1721
  %2720 = vmatprep.subr.bf16.mxu0 %v1729
  %2721 = vmatpush1.bf16.msra.mxu0 %v1728
  %2722 = vmatprep.subr.bf16.mxu0 %v1736
  %2723 = vmatpush1.bf16.msra.mxu0 %v1735
  %2724 = vmatprep.subr.bf16.mxu0 %v1743
  %2725 = vmatpush1.bf16.msra.mxu0 %v1742
  %2726 = vmatprep.subr.bf16.mxu0 %v1750
  %2727 = vmatpush1.bf16.msra.mxu0 %v1749
  %2728 = vmatprep.subr.bf16.mxu0 %v1757
  %2729 = vmatpush1.bf16.msra.mxu0 %v1756
  %2730 = vmatprep.subr.bf16.mxu0 %v1764
  %2731 = vmatpush1.bf16.msra.mxu0 %v1763
  %2732 = vmatprep.mubr.bf16.mxu0 %v612
  %2733 = vmatmul.mubr.bf16.gmra.mrb[0].mxu0 %v611
  %v2734 = vpop.f32.mrb[0].mxu0
  %v2735 = vadd.f32 0.0, %v2734
  %v2736 = vpop.f32.mrb[0].mxu0
  %v2737 = vadd.f32 0.0, %v2736
  %v2738 = vpop.f32.mrb[0].mxu0
  %v2739 = vadd.f32 0.0, %v2738
  %v2740 = vpop.f32.mrb[0].mxu0
  %v2741 = vadd.f32 0.0, %v2740
  %2742 = vmatprep.mubr.bf16.mxu0 %v618
  %2743 = vmatmul.mubr.bf16.gmra.mrb[0].mxu0 %v617
  %v2744 = vpop.f32.mrb[0].mxu0
  %v2745 = vadd.f32 0.0, %v2744
  %v2746 = vpop.f32.mrb[0].mxu0
  %v2747 = vadd.f32 0.0, %v2746
  %v2748 = vpop.f32.mrb[0].mxu0
  %v2749 = vadd.f32 0.0, %v2748
  %v2750 = vpop.f32.mrb[0].mxu0
  %v2751 = vadd.f32 0.0, %v2750
  %2752 = vmatprep.mubr.bf16.mxu0 %v624
  %2753 = vmatmul.mubr.bf16.gmra.mrb[0].mxu0 %v623
  %v2754 = vpop.f32.mrb[0].mxu0
  %v2755 = vadd.f32 0.0, %v2754
  %v2756 = vpop.f32.mrb[0].mxu0
  %v2757 = vadd.f32 0.0, %v2756
  %v2758 = vpop.f32.mrb[0].mxu0
  %v2759 = vadd.f32 0.0, %v2758
  %v2760 = vpop.f32.mrb[0].mxu0
  %v2761 = vadd.f32 0.0, %v2760
  %2762 = vmatprep.mubr.bf16.mxu0 %v630
  %2763 = vmatmul.mubr.bf16.gmra.mrb[0].mxu0 %v629
  %v2764 = vpop.f32.mrb[0].mxu0
  %v2765 = vadd.f32 0.0, %v2764
  %v2766 = vpop.f32.mrb[0].mxu0
  %v2767 = vadd.f32 0.0, %v2766
  %v2768 = vpop.f32.mrb[0].mxu0
  %v2769 = vadd.f32 0.0, %v2768
  %v2770 = vpop.f32.mrb[0].mxu0
  %v2771 = vadd.f32 0.0, %v2770
  %2772 = vmatprep.mubr.bf16.mxu0 %v636
  %2773 = vmatmul.mubr.bf16.gmra.mrb[0].mxu0 %v635
  %v2774 = vpop.f32.mrb[0].mxu0
  %v2775 = vadd.f32 0.0, %v2774
  %v2776 = vpop.f32.mrb[0].mxu0
  %v2777 = vadd.f32 0.0, %v2776
  %v2778 = vpop.f32.mrb[0].mxu0
  %v2779 = vadd.f32 0.0, %v2778
  %v2780 = vpop.f32.mrb[0].mxu0
  %v2781 = vadd.f32 0.0, %v2780
  %2782 = vmatprep.mubr.bf16.mxu0 %v642
  %2783 = vmatmul.mubr.bf16.gmra.mrb[0].mxu0 %v641
  %v2784 = vpop.f32.mrb[0].mxu0
  %v2785 = vadd.f32 0.0, %v2784
  %v2786 = vpop.f32.mrb[0].mxu0
  %v2787 = vadd.f32 0.0, %v2786
  %v2788 = vpop.f32.mrb[0].mxu0
  %v2789 = vadd.f32 0.0, %v2788
  %v2790 = vpop.f32.mrb[0].mxu0
  %v2791 = vadd.f32 0.0, %v2790
  %2792 = vmatprep.mubr.bf16.mxu0 %v648
  %2793 = vmatmul.mubr.bf16.gmra.mrb[0].mxu0 %v647
  %v2794 = vpop.f32.mrb[0].mxu0
  %v2795 = vadd.f32 0.0, %v2794
  %v2796 = vpop.f32.mrb[0].mxu0
  %v2797 = vadd.f32 0.0, %v2796
  %v2798 = vpop.f32.mrb[0].mxu0
  %v2799 = vadd.f32 0.0, %v2798
  %v2800 = vpop.f32.mrb[0].mxu0
  %v2801 = vadd.f32 0.0, %v2800
  %2802 = vmatprep.mubr.bf16.mxu0 %v654
  %2803 = vmatmul.mubr.bf16.gmra.mrb[0].mxu0 %v653
  %v2804 = vpop.f32.mrb[0].mxu0
  %v2805 = vadd.f32 0.0, %v2804
  %v2806 = vpop.f32.mrb[0].mxu0
  %v2807 = vadd.f32 0.0, %v2806
  %v2808 = vpop.f32.mrb[0].mxu0
  %v2809 = vadd.f32 0.0, %v2808
  %v2810 = vpop.f32.mrb[0].mxu0
  %v2811 = vadd.f32 0.0, %v2810
  %2812 = vmatprep.mubr.bf16.mxu0 %v660
  %2813 = vmatmul.mubr.bf16.gmra.mrb[0].mxu0 %v659
  %v2814 = vpop.f32.mrb[0].mxu0
  %v2815 = vadd.f32 0.0, %v2814
  %v2816 = vpop.f32.mrb[0].mxu0
  %v2817 = vadd.f32 0.0, %v2816
  %v2818 = vpop.f32.mrb[0].mxu0
  %v2819 = vadd.f32 0.0, %v2818
  %v2820 = vpop.f32.mrb[0].mxu0
  %v2821 = vadd.f32 0.0, %v2820
  %2822 = vmatprep.mubr.bf16.mxu0 %v666
  %2823 = vmatmul.mubr.bf16.gmra.mrb[0].mxu0 %v665
  %v2824 = vpop.f32.mrb[0].mxu0
  %v2825 = vadd.f32 0.0, %v2824
  %v2826 = vpop.f32.mrb[0].mxu0
  %v2827 = vadd.f32 0.0, %v2826
  %v2828 = vpop.f32.mrb[0].mxu0
  %v2829 = vpop.f32.mrb[0].mxu0
  %2830 = vdwg.mxu0
  %2831 = vmatprep.subr.bf16.mxu0 %v1771
  %2832 = vmatpush1.bf16.msra.mxu0 %v1770
  %2833 = vmatprep.subr.bf16.mxu0 %v1778
  %2834 = vmatpush1.bf16.msra.mxu0 %v1777
  %2835 = vmatprep.subr.bf16.mxu0 %v1785
  %2836 = vmatpush1.bf16.msra.mxu0 %v1784
  %2837 = vmatprep.subr.bf16.mxu0 %v1792
  %2838 = vmatpush1.bf16.msra.mxu0 %v1791
  %2839 = vmatprep.subr.bf16.mxu0 %v1799
  %2840 = vmatpush1.bf16.msra.mxu0 %v1798
  %2841 = vmatprep.subr.bf16.mxu0 %v1806
  %2842 = vmatpush1.bf16.msra.mxu0 %v1805
  %2843 = vmatprep.subr.bf16.mxu0 %v1813
  %2844 = vmatpush1.bf16.msra.mxu0 %v1812
  %2845 = vmatprep.subr.bf16.mxu0 %v1820
  %2846 = vmatpush1.bf16.msra.mxu0 %v1819
  %2847 = vmatprep.subr.bf16.mxu0 %v1827
  %2848 = vmatpush1.bf16.msra.mxu0 %v1826
  %2849 = vmatprep.subr.bf16.mxu0 %v1834
  %2850 = vmatpush1.bf16.msra.mxu0 %v1833
  %2851 = vmatprep.subr.bf16.mxu0 %v1841
  %2852 = vmatpush1.bf16.msra.mxu0 %v1840
  %2853 = vmatprep.subr.bf16.mxu0 %v1848
  %2854 = vmatpush1.bf16.msra.mxu0 %v1847
  %2855 = vmatprep.subr.bf16.mxu0 %v1855
  %2856 = vmatpush1.bf16.msra.mxu0 %v1854
  %2857 = vmatprep.subr.bf16.mxu0 %v1862
  %2858 = vmatpush1.bf16.msra.mxu0 %v1861
  %2859 = vmatprep.subr.bf16.mxu0 %v1869
  %2860 = vmatpush1.bf16.msra.mxu0 %v1868
  %2861 = vmatprep.subr.bf16.mxu0 %v1876
  %2862 = vmatpush1.bf16.msra.mxu0 %v1875
  %2863 = vmatprep.mubr.bf16.mxu0 %v614
  %2864 = vmatmul.mubr.bf16.gmra.mrb[0].mxu0 %v613
  %v2865 = vpop.f32.mrb[0].mxu0
  %v2866 = vadd.f32 %v2735, %v2865
  %v2867 = vpop.f32.mrb[0].mxu0
  %v2868 = vadd.f32 %v2737, %v2867
  %v2869 = vpop.f32.mrb[0].mxu0
  %v2870 = vadd.f32 %v2739, %v2869
  %v2871 = vpop.f32.mrb[0].mxu0
  %v2872 = vadd.f32 %v2741, %v2871
  %2873 = vmatprep.mubr.bf16.mxu0 %v620
  %2874 = vmatmul.mubr.bf16.gmra.mrb[0].mxu0 %v619
  %v2875 = vpop.f32.mrb[0].mxu0
  %v2876 = vadd.f32 %v2745, %v2875
  %v2877 = vpop.f32.mrb[0].mxu0
  %v2878 = vadd.f32 %v2747, %v2877
  %v2879 = vpop.f32.mrb[0].mxu0
  %v2880 = vadd.f32 %v2749, %v2879
  %v2881 = vpop.f32.mrb[0].mxu0
  %v2882 = vadd.f32 %v2751, %v2881
  %2883 = vmatprep.mubr.bf16.mxu0 %v626
  %2884 = vmatmul.mubr.bf16.gmra.mrb[0].mxu0 %v625
  %v2885 = vpop.f32.mrb[0].mxu0
  %v2886 = vadd.f32 %v2755, %v2885
  %v2887 = vpop.f32.mrb[0].mxu0
  %v2888 = vadd.f32 %v2757, %v2887
  %v2889 = vpop.f32.mrb[0].mxu0
  %v2890 = vadd.f32 %v2759, %v2889
  %v2891 = vpop.f32.mrb[0].mxu0
  %v2892 = vadd.f32 %v2761, %v2891
  %2893 = vmatprep.mubr.bf16.mxu0 %v632
  %2894 = vmatmul.mubr.bf16.gmra.mrb[0].mxu0 %v631
  %v2895 = vpop.f32.mrb[0].mxu0
  %v2896 = vadd.f32 %v2765, %v2895
  %v2897 = vpop.f32.mrb[0].mxu0
  %v2898 = vadd.f32 %v2767, %v2897
  %v2899 = vpop.f32.mrb[0].mxu0
  %v2900 = vadd.f32 %v2769, %v2899
  %v2901 = vpop.f32.mrb[0].mxu0
  %v2902 = vadd.f32 %v2771, %v2901
  %2903 = vmatprep.mubr.bf16.mxu0 %v638
  %2904 = vmatmul.mubr.bf16.gmra.mrb[0].mxu0 %v637
  %v2905 = vpop.f32.mrb[0].mxu0
  %v2906 = vadd.f32 %v2775, %v2905
  %v2907 = vpop.f32.mrb[0].mxu0
  %v2908 = vadd.f32 %v2777, %v2907
  %v2909 = vpop.f32.mrb[0].mxu0
  %v2910 = vadd.f32 %v2779, %v2909
  %v2911 = vpop.f32.mrb[0].mxu0
  %v2912 = vadd.f32 %v2781, %v2911
  %2913 = vmatprep.mubr.bf16.mxu0 %v644
  %2914 = vmatmul.mubr.bf16.gmra.mrb[0].mxu0 %v643
  %v2915 = vpop.f32.mrb[0].mxu0
  %v2916 = vadd.f32 %v2785, %v2915
  %v2917 = vpop.f32.mrb[0].mxu0
  %v2918 = vadd.f32 %v2787, %v2917
  %v2919 = vpop.f32.mrb[0].mxu0
  %v2920 = vadd.f32 %v2789, %v2919
  %v2921 = vpop.f32.mrb[0].mxu0
  %v2922 = vadd.f32 %v2791, %v2921
  %2923 = vmatprep.mubr.bf16.mxu0 %v650
  %2924 = vmatmul.mubr.bf16.gmra.mrb[0].mxu0 %v649
  %v2925 = vpop.f32.mrb[0].mxu0
  %v2926 = vadd.f32 %v2795, %v2925
  %v2927 = vpop.f32.mrb[0].mxu0
  %v2928 = vadd.f32 %v2797, %v2927
  %v2929 = vpop.f32.mrb[0].mxu0
  %v2930 = vadd.f32 %v2799, %v2929
  %v2931 = vpop.f32.mrb[0].mxu0
  %v2932 = vadd.f32 %v2801, %v2931
  %2933 = vmatprep.mubr.bf16.mxu0 %v656
  %2934 = vmatmul.mubr.bf16.gmra.mrb[0].mxu0 %v655
  %v2935 = vpop.f32.mrb[0].mxu0
  %v2936 = vadd.f32 %v2805, %v2935
  %v2937 = vpop.f32.mrb[0].mxu0
  %v2938 = vadd.f32 %v2807, %v2937
  %v2939 = vpop.f32.mrb[0].mxu0
  %v2940 = vadd.f32 %v2809, %v2939
  %v2941 = vpop.f32.mrb[0].mxu0
  %v2942 = vadd.f32 %v2811, %v2941
  %2943 = vmatprep.mubr.bf16.mxu0 %v662
  %2944 = vmatmul.mubr.bf16.gmra.mrb[0].mxu0 %v661
  %v2945 = vpop.f32.mrb[0].mxu0
  %v2946 = vadd.f32 %v2815, %v2945
  %v2947 = vpop.f32.mrb[0].mxu0
  %v2948 = vadd.f32 %v2817, %v2947
  %v2949 = vpop.f32.mrb[0].mxu0
  %v2950 = vadd.f32 %v2819, %v2949
  %v2951 = vpop.f32.mrb[0].mxu0
  %v2952 = vadd.f32 %v2821, %v2951
  %2953 = vmatprep.mubr.bf16.mxu0 %v668
  %2954 = vmatmul.mubr.bf16.gmra.mrb[0].mxu0 %v667
  %v2955 = vpop.f32.mrb[0].mxu0
  %v2956 = vadd.f32 %v2825, %v2955
  %v2957 = vpop.f32.mrb[0].mxu0
  %v2958 = vadd.f32 %v2827, %v2957
  %v2959 = vpop.f32.mrb[0].mxu0
  %v2960 = vpop.f32.mrb[0].mxu0
  %2961 = vdwg.mxu0
  %2962 = vmatprep.subr.bf16.mxu0 %v1883
  %2963 = vmatpush1.bf16.msra.mxu0 %v1882
  %2964 = vmatprep.subr.bf16.mxu0 %v1890
  %2965 = vmatpush1.bf16.msra.mxu0 %v1889
  %2966 = vmatprep.subr.bf16.mxu0 %v1897
  %2967 = vmatpush1.bf16.msra.mxu0 %v1896
  %2968 = vmatprep.subr.bf16.mxu0 %v1904
  %2969 = vmatpush1.bf16.msra.mxu0 %v1903
  %2970 = vmatprep.subr.bf16.mxu0 %v1911
  %2971 = vmatpush1.bf16.msra.mxu0 %v1910
  %2972 = vmatprep.subr.bf16.mxu0 %v1918
  %2973 = vmatpush1.bf16.msra.mxu0 %v1917
  %2974 = vmatprep.subr.bf16.mxu0 %v1925
  %2975 = vmatpush1.bf16.msra.mxu0 %v1924
  %2976 = vmatprep.subr.bf16.mxu0 %v1932
  %2977 = vmatpush1.bf16.msra.mxu0 %v1931
  %2978 = vmatprep.subr.bf16.mxu0 %v1939
  %2979 = vmatpush1.bf16.msra.mxu0 %v1938
  %2980 = vmatprep.subr.bf16.mxu0 %v1946
  %2981 = vmatpush1.bf16.msra.mxu0 %v1945
  %2982 = vmatprep.subr.bf16.mxu0 %v2296
  %2983 = vmatpush1.bf16.msra.mxu0 %v2293
  %2984 = vmatprep.subr.bf16.mxu0 0
  %2985 = vmatpush1.bf16.msra.mxu0 0
  %2986 = vmatprep.subr.bf16.mxu0 0
  %2987 = vmatpush1.bf16.msra.mxu0 0
  %2988 = vmatprep.subr.bf16.mxu0 0
  %2989 = vmatpush1.bf16.msra.mxu0 0
  %2990 = vmatprep.subr.bf16.mxu0 0
  %2991 = vmatpush1.bf16.msra.mxu0 0
  %2992 = vmatprep.subr.bf16.mxu0 0
  %2993 = vmatpush1.bf16.msra.mxu0 0
  %2994 = vmatprep.mubr.bf16.mxu0 %v2253
  %2995 = vmatmul.mubr.bf16.gmra.mrb[0].mxu0 %v615
  %v2996 = vpop.f32.mrb[0].mxu0
  %v2997 = vadd.f32 %v2866, %v2996
  %v2998 = vpop.f32.mrb[0].mxu0
  %v2999 = vadd.f32 %v2868, %v2998
  %v3000 = vpop.f32.mrb[0].mxu0
  %v3001 = vadd.f32 %v2870, %v3000
  %v3002 = vpop.f32.mrb[0].mxu0
  %v3003 = vadd.f32 %v2872, %v3002
  %3004 = vmatprep.mubr.bf16.mxu0 %v2256
  %3005 = vmatmul.mubr.bf16.gmra.mrb[0].mxu0 %v621
  %v3006 = vpop.f32.mrb[0].mxu0
  %v3007 = vadd.f32 %v2876, %v3006
  %v3008 = vpop.f32.mrb[0].mxu0
  %v3009 = vadd.f32 %v2878, %v3008
  %v3010 = vpop.f32.mrb[0].mxu0
  %v3011 = vadd.f32 %v2880, %v3010
  %v3012 = vpop.f32.mrb[0].mxu0
  %v3013 = vadd.f32 %v2882, %v3012
  %3014 = vmatprep.mubr.bf16.mxu0 %v2259
  %3015 = vmatmul.mubr.bf16.gmra.mrb[0].mxu0 %v627
  %v3016 = vpop.f32.mrb[0].mxu0
  %v3017 = vadd.f32 %v2886, %v3016
  %v3018 = vpop.f32.mrb[0].mxu0
  %v3019 = vadd.f32 %v2888, %v3018
  %v3020 = vpop.f32.mrb[0].mxu0
  %v3021 = vadd.f32 %v2890, %v3020
  %v3022 = vpop.f32.mrb[0].mxu0
  %v3023 = vadd.f32 %v2892, %v3022
  %3024 = vmatprep.mubr.bf16.mxu0 %v2262
  %3025 = vmatmul.mubr.bf16.gmra.mrb[0].mxu0 %v633
  %v3026 = vpop.f32.mrb[0].mxu0
  %v3027 = vadd.f32 %v2896, %v3026
  %v3028 = vpop.f32.mrb[0].mxu0
  %v3029 = vadd.f32 %v2898, %v3028
  %v3030 = vpop.f32.mrb[0].mxu0
  %v3031 = vadd.f32 %v2900, %v3030
  %v3032 = vpop.f32.mrb[0].mxu0
  %v3033 = vadd.f32 %v2902, %v3032
  %3034 = vmatprep.mubr.bf16.mxu0 %v2265
  %3035 = vmatmul.mubr.bf16.gmra.mrb[0].mxu0 %v639
  %v3036 = vpop.f32.mrb[0].mxu0
  %v3037 = vadd.f32 %v2906, %v3036
  %v3038 = vpop.f32.mrb[0].mxu0
  %v3039 = vadd.f32 %v2908, %v3038
  %v3040 = vpop.f32.mrb[0].mxu0
  %v3041 = vadd.f32 %v2910, %v3040
  %v3042 = vpop.f32.mrb[0].mxu0
  %v3043 = vadd.f32 %v2912, %v3042
  %3044 = vmatprep.mubr.bf16.mxu0 %v2268
  %3045 = vmatmul.mubr.bf16.gmra.mrb[0].mxu0 %v645
  %v3046 = vpop.f32.mrb[0].mxu0
  %v3047 = vadd.f32 %v2916, %v3046
  %v3048 = vpop.f32.mrb[0].mxu0
  %v3049 = vadd.f32 %v2918, %v3048
  %v3050 = vpop.f32.mrb[0].mxu0
  %v3051 = vadd.f32 %v2920, %v3050
  %v3052 = vpop.f32.mrb[0].mxu0
  %v3053 = vadd.f32 %v2922, %v3052
  %3054 = vmatprep.mubr.bf16.mxu0 %v2271
  %3055 = vmatmul.mubr.bf16.gmra.mrb[0].mxu0 %v651
  %v3056 = vpop.f32.mrb[0].mxu0
  %v3057 = vadd.f32 %v2926, %v3056
  %v3058 = vpop.f32.mrb[0].mxu0
  %v3059 = vadd.f32 %v2928, %v3058
  %v3060 = vpop.f32.mrb[0].mxu0
  %v3061 = vadd.f32 %v2930, %v3060
  %v3062 = vpop.f32.mrb[0].mxu0
  %v3063 = vadd.f32 %v2932, %v3062
  %3064 = vmatprep.mubr.bf16.mxu0 %v2274
  %3065 = vmatmul.mubr.bf16.gmra.mrb[0].mxu0 %v657
  %v3066 = vpop.f32.mrb[0].mxu0
  %v3067 = vadd.f32 %v2936, %v3066
  %v3068 = vpop.f32.mrb[0].mxu0
  %v3069 = vadd.f32 %v2938, %v3068
  %v3070 = vpop.f32.mrb[0].mxu0
  %v3071 = vadd.f32 %v2940, %v3070
  %v3072 = vpop.f32.mrb[0].mxu0
  %v3073 = vadd.f32 %v2942, %v3072
  %3074 = vmatprep.mubr.bf16.mxu0 %v2277
  %3075 = vmatmul.mubr.bf16.gmra.mrb[0].mxu0 %v663
  %v3076 = vpop.f32.mrb[0].mxu0
  %v3077 = vadd.f32 %v2946, %v3076
  %v3078 = vpop.f32.mrb[0].mxu0
  %v3079 = vadd.f32 %v2948, %v3078
  %v3080 = vpop.f32.mrb[0].mxu0
  %v3081 = vadd.f32 %v2950, %v3080
  %v3082 = vpop.f32.mrb[0].mxu0
  %v3083 = vadd.f32 %v2952, %v3082
  %3084 = vmatprep.mubr.bf16.mxu0 %v2280
  %3085 = vmatmul.mubr.bf16.gmra.mrb[0].mxu0 %v669
  %v3086 = vpop.f32.mrb[0].mxu0
  %v3087 = vadd.f32 %v2956, %v3086
  %v3088 = vpop.f32.mrb[0].mxu0
  %v3089 = vadd.f32 %v2958, %v3088
  %v3090 = vpop.f32.mrb[0].mxu0
  %v3091 = vpop.f32.mrb[0].mxu0
  %3092 = vdwg.mxu0
  %3093 = vmatprep.subr.bf16.mxu0 %v1661
  %3094 = vmatpush1.bf16.msra.mxu0 %v1660
  %3095 = vmatprep.subr.bf16.mxu0 %v1668
  %3096 = vmatpush1.bf16.msra.mxu0 %v1667
  %3097 = vmatprep.subr.bf16.mxu0 %v1675
  %3098 = vmatpush1.bf16.msra.mxu0 %v1674
  %3099 = vmatprep.subr.bf16.mxu0 %v1682
  %3100 = vmatpush1.bf16.msra.mxu0 %v1681
  %3101 = vmatprep.subr.bf16.mxu0 %v1689
  %3102 = vmatpush1.bf16.msra.mxu0 %v1688
  %3103 = vmatprep.subr.bf16.mxu0 %v1696
  %3104 = vmatpush1.bf16.msra.mxu0 %v1695
  %3105 = vmatprep.subr.bf16.mxu0 %v1703
  %3106 = vmatpush1.bf16.msra.mxu0 %v1702
  %3107 = vmatprep.subr.bf16.mxu0 %v1710
  %3108 = vmatpush1.bf16.msra.mxu0 %v1709
  %3109 = vmatprep.subr.bf16.mxu0 %v1717
  %3110 = vmatpush1.bf16.msra.mxu0 %v1716
  %3111 = vmatprep.subr.bf16.mxu0 %v1724
  %3112 = vmatpush1.bf16.msra.mxu0 %v1723
  %3113 = vmatprep.subr.bf16.mxu0 %v1731
  %3114 = vmatpush1.bf16.msra.mxu0 %v1730
  %3115 = vmatprep.subr.bf16.mxu0 %v1738
  %3116 = vmatpush1.bf16.msra.mxu0 %v1737
  %3117 = vmatprep.subr.bf16.mxu0 %v1745
  %3118 = vmatpush1.bf16.msra.mxu0 %v1744
  %3119 = vmatprep.subr.bf16.mxu0 %v1752
  %3120 = vmatpush1.bf16.msra.mxu0 %v1751
  %3121 = vmatprep.subr.bf16.mxu0 %v1759
  %3122 = vmatpush1.bf16.msra.mxu0 %v1758
  %3123 = vmatprep.subr.bf16.mxu0 %v1766
  %3124 = vmatpush1.bf16.msra.mxu0 %v1765
  %3125 = vmatprep.mubr.bf16.mxu0 %v612
  %3126 = vmatmul.mubr.bf16.gmra.mrb[0].mxu0 %v611
  %v3127 = vpop.f32.mrb[0].mxu0
  %v3128 = vadd.f32 0.0, %v3127
  %v3129 = vpop.f32.mrb[0].mxu0
  %v3130 = vadd.f32 0.0, %v3129
  %v3131 = vpop.f32.mrb[0].mxu0
  %v3132 = vadd.f32 0.0, %v3131
  %v3133 = vpop.f32.mrb[0].mxu0
  %v3134 = vadd.f32 0.0, %v3133
  %3135 = vmatprep.mubr.bf16.mxu0 %v618
  %3136 = vmatmul.mubr.bf16.gmra.mrb[0].mxu0 %v617
  %v3137 = vpop.f32.mrb[0].mxu0
  %v3138 = vadd.f32 0.0, %v3137
  %v3139 = vpop.f32.mrb[0].mxu0
  %v3140 = vadd.f32 0.0, %v3139
  %v3141 = vpop.f32.mrb[0].mxu0
  %v3142 = vadd.f32 0.0, %v3141
  %v3143 = vpop.f32.mrb[0].mxu0
  %v3144 = vadd.f32 0.0, %v3143
  %3145 = vmatprep.mubr.bf16.mxu0 %v624
  %3146 = vmatmul.mubr.bf16.gmra.mrb[0].mxu0 %v623
  %v3147 = vpop.f32.mrb[0].mxu0
  %v3148 = vadd.f32 0.0, %v3147
  %v3149 = vpop.f32.mrb[0].mxu0
  %v3150 = vadd.f32 0.0, %v3149
  %v3151 = vpop.f32.mrb[0].mxu0
  %v3152 = vadd.f32 0.0, %v3151
  %v3153 = vpop.f32.mrb[0].mxu0
  %v3154 = vadd.f32 0.0, %v3153
  %3155 = vmatprep.mubr.bf16.mxu0 %v630
  %3156 = vmatmul.mubr.bf16.gmra.mrb[0].mxu0 %v629
  %v3157 = vpop.f32.mrb[0].mxu0
  %v3158 = vadd.f32 0.0, %v3157
  %v3159 = vpop.f32.mrb[0].mxu0
  %v3160 = vadd.f32 0.0, %v3159
  %v3161 = vpop.f32.mrb[0].mxu0
  %v3162 = vadd.f32 0.0, %v3161
  %v3163 = vpop.f32.mrb[0].mxu0
  %v3164 = vadd.f32 0.0, %v3163
  %3165 = vmatprep.mubr.bf16.mxu0 %v636
  %3166 = vmatmul.mubr.bf16.gmra.mrb[0].mxu0 %v635
  %v3167 = vpop.f32.mrb[0].mxu0
  %v3168 = vadd.f32 0.0, %v3167
  %v3169 = vpop.f32.mrb[0].mxu0
  %v3170 = vadd.f32 0.0, %v3169
  %v3171 = vpop.f32.mrb[0].mxu0
  %v3172 = vadd.f32 0.0, %v3171
  %v3173 = vpop.f32.mrb[0].mxu0
  %v3174 = vadd.f32 0.0, %v3173
  %3175 = vmatprep.mubr.bf16.mxu0 %v642
  %3176 = vmatmul.mubr.bf16.gmra.mrb[0].mxu0 %v641
  %v3177 = vpop.f32.mrb[0].mxu0
  %v3178 = vadd.f32 0.0, %v3177
  %v3179 = vpop.f32.mrb[0].mxu0
  %v3180 = vadd.f32 0.0, %v3179
  %v3181 = vpop.f32.mrb[0].mxu0
  %v3182 = vadd.f32 0.0, %v3181
  %v3183 = vpop.f32.mrb[0].mxu0
  %v3184 = vadd.f32 0.0, %v3183
  %3185 = vmatprep.mubr.bf16.mxu0 %v648
  %3186 = vmatmul.mubr.bf16.gmra.mrb[0].mxu0 %v647
  %v3187 = vpop.f32.mrb[0].mxu0
  %v3188 = vadd.f32 0.0, %v3187
  %v3189 = vpop.f32.mrb[0].mxu0
  %v3190 = vadd.f32 0.0, %v3189
  %v3191 = vpop.f32.mrb[0].mxu0
  %v3192 = vadd.f32 0.0, %v3191
  %v3193 = vpop.f32.mrb[0].mxu0
  %v3194 = vadd.f32 0.0, %v3193
  %3195 = vmatprep.mubr.bf16.mxu0 %v654
  %3196 = vmatmul.mubr.bf16.gmra.mrb[0].mxu0 %v653
  %v3197 = vpop.f32.mrb[0].mxu0
  %v3198 = vadd.f32 0.0, %v3197
  %v3199 = vpop.f32.mrb[0].mxu0
  %v3200 = vadd.f32 0.0, %v3199
  %v3201 = vpop.f32.mrb[0].mxu0
  %v3202 = vadd.f32 0.0, %v3201
  %v3203 = vpop.f32.mrb[0].mxu0
  %v3204 = vadd.f32 0.0, %v3203
  %3205 = vmatprep.mubr.bf16.mxu0 %v660
  %3206 = vmatmul.mubr.bf16.gmra.mrb[0].mxu0 %v659
  %v3207 = vpop.f32.mrb[0].mxu0
  %v3208 = vadd.f32 0.0, %v3207
  %v3209 = vpop.f32.mrb[0].mxu0
  %v3210 = vadd.f32 0.0, %v3209
  %v3211 = vpop.f32.mrb[0].mxu0
  %v3212 = vadd.f32 0.0, %v3211
  %v3213 = vpop.f32.mrb[0].mxu0
  %v3214 = vadd.f32 0.0, %v3213
  %3215 = vmatprep.mubr.bf16.mxu0 %v666
  %3216 = vmatmul.mubr.bf16.gmra.mrb[0].mxu0 %v665
  %v3217 = vpop.f32.mrb[0].mxu0
  %v3218 = vadd.f32 0.0, %v3217
  %v3219 = vpop.f32.mrb[0].mxu0
  %v3220 = vadd.f32 0.0, %v3219
  %v3221 = vpop.f32.mrb[0].mxu0
  %v3222 = vpop.f32.mrb[0].mxu0
  %3223 = vdwg.mxu0
  %3224 = vmatprep.subr.bf16.mxu0 %v1773
  %3225 = vmatpush1.bf16.msra.mxu0 %v1772
  %3226 = vmatprep.subr.bf16.mxu0 %v1780
  %3227 = vmatpush1.bf16.msra.mxu0 %v1779
  %3228 = vmatprep.subr.bf16.mxu0 %v1787
  %3229 = vmatpush1.bf16.msra.mxu0 %v1786
  %3230 = vmatprep.subr.bf16.mxu0 %v1794
  %3231 = vmatpush1.bf16.msra.mxu0 %v1793
  %3232 = vmatprep.subr.bf16.mxu0 %v1801
  %3233 = vmatpush1.bf16.msra.mxu0 %v1800
  %3234 = vmatprep.subr.bf16.mxu0 %v1808
  %3235 = vmatpush1.bf16.msra.mxu0 %v1807
  %3236 = vmatprep.subr.bf16.mxu0 %v1815
  %3237 = vmatpush1.bf16.msra.mxu0 %v1814
  %3238 = vmatprep.subr.bf16.mxu0 %v1822
  %3239 = vmatpush1.bf16.msra.mxu0 %v1821
  %3240 = vmatprep.subr.bf16.mxu0 %v1829
  %3241 = vmatpush1.bf16.msra.mxu0 %v1828
  %3242 = vmatprep.subr.bf16.mxu0 %v1836
  %3243 = vmatpush1.bf16.msra.mxu0 %v1835
  %3244 = vmatprep.subr.bf16.mxu0 %v1843
  %3245 = vmatpush1.bf16.msra.mxu0 %v1842
  %3246 = vmatprep.subr.bf16.mxu0 %v1850
  %3247 = vmatpush1.bf16.msra.mxu0 %v1849
  %3248 = vmatprep.subr.bf16.mxu0 %v1857
  %3249 = vmatpush1.bf16.msra.mxu0 %v1856
  %3250 = vmatprep.subr.bf16.mxu0 %v1864
  %3251 = vmatpush1.bf16.msra.mxu0 %v1863
  %3252 = vmatprep.subr.bf16.mxu0 %v1871
  %3253 = vmatpush1.bf16.msra.mxu0 %v1870
  %3254 = vmatprep.subr.bf16.mxu0 %v1878
  %3255 = vmatpush1.bf16.msra.mxu0 %v1877
  %3256 = vmatprep.mubr.bf16.mxu0 %v614
  %3257 = vmatmul.mubr.bf16.gmra.mrb[0].mxu0 %v613
  %v3258 = vpop.f32.mrb[0].mxu0
  %v3259 = vadd.f32 %v3128, %v3258
  %v3260 = vpop.f32.mrb[0].mxu0
  %v3261 = vadd.f32 %v3130, %v3260
  %v3262 = vpop.f32.mrb[0].mxu0
  %v3263 = vadd.f32 %v3132, %v3262
  %v3264 = vpop.f32.mrb[0].mxu0
  %v3265 = vadd.f32 %v3134, %v3264
  %3266 = vmatprep.mubr.bf16.mxu0 %v620
  %3267 = vmatmul.mubr.bf16.gmra.mrb[0].mxu0 %v619
  %v3268 = vpop.f32.mrb[0].mxu0
  %v3269 = vadd.f32 %v3138, %v3268
  %v3270 = vpop.f32.mrb[0].mxu0
  %v3271 = vadd.f32 %v3140, %v3270
  %v3272 = vpop.f32.mrb[0].mxu0
  %v3273 = vadd.f32 %v3142, %v3272
  %v3274 = vpop.f32.mrb[0].mxu0
  %v3275 = vadd.f32 %v3144, %v3274
  %3276 = vmatprep.mubr.bf16.mxu0 %v626
  %3277 = vmatmul.mubr.bf16.gmra.mrb[0].mxu0 %v625
  %v3278 = vpop.f32.mrb[0].mxu0
  %v3279 = vadd.f32 %v3148, %v3278
  %v3280 = vpop.f32.mrb[0].mxu0
  %v3281 = vadd.f32 %v3150, %v3280
  %v3282 = vpop.f32.mrb[0].mxu0
  %v3283 = vadd.f32 %v3152, %v3282
  %v3284 = vpop.f32.mrb[0].mxu0
  %v3285 = vadd.f32 %v3154, %v3284
  %3286 = vmatprep.mubr.bf16.mxu0 %v632
  %3287 = vmatmul.mubr.bf16.gmra.mrb[0].mxu0 %v631
  %v3288 = vpop.f32.mrb[0].mxu0
  %v3289 = vadd.f32 %v3158, %v3288
  %v3290 = vpop.f32.mrb[0].mxu0
  %v3291 = vadd.f32 %v3160, %v3290
  %v3292 = vpop.f32.mrb[0].mxu0
  %v3293 = vadd.f32 %v3162, %v3292
  %v3294 = vpop.f32.mrb[0].mxu0
  %v3295 = vadd.f32 %v3164, %v3294
  %3296 = vmatprep.mubr.bf16.mxu0 %v638
  %3297 = vmatmul.mubr.bf16.gmra.mrb[0].mxu0 %v637
  %v3298 = vpop.f32.mrb[0].mxu0
  %v3299 = vadd.f32 %v3168, %v3298
  %v3300 = vpop.f32.mrb[0].mxu0
  %v3301 = vadd.f32 %v3170, %v3300
  %v3302 = vpop.f32.mrb[0].mxu0
  %v3303 = vadd.f32 %v3172, %v3302
  %v3304 = vpop.f32.mrb[0].mxu0
  %v3305 = vadd.f32 %v3174, %v3304
  %3306 = vmatprep.mubr.bf16.mxu0 %v644
  %3307 = vmatmul.mubr.bf16.gmra.mrb[0].mxu0 %v643
  %v3308 = vpop.f32.mrb[0].mxu0
  %v3309 = vadd.f32 %v3178, %v3308
  %v3310 = vpop.f32.mrb[0].mxu0
  %v3311 = vadd.f32 %v3180, %v3310
  %v3312 = vpop.f32.mrb[0].mxu0
  %v3313 = vadd.f32 %v3182, %v3312
  %v3314 = vpop.f32.mrb[0].mxu0
  %v3315 = vadd.f32 %v3184, %v3314
  %3316 = vmatprep.mubr.bf16.mxu0 %v650
  %3317 = vmatmul.mubr.bf16.gmra.mrb[0].mxu0 %v649
  %v3318 = vpop.f32.mrb[0].mxu0
  %v3319 = vadd.f32 %v3188, %v3318
  %v3320 = vpop.f32.mrb[0].mxu0
  %v3321 = vadd.f32 %v3190, %v3320
  %v3322 = vpop.f32.mrb[0].mxu0
  %v3323 = vadd.f32 %v3192, %v3322
  %v3324 = vpop.f32.mrb[0].mxu0
  %v3325 = vadd.f32 %v3194, %v3324
  %3326 = vmatprep.mubr.bf16.mxu0 %v656
  %3327 = vmatmul.mubr.bf16.gmra.mrb[0].mxu0 %v655
  %v3328 = vpop.f32.mrb[0].mxu0
  %v3329 = vadd.f32 %v3198, %v3328
  %v3330 = vpop.f32.mrb[0].mxu0
  %v3331 = vadd.f32 %v3200, %v3330
  %v3332 = vpop.f32.mrb[0].mxu0
  %v3333 = vadd.f32 %v3202, %v3332
  %v3334 = vpop.f32.mrb[0].mxu0
  %v3335 = vadd.f32 %v3204, %v3334
  %3336 = vmatprep.mubr.bf16.mxu0 %v662
  %3337 = vmatmul.mubr.bf16.gmra.mrb[0].mxu0 %v661
  %v3338 = vpop.f32.mrb[0].mxu0
  %v3339 = vadd.f32 %v3208, %v3338
  %v3340 = vpop.f32.mrb[0].mxu0
  %v3341 = vadd.f32 %v3210, %v3340
  %v3342 = vpop.f32.mrb[0].mxu0
  %v3343 = vadd.f32 %v3212, %v3342
  %v3344 = vpop.f32.mrb[0].mxu0
  %v3345 = vadd.f32 %v3214, %v3344
  %3346 = vmatprep.mubr.bf16.mxu0 %v668
  %3347 = vmatmul.mubr.bf16.gmra.mrb[0].mxu0 %v667
  %v3348 = vpop.f32.mrb[0].mxu0
  %v3349 = vadd.f32 %v3218, %v3348
  %v3350 = vpop.f32.mrb[0].mxu0
  %v3351 = vadd.f32 %v3220, %v3350
  %v3352 = vpop.f32.mrb[0].mxu0
  %v3353 = vpop.f32.mrb[0].mxu0
  %3354 = vdwg.mxu0
  %3355 = vmatprep.subr.bf16.mxu0 %v1885
  %3356 = vmatpush1.bf16.msra.mxu0 %v1884
  %3357 = vmatprep.subr.bf16.mxu0 %v1892
  %3358 = vmatpush1.bf16.msra.mxu0 %v1891
  %3359 = vmatprep.subr.bf16.mxu0 %v1899
  %3360 = vmatpush1.bf16.msra.mxu0 %v1898
  %3361 = vmatprep.subr.bf16.mxu0 %v1906
  %3362 = vmatpush1.bf16.msra.mxu0 %v1905
  %3363 = vmatprep.subr.bf16.mxu0 %v1913
  %3364 = vmatpush1.bf16.msra.mxu0 %v1912
  %3365 = vmatprep.subr.bf16.mxu0 %v1920
  %3366 = vmatpush1.bf16.msra.mxu0 %v1919
  %3367 = vmatprep.subr.bf16.mxu0 %v1927
  %3368 = vmatpush1.bf16.msra.mxu0 %v1926
  %3369 = vmatprep.subr.bf16.mxu0 %v1934
  %3370 = vmatpush1.bf16.msra.mxu0 %v1933
  %3371 = vmatprep.subr.bf16.mxu0 %v1941
  %3372 = vmatpush1.bf16.msra.mxu0 %v1940
  %3373 = vmatprep.subr.bf16.mxu0 %v1948
  %3374 = vmatpush1.bf16.msra.mxu0 %v1947
  %3375 = vmatprep.subr.bf16.mxu0 %v2302
  %3376 = vmatpush1.bf16.msra.mxu0 %v2299
  %3377 = vmatprep.subr.bf16.mxu0 0
  %3378 = vmatpush1.bf16.msra.mxu0 0
  %3379 = vmatprep.subr.bf16.mxu0 0
  %3380 = vmatpush1.bf16.msra.mxu0 0
  %3381 = vmatprep.subr.bf16.mxu0 0
  %3382 = vmatpush1.bf16.msra.mxu0 0
  %3383 = vmatprep.subr.bf16.mxu0 0
  %3384 = vmatpush1.bf16.msra.mxu0 0
  %3385 = vmatprep.subr.bf16.mxu0 0
  %3386 = vmatpush1.bf16.msra.mxu0 0
  %3387 = vmatprep.mubr.bf16.mxu0 %v2253
  %3388 = vmatmul.mubr.bf16.gmra.mrb[0].mxu0 %v615
  %v3389 = vpop.f32.mrb[0].mxu0
  %v3390 = vadd.f32 %v3259, %v3389
  %v3391 = vpop.f32.mrb[0].mxu0
  %v3392 = vadd.f32 %v3261, %v3391
  %v3393 = vpop.f32.mrb[0].mxu0
  %v3394 = vadd.f32 %v3263, %v3393
  %v3395 = vpop.f32.mrb[0].mxu0
  %v3396 = vadd.f32 %v3265, %v3395
  %3397 = vmatprep.mubr.bf16.mxu0 %v2256
  %3398 = vmatmul.mubr.bf16.gmra.mrb[0].mxu0 %v621
  %v3399 = vpop.f32.mrb[0].mxu0
  %v3400 = vadd.f32 %v3269, %v3399
  %v3401 = vpop.f32.mrb[0].mxu0
  %v3402 = vadd.f32 %v3271, %v3401
  %v3403 = vpop.f32.mrb[0].mxu0
  %v3404 = vadd.f32 %v3273, %v3403
  %v3405 = vpop.f32.mrb[0].mxu0
  %v3406 = vadd.f32 %v3275, %v3405
  %3407 = vmatprep.mubr.bf16.mxu0 %v2259
  %3408 = vmatmul.mubr.bf16.gmra.mrb[0].mxu0 %v627
  %v3409 = vpop.f32.mrb[0].mxu0
  %v3410 = vadd.f32 %v3279, %v3409
  %v3411 = vpop.f32.mrb[0].mxu0
  %v3412 = vadd.f32 %v3281, %v3411
  %v3413 = vpop.f32.mrb[0].mxu0
  %v3414 = vadd.f32 %v3283, %v3413
  %v3415 = vpop.f32.mrb[0].mxu0
  %v3416 = vadd.f32 %v3285, %v3415
  %3417 = vmatprep.mubr.bf16.mxu0 %v2262
  %3418 = vmatmul.mubr.bf16.gmra.mrb[0].mxu0 %v633
  %v3419 = vpop.f32.mrb[0].mxu0
  %v3420 = vadd.f32 %v3289, %v3419
  %v3421 = vpop.f32.mrb[0].mxu0
  %v3422 = vadd.f32 %v3291, %v3421
  %v3423 = vpop.f32.mrb[0].mxu0
  %v3424 = vadd.f32 %v3293, %v3423
  %v3425 = vpop.f32.mrb[0].mxu0
  %v3426 = vadd.f32 %v3295, %v3425
  %3427 = vmatprep.mubr.bf16.mxu0 %v2265
  %3428 = vmatmul.mubr.bf16.gmra.mrb[0].mxu0 %v639
  %v3429 = vpop.f32.mrb[0].mxu0
  %v3430 = vadd.f32 %v3299, %v3429
  %v3431 = vpop.f32.mrb[0].mxu0
  %v3432 = vadd.f32 %v3301, %v3431
  %v3433 = vpop.f32.mrb[0].mxu0
  %v3434 = vadd.f32 %v3303, %v3433
  %v3435 = vpop.f32.mrb[0].mxu0
  %v3436 = vadd.f32 %v3305, %v3435
  %3437 = vmatprep.mubr.bf16.mxu0 %v2268
  %3438 = vmatmul.mubr.bf16.gmra.mrb[0].mxu0 %v645
  %v3439 = vpop.f32.mrb[0].mxu0
  %v3440 = vadd.f32 %v3309, %v3439
  %v3441 = vpop.f32.mrb[0].mxu0
  %v3442 = vadd.f32 %v3311, %v3441
  %v3443 = vpop.f32.mrb[0].mxu0
  %v3444 = vadd.f32 %v3313, %v3443
  %v3445 = vpop.f32.mrb[0].mxu0
  %v3446 = vadd.f32 %v3315, %v3445
  %3447 = vmatprep.mubr.bf16.mxu0 %v2271
  %3448 = vmatmul.mubr.bf16.gmra.mrb[0].mxu0 %v651
  %v3449 = vpop.f32.mrb[0].mxu0
  %v3450 = vadd.f32 %v3319, %v3449
  %v3451 = vpop.f32.mrb[0].mxu0
  %v3452 = vadd.f32 %v3321, %v3451
  %v3453 = vpop.f32.mrb[0].mxu0
  %v3454 = vadd.f32 %v3323, %v3453
  %v3455 = vpop.f32.mrb[0].mxu0
  %v3456 = vadd.f32 %v3325, %v3455
  %3457 = vmatprep.mubr.bf16.mxu0 %v2274
  %3458 = vmatmul.mubr.bf16.gmra.mrb[0].mxu0 %v657
  %v3459 = vpop.f32.mrb[0].mxu0
  %v3460 = vadd.f32 %v3329, %v3459
  %v3461 = vpop.f32.mrb[0].mxu0
  %v3462 = vadd.f32 %v3331, %v3461
  %v3463 = vpop.f32.mrb[0].mxu0
  %v3464 = vadd.f32 %v3333, %v3463
  %v3465 = vpop.f32.mrb[0].mxu0
  %v3466 = vadd.f32 %v3335, %v3465
  %3467 = vmatprep.mubr.bf16.mxu0 %v2277
  %3468 = vmatmul.mubr.bf16.gmra.mrb[0].mxu0 %v663
  %v3469 = vpop.f32.mrb[0].mxu0
  %v3470 = vadd.f32 %v3339, %v3469
  %v3471 = vpop.f32.mrb[0].mxu0
  %v3472 = vadd.f32 %v3341, %v3471
  %v3473 = vpop.f32.mrb[0].mxu0
  %v3474 = vadd.f32 %v3343, %v3473
  %v3475 = vpop.f32.mrb[0].mxu0
  %v3476 = vadd.f32 %v3345, %v3475
  %3477 = vmatprep.mubr.bf16.mxu0 %v2280
  %3478 = vmatmul.mubr.bf16.gmra.mrb[0].mxu0 %v669
  %v3479 = vpop.f32.mrb[0].mxu0
  %v3480 = vadd.f32 %v3349, %v3479
  %v3481 = vpop.f32.mrb[0].mxu0
  %v3482 = vadd.f32 %v3351, %v3481
  %v3483 = vpop.f32.mrb[0].mxu0
  %v3484 = vpop.f32.mrb[0].mxu0
  %3485 = vdwg.mxu0
  %3486 = vmatprep.subr.bf16.mxu0 0
  %3487 = vmatpush1.bf16.msra.mxu0 %v1662
  %3488 = vmatprep.subr.bf16.mxu0 0
  %3489 = vmatpush1.bf16.msra.mxu0 %v1669
  %3490 = vmatprep.subr.bf16.mxu0 0
  %3491 = vmatpush1.bf16.msra.mxu0 %v1676
  %3492 = vmatprep.subr.bf16.mxu0 0
  %3493 = vmatpush1.bf16.msra.mxu0 %v1683
  %3494 = vmatprep.subr.bf16.mxu0 0
  %3495 = vmatpush1.bf16.msra.mxu0 %v1690
  %3496 = vmatprep.subr.bf16.mxu0 0
  %3497 = vmatpush1.bf16.msra.mxu0 %v1697
  %3498 = vmatprep.subr.bf16.mxu0 0
  %3499 = vmatpush1.bf16.msra.mxu0 %v1704
  %3500 = vmatprep.subr.bf16.mxu0 0
  %3501 = vmatpush1.bf16.msra.mxu0 %v1711
  %3502 = vmatprep.subr.bf16.mxu0 0
  %3503 = vmatpush1.bf16.msra.mxu0 %v1718
  %3504 = vmatprep.subr.bf16.mxu0 0
  %3505 = vmatpush1.bf16.msra.mxu0 %v1725
  %3506 = vmatprep.subr.bf16.mxu0 0
  %3507 = vmatpush1.bf16.msra.mxu0 %v1732
  %3508 = vmatprep.subr.bf16.mxu0 0
  %3509 = vmatpush1.bf16.msra.mxu0 %v1739
  %3510 = vmatprep.subr.bf16.mxu0 0
  %3511 = vmatpush1.bf16.msra.mxu0 %v1746
  %3512 = vmatprep.subr.bf16.mxu0 0
  %3513 = vmatpush1.bf16.msra.mxu0 %v1753
  %3514 = vmatprep.subr.bf16.mxu0 0
  %3515 = vmatpush1.bf16.msra.mxu0 %v1760
  %3516 = vmatprep.subr.bf16.mxu0 0
  %3517 = vmatpush1.bf16.msra.mxu0 %v1767
  %3518 = vmatprep.mubr.bf16.mxu0 %v612
  %3519 = vmatmul.mubr.bf16.gmra.mrb[0].mxu0 %v611
  %v3520 = vpop.f32.mrb[0].mxu0
  %v3521 = vadd.f32 0.0, %v3520
  %v3522 = vpop.f32.mrb[0].mxu0
  %v3523 = vpop.f32.mrb[0].mxu0
  %v3524 = vadd.f32 0.0, %v3523
  %v3525 = vpop.f32.mrb[0].mxu0
  %3526 = vmatprep.mubr.bf16.mxu0 %v618
  %3527 = vmatmul.mubr.bf16.gmra.mrb[0].mxu0 %v617
  %v3528 = vpop.f32.mrb[0].mxu0
  %v3529 = vadd.f32 0.0, %v3528
  %v3530 = vpop.f32.mrb[0].mxu0
  %v3531 = vpop.f32.mrb[0].mxu0
  %v3532 = vadd.f32 0.0, %v3531
  %v3533 = vpop.f32.mrb[0].mxu0
  %3534 = vmatprep.mubr.bf16.mxu0 %v624
  %3535 = vmatmul.mubr.bf16.gmra.mrb[0].mxu0 %v623
  %v3536 = vpop.f32.mrb[0].mxu0
  %v3537 = vadd.f32 0.0, %v3536
  %v3538 = vpop.f32.mrb[0].mxu0
  %v3539 = vpop.f32.mrb[0].mxu0
  %v3540 = vadd.f32 0.0, %v3539
  %v3541 = vpop.f32.mrb[0].mxu0
  %3542 = vmatprep.mubr.bf16.mxu0 %v630
  %3543 = vmatmul.mubr.bf16.gmra.mrb[0].mxu0 %v629
  %v3544 = vpop.f32.mrb[0].mxu0
  %v3545 = vadd.f32 0.0, %v3544
  %v3546 = vpop.f32.mrb[0].mxu0
  %v3547 = vpop.f32.mrb[0].mxu0
  %v3548 = vadd.f32 0.0, %v3547
  %v3549 = vpop.f32.mrb[0].mxu0
  %3550 = vmatprep.mubr.bf16.mxu0 %v636
  %3551 = vmatmul.mubr.bf16.gmra.mrb[0].mxu0 %v635
  %v3552 = vpop.f32.mrb[0].mxu0
  %v3553 = vadd.f32 0.0, %v3552
  %v3554 = vpop.f32.mrb[0].mxu0
  %v3555 = vpop.f32.mrb[0].mxu0
  %v3556 = vadd.f32 0.0, %v3555
  %v3557 = vpop.f32.mrb[0].mxu0
  %3558 = vmatprep.mubr.bf16.mxu0 %v642
  %3559 = vmatmul.mubr.bf16.gmra.mrb[0].mxu0 %v641
  %v3560 = vpop.f32.mrb[0].mxu0
  %v3561 = vadd.f32 0.0, %v3560
  %v3562 = vpop.f32.mrb[0].mxu0
  %v3563 = vpop.f32.mrb[0].mxu0
  %v3564 = vadd.f32 0.0, %v3563
  %v3565 = vpop.f32.mrb[0].mxu0
  %3566 = vmatprep.mubr.bf16.mxu0 %v648
  %3567 = vmatmul.mubr.bf16.gmra.mrb[0].mxu0 %v647
  %v3568 = vpop.f32.mrb[0].mxu0
  %v3569 = vadd.f32 0.0, %v3568
  %v3570 = vpop.f32.mrb[0].mxu0
  %v3571 = vpop.f32.mrb[0].mxu0
  %v3572 = vadd.f32 0.0, %v3571
  %v3573 = vpop.f32.mrb[0].mxu0
  %3574 = vmatprep.mubr.bf16.mxu0 %v654
  %3575 = vmatmul.mubr.bf16.gmra.mrb[0].mxu0 %v653
  %v3576 = vpop.f32.mrb[0].mxu0
  %v3577 = vadd.f32 0.0, %v3576
  %v3578 = vpop.f32.mrb[0].mxu0
  %v3579 = vpop.f32.mrb[0].mxu0
  %v3580 = vadd.f32 0.0, %v3579
  %v3581 = vpop.f32.mrb[0].mxu0
  %3582 = vmatprep.mubr.bf16.mxu0 %v660
  %3583 = vmatmul.mubr.bf16.gmra.mrb[0].mxu0 %v659
  %v3584 = vpop.f32.mrb[0].mxu0
  %v3585 = vadd.f32 0.0, %v3584
  %v3586 = vpop.f32.mrb[0].mxu0
  %v3587 = vpop.f32.mrb[0].mxu0
  %v3588 = vadd.f32 0.0, %v3587
  %v3589 = vpop.f32.mrb[0].mxu0
  %3590 = vmatprep.mubr.bf16.mxu0 %v666
  %3591 = vmatmul.mubr.bf16.gmra.mrb[0].mxu0 %v665
  %v3592 = vpop.f32.mrb[0].mxu0
  %v3593 = vadd.f32 0.0, %v3592
  %v3594 = vpop.f32.mrb[0].mxu0
  %v3595 = vpop.f32.mrb[0].mxu0
  %v3596 = vpop.f32.mrb[0].mxu0
  %3597 = vdwg.mxu0
  %3598 = vmatprep.subr.bf16.mxu0 0
  %3599 = vmatpush1.bf16.msra.mxu0 %v1774
  %3600 = vmatprep.subr.bf16.mxu0 0
  %3601 = vmatpush1.bf16.msra.mxu0 %v1781
  %3602 = vmatprep.subr.bf16.mxu0 0
  %3603 = vmatpush1.bf16.msra.mxu0 %v1788
  %3604 = vmatprep.subr.bf16.mxu0 0
  %3605 = vmatpush1.bf16.msra.mxu0 %v1795
  %3606 = vmatprep.subr.bf16.mxu0 0
  %3607 = vmatpush1.bf16.msra.mxu0 %v1802
  %3608 = vmatprep.subr.bf16.mxu0 0
  %3609 = vmatpush1.bf16.msra.mxu0 %v1809
  %3610 = vmatprep.subr.bf16.mxu0 0
  %3611 = vmatpush1.bf16.msra.mxu0 %v1816
  %3612 = vmatprep.subr.bf16.mxu0 0
  %3613 = vmatpush1.bf16.msra.mxu0 %v1823
  %3614 = vmatprep.subr.bf16.mxu0 0
  %3615 = vmatpush1.bf16.msra.mxu0 %v1830
  %3616 = vmatprep.subr.bf16.mxu0 0
  %3617 = vmatpush1.bf16.msra.mxu0 %v1837
  %3618 = vmatprep.subr.bf16.mxu0 0
  %3619 = vmatpush1.bf16.msra.mxu0 %v1844
  %3620 = vmatprep.subr.bf16.mxu0 0
  %3621 = vmatpush1.bf16.msra.mxu0 %v1851
  %3622 = vmatprep.subr.bf16.mxu0 0
  %3623 = vmatpush1.bf16.msra.mxu0 %v1858
  %3624 = vmatprep.subr.bf16.mxu0 0
  %3625 = vmatpush1.bf16.msra.mxu0 %v1865
  %3626 = vmatprep.subr.bf16.mxu0 0
  %3627 = vmatpush1.bf16.msra.mxu0 %v1872
  %3628 = vmatprep.subr.bf16.mxu0 0
  %3629 = vmatpush1.bf16.msra.mxu0 %v1879
  %3630 = vmatprep.mubr.bf16.mxu0 %v614
  %3631 = vmatmul.mubr.bf16.gmra.mrb[0].mxu0 %v613
  %v3632 = vpop.f32.mrb[0].mxu0
  %v3633 = vadd.f32 %v3521, %v3632
  %v3634 = vpop.f32.mrb[0].mxu0
  %v3635 = vpop.f32.mrb[0].mxu0
  %v3636 = vadd.f32 %v3524, %v3635
  %v3637 = vpop.f32.mrb[0].mxu0
  %3638 = vmatprep.mubr.bf16.mxu0 %v620
  %3639 = vmatmul.mubr.bf16.gmra.mrb[0].mxu0 %v619
  %v3640 = vpop.f32.mrb[0].mxu0
  %v3641 = vadd.f32 %v3529, %v3640
  %v3642 = vpop.f32.mrb[0].mxu0
  %v3643 = vpop.f32.mrb[0].mxu0
  %v3644 = vadd.f32 %v3532, %v3643
  %v3645 = vpop.f32.mrb[0].mxu0
  %3646 = vmatprep.mubr.bf16.mxu0 %v626
  %3647 = vmatmul.mubr.bf16.gmra.mrb[0].mxu0 %v625
  %v3648 = vpop.f32.mrb[0].mxu0
  %v3649 = vadd.f32 %v3537, %v3648
  %v3650 = vpop.f32.mrb[0].mxu0
  %v3651 = vpop.f32.mrb[0].mxu0
  %v3652 = vadd.f32 %v3540, %v3651
  %v3653 = vpop.f32.mrb[0].mxu0
  %3654 = vmatprep.mubr.bf16.mxu0 %v632
  %3655 = vmatmul.mubr.bf16.gmra.mrb[0].mxu0 %v631
  %v3656 = vpop.f32.mrb[0].mxu0
  %v3657 = vadd.f32 %v3545, %v3656
  %v3658 = vpop.f32.mrb[0].mxu0
  %v3659 = vpop.f32.mrb[0].mxu0
  %v3660 = vadd.f32 %v3548, %v3659
  %v3661 = vpop.f32.mrb[0].mxu0
  %3662 = vmatprep.mubr.bf16.mxu0 %v638
  %3663 = vmatmul.mubr.bf16.gmra.mrb[0].mxu0 %v637
  %v3664 = vpop.f32.mrb[0].mxu0
  %v3665 = vadd.f32 %v3553, %v3664
  %v3666 = vpop.f32.mrb[0].mxu0
  %v3667 = vpop.f32.mrb[0].mxu0
  %v3668 = vadd.f32 %v3556, %v3667
  %v3669 = vpop.f32.mrb[0].mxu0
  %3670 = vmatprep.mubr.bf16.mxu0 %v644
  %3671 = vmatmul.mubr.bf16.gmra.mrb[0].mxu0 %v643
  %v3672 = vpop.f32.mrb[0].mxu0
  %v3673 = vadd.f32 %v3561, %v3672
  %v3674 = vpop.f32.mrb[0].mxu0
  %v3675 = vpop.f32.mrb[0].mxu0
  %v3676 = vadd.f32 %v3564, %v3675
  %v3677 = vpop.f32.mrb[0].mxu0
  %3678 = vmatprep.mubr.bf16.mxu0 %v650
  %3679 = vmatmul.mubr.bf16.gmra.mrb[0].mxu0 %v649
  %v3680 = vpop.f32.mrb[0].mxu0
  %v3681 = vadd.f32 %v3569, %v3680
  %v3682 = vpop.f32.mrb[0].mxu0
  %v3683 = vpop.f32.mrb[0].mxu0
  %v3684 = vadd.f32 %v3572, %v3683
  %v3685 = vpop.f32.mrb[0].mxu0
  %3686 = vmatprep.mubr.bf16.mxu0 %v656
  %3687 = vmatmul.mubr.bf16.gmra.mrb[0].mxu0 %v655
  %v3688 = vpop.f32.mrb[0].mxu0
  %v3689 = vadd.f32 %v3577, %v3688
  %v3690 = vpop.f32.mrb[0].mxu0
  %v3691 = vpop.f32.mrb[0].mxu0
  %v3692 = vadd.f32 %v3580, %v3691
  %v3693 = vpop.f32.mrb[0].mxu0
  %3694 = vmatprep.mubr.bf16.mxu0 %v662
  %3695 = vmatmul.mubr.bf16.gmra.mrb[0].mxu0 %v661
  %v3696 = vpop.f32.mrb[0].mxu0
  %v3697 = vadd.f32 %v3585, %v3696
  %v3698 = vpop.f32.mrb[0].mxu0
  %v3699 = vpop.f32.mrb[0].mxu0
  %v3700 = vadd.f32 %v3588, %v3699
  %v3701 = vpop.f32.mrb[0].mxu0
  %3702 = vmatprep.mubr.bf16.mxu0 %v668
  %3703 = vmatmul.mubr.bf16.gmra.mrb[0].mxu0 %v667
  %v3704 = vpop.f32.mrb[0].mxu0
  %v3705 = vadd.f32 %v3593, %v3704
  %v3706 = vpop.f32.mrb[0].mxu0
  %v3707 = vpop.f32.mrb[0].mxu0
  %v3708 = vpop.f32.mrb[0].mxu0
  %3709 = vdwg.mxu0
  %3710 = vmatprep.subr.bf16.mxu0 0
  %3711 = vmatpush1.bf16.msra.mxu0 %v1886
  %3712 = vmatprep.subr.bf16.mxu0 0
  %3713 = vmatpush1.bf16.msra.mxu0 %v1893
  %3714 = vmatprep.subr.bf16.mxu0 0
  %3715 = vmatpush1.bf16.msra.mxu0 %v1900
  %3716 = vmatprep.subr.bf16.mxu0 0
  %3717 = vmatpush1.bf16.msra.mxu0 %v1907
  %3718 = vmatprep.subr.bf16.mxu0 0
  %3719 = vmatpush1.bf16.msra.mxu0 %v1914
  %3720 = vmatprep.subr.bf16.mxu0 0
  %3721 = vmatpush1.bf16.msra.mxu0 %v1921
  %3722 = vmatprep.subr.bf16.mxu0 0
  %3723 = vmatpush1.bf16.msra.mxu0 %v1928
  %3724 = vmatprep.subr.bf16.mxu0 0
  %3725 = vmatpush1.bf16.msra.mxu0 %v1935
  %3726 = vmatprep.subr.bf16.mxu0 0
  %3727 = vmatpush1.bf16.msra.mxu0 %v1942
  %3728 = vmatprep.subr.bf16.mxu0 0
  %3729 = vmatpush1.bf16.msra.mxu0 %v1949
  %3730 = vmatprep.subr.bf16.mxu0 0
  %3731 = vmatpush1.bf16.msra.mxu0 %v2305
  %3732 = vmatprep.subr.bf16.mxu0 0
  %3733 = vmatpush1.bf16.msra.mxu0 0
  %3734 = vmatprep.subr.bf16.mxu0 0
  %3735 = vmatpush1.bf16.msra.mxu0 0
  %3736 = vmatprep.subr.bf16.mxu0 0
  %3737 = vmatpush1.bf16.msra.mxu0 0
  %3738 = vmatprep.subr.bf16.mxu0 0
  %3739 = vmatpush1.bf16.msra.mxu0 0
  %3740 = vmatprep.subr.bf16.mxu0 0
  %3741 = vmatpush1.bf16.msra.mxu0 0
  %3742 = vmatprep.mubr.bf16.mxu0 %v2253
  %3743 = vmatmul.mubr.bf16.gmra.mrb[0].mxu0 %v615
  %v3744 = vpop.f32.mrb[0].mxu0
  %v3745 = vadd.f32 %v3633, %v3744
  %v3746 = vpop.f32.mrb[0].mxu0
  %v3747 = vpop.f32.mrb[0].mxu0
  %v3748 = vadd.f32 %v3636, %v3747
  %v3749 = vpop.f32.mrb[0].mxu0
  %3750 = vmatprep.mubr.bf16.mxu0 %v2256
  %3751 = vmatmul.mubr.bf16.gmra.mrb[0].mxu0 %v621
  %v3752 = vpop.f32.mrb[0].mxu0
  %v3753 = vadd.f32 %v3641, %v3752
  %v3754 = vpop.f32.mrb[0].mxu0
  %v3755 = vpop.f32.mrb[0].mxu0
  %v3756 = vadd.f32 %v3644, %v3755
  %v3757 = vpop.f32.mrb[0].mxu0
  %3758 = vmatprep.mubr.bf16.mxu0 %v2259
  %3759 = vmatmul.mubr.bf16.gmra.mrb[0].mxu0 %v627
  %v3760 = vpop.f32.mrb[0].mxu0
  %v3761 = vadd.f32 %v3649, %v3760
  %v3762 = vpop.f32.mrb[0].mxu0
  %v3763 = vpop.f32.mrb[0].mxu0
  %v3764 = vadd.f32 %v3652, %v3763
  %v3765 = vpop.f32.mrb[0].mxu0
  %3766 = vmatprep.mubr.bf16.mxu0 %v2262
  %3767 = vmatmul.mubr.bf16.gmra.mrb[0].mxu0 %v633
  %v3768 = vpop.f32.mrb[0].mxu0
  %v3769 = vadd.f32 %v3657, %v3768
  %v3770 = vpop.f32.mrb[0].mxu0
  %v3771 = vpop.f32.mrb[0].mxu0
  %v3772 = vadd.f32 %v3660, %v3771
  %v3773 = vpop.f32.mrb[0].mxu0
  %3774 = vmatprep.mubr.bf16.mxu0 %v2265
  %3775 = vmatmul.mubr.bf16.gmra.mrb[0].mxu0 %v639
  %v3776 = vpop.f32.mrb[0].mxu0
  %v3777 = vadd.f32 %v3665, %v3776
  %v3778 = vpop.f32.mrb[0].mxu0
  %v3779 = vpop.f32.mrb[0].mxu0
  %v3780 = vadd.f32 %v3668, %v3779
  %v3781 = vpop.f32.mrb[0].mxu0
  %3782 = vmatprep.mubr.bf16.mxu0 %v2268
  %3783 = vmatmul.mubr.bf16.gmra.mrb[0].mxu0 %v645
  %v3784 = vpop.f32.mrb[0].mxu0
  %v3785 = vadd.f32 %v3673, %v3784
  %v3786 = vpop.f32.mrb[0].mxu0
  %v3787 = vpop.f32.mrb[0].mxu0
  %v3788 = vadd.f32 %v3676, %v3787
  %v3789 = vpop.f32.mrb[0].mxu0
  %3790 = vmatprep.mubr.bf16.mxu0 %v2271
  %3791 = vmatmul.mubr.bf16.gmra.mrb[0].mxu0 %v651
  %v3792 = vpop.f32.mrb[0].mxu0
  %v3793 = vadd.f32 %v3681, %v3792
  %v3794 = vpop.f32.mrb[0].mxu0
  %v3795 = vpop.f32.mrb[0].mxu0
  %v3796 = vadd.f32 %v3684, %v3795
  %v3797 = vpop.f32.mrb[0].mxu0
  %3798 = vmatprep.mubr.bf16.mxu0 %v2274
  %3799 = vmatmul.mubr.bf16.gmra.mrb[0].mxu0 %v657
  %v3800 = vpop.f32.mrb[0].mxu0
  %v3801 = vadd.f32 %v3689, %v3800
  %v3802 = vpop.f32.mrb[0].mxu0
  %v3803 = vpop.f32.mrb[0].mxu0
  %v3804 = vadd.f32 %v3692, %v3803
  %v3805 = vpop.f32.mrb[0].mxu0
  %3806 = vmatprep.mubr.bf16.mxu0 %v2277
  %3807 = vmatmul.mubr.bf16.gmra.mrb[0].mxu0 %v663
  %v3808 = vpop.f32.mrb[0].mxu0
  %v3809 = vadd.f32 %v3697, %v3808
  %v3810 = vpop.f32.mrb[0].mxu0
  %v3811 = vpop.f32.mrb[0].mxu0
  %v3812 = vadd.f32 %v3700, %v3811
  %v3813 = vpop.f32.mrb[0].mxu0
  %3814 = vmatprep.mubr.bf16.mxu0 %v2280
  %3815 = vmatmul.mubr.bf16.gmra.mrb[0].mxu0 %v669
  %v3816 = vpop.f32.mrb[0].mxu0
  %v3817 = vadd.f32 %v3705, %v3816
  %v3818 = vpop.f32.mrb[0].mxu0
  %v3819 = vpop.f32.mrb[0].mxu0
  %v3820 = vpop.f32.mrb[0].mxu0
  %3821 = vdwg.mxu0
  %s3822 = scalar_lea.vmem %s0, 456
  %v3823 = vld [vmem:[%s3822] sm:$0xff]
  %v3824 = vld [vmem:[%s3822 + $0x8] sm:$0xff]
  %v3825 = vld [vmem:[%s3822 + $0x10] sm:$0xff]
  %v3826 = vld [vmem:[%s3822 + $0x18] sm:$0xff]
  %v3827 = vld [vmem:[%s3822 + $0x20] sm:$0xff]
  %v3828 = vld [vmem:[%s3822 + $0x28] sm:$0xff]
  %v3829 = vld [vmem:[%s3822 + $0x30] sm:$0xff]
  %v3830 = vld [vmem:[%s3822 + $0x38] sm:$0xff]
  %v3831 = vld [vmem:[%s3822 + $0x40] sm:$0xff]
  %v3832 = vld [vmem:[%s3822 + $0x48] sm:$0xff]
  %v3833 = vld [vmem:[%s3822 + $0x50] sm:$0xff]
  %v3834 = vld [vmem:[%s3822 + $0x58] sm:$0xff]
  %v3835 = vld [vmem:[%s3822 + $0x60] sm:$0xff]
  %v3836 = vld [vmem:[%s3822 + $0x68] sm:$0xff]
  %v3837 = vld [vmem:[%s3822 + $0x70] sm:$0xff]
  %v3838 = vld [vmem:[%s3822 + $0x78] sm:$0xff]
  %v3839 = vld [vmem:[%s3822 + $0x80] sm:$0xff]
  %v3840 = vld [vmem:[%s3822 + $0x88] sm:$0xff]
  %v3841 = vld [vmem:[%s3822 + $0x90] sm:$0xff]
  %v3842 = vld [vmem:[%s3822 + $0x98] sm:$0xff]
  %v3843 = vld [vmem:[%s3822 + $0xa0] sm:$0xff]
  %v3844 = vld [vmem:[%s3822 + $0xa8] sm:$0xff]
  %v3845 = vld [vmem:[%s3822 + $0xb0] sm:$0xff]
  %v3846 = vld [vmem:[%s3822 + $0xb8] sm:$0xff]
  %v3847 = vld [vmem:[%s3822 + $0xc0] sm:$0xff]
  %v3848 = vld [vmem:[%s3822 + $0xc8] sm:$0xff]
  %v3849 = vld [vmem:[%s3822 + $0xd0] sm:$0xff]
  %v3850 = vld [vmem:[%s3822 + $0xd8] sm:$0xff]
  %v3851 = vld [vmem:[%s3822 + $0xe0] sm:$0xff]
  %v3852 = vld [vmem:[%s3822 + $0xe8] sm:$0xff]
  %v3853 = vld [vmem:[%s3822 + $0xf0] sm:$0xff]
  %v3854 = vld [vmem:[%s3822 + $0xf8] sm:$0xff]
  %v3855 = vld [vmem:[%s3822 + $0x100] sm:$0xff]
  %v3856 = vld [vmem:[%s3822 + $0x108] sm:$0xff]
  %v3857 = vld [vmem:[%s3822 + $0x110] sm:$0xff]
  %v3858 = vld [vmem:[%s3822 + $0x118] sm:$0xff]
  %v3859 = vld [vmem:[%s3822 + $0x120] sm:$0xff]
  %v3860 = vld [vmem:[%s3822 + $0x128] sm:$0xff]
  %v3861 = vld [vmem:[%s3822 + $0x130] sm:$0xff]
  %v3862 = vld [vmem:[%s3822 + $0x138] sm:$0xff]
  %v3863 = vld [vmem:[%s3822 + $0x140] sm:$0xff]
  %v3864 = vld [vmem:[%s3822 + $0x148] sm:$0xff]
  %v3865 = vld [vmem:[%s3822 + $0x150] sm:$0xff]
  %v3866 = vld [vmem:[%s3822 + $0x158] sm:$0xff]
  %v3867 = vld [vmem:[%s3822 + $0x160] sm:$0xff]
  %v3868 = vld [vmem:[%s3822 + $0x168] sm:$0xff]
  %v3869 = vld [vmem:[%s3822 + $0x170] sm:$0xff]
  %v3870 = vld [vmem:[%s3822 + $0x178] sm:$0xff]
  %v3871 = vld [vmem:[%s3822 + $0x180] sm:$0xff]
  %v3872 = vld [vmem:[%s3822 + $0x188] sm:$0xff]
  %v3873 = vld [vmem:[%s3822 + $0x190] sm:$0xff]
  %v3874 = vld [vmem:[%s3822 + $0x198] sm:$0xff]
  %v3875 = vld [vmem:[%s3822 + $0x1a0] sm:$0xff]
  %v3876 = vld [vmem:[%s3822 + $0x1a8] sm:$0xff]
  %v3877 = vld [vmem:[%s3822 + $0x1b0] sm:$0xff]
  %v3878 = vld [vmem:[%s3822 + $0x1b8] sm:$0xff]
  %v3879 = vld [vmem:[%s3822 + $0x1c0] sm:$0xff]
  %v3937 = vunpack.c.l.b16 %v3823
  %v3938 = vunpack.c.h.b16 %v3823
  %v3939 = vunpack.c.l.b16 %v3824
  %v3940 = vunpack.c.h.b16 %v3824
  %v3941 = vunpack.c.l.b16 %v3825
  %v3942 = vunpack.c.h.b16 %v3825
  %v3943 = vunpack.c.l.b16 %v3826
  %v3944 = vunpack.c.h.b16 %v3826
  %v3945 = vunpack.c.l.b16 %v3827
  %v3946 = vunpack.c.h.b16 %v3827
  %v3947 = vunpack.c.l.b16 %v3828
  %v3948 = vunpack.c.h.b16 %v3828
  %v3949 = vunpack.c.l.b16 %v3829
  %v3950 = vunpack.c.h.b16 %v3829
  %v3951 = vunpack.c.l.b16 %v3830
  %v3952 = vunpack.c.h.b16 %v3830
  %v3953 = vunpack.c.l.b16 %v3831
  %v3954 = vunpack.c.h.b16 %v3831
  %v3955 = vunpack.c.l.b16 %v3832
  %v3956 = vunpack.c.h.b16 %v3832
  %v3957 = vunpack.c.l.b16 %v3833
  %v3958 = vunpack.c.h.b16 %v3833
  %v3959 = vunpack.c.l.b16 %v3834
  %v3960 = vunpack.c.h.b16 %v3834
  %v3961 = vunpack.c.l.b16 %v3835
  %v3962 = vunpack.c.h.b16 %v3835
  %v3963 = vunpack.c.l.b16 %v3836
  %v3964 = vunpack.c.h.b16 %v3836
  %v3965 = vunpack.c.l.b16 %v3837
  %v3966 = vunpack.c.h.b16 %v3837
  %v3967 = vunpack.c.l.b16 %v3838
  %v3968 = vunpack.c.h.b16 %v3838
  %v3969 = vunpack.c.l.b16 %v3839
  %v3970 = vunpack.c.h.b16 %v3839
  %v3971 = vunpack.c.l.b16 %v3840
  %v3972 = vunpack.c.h.b16 %v3840
  %v3973 = vunpack.c.l.b16 %v3841
  %v3974 = vunpack.c.h.b16 %v3841
  %v3975 = vunpack.c.l.b16 %v3842
  %v3976 = vunpack.c.h.b16 %v3842
  %v3977 = vunpack.c.l.b16 %v3843
  %v3978 = vunpack.c.h.b16 %v3843
  %v3979 = vunpack.c.l.b16 %v3844
  %v3980 = vunpack.c.h.b16 %v3844
  %v3981 = vunpack.c.l.b16 %v3845
  %v3982 = vunpack.c.h.b16 %v3845
  %v3983 = vunpack.c.l.b16 %v3846
  %v3984 = vunpack.c.h.b16 %v3846
  %v3985 = vunpack.c.l.b16 %v3847
  %v3986 = vunpack.c.h.b16 %v3847
  %v3987 = vunpack.c.l.b16 %v3848
  %v3988 = vunpack.c.h.b16 %v3848
  %v3989 = vunpack.c.l.b16 %v3849
  %v3990 = vunpack.c.h.b16 %v3849
  %v3991 = vunpack.c.l.b16 %v3850
  %v3992 = vunpack.c.h.b16 %v3850
  %v3993 = vunpack.c.l.b16 %v3851
  %v3994 = vunpack.c.h.b16 %v3851
  %v3995 = vunpack.c.l.b16 %v3852
  %v3996 = vunpack.c.h.b16 %v3852
  %v3997 = vunpack.c.l.b16 %v3853
  %v3998 = vunpack.c.h.b16 %v3853
  %v3999 = vunpack.c.l.b16 %v3854
  %v4000 = vunpack.c.h.b16 %v3854
  %v4001 = vunpack.c.l.b16 %v3855
  %v4002 = vunpack.c.h.b16 %v3855
  %v4003 = vunpack.c.l.b16 %v3856
  %v4004 = vunpack.c.h.b16 %v3856
  %v4005 = vunpack.c.l.b16 %v3857
  %v4006 = vunpack.c.h.b16 %v3857
  %v4007 = vunpack.c.l.b16 %v3858
  %v4008 = vunpack.c.h.b16 %v3858
  %v4009 = vunpack.c.l.b16 %v3859
  %v4010 = vunpack.c.h.b16 %v3859
  %v4011 = vunpack.c.l.b16 %v3860
  %v4012 = vunpack.c.h.b16 %v3860
  %v4013 = vunpack.c.l.b16 %v3861
  %v4014 = vunpack.c.h.b16 %v3861
  %v4015 = vunpack.c.l.b16 %v3862
  %v4016 = vunpack.c.h.b16 %v3862
  %v4017 = vunpack.c.l.b16 %v3863
  %v4018 = vunpack.c.h.b16 %v3863
  %v4019 = vunpack.c.l.b16 %v3864
  %v4020 = vunpack.c.h.b16 %v3864
  %v4021 = vunpack.c.l.b16 %v3865
  %v4022 = vunpack.c.h.b16 %v3865
  %v4023 = vunpack.c.l.b16 %v3866
  %v4024 = vunpack.c.h.b16 %v3866
  %v4025 = vunpack.c.l.b16 %v3867
  %v4026 = vunpack.c.h.b16 %v3867
  %v4027 = vunpack.c.l.b16 %v3868
  %v4028 = vunpack.c.h.b16 %v3868
  %v4029 = vunpack.c.l.b16 %v3869
  %v4030 = vunpack.c.h.b16 %v3869
  %v4031 = vunpack.c.l.b16 %v3870
  %v4032 = vunpack.c.h.b16 %v3870
  %v4033 = vunpack.c.l.b16 %v3871
  %v4034 = vunpack.c.h.b16 %v3871
  %v4035 = vunpack.c.l.b16 %v3872
  %v4036 = vunpack.c.h.b16 %v3872
  %v4037 = vunpack.c.l.b16 %v3873
  %v4038 = vunpack.c.h.b16 %v3873
  %v4039 = vunpack.c.l.b16 %v3874
  %v4040 = vunpack.c.h.b16 %v3874
  %v4041 = vunpack.c.l.b16 %v3875
  %v4042 = vunpack.c.h.b16 %v3875
  %v4043 = vunpack.c.l.b16 %v3876
  %v4044 = vunpack.c.h.b16 %v3876
  %v4045 = vunpack.c.l.b16 %v3877
  %v4046 = vunpack.c.h.b16 %v3877
  %v4047 = vunpack.c.l.b16 %v3878
  %v4048 = vunpack.c.h.b16 %v3878
  %v4049 = vunpack.c.l.b16 %v3879
  %v4050 = vunpack.c.h.b16 %v3879
  %v4051 = vpack.c.b16 %v3943, %v3937
  %v4052 = vpack.c.b16 %v3944, %v3938
  %v4053 = vpack.c.b16 %v3945, %v3939
  %v4054 = vpack.c.b16 %v3946, %v3940
  %v4055 = vpack.c.b16 %v3947, %v3941
  %v4056 = vpack.c.b16 %v3948, %v3942
  %v4057 = vpack.c.b16 %v3955, %v3949
  %v4058 = vpack.c.b16 %v3956, %v3950
  %v4059 = vpack.c.b16 %v3957, %v3951
  %v4060 = vpack.c.b16 %v3958, %v3952
  %v4061 = vpack.c.b16 %v3959, %v3953
  %v4062 = vpack.c.b16 %v3960, %v3954
  %v4063 = vpack.c.b16 %v3967, %v3961
  %v4064 = vpack.c.b16 %v3968, %v3962
  %v4065 = vpack.c.b16 %v3969, %v3963
  %v4066 = vpack.c.b16 %v3970, %v3964
  %v4067 = vpack.c.b16 %v3971, %v3965
  %v4068 = vpack.c.b16 %v3972, %v3966
  %v4069 = vpack.c.b16 %v3979, %v3973
  %v4070 = vpack.c.b16 %v3980, %v3974
  %v4071 = vpack.c.b16 %v3981, %v3975
  %v4072 = vpack.c.b16 %v3982, %v3976
  %v4073 = vpack.c.b16 %v3983, %v3977
  %v4074 = vpack.c.b16 %v3984, %v3978
  %v4075 = vpack.c.b16 %v3991, %v3985
  %v4076 = vpack.c.b16 %v3992, %v3986
  %v4077 = vpack.c.b16 %v3993, %v3987
  %v4078 = vpack.c.b16 %v3994, %v3988
  %v4079 = vpack.c.b16 %v3995, %v3989
  %v4080 = vpack.c.b16 %v3996, %v3990
  %v4081 = vpack.c.b16 %v4003, %v3997
  %v4082 = vpack.c.b16 %v4004, %v3998
  %v4083 = vpack.c.b16 %v4005, %v3999
  %v4084 = vpack.c.b16 %v4006, %v4000
  %v4085 = vpack.c.b16 %v4007, %v4001
  %v4086 = vpack.c.b16 %v4008, %v4002
  %v4087 = vpack.c.b16 %v4015, %v4009
  %v4088 = vpack.c.b16 %v4016, %v4010
  %v4089 = vpack.c.b16 %v4017, %v4011
  %v4090 = vpack.c.b16 %v4018, %v4012
  %v4091 = vpack.c.b16 %v4019, %v4013
  %v4092 = vpack.c.b16 %v4020, %v4014
  %v4093 = vpack.c.b16 %v4027, %v4021
  %v4094 = vpack.c.b16 %v4028, %v4022
  %v4095 = vpack.c.b16 %v4029, %v4023
  %v4096 = vpack.c.b16 %v4030, %v4024
  %v4097 = vpack.c.b16 %v4031, %v4025
  %v4098 = vpack.c.b16 %v4032, %v4026
  %v4099 = vpack.c.b16 %v4039, %v4033
  %v4100 = vpack.c.b16 %v4040, %v4034
  %v4101 = vpack.c.b16 %v4041, %v4035
  %v4102 = vpack.c.b16 %v4042, %v4036
  %v4103 = vpack.c.b16 %v4043, %v4037
  %v4104 = vpack.c.b16 %v4044, %v4038
  %v4105 = vpack.c.b16 %v4045, %v4045
  %v4106 = vpack.c.b16 %v4046, %v4046
  %v4107 = vpack.c.b16 %v4047, %v4047
  %v4108 = vpack.c.b16 %v4048, %v4048
  %v4109 = vpack.c.b16 %v4049, %v4049
  %v4110 = vpack.c.b16 %v4050, %v4050
  %v4162 = vsel %vm2251, %v4056, 0
  %v4165 = vsel %vm2251, %v4062, 0
  %v4168 = vsel %vm2251, %v4068, 0
  %v4171 = vsel %vm2251, %v4074, 0
  %v4174 = vsel %vm2251, %v4080, 0
  %v4177 = vsel %vm2251, %v4086, 0
  %v4180 = vsel %vm2251, %v4092, 0
  %v4183 = vsel %vm2251, %v4098, 0
  %v4186 = vsel %vm2251, %v4104, 0
  %v4189 = vsel %vm2251, %v4110, 0
  %4191 = vmatprep.subr.bf16.mxu0 %v1657
  %4192 = vmatpush1.bf16.msra.mxu0 %v1656
  %4193 = vmatprep.subr.bf16.mxu0 %v1664
  %4194 = vmatpush1.bf16.msra.mxu0 %v1663
  %4195 = vmatprep.subr.bf16.mxu0 %v1671
  %4196 = vmatpush1.bf16.msra.mxu0 %v1670
  %4197 = vmatprep.subr.bf16.mxu0 %v1678
  %4198 = vmatpush1.bf16.msra.mxu0 %v1677
  %4199 = vmatprep.subr.bf16.mxu0 %v1685
  %4200 = vmatpush1.bf16.msra.mxu0 %v1684
  %4201 = vmatprep.subr.bf16.mxu0 %v1692
  %4202 = vmatpush1.bf16.msra.mxu0 %v1691
  %4203 = vmatprep.subr.bf16.mxu0 %v1699
  %4204 = vmatpush1.bf16.msra.mxu0 %v1698
  %4205 = vmatprep.subr.bf16.mxu0 %v1706
  %4206 = vmatpush1.bf16.msra.mxu0 %v1705
  %4207 = vmatprep.subr.bf16.mxu0 %v1713
  %4208 = vmatpush1.bf16.msra.mxu0 %v1712
  %4209 = vmatprep.subr.bf16.mxu0 %v1720
  %4210 = vmatpush1.bf16.msra.mxu0 %v1719
  %4211 = vmatprep.subr.bf16.mxu0 %v1727
  %4212 = vmatpush1.bf16.msra.mxu0 %v1726
  %4213 = vmatprep.subr.bf16.mxu0 %v1734
  %4214 = vmatpush1.bf16.msra.mxu0 %v1733
  %4215 = vmatprep.subr.bf16.mxu0 %v1741
  %4216 = vmatpush1.bf16.msra.mxu0 %v1740
  %4217 = vmatprep.subr.bf16.mxu0 %v1748
  %4218 = vmatpush1.bf16.msra.mxu0 %v1747
  %4219 = vmatprep.subr.bf16.mxu0 %v1755
  %4220 = vmatpush1.bf16.msra.mxu0 %v1754
  %4221 = vmatprep.subr.bf16.mxu0 %v1762
  %4222 = vmatpush1.bf16.msra.mxu0 %v1761
  %4223 = vmatprep.mubr.bf16.mxu0 %v4052
  %4224 = vmatmul.mubr.bf16.gmra.mrb[0].mxu0 %v4051
  %v4225 = vpop.f32.mrb[0].mxu0
  %v4226 = vadd.f32 0.0, %v4225
  %v4227 = vpop.f32.mrb[0].mxu0
  %v4228 = vadd.f32 0.0, %v4227
  %v4229 = vpop.f32.mrb[0].mxu0
  %v4230 = vadd.f32 0.0, %v4229
  %v4231 = vpop.f32.mrb[0].mxu0
  %v4232 = vadd.f32 0.0, %v4231
  %4233 = vmatprep.mubr.bf16.mxu0 %v4058
  %4234 = vmatmul.mubr.bf16.gmra.mrb[0].mxu0 %v4057
  %v4235 = vpop.f32.mrb[0].mxu0
  %v4236 = vadd.f32 0.0, %v4235
  %v4237 = vpop.f32.mrb[0].mxu0
  %v4238 = vadd.f32 0.0, %v4237
  %v4239 = vpop.f32.mrb[0].mxu0
  %v4240 = vadd.f32 0.0, %v4239
  %v4241 = vpop.f32.mrb[0].mxu0
  %v4242 = vadd.f32 0.0, %v4241
  %4243 = vmatprep.mubr.bf16.mxu0 %v4064
  %4244 = vmatmul.mubr.bf16.gmra.mrb[0].mxu0 %v4063
  %v4245 = vpop.f32.mrb[0].mxu0
  %v4246 = vadd.f32 0.0, %v4245
  %v4247 = vpop.f32.mrb[0].mxu0
  %v4248 = vadd.f32 0.0, %v4247
  %v4249 = vpop.f32.mrb[0].mxu0
  %v4250 = vadd.f32 0.0, %v4249
  %v4251 = vpop.f32.mrb[0].mxu0
  %v4252 = vadd.f32 0.0, %v4251
  %4253 = vmatprep.mubr.bf16.mxu0 %v4070
  %4254 = vmatmul.mubr.bf16.gmra.mrb[0].mxu0 %v4069
  %v4255 = vpop.f32.mrb[0].mxu0
  %v4256 = vadd.f32 0.0, %v4255
  %v4257 = vpop.f32.mrb[0].mxu0
  %v4258 = vadd.f32 0.0, %v4257
  %v4259 = vpop.f32.mrb[0].mxu0
  %v4260 = vadd.f32 0.0, %v4259
  %v4261 = vpop.f32.mrb[0].mxu0
  %v4262 = vadd.f32 0.0, %v4261
  %4263 = vmatprep.mubr.bf16.mxu0 %v4076
  %4264 = vmatmul.mubr.bf16.gmra.mrb[0].mxu0 %v4075
  %v4265 = vpop.f32.mrb[0].mxu0
  %v4266 = vadd.f32 0.0, %v4265
  %v4267 = vpop.f32.mrb[0].mxu0
  %v4268 = vadd.f32 0.0, %v4267
  %v4269 = vpop.f32.mrb[0].mxu0
  %v4270 = vadd.f32 0.0, %v4269
  %v4271 = vpop.f32.mrb[0].mxu0
  %v4272 = vadd.f32 0.0, %v4271
  %4273 = vmatprep.mubr.bf16.mxu0 %v4082
  %4274 = vmatmul.mubr.bf16.gmra.mrb[0].mxu0 %v4081
  %v4275 = vpop.f32.mrb[0].mxu0
  %v4276 = vadd.f32 0.0, %v4275
  %v4277 = vpop.f32.mrb[0].mxu0
  %v4278 = vadd.f32 0.0, %v4277
  %v4279 = vpop.f32.mrb[0].mxu0
  %v4280 = vadd.f32 0.0, %v4279
  %v4281 = vpop.f32.mrb[0].mxu0
  %v4282 = vadd.f32 0.0, %v4281
  %4283 = vmatprep.mubr.bf16.mxu0 %v4088
  %4284 = vmatmul.mubr.bf16.gmra.mrb[0].mxu0 %v4087
  %v4285 = vpop.f32.mrb[0].mxu0
  %v4286 = vadd.f32 0.0, %v4285
  %v4287 = vpop.f32.mrb[0].mxu0
  %v4288 = vadd.f32 0.0, %v4287
  %v4289 = vpop.f32.mrb[0].mxu0
  %v4290 = vadd.f32 0.0, %v4289
  %v4291 = vpop.f32.mrb[0].mxu0
  %v4292 = vadd.f32 0.0, %v4291
  %4293 = vmatprep.mubr.bf16.mxu0 %v4094
  %4294 = vmatmul.mubr.bf16.gmra.mrb[0].mxu0 %v4093
  %v4295 = vpop.f32.mrb[0].mxu0
  %v4296 = vadd.f32 0.0, %v4295
  %v4297 = vpop.f32.mrb[0].mxu0
  %v4298 = vadd.f32 0.0, %v4297
  %v4299 = vpop.f32.mrb[0].mxu0
  %v4300 = vadd.f32 0.0, %v4299
  %v4301 = vpop.f32.mrb[0].mxu0
  %v4302 = vadd.f32 0.0, %v4301
  %4303 = vmatprep.mubr.bf16.mxu0 %v4100
  %4304 = vmatmul.mubr.bf16.gmra.mrb[0].mxu0 %v4099
  %v4305 = vpop.f32.mrb[0].mxu0
  %v4306 = vadd.f32 0.0, %v4305
  %v4307 = vpop.f32.mrb[0].mxu0
  %v4308 = vadd.f32 0.0, %v4307
  %v4309 = vpop.f32.mrb[0].mxu0
  %v4310 = vadd.f32 0.0, %v4309
  %v4311 = vpop.f32.mrb[0].mxu0
  %v4312 = vadd.f32 0.0, %v4311
  %4313 = vmatprep.mubr.bf16.mxu0 %v4106
  %4314 = vmatmul.mubr.bf16.gmra.mrb[0].mxu0 %v4105
  %v4315 = vpop.f32.mrb[0].mxu0
  %v4316 = vadd.f32 0.0, %v4315
  %v4317 = vpop.f32.mrb[0].mxu0
  %v4318 = vadd.f32 0.0, %v4317
  %v4319 = vpop.f32.mrb[0].mxu0
  %v4320 = vpop.f32.mrb[0].mxu0
  %4321 = vdwg.mxu0
  %4322 = vmatprep.subr.bf16.mxu0 %v1769
  %4323 = vmatpush1.bf16.msra.mxu0 %v1768
  %4324 = vmatprep.subr.bf16.mxu0 %v1776
  %4325 = vmatpush1.bf16.msra.mxu0 %v1775
  %4326 = vmatprep.subr.bf16.mxu0 %v1783
  %4327 = vmatpush1.bf16.msra.mxu0 %v1782
  %4328 = vmatprep.subr.bf16.mxu0 %v1790
  %4329 = vmatpush1.bf16.msra.mxu0 %v1789
  %4330 = vmatprep.subr.bf16.mxu0 %v1797
  %4331 = vmatpush1.bf16.msra.mxu0 %v1796
  %4332 = vmatprep.subr.bf16.mxu0 %v1804
  %4333 = vmatpush1.bf16.msra.mxu0 %v1803
  %4334 = vmatprep.subr.bf16.mxu0 %v1811
  %4335 = vmatpush1.bf16.msra.mxu0 %v1810
  %4336 = vmatprep.subr.bf16.mxu0 %v1818
  %4337 = vmatpush1.bf16.msra.mxu0 %v1817
  %4338 = vmatprep.subr.bf16.mxu0 %v1825
  %4339 = vmatpush1.bf16.msra.mxu0 %v1824
  %4340 = vmatprep.subr.bf16.mxu0 %v1832
  %4341 = vmatpush1.bf16.msra.mxu0 %v1831
  %4342 = vmatprep.subr.bf16.mxu0 %v1839
  %4343 = vmatpush1.bf16.msra.mxu0 %v1838
  %4344 = vmatprep.subr.bf16.mxu0 %v1846
  %4345 = vmatpush1.bf16.msra.mxu0 %v1845
  %4346 = vmatprep.subr.bf16.mxu0 %v1853
  %4347 = vmatpush1.bf16.msra.mxu0 %v1852
  %4348 = vmatprep.subr.bf16.mxu0 %v1860
  %4349 = vmatpush1.bf16.msra.mxu0 %v1859
  %4350 = vmatprep.subr.bf16.mxu0 %v1867
  %4351 = vmatpush1.bf16.msra.mxu0 %v1866
  %4352 = vmatprep.subr.bf16.mxu0 %v1874
  %4353 = vmatpush1.bf16.msra.mxu0 %v1873
  %4354 = vmatprep.mubr.bf16.mxu0 %v4054
  %4355 = vmatmul.mubr.bf16.gmra.mrb[0].mxu0 %v4053
  %v4356 = vpop.f32.mrb[0].mxu0
  %v4357 = vadd.f32 %v4226, %v4356
  %v4358 = vpop.f32.mrb[0].mxu0
  %v4359 = vadd.f32 %v4228, %v4358
  %v4360 = vpop.f32.mrb[0].mxu0
  %v4361 = vadd.f32 %v4230, %v4360
  %v4362 = vpop.f32.mrb[0].mxu0
  %v4363 = vadd.f32 %v4232, %v4362
  %4364 = vmatprep.mubr.bf16.mxu0 %v4060
  %4365 = vmatmul.mubr.bf16.gmra.mrb[0].mxu0 %v4059
  %v4366 = vpop.f32.mrb[0].mxu0
  %v4367 = vadd.f32 %v4236, %v4366
  %v4368 = vpop.f32.mrb[0].mxu0
  %v4369 = vadd.f32 %v4238, %v4368
  %v4370 = vpop.f32.mrb[0].mxu0
  %v4371 = vadd.f32 %v4240, %v4370
  %v4372 = vpop.f32.mrb[0].mxu0
  %v4373 = vadd.f32 %v4242, %v4372
  %4374 = vmatprep.mubr.bf16.mxu0 %v4066
  %4375 = vmatmul.mubr.bf16.gmra.mrb[0].mxu0 %v4065
  %v4376 = vpop.f32.mrb[0].mxu0
  %v4377 = vadd.f32 %v4246, %v4376
  %v4378 = vpop.f32.mrb[0].mxu0
  %v4379 = vadd.f32 %v4248, %v4378
  %v4380 = vpop.f32.mrb[0].mxu0
  %v4381 = vadd.f32 %v4250, %v4380
  %v4382 = vpop.f32.mrb[0].mxu0
  %v4383 = vadd.f32 %v4252, %v4382
  %4384 = vmatprep.mubr.bf16.mxu0 %v4072
  %4385 = vmatmul.mubr.bf16.gmra.mrb[0].mxu0 %v4071
  %v4386 = vpop.f32.mrb[0].mxu0
  %v4387 = vadd.f32 %v4256, %v4386
  %v4388 = vpop.f32.mrb[0].mxu0
  %v4389 = vadd.f32 %v4258, %v4388
  %v4390 = vpop.f32.mrb[0].mxu0
  %v4391 = vadd.f32 %v4260, %v4390
  %v4392 = vpop.f32.mrb[0].mxu0
  %v4393 = vadd.f32 %v4262, %v4392
  %4394 = vmatprep.mubr.bf16.mxu0 %v4078
  %4395 = vmatmul.mubr.bf16.gmra.mrb[0].mxu0 %v4077
  %v4396 = vpop.f32.mrb[0].mxu0
  %v4397 = vadd.f32 %v4266, %v4396
  %v4398 = vpop.f32.mrb[0].mxu0
  %v4399 = vadd.f32 %v4268, %v4398
  %v4400 = vpop.f32.mrb[0].mxu0
  %v4401 = vadd.f32 %v4270, %v4400
  %v4402 = vpop.f32.mrb[0].mxu0
  %v4403 = vadd.f32 %v4272, %v4402
  %4404 = vmatprep.mubr.bf16.mxu0 %v4084
  %4405 = vmatmul.mubr.bf16.gmra.mrb[0].mxu0 %v4083
  %v4406 = vpop.f32.mrb[0].mxu0
  %v4407 = vadd.f32 %v4276, %v4406
  %v4408 = vpop.f32.mrb[0].mxu0
  %v4409 = vadd.f32 %v4278, %v4408
  %v4410 = vpop.f32.mrb[0].mxu0
  %v4411 = vadd.f32 %v4280, %v4410
  %v4412 = vpop.f32.mrb[0].mxu0
  %v4413 = vadd.f32 %v4282, %v4412
  %4414 = vmatprep.mubr.bf16.mxu0 %v4090
  %4415 = vmatmul.mubr.bf16.gmra.mrb[0].mxu0 %v4089
  %v4416 = vpop.f32.mrb[0].mxu0
  %v4417 = vadd.f32 %v4286, %v4416
  %v4418 = vpop.f32.mrb[0].mxu0
  %v4419 = vadd.f32 %v4288, %v4418
  %v4420 = vpop.f32.mrb[0].mxu0
  %v4421 = vadd.f32 %v4290, %v4420
  %v4422 = vpop.f32.mrb[0].mxu0
  %v4423 = vadd.f32 %v4292, %v4422
  %4424 = vmatprep.mubr.bf16.mxu0 %v4096
  %4425 = vmatmul.mubr.bf16.gmra.mrb[0].mxu0 %v4095
  %v4426 = vpop.f32.mrb[0].mxu0
  %v4427 = vadd.f32 %v4296, %v4426
  %v4428 = vpop.f32.mrb[0].mxu0
  %v4429 = vadd.f32 %v4298, %v4428
  %v4430 = vpop.f32.mrb[0].mxu0
  %v4431 = vadd.f32 %v4300, %v4430
  %v4432 = vpop.f32.mrb[0].mxu0
  %v4433 = vadd.f32 %v4302, %v4432
  %4434 = vmatprep.mubr.bf16.mxu0 %v4102
  %4435 = vmatmul.mubr.bf16.gmra.mrb[0].mxu0 %v4101
  %v4436 = vpop.f32.mrb[0].mxu0
  %v4437 = vadd.f32 %v4306, %v4436
  %v4438 = vpop.f32.mrb[0].mxu0
  %v4439 = vadd.f32 %v4308, %v4438
  %v4440 = vpop.f32.mrb[0].mxu0
  %v4441 = vadd.f32 %v4310, %v4440
  %v4442 = vpop.f32.mrb[0].mxu0
  %v4443 = vadd.f32 %v4312, %v4442
  %4444 = vmatprep.mubr.bf16.mxu0 %v4108
  %4445 = vmatmul.mubr.bf16.gmra.mrb[0].mxu0 %v4107
  %v4446 = vpop.f32.mrb[0].mxu0
  %v4447 = vadd.f32 %v4316, %v4446
  %v4448 = vpop.f32.mrb[0].mxu0
  %v4449 = vadd.f32 %v4318, %v4448
  %v4450 = vpop.f32.mrb[0].mxu0
  %v4451 = vpop.f32.mrb[0].mxu0
  %4452 = vdwg.mxu0
  %4453 = vmatprep.subr.bf16.mxu0 %v1881
  %4454 = vmatpush1.bf16.msra.mxu0 %v1880
  %4455 = vmatprep.subr.bf16.mxu0 %v1888
  %4456 = vmatpush1.bf16.msra.mxu0 %v1887
  %4457 = vmatprep.subr.bf16.mxu0 %v1895
  %4458 = vmatpush1.bf16.msra.mxu0 %v1894
  %4459 = vmatprep.subr.bf16.mxu0 %v1902
  %4460 = vmatpush1.bf16.msra.mxu0 %v1901
  %4461 = vmatprep.subr.bf16.mxu0 %v1909
  %4462 = vmatpush1.bf16.msra.mxu0 %v1908
  %4463 = vmatprep.subr.bf16.mxu0 %v1916
  %4464 = vmatpush1.bf16.msra.mxu0 %v1915
  %4465 = vmatprep.subr.bf16.mxu0 %v1923
  %4466 = vmatpush1.bf16.msra.mxu0 %v1922
  %4467 = vmatprep.subr.bf16.mxu0 %v1930
  %4468 = vmatpush1.bf16.msra.mxu0 %v1929
  %4469 = vmatprep.subr.bf16.mxu0 %v1937
  %4470 = vmatpush1.bf16.msra.mxu0 %v1936
  %4471 = vmatprep.subr.bf16.mxu0 %v1944
  %4472 = vmatpush1.bf16.msra.mxu0 %v1943
  %4473 = vmatprep.subr.bf16.mxu0 %v2290
  %4474 = vmatpush1.bf16.msra.mxu0 %v2287
  %4475 = vmatprep.subr.bf16.mxu0 0
  %4476 = vmatpush1.bf16.msra.mxu0 0
  %4477 = vmatprep.subr.bf16.mxu0 0
  %4478 = vmatpush1.bf16.msra.mxu0 0
  %4479 = vmatprep.subr.bf16.mxu0 0
  %4480 = vmatpush1.bf16.msra.mxu0 0
  %4481 = vmatprep.subr.bf16.mxu0 0
  %4482 = vmatpush1.bf16.msra.mxu0 0
  %4483 = vmatprep.subr.bf16.mxu0 0
  %4484 = vmatpush1.bf16.msra.mxu0 0
  %4485 = vmatprep.mubr.bf16.mxu0 %v4162
  %4486 = vmatmul.mubr.bf16.gmra.mrb[0].mxu0 %v4055
  %v4487 = vpop.f32.mrb[0].mxu0
  %v4488 = vadd.f32 %v4357, %v4487
  %v4489 = vpop.f32.mrb[0].mxu0
  %v4490 = vadd.f32 %v4359, %v4489
  %v4491 = vpop.f32.mrb[0].mxu0
  %v4492 = vadd.f32 %v4361, %v4491
  %v4493 = vpop.f32.mrb[0].mxu0
  %v4494 = vadd.f32 %v4363, %v4493
  %4495 = vmatprep.mubr.bf16.mxu0 %v4165
  %4496 = vmatmul.mubr.bf16.gmra.mrb[0].mxu0 %v4061
  %v4497 = vpop.f32.mrb[0].mxu0
  %v4498 = vadd.f32 %v4367, %v4497
  %v4499 = vpop.f32.mrb[0].mxu0
  %v4500 = vadd.f32 %v4369, %v4499
  %v4501 = vpop.f32.mrb[0].mxu0
  %v4502 = vadd.f32 %v4371, %v4501
  %v4503 = vpop.f32.mrb[0].mxu0
  %v4504 = vadd.f32 %v4373, %v4503
  %4505 = vmatprep.mubr.bf16.mxu0 %v4168
  %4506 = vmatmul.mubr.bf16.gmra.mrb[0].mxu0 %v4067
  %v4507 = vpop.f32.mrb[0].mxu0
  %v4508 = vadd.f32 %v4377, %v4507
  %v4509 = vpop.f32.mrb[0].mxu0
  %v4510 = vadd.f32 %v4379, %v4509
  %v4511 = vpop.f32.mrb[0].mxu0
  %v4512 = vadd.f32 %v4381, %v4511
  %v4513 = vpop.f32.mrb[0].mxu0
  %v4514 = vadd.f32 %v4383, %v4513
  %4515 = vmatprep.mubr.bf16.mxu0 %v4171
  %4516 = vmatmul.mubr.bf16.gmra.mrb[0].mxu0 %v4073
  %v4517 = vpop.f32.mrb[0].mxu0
  %v4518 = vadd.f32 %v4387, %v4517
  %v4519 = vpop.f32.mrb[0].mxu0
  %v4520 = vadd.f32 %v4389, %v4519
  %v4521 = vpop.f32.mrb[0].mxu0
  %v4522 = vadd.f32 %v4391, %v4521
  %v4523 = vpop.f32.mrb[0].mxu0
  %v4524 = vadd.f32 %v4393, %v4523
  %4525 = vmatprep.mubr.bf16.mxu0 %v4174
  %4526 = vmatmul.mubr.bf16.gmra.mrb[0].mxu0 %v4079
  %v4527 = vpop.f32.mrb[0].mxu0
  %v4528 = vadd.f32 %v4397, %v4527
  %v4529 = vpop.f32.mrb[0].mxu0
  %v4530 = vadd.f32 %v4399, %v4529
  %v4531 = vpop.f32.mrb[0].mxu0
  %v4532 = vadd.f32 %v4401, %v4531
  %v4533 = vpop.f32.mrb[0].mxu0
  %v4534 = vadd.f32 %v4403, %v4533
  %4535 = vmatprep.mubr.bf16.mxu0 %v4177
  %4536 = vmatmul.mubr.bf16.gmra.mrb[0].mxu0 %v4085
  %v4537 = vpop.f32.mrb[0].mxu0
  %v4538 = vadd.f32 %v4407, %v4537
  %v4539 = vpop.f32.mrb[0].mxu0
  %v4540 = vadd.f32 %v4409, %v4539
  %v4541 = vpop.f32.mrb[0].mxu0
  %v4542 = vadd.f32 %v4411, %v4541
  %v4543 = vpop.f32.mrb[0].mxu0
  %v4544 = vadd.f32 %v4413, %v4543
  %4545 = vmatprep.mubr.bf16.mxu0 %v4180
  %4546 = vmatmul.mubr.bf16.gmra.mrb[0].mxu0 %v4091
  %v4547 = vpop.f32.mrb[0].mxu0
  %v4548 = vadd.f32 %v4417, %v4547
  %v4549 = vpop.f32.mrb[0].mxu0
  %v4550 = vadd.f32 %v4419, %v4549
  %v4551 = vpop.f32.mrb[0].mxu0
  %v4552 = vadd.f32 %v4421, %v4551
  %v4553 = vpop.f32.mrb[0].mxu0
  %v4554 = vadd.f32 %v4423, %v4553
  %4555 = vmatprep.mubr.bf16.mxu0 %v4183
  %4556 = vmatmul.mubr.bf16.gmra.mrb[0].mxu0 %v4097
  %v4557 = vpop.f32.mrb[0].mxu0
  %v4558 = vadd.f32 %v4427, %v4557
  %v4559 = vpop.f32.mrb[0].mxu0
  %v4560 = vadd.f32 %v4429, %v4559
  %v4561 = vpop.f32.mrb[0].mxu0
  %v4562 = vadd.f32 %v4431, %v4561
  %v4563 = vpop.f32.mrb[0].mxu0
  %v4564 = vadd.f32 %v4433, %v4563
  %4565 = vmatprep.mubr.bf16.mxu0 %v4186
  %4566 = vmatmul.mubr.bf16.gmra.mrb[0].mxu0 %v4103
  %v4567 = vpop.f32.mrb[0].mxu0
  %v4568 = vadd.f32 %v4437, %v4567
  %v4569 = vpop.f32.mrb[0].mxu0
  %v4570 = vadd.f32 %v4439, %v4569
  %v4571 = vpop.f32.mrb[0].mxu0
  %v4572 = vadd.f32 %v4441, %v4571
  %v4573 = vpop.f32.mrb[0].mxu0
  %v4574 = vadd.f32 %v4443, %v4573
  %4575 = vmatprep.mubr.bf16.mxu0 %v4189
  %4576 = vmatmul.mubr.bf16.gmra.mrb[0].mxu0 %v4109
  %v4577 = vpop.f32.mrb[0].mxu0
  %v4578 = vadd.f32 %v4447, %v4577
  %v4579 = vpop.f32.mrb[0].mxu0
  %v4580 = vadd.f32 %v4449, %v4579
  %v4581 = vpop.f32.mrb[0].mxu0
  %v4582 = vpop.f32.mrb[0].mxu0
  %4583 = vdwg.mxu0
  %4584 = vmatprep.subr.bf16.mxu0 %v1659
  %4585 = vmatpush1.bf16.msra.mxu0 %v1658
  %4586 = vmatprep.subr.bf16.mxu0 %v1666
  %4587 = vmatpush1.bf16.msra.mxu0 %v1665
  %4588 = vmatprep.subr.bf16.mxu0 %v1673
  %4589 = vmatpush1.bf16.msra.mxu0 %v1672
  %4590 = vmatprep.subr.bf16.mxu0 %v1680
  %4591 = vmatpush1.bf16.msra.mxu0 %v1679
  %4592 = vmatprep.subr.bf16.mxu0 %v1687
  %4593 = vmatpush1.bf16.msra.mxu0 %v1686
  %4594 = vmatprep.subr.bf16.mxu0 %v1694
  %4595 = vmatpush1.bf16.msra.mxu0 %v1693
  %4596 = vmatprep.subr.bf16.mxu0 %v1701
  %4597 = vmatpush1.bf16.msra.mxu0 %v1700
  %4598 = vmatprep.subr.bf16.mxu0 %v1708
  %4599 = vmatpush1.bf16.msra.mxu0 %v1707
  %4600 = vmatprep.subr.bf16.mxu0 %v1715
  %4601 = vmatpush1.bf16.msra.mxu0 %v1714
  %4602 = vmatprep.subr.bf16.mxu0 %v1722
  %4603 = vmatpush1.bf16.msra.mxu0 %v1721
  %4604 = vmatprep.subr.bf16.mxu0 %v1729
  %4605 = vmatpush1.bf16.msra.mxu0 %v1728
  %4606 = vmatprep.subr.bf16.mxu0 %v1736
  %4607 = vmatpush1.bf16.msra.mxu0 %v1735
  %4608 = vmatprep.subr.bf16.mxu0 %v1743
  %4609 = vmatpush1.bf16.msra.mxu0 %v1742
  %4610 = vmatprep.subr.bf16.mxu0 %v1750
  %4611 = vmatpush1.bf16.msra.mxu0 %v1749
  %4612 = vmatprep.subr.bf16.mxu0 %v1757
  %4613 = vmatpush1.bf16.msra.mxu0 %v1756
  %4614 = vmatprep.subr.bf16.mxu0 %v1764
  %4615 = vmatpush1.bf16.msra.mxu0 %v1763
  %4616 = vmatprep.mubr.bf16.mxu0 %v4052
  %4617 = vmatmul.mubr.bf16.gmra.mrb[0].mxu0 %v4051
  %v4618 = vpop.f32.mrb[0].mxu0
  %v4619 = vadd.f32 0.0, %v4618
  %v4620 = vpop.f32.mrb[0].mxu0
  %v4621 = vadd.f32 0.0, %v4620
  %v4622 = vpop.f32.mrb[0].mxu0
  %v4623 = vadd.f32 0.0, %v4622
  %v4624 = vpop.f32.mrb[0].mxu0
  %v4625 = vadd.f32 0.0, %v4624
  %4626 = vmatprep.mubr.bf16.mxu0 %v4058
  %4627 = vmatmul.mubr.bf16.gmra.mrb[0].mxu0 %v4057
  %v4628 = vpop.f32.mrb[0].mxu0
  %v4629 = vadd.f32 0.0, %v4628
  %v4630 = vpop.f32.mrb[0].mxu0
  %v4631 = vadd.f32 0.0, %v4630
  %v4632 = vpop.f32.mrb[0].mxu0
  %v4633 = vadd.f32 0.0, %v4632
  %v4634 = vpop.f32.mrb[0].mxu0
  %v4635 = vadd.f32 0.0, %v4634
  %4636 = vmatprep.mubr.bf16.mxu0 %v4064
  %4637 = vmatmul.mubr.bf16.gmra.mrb[0].mxu0 %v4063
  %v4638 = vpop.f32.mrb[0].mxu0
  %v4639 = vadd.f32 0.0, %v4638
  %v4640 = vpop.f32.mrb[0].mxu0
  %v4641 = vadd.f32 0.0, %v4640
  %v4642 = vpop.f32.mrb[0].mxu0
  %v4643 = vadd.f32 0.0, %v4642
  %v4644 = vpop.f32.mrb[0].mxu0
  %v4645 = vadd.f32 0.0, %v4644
  %4646 = vmatprep.mubr.bf16.mxu0 %v4070
  %4647 = vmatmul.mubr.bf16.gmra.mrb[0].mxu0 %v4069
  %v4648 = vpop.f32.mrb[0].mxu0
  %v4649 = vadd.f32 0.0, %v4648
  %v4650 = vpop.f32.mrb[0].mxu0
  %v4651 = vadd.f32 0.0, %v4650
  %v4652 = vpop.f32.mrb[0].mxu0
  %v4653 = vadd.f32 0.0, %v4652
  %v4654 = vpop.f32.mrb[0].mxu0
  %v4655 = vadd.f32 0.0, %v4654
  %4656 = vmatprep.mubr.bf16.mxu0 %v4076
  %4657 = vmatmul.mubr.bf16.gmra.mrb[0].mxu0 %v4075
  %v4658 = vpop.f32.mrb[0].mxu0
  %v4659 = vadd.f32 0.0, %v4658
  %v4660 = vpop.f32.mrb[0].mxu0
  %v4661 = vadd.f32 0.0, %v4660
  %v4662 = vpop.f32.mrb[0].mxu0
  %v4663 = vadd.f32 0.0, %v4662
  %v4664 = vpop.f32.mrb[0].mxu0
  %v4665 = vadd.f32 0.0, %v4664
  %4666 = vmatprep.mubr.bf16.mxu0 %v4082
  %4667 = vmatmul.mubr.bf16.gmra.mrb[0].mxu0 %v4081
  %v4668 = vpop.f32.mrb[0].mxu0
  %v4669 = vadd.f32 0.0, %v4668
  %v4670 = vpop.f32.mrb[0].mxu0
  %v4671 = vadd.f32 0.0, %v4670
  %v4672 = vpop.f32.mrb[0].mxu0
  %v4673 = vadd.f32 0.0, %v4672
  %v4674 = vpop.f32.mrb[0].mxu0
  %v4675 = vadd.f32 0.0, %v4674
  %4676 = vmatprep.mubr.bf16.mxu0 %v4088
  %4677 = vmatmul.mubr.bf16.gmra.mrb[0].mxu0 %v4087
  %v4678 = vpop.f32.mrb[0].mxu0
  %v4679 = vadd.f32 0.0, %v4678
  %v4680 = vpop.f32.mrb[0].mxu0
  %v4681 = vadd.f32 0.0, %v4680
  %v4682 = vpop.f32.mrb[0].mxu0
  %v4683 = vadd.f32 0.0, %v4682
  %v4684 = vpop.f32.mrb[0].mxu0
  %v4685 = vadd.f32 0.0, %v4684
  %4686 = vmatprep.mubr.bf16.mxu0 %v4094
  %4687 = vmatmul.mubr.bf16.gmra.mrb[0].mxu0 %v4093
  %v4688 = vpop.f32.mrb[0].mxu0
  %v4689 = vadd.f32 0.0, %v4688
  %v4690 = vpop.f32.mrb[0].mxu0
  %v4691 = vadd.f32 0.0, %v4690
  %v4692 = vpop.f32.mrb[0].mxu0
  %v4693 = vadd.f32 0.0, %v4692
  %v4694 = vpop.f32.mrb[0].mxu0
  %v4695 = vadd.f32 0.0, %v4694
  %4696 = vmatprep.mubr.bf16.mxu0 %v4100
  %4697 = vmatmul.mubr.bf16.gmra.mrb[0].mxu0 %v4099
  %v4698 = vpop.f32.mrb[0].mxu0
  %v4699 = vadd.f32 0.0, %v4698
  %v4700 = vpop.f32.mrb[0].mxu0
  %v4701 = vadd.f32 0.0, %v4700
  %v4702 = vpop.f32.mrb[0].mxu0
  %v4703 = vadd.f32 0.0, %v4702
  %v4704 = vpop.f32.mrb[0].mxu0
  %v4705 = vadd.f32 0.0, %v4704
  %4706 = vmatprep.mubr.bf16.mxu0 %v4106
  %4707 = vmatmul.mubr.bf16.gmra.mrb[0].mxu0 %v4105
  %v4708 = vpop.f32.mrb[0].mxu0
  %v4709 = vadd.f32 0.0, %v4708
  %v4710 = vpop.f32.mrb[0].mxu0
  %v4711 = vadd.f32 0.0, %v4710
  %v4712 = vpop.f32.mrb[0].mxu0
  %v4713 = vpop.f32.mrb[0].mxu0
  %4714 = vdwg.mxu0
  %4715 = vmatprep.subr.bf16.mxu0 %v1771
  %4716 = vmatpush1.bf16.msra.mxu0 %v1770
  %4717 = vmatprep.subr.bf16.mxu0 %v1778
  %4718 = vmatpush1.bf16.msra.mxu0 %v1777
  %4719 = vmatprep.subr.bf16.mxu0 %v1785
  %4720 = vmatpush1.bf16.msra.mxu0 %v1784
  %4721 = vmatprep.subr.bf16.mxu0 %v1792
  %4722 = vmatpush1.bf16.msra.mxu0 %v1791
  %4723 = vmatprep.subr.bf16.mxu0 %v1799
  %4724 = vmatpush1.bf16.msra.mxu0 %v1798
  %4725 = vmatprep.subr.bf16.mxu0 %v1806
  %4726 = vmatpush1.bf16.msra.mxu0 %v1805
  %4727 = vmatprep.subr.bf16.mxu0 %v1813
  %4728 = vmatpush1.bf16.msra.mxu0 %v1812
  %4729 = vmatprep.subr.bf16.mxu0 %v1820
  %4730 = vmatpush1.bf16.msra.mxu0 %v1819
  %4731 = vmatprep.subr.bf16.mxu0 %v1827
  %4732 = vmatpush1.bf16.msra.mxu0 %v1826
  %4733 = vmatprep.subr.bf16.mxu0 %v1834
  %4734 = vmatpush1.bf16.msra.mxu0 %v1833
  %4735 = vmatprep.subr.bf16.mxu0 %v1841
  %4736 = vmatpush1.bf16.msra.mxu0 %v1840
  %4737 = vmatprep.subr.bf16.mxu0 %v1848
  %4738 = vmatpush1.bf16.msra.mxu0 %v1847
  %4739 = vmatprep.subr.bf16.mxu0 %v1855
  %4740 = vmatpush1.bf16.msra.mxu0 %v1854
  %4741 = vmatprep.subr.bf16.mxu0 %v1862
  %4742 = vmatpush1.bf16.msra.mxu0 %v1861
  %4743 = vmatprep.subr.bf16.mxu0 %v1869
  %4744 = vmatpush1.bf16.msra.mxu0 %v1868
  %4745 = vmatprep.subr.bf16.mxu0 %v1876
  %4746 = vmatpush1.bf16.msra.mxu0 %v1875
  %4747 = vmatprep.mubr.bf16.mxu0 %v4054
  %4748 = vmatmul.mubr.bf16.gmra.mrb[0].mxu0 %v4053
  %v4749 = vpop.f32.mrb[0].mxu0
  %v4750 = vadd.f32 %v4619, %v4749
  %v4751 = vpop.f32.mrb[0].mxu0
  %v4752 = vadd.f32 %v4621, %v4751
  %v4753 = vpop.f32.mrb[0].mxu0
  %v4754 = vadd.f32 %v4623, %v4753
  %v4755 = vpop.f32.mrb[0].mxu0
  %v4756 = vadd.f32 %v4625, %v4755
  %4757 = vmatprep.mubr.bf16.mxu0 %v4060
  %4758 = vmatmul.mubr.bf16.gmra.mrb[0].mxu0 %v4059
  %v4759 = vpop.f32.mrb[0].mxu0
  %v4760 = vadd.f32 %v4629, %v4759
  %v4761 = vpop.f32.mrb[0].mxu0
  %v4762 = vadd.f32 %v4631, %v4761
  %v4763 = vpop.f32.mrb[0].mxu0
  %v4764 = vadd.f32 %v4633, %v4763
  %v4765 = vpop.f32.mrb[0].mxu0
  %v4766 = vadd.f32 %v4635, %v4765
  %4767 = vmatprep.mubr.bf16.mxu0 %v4066
  %4768 = vmatmul.mubr.bf16.gmra.mrb[0].mxu0 %v4065
  %v4769 = vpop.f32.mrb[0].mxu0
  %v4770 = vadd.f32 %v4639, %v4769
  %v4771 = vpop.f32.mrb[0].mxu0
  %v4772 = vadd.f32 %v4641, %v4771
  %v4773 = vpop.f32.mrb[0].mxu0
  %v4774 = vadd.f32 %v4643, %v4773
  %v4775 = vpop.f32.mrb[0].mxu0
  %v4776 = vadd.f32 %v4645, %v4775
  %4777 = vmatprep.mubr.bf16.mxu0 %v4072
  %4778 = vmatmul.mubr.bf16.gmra.mrb[0].mxu0 %v4071
  %v4779 = vpop.f32.mrb[0].mxu0
  %v4780 = vadd.f32 %v4649, %v4779
  %v4781 = vpop.f32.mrb[0].mxu0
  %v4782 = vadd.f32 %v4651, %v4781
  %v4783 = vpop.f32.mrb[0].mxu0
  %v4784 = vadd.f32 %v4653, %v4783
  %v4785 = vpop.f32.mrb[0].mxu0
  %v4786 = vadd.f32 %v4655, %v4785
  %4787 = vmatprep.mubr.bf16.mxu0 %v4078
  %4788 = vmatmul.mubr.bf16.gmra.mrb[0].mxu0 %v4077
  %v4789 = vpop.f32.mrb[0].mxu0
  %v4790 = vadd.f32 %v4659, %v4789
  %v4791 = vpop.f32.mrb[0].mxu0
  %v4792 = vadd.f32 %v4661, %v4791
  %v4793 = vpop.f32.mrb[0].mxu0
  %v4794 = vadd.f32 %v4663, %v4793
  %v4795 = vpop.f32.mrb[0].mxu0
  %v4796 = vadd.f32 %v4665, %v4795
  %4797 = vmatprep.mubr.bf16.mxu0 %v4084
  %4798 = vmatmul.mubr.bf16.gmra.mrb[0].mxu0 %v4083
  %v4799 = vpop.f32.mrb[0].mxu0
  %v4800 = vadd.f32 %v4669, %v4799
  %v4801 = vpop.f32.mrb[0].mxu0
  %v4802 = vadd.f32 %v4671, %v4801
  %v4803 = vpop.f32.mrb[0].mxu0
  %v4804 = vadd.f32 %v4673, %v4803
  %v4805 = vpop.f32.mrb[0].mxu0
  %v4806 = vadd.f32 %v4675, %v4805
  %4807 = vmatprep.mubr.bf16.mxu0 %v4090
  %4808 = vmatmul.mubr.bf16.gmra.mrb[0].mxu0 %v4089
  %v4809 = vpop.f32.mrb[0].mxu0
  %v4810 = vadd.f32 %v4679, %v4809
  %v4811 = vpop.f32.mrb[0].mxu0
  %v4812 = vadd.f32 %v4681, %v4811
  %v4813 = vpop.f32.mrb[0].mxu0
  %v4814 = vadd.f32 %v4683, %v4813
  %v4815 = vpop.f32.mrb[0].mxu0
  %v4816 = vadd.f32 %v4685, %v4815
  %4817 = vmatprep.mubr.bf16.mxu0 %v4096
  %4818 = vmatmul.mubr.bf16.gmra.mrb[0].mxu0 %v4095
  %v4819 = vpop.f32.mrb[0].mxu0
  %v4820 = vadd.f32 %v4689, %v4819
  %v4821 = vpop.f32.mrb[0].mxu0
  %v4822 = vadd.f32 %v4691, %v4821
  %v4823 = vpop.f32.mrb[0].mxu0
  %v4824 = vadd.f32 %v4693, %v4823
  %v4825 = vpop.f32.mrb[0].mxu0
  %v4826 = vadd.f32 %v4695, %v4825
  %4827 = vmatprep.mubr.bf16.mxu0 %v4102
  %4828 = vmatmul.mubr.bf16.gmra.mrb[0].mxu0 %v4101
  %v4829 = vpop.f32.mrb[0].mxu0
  %v4830 = vadd.f32 %v4699, %v4829
  %v4831 = vpop.f32.mrb[0].mxu0
  %v4832 = vadd.f32 %v4701, %v4831
  %v4833 = vpop.f32.mrb[0].mxu0
  %v4834 = vadd.f32 %v4703, %v4833
  %v4835 = vpop.f32.mrb[0].mxu0
  %v4836 = vadd.f32 %v4705, %v4835
  %4837 = vmatprep.mubr.bf16.mxu0 %v4108
  %4838 = vmatmul.mubr.bf16.gmra.mrb[0].mxu0 %v4107
  %v4839 = vpop.f32.mrb[0].mxu0
  %v4840 = vadd.f32 %v4709, %v4839
  %v4841 = vpop.f32.mrb[0].mxu0
  %v4842 = vadd.f32 %v4711, %v4841
  %v4843 = vpop.f32.mrb[0].mxu0
  %v4844 = vpop.f32.mrb[0].mxu0
  %4845 = vdwg.mxu0
  %4846 = vmatprep.subr.bf16.mxu0 %v1883
  %4847 = vmatpush1.bf16.msra.mxu0 %v1882
  %4848 = vmatprep.subr.bf16.mxu0 %v1890
  %4849 = vmatpush1.bf16.msra.mxu0 %v1889
  %4850 = vmatprep.subr.bf16.mxu0 %v1897
  %4851 = vmatpush1.bf16.msra.mxu0 %v1896
  %4852 = vmatprep.subr.bf16.mxu0 %v1904
  %4853 = vmatpush1.bf16.msra.mxu0 %v1903
  %4854 = vmatprep.subr.bf16.mxu0 %v1911
  %4855 = vmatpush1.bf16.msra.mxu0 %v1910
  %4856 = vmatprep.subr.bf16.mxu0 %v1918
  %4857 = vmatpush1.bf16.msra.mxu0 %v1917
  %4858 = vmatprep.subr.bf16.mxu0 %v1925
  %4859 = vmatpush1.bf16.msra.mxu0 %v1924
  %4860 = vmatprep.subr.bf16.mxu0 %v1932
  %4861 = vmatpush1.bf16.msra.mxu0 %v1931
  %4862 = vmatprep.subr.bf16.mxu0 %v1939
  %4863 = vmatpush1.bf16.msra.mxu0 %v1938
  %4864 = vmatprep.subr.bf16.mxu0 %v1946
  %4865 = vmatpush1.bf16.msra.mxu0 %v1945
  %4866 = vmatprep.subr.bf16.mxu0 %v2296
  %4867 = vmatpush1.bf16.msra.mxu0 %v2293
  %4868 = vmatprep.subr.bf16.mxu0 0
  %4869 = vmatpush1.bf16.msra.mxu0 0
  %4870 = vmatprep.subr.bf16.mxu0 0
  %4871 = vmatpush1.bf16.msra.mxu0 0
  %4872 = vmatprep.subr.bf16.mxu0 0
  %4873 = vmatpush1.bf16.msra.mxu0 0
  %4874 = vmatprep.subr.bf16.mxu0 0
  %4875 = vmatpush1.bf16.msra.mxu0 0
  %4876 = vmatprep.subr.bf16.mxu0 0
  %4877 = vmatpush1.bf16.msra.mxu0 0
  %4878 = vmatprep.mubr.bf16.mxu0 %v4162
  %4879 = vmatmul.mubr.bf16.gmra.mrb[0].mxu0 %v4055
  %v4880 = vpop.f32.mrb[0].mxu0
  %v4881 = vadd.f32 %v4750, %v4880
  %v4882 = vpop.f32.mrb[0].mxu0
  %v4883 = vadd.f32 %v4752, %v4882
  %v4884 = vpop.f32.mrb[0].mxu0
  %v4885 = vadd.f32 %v4754, %v4884
  %v4886 = vpop.f32.mrb[0].mxu0
  %v4887 = vadd.f32 %v4756, %v4886
  %4888 = vmatprep.mubr.bf16.mxu0 %v4165
  %4889 = vmatmul.mubr.bf16.gmra.mrb[0].mxu0 %v4061
  %v4890 = vpop.f32.mrb[0].mxu0
  %v4891 = vadd.f32 %v4760, %v4890
  %v4892 = vpop.f32.mrb[0].mxu0
  %v4893 = vadd.f32 %v4762, %v4892
  %v4894 = vpop.f32.mrb[0].mxu0
  %v4895 = vadd.f32 %v4764, %v4894
  %v4896 = vpop.f32.mrb[0].mxu0
  %v4897 = vadd.f32 %v4766, %v4896
  %4898 = vmatprep.mubr.bf16.mxu0 %v4168
  %4899 = vmatmul.mubr.bf16.gmra.mrb[0].mxu0 %v4067
  %v4900 = vpop.f32.mrb[0].mxu0
  %v4901 = vadd.f32 %v4770, %v4900
  %v4902 = vpop.f32.mrb[0].mxu0
  %v4903 = vadd.f32 %v4772, %v4902
  %v4904 = vpop.f32.mrb[0].mxu0
  %v4905 = vadd.f32 %v4774, %v4904
  %v4906 = vpop.f32.mrb[0].mxu0
  %v4907 = vadd.f32 %v4776, %v4906
  %4908 = vmatprep.mubr.bf16.mxu0 %v4171
  %4909 = vmatmul.mubr.bf16.gmra.mrb[0].mxu0 %v4073
  %v4910 = vpop.f32.mrb[0].mxu0
  %v4911 = vadd.f32 %v4780, %v4910
  %v4912 = vpop.f32.mrb[0].mxu0
  %v4913 = vadd.f32 %v4782, %v4912
  %v4914 = vpop.f32.mrb[0].mxu0
  %v4915 = vadd.f32 %v4784, %v4914
  %v4916 = vpop.f32.mrb[0].mxu0
  %v4917 = vadd.f32 %v4786, %v4916
  %4918 = vmatprep.mubr.bf16.mxu0 %v4174
  %4919 = vmatmul.mubr.bf16.gmra.mrb[0].mxu0 %v4079
  %v4920 = vpop.f32.mrb[0].mxu0
  %v4921 = vadd.f32 %v4790, %v4920
  %v4922 = vpop.f32.mrb[0].mxu0
  %v4923 = vadd.f32 %v4792, %v4922
  %v4924 = vpop.f32.mrb[0].mxu0
  %v4925 = vadd.f32 %v4794, %v4924
  %v4926 = vpop.f32.mrb[0].mxu0
  %v4927 = vadd.f32 %v4796, %v4926
  %4928 = vmatprep.mubr.bf16.mxu0 %v4177
  %4929 = vmatmul.mubr.bf16.gmra.mrb[0].mxu0 %v4085
  %v4930 = vpop.f32.mrb[0].mxu0
  %v4931 = vadd.f32 %v4800, %v4930
  %v4932 = vpop.f32.mrb[0].mxu0
  %v4933 = vadd.f32 %v4802, %v4932
  %v4934 = vpop.f32.mrb[0].mxu0
  %v4935 = vadd.f32 %v4804, %v4934
  %v4936 = vpop.f32.mrb[0].mxu0
  %v4937 = vadd.f32 %v4806, %v4936
  %4938 = vmatprep.mubr.bf16.mxu0 %v4180
  %4939 = vmatmul.mubr.bf16.gmra.mrb[0].mxu0 %v4091
  %v4940 = vpop.f32.mrb[0].mxu0
  %v4941 = vadd.f32 %v4810, %v4940
  %v4942 = vpop.f32.mrb[0].mxu0
  %v4943 = vadd.f32 %v4812, %v4942
  %v4944 = vpop.f32.mrb[0].mxu0
  %v4945 = vadd.f32 %v4814, %v4944
  %v4946 = vpop.f32.mrb[0].mxu0
  %v4947 = vadd.f32 %v4816, %v4946
  %4948 = vmatprep.mubr.bf16.mxu0 %v4183
  %4949 = vmatmul.mubr.bf16.gmra.mrb[0].mxu0 %v4097
  %v4950 = vpop.f32.mrb[0].mxu0
  %v4951 = vadd.f32 %v4820, %v4950
  %v4952 = vpop.f32.mrb[0].mxu0
  %v4953 = vadd.f32 %v4822, %v4952
  %v4954 = vpop.f32.mrb[0].mxu0
  %v4955 = vadd.f32 %v4824, %v4954
  %v4956 = vpop.f32.mrb[0].mxu0
  %v4957 = vadd.f32 %v4826, %v4956
  %4958 = vmatprep.mubr.bf16.mxu0 %v4186
  %4959 = vmatmul.mubr.bf16.gmra.mrb[0].mxu0 %v4103
  %v4960 = vpop.f32.mrb[0].mxu0
  %v4961 = vadd.f32 %v4830, %v4960
  %v4962 = vpop.f32.mrb[0].mxu0
  %v4963 = vadd.f32 %v4832, %v4962
  %v4964 = vpop.f32.mrb[0].mxu0
  %v4965 = vadd.f32 %v4834, %v4964
  %v4966 = vpop.f32.mrb[0].mxu0
  %v4967 = vadd.f32 %v4836, %v4966
  %4968 = vmatprep.mubr.bf16.mxu0 %v4189
  %4969 = vmatmul.mubr.bf16.gmra.mrb[0].mxu0 %v4109
  %v4970 = vpop.f32.mrb[0].mxu0
  %v4971 = vadd.f32 %v4840, %v4970
  %v4972 = vpop.f32.mrb[0].mxu0
  %v4973 = vadd.f32 %v4842, %v4972
  %v4974 = vpop.f32.mrb[0].mxu0
  %v4975 = vpop.f32.mrb[0].mxu0
  %4976 = vdwg.mxu0
  %4977 = vmatprep.subr.bf16.mxu0 %v1661
  %4978 = vmatpush1.bf16.msra.mxu0 %v1660
  %4979 = vmatprep.subr.bf16.mxu0 %v1668
  %4980 = vmatpush1.bf16.msra.mxu0 %v1667
  %4981 = vmatprep.subr.bf16.mxu0 %v1675
  %4982 = vmatpush1.bf16.msra.mxu0 %v1674
  %4983 = vmatprep.subr.bf16.mxu0 %v1682
  %4984 = vmatpush1.bf16.msra.mxu0 %v1681
  %4985 = vmatprep.subr.bf16.mxu0 %v1689
  %4986 = vmatpush1.bf16.msra.mxu0 %v1688
  %4987 = vmatprep.subr.bf16.mxu0 %v1696
  %4988 = vmatpush1.bf16.msra.mxu0 %v1695
  %4989 = vmatprep.subr.bf16.mxu0 %v1703
  %4990 = vmatpush1.bf16.msra.mxu0 %v1702
  %4991 = vmatprep.subr.bf16.mxu0 %v1710
  %4992 = vmatpush1.bf16.msra.mxu0 %v1709
  %4993 = vmatprep.subr.bf16.mxu0 %v1717
  %4994 = vmatpush1.bf16.msra.mxu0 %v1716
  %4995 = vmatprep.subr.bf16.mxu0 %v1724
  %4996 = vmatpush1.bf16.msra.mxu0 %v1723
  %4997 = vmatprep.subr.bf16.mxu0 %v1731
  %4998 = vmatpush1.bf16.msra.mxu0 %v1730
  %4999 = vmatprep.subr.bf16.mxu0 %v1738
  %5000 = vmatpush1.bf16.msra.mxu0 %v1737
  %5001 = vmatprep.subr.bf16.mxu0 %v1745
  %5002 = vmatpush1.bf16.msra.mxu0 %v1744
  %5003 = vmatprep.subr.bf16.mxu0 %v1752
  %5004 = vmatpush1.bf16.msra.mxu0 %v1751
  %5005 = vmatprep.subr.bf16.mxu0 %v1759
  %5006 = vmatpush1.bf16.msra.mxu0 %v1758
  %5007 = vmatprep.subr.bf16.mxu0 %v1766
  %5008 = vmatpush1.bf16.msra.mxu0 %v1765
  %5009 = vmatprep.mubr.bf16.mxu0 %v4052
  %5010 = vmatmul.mubr.bf16.gmra.mrb[0].mxu0 %v4051
  %v5011 = vpop.f32.mrb[0].mxu0
  %v5012 = vadd.f32 0.0, %v5011
  %v5013 = vpop.f32.mrb[0].mxu0
  %v5014 = vadd.f32 0.0, %v5013
  %v5015 = vpop.f32.mrb[0].mxu0
  %v5016 = vadd.f32 0.0, %v5015
  %v5017 = vpop.f32.mrb[0].mxu0
  %v5018 = vadd.f32 0.0, %v5017
  %5019 = vmatprep.mubr.bf16.mxu0 %v4058
  %5020 = vmatmul.mubr.bf16.gmra.mrb[0].mxu0 %v4057
  %v5021 = vpop.f32.mrb[0].mxu0
  %v5022 = vadd.f32 0.0, %v5021
  %v5023 = vpop.f32.mrb[0].mxu0
  %v5024 = vadd.f32 0.0, %v5023
  %v5025 = vpop.f32.mrb[0].mxu0
  %v5026 = vadd.f32 0.0, %v5025
  %v5027 = vpop.f32.mrb[0].mxu0
  %v5028 = vadd.f32 0.0, %v5027
  %5029 = vmatprep.mubr.bf16.mxu0 %v4064
  %5030 = vmatmul.mubr.bf16.gmra.mrb[0].mxu0 %v4063
  %v5031 = vpop.f32.mrb[0].mxu0
  %v5032 = vadd.f32 0.0, %v5031
  %v5033 = vpop.f32.mrb[0].mxu0
  %v5034 = vadd.f32 0.0, %v5033
  %v5035 = vpop.f32.mrb[0].mxu0
  %v5036 = vadd.f32 0.0, %v5035
  %v5037 = vpop.f32.mrb[0].mxu0
  %v5038 = vadd.f32 0.0, %v5037
  %5039 = vmatprep.mubr.bf16.mxu0 %v4070
  %5040 = vmatmul.mubr.bf16.gmra.mrb[0].mxu0 %v4069
  %v5041 = vpop.f32.mrb[0].mxu0
  %v5042 = vadd.f32 0.0, %v5041
  %v5043 = vpop.f32.mrb[0].mxu0
  %v5044 = vadd.f32 0.0, %v5043
  %v5045 = vpop.f32.mrb[0].mxu0
  %v5046 = vadd.f32 0.0, %v5045
  %v5047 = vpop.f32.mrb[0].mxu0
  %v5048 = vadd.f32 0.0, %v5047
  %5049 = vmatprep.mubr.bf16.mxu0 %v4076
  %5050 = vmatmul.mubr.bf16.gmra.mrb[0].mxu0 %v4075
  %v5051 = vpop.f32.mrb[0].mxu0
  %v5052 = vadd.f32 0.0, %v5051
  %v5053 = vpop.f32.mrb[0].mxu0
  %v5054 = vadd.f32 0.0, %v5053
  %v5055 = vpop.f32.mrb[0].mxu0
  %v5056 = vadd.f32 0.0, %v5055
  %v5057 = vpop.f32.mrb[0].mxu0
  %v5058 = vadd.f32 0.0, %v5057
  %5059 = vmatprep.mubr.bf16.mxu0 %v4082
  %5060 = vmatmul.mubr.bf16.gmra.mrb[0].mxu0 %v4081
  %v5061 = vpop.f32.mrb[0].mxu0
  %v5062 = vadd.f32 0.0, %v5061
  %v5063 = vpop.f32.mrb[0].mxu0
  %v5064 = vadd.f32 0.0, %v5063
  %v5065 = vpop.f32.mrb[0].mxu0
  %v5066 = vadd.f32 0.0, %v5065
  %v5067 = vpop.f32.mrb[0].mxu0
  %v5068 = vadd.f32 0.0, %v5067
  %5069 = vmatprep.mubr.bf16.mxu0 %v4088
  %5070 = vmatmul.mubr.bf16.gmra.mrb[0].mxu0 %v4087
  %v5071 = vpop.f32.mrb[0].mxu0
  %v5072 = vadd.f32 0.0, %v5071
  %v5073 = vpop.f32.mrb[0].mxu0
  %v5074 = vadd.f32 0.0, %v5073
  %v5075 = vpop.f32.mrb[0].mxu0
  %v5076 = vadd.f32 0.0, %v5075
  %v5077 = vpop.f32.mrb[0].mxu0
  %v5078 = vadd.f32 0.0, %v5077
  %5079 = vmatprep.mubr.bf16.mxu0 %v4094
  %5080 = vmatmul.mubr.bf16.gmra.mrb[0].mxu0 %v4093
  %v5081 = vpop.f32.mrb[0].mxu0
  %v5082 = vadd.f32 0.0, %v5081
  %v5083 = vpop.f32.mrb[0].mxu0
  %v5084 = vadd.f32 0.0, %v5083
  %v5085 = vpop.f32.mrb[0].mxu0
  %v5086 = vadd.f32 0.0, %v5085
  %v5087 = vpop.f32.mrb[0].mxu0
  %v5088 = vadd.f32 0.0, %v5087
  %5089 = vmatprep.mubr.bf16.mxu0 %v4100
  %5090 = vmatmul.mubr.bf16.gmra.mrb[0].mxu0 %v4099
  %v5091 = vpop.f32.mrb[0].mxu0
  %v5092 = vadd.f32 0.0, %v5091
  %v5093 = vpop.f32.mrb[0].mxu0
  %v5094 = vadd.f32 0.0, %v5093
  %v5095 = vpop.f32.mrb[0].mxu0
  %v5096 = vadd.f32 0.0, %v5095
  %v5097 = vpop.f32.mrb[0].mxu0
  %v5098 = vadd.f32 0.0, %v5097
  %5099 = vmatprep.mubr.bf16.mxu0 %v4106
  %5100 = vmatmul.mubr.bf16.gmra.mrb[0].mxu0 %v4105
  %v5101 = vpop.f32.mrb[0].mxu0
  %v5102 = vadd.f32 0.0, %v5101
  %v5103 = vpop.f32.mrb[0].mxu0
  %v5104 = vadd.f32 0.0, %v5103
  %v5105 = vpop.f32.mrb[0].mxu0
  %v5106 = vpop.f32.mrb[0].mxu0
  %5107 = vdwg.mxu0
  %5108 = vmatprep.subr.bf16.mxu0 %v1773
  %5109 = vmatpush1.bf16.msra.mxu0 %v1772
  %5110 = vmatprep.subr.bf16.mxu0 %v1780
  %5111 = vmatpush1.bf16.msra.mxu0 %v1779
  %5112 = vmatprep.subr.bf16.mxu0 %v1787
  %5113 = vmatpush1.bf16.msra.mxu0 %v1786
  %5114 = vmatprep.subr.bf16.mxu0 %v1794
  %5115 = vmatpush1.bf16.msra.mxu0 %v1793
  %5116 = vmatprep.subr.bf16.mxu0 %v1801
  %5117 = vmatpush1.bf16.msra.mxu0 %v1800
  %5118 = vmatprep.subr.bf16.mxu0 %v1808
  %5119 = vmatpush1.bf16.msra.mxu0 %v1807
  %5120 = vmatprep.subr.bf16.mxu0 %v1815
  %5121 = vmatpush1.bf16.msra.mxu0 %v1814
  %5122 = vmatprep.subr.bf16.mxu0 %v1822
  %5123 = vmatpush1.bf16.msra.mxu0 %v1821
  %5124 = vmatprep.subr.bf16.mxu0 %v1829
  %5125 = vmatpush1.bf16.msra.mxu0 %v1828
  %5126 = vmatprep.subr.bf16.mxu0 %v1836
  %5127 = vmatpush1.bf16.msra.mxu0 %v1835
  %5128 = vmatprep.subr.bf16.mxu0 %v1843
  %5129 = vmatpush1.bf16.msra.mxu0 %v1842
  %5130 = vmatprep.subr.bf16.mxu0 %v1850
  %5131 = vmatpush1.bf16.msra.mxu0 %v1849
  %5132 = vmatprep.subr.bf16.mxu0 %v1857
  %5133 = vmatpush1.bf16.msra.mxu0 %v1856
  %5134 = vmatprep.subr.bf16.mxu0 %v1864
  %5135 = vmatpush1.bf16.msra.mxu0 %v1863
  %5136 = vmatprep.subr.bf16.mxu0 %v1871
  %5137 = vmatpush1.bf16.msra.mxu0 %v1870
  %5138 = vmatprep.subr.bf16.mxu0 %v1878
  %5139 = vmatpush1.bf16.msra.mxu0 %v1877
  %5140 = vmatprep.mubr.bf16.mxu0 %v4054
  %5141 = vmatmul.mubr.bf16.gmra.mrb[0].mxu0 %v4053
  %v5142 = vpop.f32.mrb[0].mxu0
  %v5143 = vadd.f32 %v5012, %v5142
  %v5144 = vpop.f32.mrb[0].mxu0
  %v5145 = vadd.f32 %v5014, %v5144
  %v5146 = vpop.f32.mrb[0].mxu0
  %v5147 = vadd.f32 %v5016, %v5146
  %v5148 = vpop.f32.mrb[0].mxu0
  %v5149 = vadd.f32 %v5018, %v5148
  %5150 = vmatprep.mubr.bf16.mxu0 %v4060
  %5151 = vmatmul.mubr.bf16.gmra.mrb[0].mxu0 %v4059
  %v5152 = vpop.f32.mrb[0].mxu0
  %v5153 = vadd.f32 %v5022, %v5152
  %v5154 = vpop.f32.mrb[0].mxu0
  %v5155 = vadd.f32 %v5024, %v5154
  %v5156 = vpop.f32.mrb[0].mxu0
  %v5157 = vadd.f32 %v5026, %v5156
  %v5158 = vpop.f32.mrb[0].mxu0
  %v5159 = vadd.f32 %v5028, %v5158
  %5160 = vmatprep.mubr.bf16.mxu0 %v4066
  %5161 = vmatmul.mubr.bf16.gmra.mrb[0].mxu0 %v4065
  %v5162 = vpop.f32.mrb[0].mxu0
  %v5163 = vadd.f32 %v5032, %v5162
  %v5164 = vpop.f32.mrb[0].mxu0
  %v5165 = vadd.f32 %v5034, %v5164
  %v5166 = vpop.f32.mrb[0].mxu0
  %v5167 = vadd.f32 %v5036, %v5166
  %v5168 = vpop.f32.mrb[0].mxu0
  %v5169 = vadd.f32 %v5038, %v5168
  %5170 = vmatprep.mubr.bf16.mxu0 %v4072
  %5171 = vmatmul.mubr.bf16.gmra.mrb[0].mxu0 %v4071
  %v5172 = vpop.f32.mrb[0].mxu0
  %v5173 = vadd.f32 %v5042, %v5172
  %v5174 = vpop.f32.mrb[0].mxu0
  %v5175 = vadd.f32 %v5044, %v5174
  %v5176 = vpop.f32.mrb[0].mxu0
  %v5177 = vadd.f32 %v5046, %v5176
  %v5178 = vpop.f32.mrb[0].mxu0
  %v5179 = vadd.f32 %v5048, %v5178
  %5180 = vmatprep.mubr.bf16.mxu0 %v4078
  %5181 = vmatmul.mubr.bf16.gmra.mrb[0].mxu0 %v4077
  %v5182 = vpop.f32.mrb[0].mxu0
  %v5183 = vadd.f32 %v5052, %v5182
  %v5184 = vpop.f32.mrb[0].mxu0
  %v5185 = vadd.f32 %v5054, %v5184
  %v5186 = vpop.f32.mrb[0].mxu0
  %v5187 = vadd.f32 %v5056, %v5186
  %v5188 = vpop.f32.mrb[0].mxu0
  %v5189 = vadd.f32 %v5058, %v5188
  %5190 = vmatprep.mubr.bf16.mxu0 %v4084
  %5191 = vmatmul.mubr.bf16.gmra.mrb[0].mxu0 %v4083
  %v5192 = vpop.f32.mrb[0].mxu0
  %v5193 = vadd.f32 %v5062, %v5192
  %v5194 = vpop.f32.mrb[0].mxu0
  %v5195 = vadd.f32 %v5064, %v5194
  %v5196 = vpop.f32.mrb[0].mxu0
  %v5197 = vadd.f32 %v5066, %v5196
  %v5198 = vpop.f32.mrb[0].mxu0
  %v5199 = vadd.f32 %v5068, %v5198
  %5200 = vmatprep.mubr.bf16.mxu0 %v4090
  %5201 = vmatmul.mubr.bf16.gmra.mrb[0].mxu0 %v4089
  %v5202 = vpop.f32.mrb[0].mxu0
  %v5203 = vadd.f32 %v5072, %v5202
  %v5204 = vpop.f32.mrb[0].mxu0
  %v5205 = vadd.f32 %v5074, %v5204
  %v5206 = vpop.f32.mrb[0].mxu0
  %v5207 = vadd.f32 %v5076, %v5206
  %v5208 = vpop.f32.mrb[0].mxu0
  %v5209 = vadd.f32 %v5078, %v5208
  %5210 = vmatprep.mubr.bf16.mxu0 %v4096
  %5211 = vmatmul.mubr.bf16.gmra.mrb[0].mxu0 %v4095
  %v5212 = vpop.f32.mrb[0].mxu0
  %v5213 = vadd.f32 %v5082, %v5212
  %v5214 = vpop.f32.mrb[0].mxu0
  %v5215 = vadd.f32 %v5084, %v5214
  %v5216 = vpop.f32.mrb[0].mxu0
  %v5217 = vadd.f32 %v5086, %v5216
  %v5218 = vpop.f32.mrb[0].mxu0
  %v5219 = vadd.f32 %v5088, %v5218
  %5220 = vmatprep.mubr.bf16.mxu0 %v4102
  %5221 = vmatmul.mubr.bf16.gmra.mrb[0].mxu0 %v4101
  %v5222 = vpop.f32.mrb[0].mxu0
  %v5223 = vadd.f32 %v5092, %v5222
  %v5224 = vpop.f32.mrb[0].mxu0
  %v5225 = vadd.f32 %v5094, %v5224
  %v5226 = vpop.f32.mrb[0].mxu0
  %v5227 = vadd.f32 %v5096, %v5226
  %v5228 = vpop.f32.mrb[0].mxu0
  %v5229 = vadd.f32 %v5098, %v5228
  %5230 = vmatprep.mubr.bf16.mxu0 %v4108
  %5231 = vmatmul.mubr.bf16.gmra.mrb[0].mxu0 %v4107
  %v5232 = vpop.f32.mrb[0].mxu0
  %v5233 = vadd.f32 %v5102, %v5232
  %v5234 = vpop.f32.mrb[0].mxu0
  %v5235 = vadd.f32 %v5104, %v5234
  %v5236 = vpop.f32.mrb[0].mxu0
  %v5237 = vpop.f32.mrb[0].mxu0
  %5238 = vdwg.mxu0
  %5239 = vmatprep.subr.bf16.mxu0 %v1885
  %5240 = vmatpush1.bf16.msra.mxu0 %v1884
  %5241 = vmatprep.subr.bf16.mxu0 %v1892
  %5242 = vmatpush1.bf16.msra.mxu0 %v1891
  %5243 = vmatprep.subr.bf16.mxu0 %v1899
  %5244 = vmatpush1.bf16.msra.mxu0 %v1898
  %5245 = vmatprep.subr.bf16.mxu0 %v1906
  %5246 = vmatpush1.bf16.msra.mxu0 %v1905
  %5247 = vmatprep.subr.bf16.mxu0 %v1913
  %5248 = vmatpush1.bf16.msra.mxu0 %v1912
  %5249 = vmatprep.subr.bf16.mxu0 %v1920
  %5250 = vmatpush1.bf16.msra.mxu0 %v1919
  %5251 = vmatprep.subr.bf16.mxu0 %v1927
  %5252 = vmatpush1.bf16.msra.mxu0 %v1926
  %5253 = vmatprep.subr.bf16.mxu0 %v1934
  %5254 = vmatpush1.bf16.msra.mxu0 %v1933
  %5255 = vmatprep.subr.bf16.mxu0 %v1941
  %5256 = vmatpush1.bf16.msra.mxu0 %v1940
  %5257 = vmatprep.subr.bf16.mxu0 %v1948
  %5258 = vmatpush1.bf16.msra.mxu0 %v1947
  %5259 = vmatprep.subr.bf16.mxu0 %v2302
  %5260 = vmatpush1.bf16.msra.mxu0 %v2299
  %5261 = vmatprep.subr.bf16.mxu0 0
  %5262 = vmatpush1.bf16.msra.mxu0 0
  %5263 = vmatprep.subr.bf16.mxu0 0
  %5264 = vmatpush1.bf16.msra.mxu0 0
  %5265 = vmatprep.subr.bf16.mxu0 0
  %5266 = vmatpush1.bf16.msra.mxu0 0
  %5267 = vmatprep.subr.bf16.mxu0 0
  %5268 = vmatpush1.bf16.msra.mxu0 0
  %5269 = vmatprep.subr.bf16.mxu0 0
  %5270 = vmatpush1.bf16.msra.mxu0 0
  %5271 = vmatprep.mubr.bf16.mxu0 %v4162
  %5272 = vmatmul.mubr.bf16.gmra.mrb[0].mxu0 %v4055
  %v5273 = vpop.f32.mrb[0].mxu0
  %v5274 = vadd.f32 %v5143, %v5273
  %v5275 = vpop.f32.mrb[0].mxu0
  %v5276 = vadd.f32 %v5145, %v5275
  %v5277 = vpop.f32.mrb[0].mxu0
  %v5278 = vadd.f32 %v5147, %v5277
  %v5279 = vpop.f32.mrb[0].mxu0
  %v5280 = vadd.f32 %v5149, %v5279
  %5281 = vmatprep.mubr.bf16.mxu0 %v4165
  %5282 = vmatmul.mubr.bf16.gmra.mrb[0].mxu0 %v4061
  %v5283 = vpop.f32.mrb[0].mxu0
  %v5284 = vadd.f32 %v5153, %v5283
  %v5285 = vpop.f32.mrb[0].mxu0
  %v5286 = vadd.f32 %v5155, %v5285
  %v5287 = vpop.f32.mrb[0].mxu0
  %v5288 = vadd.f32 %v5157, %v5287
  %v5289 = vpop.f32.mrb[0].mxu0
  %v5290 = vadd.f32 %v5159, %v5289
  %5291 = vmatprep.mubr.bf16.mxu0 %v4168
  %5292 = vmatmul.mubr.bf16.gmra.mrb[0].mxu0 %v4067
  %v5293 = vpop.f32.mrb[0].mxu0
  %v5294 = vadd.f32 %v5163, %v5293
  %v5295 = vpop.f32.mrb[0].mxu0
  %v5296 = vadd.f32 %v5165, %v5295
  %v5297 = vpop.f32.mrb[0].mxu0
  %v5298 = vadd.f32 %v5167, %v5297
  %v5299 = vpop.f32.mrb[0].mxu0
  %v5300 = vadd.f32 %v5169, %v5299
  %5301 = vmatprep.mubr.bf16.mxu0 %v4171
  %5302 = vmatmul.mubr.bf16.gmra.mrb[0].mxu0 %v4073
  %v5303 = vpop.f32.mrb[0].mxu0
  %v5304 = vadd.f32 %v5173, %v5303
  %v5305 = vpop.f32.mrb[0].mxu0
  %v5306 = vadd.f32 %v5175, %v5305
  %v5307 = vpop.f32.mrb[0].mxu0
  %v5308 = vadd.f32 %v5177, %v5307
  %v5309 = vpop.f32.mrb[0].mxu0
  %v5310 = vadd.f32 %v5179, %v5309
  %5311 = vmatprep.mubr.bf16.mxu0 %v4174
  %5312 = vmatmul.mubr.bf16.gmra.mrb[0].mxu0 %v4079
  %v5313 = vpop.f32.mrb[0].mxu0
  %v5314 = vadd.f32 %v5183, %v5313
  %v5315 = vpop.f32.mrb[0].mxu0
  %v5316 = vadd.f32 %v5185, %v5315
  %v5317 = vpop.f32.mrb[0].mxu0
  %v5318 = vadd.f32 %v5187, %v5317
  %v5319 = vpop.f32.mrb[0].mxu0
  %v5320 = vadd.f32 %v5189, %v5319
  %5321 = vmatprep.mubr.bf16.mxu0 %v4177
  %5322 = vmatmul.mubr.bf16.gmra.mrb[0].mxu0 %v4085
  %v5323 = vpop.f32.mrb[0].mxu0
  %v5324 = vadd.f32 %v5193, %v5323
  %v5325 = vpop.f32.mrb[0].mxu0
  %v5326 = vadd.f32 %v5195, %v5325
  %v5327 = vpop.f32.mrb[0].mxu0
  %v5328 = vadd.f32 %v5197, %v5327
  %v5329 = vpop.f32.mrb[0].mxu0
  %v5330 = vadd.f32 %v5199, %v5329
  %5331 = vmatprep.mubr.bf16.mxu0 %v4180
  %5332 = vmatmul.mubr.bf16.gmra.mrb[0].mxu0 %v4091
  %v5333 = vpop.f32.mrb[0].mxu0
  %v5334 = vadd.f32 %v5203, %v5333
  %v5335 = vpop.f32.mrb[0].mxu0
  %v5336 = vadd.f32 %v5205, %v5335
  %v5337 = vpop.f32.mrb[0].mxu0
  %v5338 = vadd.f32 %v5207, %v5337
  %v5339 = vpop.f32.mrb[0].mxu0
  %v5340 = vadd.f32 %v5209, %v5339
  %5341 = vmatprep.mubr.bf16.mxu0 %v4183
  %5342 = vmatmul.mubr.bf16.gmra.mrb[0].mxu0 %v4097
  %v5343 = vpop.f32.mrb[0].mxu0
  %v5344 = vadd.f32 %v5213, %v5343
  %v5345 = vpop.f32.mrb[0].mxu0
  %v5346 = vadd.f32 %v5215, %v5345
  %v5347 = vpop.f32.mrb[0].mxu0
  %v5348 = vadd.f32 %v5217, %v5347
  %v5349 = vpop.f32.mrb[0].mxu0
  %v5350 = vadd.f32 %v5219, %v5349
  %5351 = vmatprep.mubr.bf16.mxu0 %v4186
  %5352 = vmatmul.mubr.bf16.gmra.mrb[0].mxu0 %v4103
  %v5353 = vpop.f32.mrb[0].mxu0
  %v5354 = vadd.f32 %v5223, %v5353
  %v5355 = vpop.f32.mrb[0].mxu0
  %v5356 = vadd.f32 %v5225, %v5355
  %v5357 = vpop.f32.mrb[0].mxu0
  %v5358 = vadd.f32 %v5227, %v5357
  %v5359 = vpop.f32.mrb[0].mxu0
  %v5360 = vadd.f32 %v5229, %v5359
  %5361 = vmatprep.mubr.bf16.mxu0 %v4189
  %5362 = vmatmul.mubr.bf16.gmra.mrb[0].mxu0 %v4109
  %v5363 = vpop.f32.mrb[0].mxu0
  %v5364 = vadd.f32 %v5233, %v5363
  %v5365 = vpop.f32.mrb[0].mxu0
  %v5366 = vadd.f32 %v5235, %v5365
  %v5367 = vpop.f32.mrb[0].mxu0
  %v5368 = vpop.f32.mrb[0].mxu0
  %5369 = vdwg.mxu0
  %5370 = vmatprep.subr.bf16.mxu0 0
  %5371 = vmatpush1.bf16.msra.mxu0 %v1662
  %5372 = vmatprep.subr.bf16.mxu0 0
  %5373 = vmatpush1.bf16.msra.mxu0 %v1669
  %5374 = vmatprep.subr.bf16.mxu0 0
  %5375 = vmatpush1.bf16.msra.mxu0 %v1676
  %5376 = vmatprep.subr.bf16.mxu0 0
  %5377 = vmatpush1.bf16.msra.mxu0 %v1683
  %5378 = vmatprep.subr.bf16.mxu0 0
  %5379 = vmatpush1.bf16.msra.mxu0 %v1690
  %5380 = vmatprep.subr.bf16.mxu0 0
  %5381 = vmatpush1.bf16.msra.mxu0 %v1697
  %5382 = vmatprep.subr.bf16.mxu0 0
  %5383 = vmatpush1.bf16.msra.mxu0 %v1704
  %5384 = vmatprep.subr.bf16.mxu0 0
  %5385 = vmatpush1.bf16.msra.mxu0 %v1711
  %5386 = vmatprep.subr.bf16.mxu0 0
  %5387 = vmatpush1.bf16.msra.mxu0 %v1718
  %5388 = vmatprep.subr.bf16.mxu0 0
  %5389 = vmatpush1.bf16.msra.mxu0 %v1725
  %5390 = vmatprep.subr.bf16.mxu0 0
  %5391 = vmatpush1.bf16.msra.mxu0 %v1732
  %5392 = vmatprep.subr.bf16.mxu0 0
  %5393 = vmatpush1.bf16.msra.mxu0 %v1739
  %5394 = vmatprep.subr.bf16.mxu0 0
  %5395 = vmatpush1.bf16.msra.mxu0 %v1746
  %5396 = vmatprep.subr.bf16.mxu0 0
  %5397 = vmatpush1.bf16.msra.mxu0 %v1753
  %5398 = vmatprep.subr.bf16.mxu0 0
  %5399 = vmatpush1.bf16.msra.mxu0 %v1760
  %5400 = vmatprep.subr.bf16.mxu0 0
  %5401 = vmatpush1.bf16.msra.mxu0 %v1767
  %5402 = vmatprep.mubr.bf16.mxu0 %v4052
  %5403 = vmatmul.mubr.bf16.gmra.mrb[0].mxu0 %v4051
  %v5404 = vpop.f32.mrb[0].mxu0
  %v5405 = vadd.f32 0.0, %v5404
  %v5406 = vpop.f32.mrb[0].mxu0
  %v5407 = vpop.f32.mrb[0].mxu0
  %v5408 = vadd.f32 0.0, %v5407
  %v5409 = vpop.f32.mrb[0].mxu0
  %5410 = vmatprep.mubr.bf16.mxu0 %v4058
  %5411 = vmatmul.mubr.bf16.gmra.mrb[0].mxu0 %v4057
  %v5412 = vpop.f32.mrb[0].mxu0
  %v5413 = vadd.f32 0.0, %v5412
  %v5414 = vpop.f32.mrb[0].mxu0
  %v5415 = vpop.f32.mrb[0].mxu0
  %v5416 = vadd.f32 0.0, %v5415
  %v5417 = vpop.f32.mrb[0].mxu0
  %5418 = vmatprep.mubr.bf16.mxu0 %v4064
  %5419 = vmatmul.mubr.bf16.gmra.mrb[0].mxu0 %v4063
  %v5420 = vpop.f32.mrb[0].mxu0
  %v5421 = vadd.f32 0.0, %v5420
  %v5422 = vpop.f32.mrb[0].mxu0
  %v5423 = vpop.f32.mrb[0].mxu0
  %v5424 = vadd.f32 0.0, %v5423
  %v5425 = vpop.f32.mrb[0].mxu0
  %5426 = vmatprep.mubr.bf16.mxu0 %v4070
  %5427 = vmatmul.mubr.bf16.gmra.mrb[0].mxu0 %v4069
  %v5428 = vpop.f32.mrb[0].mxu0
  %v5429 = vadd.f32 0.0, %v5428
  %v5430 = vpop.f32.mrb[0].mxu0
  %v5431 = vpop.f32.mrb[0].mxu0
  %v5432 = vadd.f32 0.0, %v5431
  %v5433 = vpop.f32.mrb[0].mxu0
  %5434 = vmatprep.mubr.bf16.mxu0 %v4076
  %5435 = vmatmul.mubr.bf16.gmra.mrb[0].mxu0 %v4075
  %v5436 = vpop.f32.mrb[0].mxu0
  %v5437 = vadd.f32 0.0, %v5436
  %v5438 = vpop.f32.mrb[0].mxu0
  %v5439 = vpop.f32.mrb[0].mxu0
  %v5440 = vadd.f32 0.0, %v5439
  %v5441 = vpop.f32.mrb[0].mxu0
  %5442 = vmatprep.mubr.bf16.mxu0 %v4082
  %5443 = vmatmul.mubr.bf16.gmra.mrb[0].mxu0 %v4081
  %v5444 = vpop.f32.mrb[0].mxu0
  %v5445 = vadd.f32 0.0, %v5444
  %v5446 = vpop.f32.mrb[0].mxu0
  %v5447 = vpop.f32.mrb[0].mxu0
  %v5448 = vadd.f32 0.0, %v5447
  %v5449 = vpop.f32.mrb[0].mxu0
  %5450 = vmatprep.mubr.bf16.mxu0 %v4088
  %5451 = vmatmul.mubr.bf16.gmra.mrb[0].mxu0 %v4087
  %v5452 = vpop.f32.mrb[0].mxu0
  %v5453 = vadd.f32 0.0, %v5452
  %v5454 = vpop.f32.mrb[0].mxu0
  %v5455 = vpop.f32.mrb[0].mxu0
  %v5456 = vadd.f32 0.0, %v5455
  %v5457 = vpop.f32.mrb[0].mxu0
  %5458 = vmatprep.mubr.bf16.mxu0 %v4094
  %5459 = vmatmul.mubr.bf16.gmra.mrb[0].mxu0 %v4093
  %v5460 = vpop.f32.mrb[0].mxu0
  %v5461 = vadd.f32 0.0, %v5460
  %v5462 = vpop.f32.mrb[0].mxu0
  %v5463 = vpop.f32.mrb[0].mxu0
  %v5464 = vadd.f32 0.0, %v5463
  %v5465 = vpop.f32.mrb[0].mxu0
  %5466 = vmatprep.mubr.bf16.mxu0 %v4100
  %5467 = vmatmul.mubr.bf16.gmra.mrb[0].mxu0 %v4099
  %v5468 = vpop.f32.mrb[0].mxu0
  %v5469 = vadd.f32 0.0, %v5468
  %v5470 = vpop.f32.mrb[0].mxu0
  %v5471 = vpop.f32.mrb[0].mxu0
  %v5472 = vadd.f32 0.0, %v5471
  %v5473 = vpop.f32.mrb[0].mxu0
  %5474 = vmatprep.mubr.bf16.mxu0 %v4106
  %5475 = vmatmul.mubr.bf16.gmra.mrb[0].mxu0 %v4105
  %v5476 = vpop.f32.mrb[0].mxu0
  %v5477 = vadd.f32 0.0, %v5476
  %v5478 = vpop.f32.mrb[0].mxu0
  %v5479 = vpop.f32.mrb[0].mxu0
  %v5480 = vpop.f32.mrb[0].mxu0
  %5481 = vdwg.mxu0
  %5482 = vmatprep.subr.bf16.mxu0 0
  %5483 = vmatpush1.bf16.msra.mxu0 %v1774
  %5484 = vmatprep.subr.bf16.mxu0 0
  %5485 = vmatpush1.bf16.msra.mxu0 %v1781
  %5486 = vmatprep.subr.bf16.mxu0 0
  %5487 = vmatpush1.bf16.msra.mxu0 %v1788
  %5488 = vmatprep.subr.bf16.mxu0 0
  %5489 = vmatpush1.bf16.msra.mxu0 %v1795
  %5490 = vmatprep.subr.bf16.mxu0 0
  %5491 = vmatpush1.bf16.msra.mxu0 %v1802
  %5492 = vmatprep.subr.bf16.mxu0 0
  %5493 = vmatpush1.bf16.msra.mxu0 %v1809
  %5494 = vmatprep.subr.bf16.mxu0 0
  %5495 = vmatpush1.bf16.msra.mxu0 %v1816
  %5496 = vmatprep.subr.bf16.mxu0 0
  %5497 = vmatpush1.bf16.msra.mxu0 %v1823
  %5498 = vmatprep.subr.bf16.mxu0 0
  %5499 = vmatpush1.bf16.msra.mxu0 %v1830
  %5500 = vmatprep.subr.bf16.mxu0 0
  %5501 = vmatpush1.bf16.msra.mxu0 %v1837
  %5502 = vmatprep.subr.bf16.mxu0 0
  %5503 = vmatpush1.bf16.msra.mxu0 %v1844
  %5504 = vmatprep.subr.bf16.mxu0 0
  %5505 = vmatpush1.bf16.msra.mxu0 %v1851
  %5506 = vmatprep.subr.bf16.mxu0 0
  %5507 = vmatpush1.bf16.msra.mxu0 %v1858
  %5508 = vmatprep.subr.bf16.mxu0 0
  %5509 = vmatpush1.bf16.msra.mxu0 %v1865
  %5510 = vmatprep.subr.bf16.mxu0 0
  %5511 = vmatpush1.bf16.msra.mxu0 %v1872
  %5512 = vmatprep.subr.bf16.mxu0 0
  %5513 = vmatpush1.bf16.msra.mxu0 %v1879
  %5514 = vmatprep.mubr.bf16.mxu0 %v4054
  %5515 = vmatmul.mubr.bf16.gmra.mrb[0].mxu0 %v4053
  %v5516 = vpop.f32.mrb[0].mxu0
  %v5517 = vadd.f32 %v5405, %v5516
  %v5518 = vpop.f32.mrb[0].mxu0
  %v5519 = vpop.f32.mrb[0].mxu0
  %v5520 = vadd.f32 %v5408, %v5519
  %v5521 = vpop.f32.mrb[0].mxu0
  %5522 = vmatprep.mubr.bf16.mxu0 %v4060
  %5523 = vmatmul.mubr.bf16.gmra.mrb[0].mxu0 %v4059
  %v5524 = vpop.f32.mrb[0].mxu0
  %v5525 = vadd.f32 %v5413, %v5524
  %v5526 = vpop.f32.mrb[0].mxu0
  %v5527 = vpop.f32.mrb[0].mxu0
  %v5528 = vadd.f32 %v5416, %v5527
  %v5529 = vpop.f32.mrb[0].mxu0
  %5530 = vmatprep.mubr.bf16.mxu0 %v4066
  %5531 = vmatmul.mubr.bf16.gmra.mrb[0].mxu0 %v4065
  %v5532 = vpop.f32.mrb[0].mxu0
  %v5533 = vadd.f32 %v5421, %v5532
  %v5534 = vpop.f32.mrb[0].mxu0
  %v5535 = vpop.f32.mrb[0].mxu0
  %v5536 = vadd.f32 %v5424, %v5535
  %v5537 = vpop.f32.mrb[0].mxu0
  %5538 = vmatprep.mubr.bf16.mxu0 %v4072
  %5539 = vmatmul.mubr.bf16.gmra.mrb[0].mxu0 %v4071
  %v5540 = vpop.f32.mrb[0].mxu0
  %v5541 = vadd.f32 %v5429, %v5540
  %v5542 = vpop.f32.mrb[0].mxu0
  %v5543 = vpop.f32.mrb[0].mxu0
  %v5544 = vadd.f32 %v5432, %v5543
  %v5545 = vpop.f32.mrb[0].mxu0
  %5546 = vmatprep.mubr.bf16.mxu0 %v4078
  %5547 = vmatmul.mubr.bf16.gmra.mrb[0].mxu0 %v4077
  %v5548 = vpop.f32.mrb[0].mxu0
  %v5549 = vadd.f32 %v5437, %v5548
  %v5550 = vpop.f32.mrb[0].mxu0
  %v5551 = vpop.f32.mrb[0].mxu0
  %v5552 = vadd.f32 %v5440, %v5551
  %v5553 = vpop.f32.mrb[0].mxu0
  %5554 = vmatprep.mubr.bf16.mxu0 %v4084
  %5555 = vmatmul.mubr.bf16.gmra.mrb[0].mxu0 %v4083
  %v5556 = vpop.f32.mrb[0].mxu0
  %v5557 = vadd.f32 %v5445, %v5556
  %v5558 = vpop.f32.mrb[0].mxu0
  %v5559 = vpop.f32.mrb[0].mxu0
  %v5560 = vadd.f32 %v5448, %v5559
  %v5561 = vpop.f32.mrb[0].mxu0
  %5562 = vmatprep.mubr.bf16.mxu0 %v4090
  %5563 = vmatmul.mubr.bf16.gmra.mrb[0].mxu0 %v4089
  %v5564 = vpop.f32.mrb[0].mxu0
  %v5565 = vadd.f32 %v5453, %v5564
  %v5566 = vpop.f32.mrb[0].mxu0
  %v5567 = vpop.f32.mrb[0].mxu0
  %v5568 = vadd.f32 %v5456, %v5567
  %v5569 = vpop.f32.mrb[0].mxu0
  %5570 = vmatprep.mubr.bf16.mxu0 %v4096
  %5571 = vmatmul.mubr.bf16.gmra.mrb[0].mxu0 %v4095
  %v5572 = vpop.f32.mrb[0].mxu0
  %v5573 = vadd.f32 %v5461, %v5572
  %v5574 = vpop.f32.mrb[0].mxu0
  %v5575 = vpop.f32.mrb[0].mxu0
  %v5576 = vadd.f32 %v5464, %v5575
  %v5577 = vpop.f32.mrb[0].mxu0
  %5578 = vmatprep.mubr.bf16.mxu0 %v4102
  %5579 = vmatmul.mubr.bf16.gmra.mrb[0].mxu0 %v4101
  %v5580 = vpop.f32.mrb[0].mxu0
  %v5581 = vadd.f32 %v5469, %v5580
  %v5582 = vpop.f32.mrb[0].mxu0
  %v5583 = vpop.f32.mrb[0].mxu0
  %v5584 = vadd.f32 %v5472, %v5583
  %v5585 = vpop.f32.mrb[0].mxu0
  %5586 = vmatprep.mubr.bf16.mxu0 %v4108
  %5587 = vmatmul.mubr.bf16.gmra.mrb[0].mxu0 %v4107
  %v5588 = vpop.f32.mrb[0].mxu0
  %v5589 = vadd.f32 %v5477, %v5588
  %v5590 = vpop.f32.mrb[0].mxu0
  %v5591 = vpop.f32.mrb[0].mxu0
  %v5592 = vpop.f32.mrb[0].mxu0
  %5593 = vdwg.mxu0
  %5594 = vmatprep.subr.bf16.mxu0 0
  %5595 = vmatpush1.bf16.msra.mxu0 %v1886
  %5596 = vmatprep.subr.bf16.mxu0 0
  %5597 = vmatpush1.bf16.msra.mxu0 %v1893
  %5598 = vmatprep.subr.bf16.mxu0 0
  %5599 = vmatpush1.bf16.msra.mxu0 %v1900
  %5600 = vmatprep.subr.bf16.mxu0 0
  %5601 = vmatpush1.bf16.msra.mxu0 %v1907
  %5602 = vmatprep.subr.bf16.mxu0 0
  %5603 = vmatpush1.bf16.msra.mxu0 %v1914
  %5604 = vmatprep.subr.bf16.mxu0 0
  %5605 = vmatpush1.bf16.msra.mxu0 %v1921
  %5606 = vmatprep.subr.bf16.mxu0 0
  %5607 = vmatpush1.bf16.msra.mxu0 %v1928
  %5608 = vmatprep.subr.bf16.mxu0 0
  %5609 = vmatpush1.bf16.msra.mxu0 %v1935
  %5610 = vmatprep.subr.bf16.mxu0 0
  %5611 = vmatpush1.bf16.msra.mxu0 %v1942
  %5612 = vmatprep.subr.bf16.mxu0 0
  %5613 = vmatpush1.bf16.msra.mxu0 %v1949
  %5614 = vmatprep.subr.bf16.mxu0 0
  %5615 = vmatpush1.bf16.msra.mxu0 %v2305
  %5616 = vmatprep.subr.bf16.mxu0 0
  %5617 = vmatpush1.bf16.msra.mxu0 0
  %5618 = vmatprep.subr.bf16.mxu0 0
  %5619 = vmatpush1.bf16.msra.mxu0 0
  %5620 = vmatprep.subr.bf16.mxu0 0
  %5621 = vmatpush1.bf16.msra.mxu0 0
  %5622 = vmatprep.subr.bf16.mxu0 0
  %5623 = vmatpush1.bf16.msra.mxu0 0
  %5624 = vmatprep.subr.bf16.mxu0 0
  %5625 = vmatpush1.bf16.msra.mxu0 0
  %5626 = vmatprep.mubr.bf16.mxu0 %v4162
  %5627 = vmatmul.mubr.bf16.gmra.mrb[0].mxu0 %v4055
  %v5628 = vpop.f32.mrb[0].mxu0
  %v5629 = vadd.f32 %v5517, %v5628
  %v5630 = vpop.f32.mrb[0].mxu0
  %v5631 = vpop.f32.mrb[0].mxu0
  %v5632 = vadd.f32 %v5520, %v5631
  %v5633 = vpop.f32.mrb[0].mxu0
  %5634 = vmatprep.mubr.bf16.mxu0 %v4165
  %5635 = vmatmul.mubr.bf16.gmra.mrb[0].mxu0 %v4061
  %v5636 = vpop.f32.mrb[0].mxu0
  %v5637 = vadd.f32 %v5525, %v5636
  %v5638 = vpop.f32.mrb[0].mxu0
  %v5639 = vpop.f32.mrb[0].mxu0
  %v5640 = vadd.f32 %v5528, %v5639
  %v5641 = vpop.f32.mrb[0].mxu0
  %5642 = vmatprep.mubr.bf16.mxu0 %v4168
  %5643 = vmatmul.mubr.bf16.gmra.mrb[0].mxu0 %v4067
  %v5644 = vpop.f32.mrb[0].mxu0
  %v5645 = vadd.f32 %v5533, %v5644
  %v5646 = vpop.f32.mrb[0].mxu0
  %v5647 = vpop.f32.mrb[0].mxu0
  %v5648 = vadd.f32 %v5536, %v5647
  %v5649 = vpop.f32.mrb[0].mxu0
  %5650 = vmatprep.mubr.bf16.mxu0 %v4171
  %5651 = vmatmul.mubr.bf16.gmra.mrb[0].mxu0 %v4073
  %v5652 = vpop.f32.mrb[0].mxu0
  %v5653 = vadd.f32 %v5541, %v5652
  %v5654 = vpop.f32.mrb[0].mxu0
  %v5655 = vpop.f32.mrb[0].mxu0
  %v5656 = vadd.f32 %v5544, %v5655
  %v5657 = vpop.f32.mrb[0].mxu0
  %5658 = vmatprep.mubr.bf16.mxu0 %v4174
  %5659 = vmatmul.mubr.bf16.gmra.mrb[0].mxu0 %v4079
  %v5660 = vpop.f32.mrb[0].mxu0
  %v5661 = vadd.f32 %v5549, %v5660
  %v5662 = vpop.f32.mrb[0].mxu0
  %v5663 = vpop.f32.mrb[0].mxu0
  %v5664 = vadd.f32 %v5552, %v5663
  %v5665 = vpop.f32.mrb[0].mxu0
  %5666 = vmatprep.mubr.bf16.mxu0 %v4177
  %5667 = vmatmul.mubr.bf16.gmra.mrb[0].mxu0 %v4085
  %v5668 = vpop.f32.mrb[0].mxu0
  %v5669 = vadd.f32 %v5557, %v5668
  %v5670 = vpop.f32.mrb[0].mxu0
  %v5671 = vpop.f32.mrb[0].mxu0
  %v5672 = vadd.f32 %v5560, %v5671
  %v5673 = vpop.f32.mrb[0].mxu0
  %5674 = vmatprep.mubr.bf16.mxu0 %v4180
  %5675 = vmatmul.mubr.bf16.gmra.mrb[0].mxu0 %v4091
  %v5676 = vpop.f32.mrb[0].mxu0
  %v5677 = vadd.f32 %v5565, %v5676
  %v5678 = vpop.f32.mrb[0].mxu0
  %v5679 = vpop.f32.mrb[0].mxu0
  %v5680 = vadd.f32 %v5568, %v5679
  %v5681 = vpop.f32.mrb[0].mxu0
  %5682 = vmatprep.mubr.bf16.mxu0 %v4183
  %5683 = vmatmul.mubr.bf16.gmra.mrb[0].mxu0 %v4097
  %v5684 = vpop.f32.mrb[0].mxu0
  %v5685 = vadd.f32 %v5573, %v5684
  %v5686 = vpop.f32.mrb[0].mxu0
  %v5687 = vpop.f32.mrb[0].mxu0
  %v5688 = vadd.f32 %v5576, %v5687
  %v5689 = vpop.f32.mrb[0].mxu0
  %5690 = vmatprep.mubr.bf16.mxu0 %v4186
  %5691 = vmatmul.mubr.bf16.gmra.mrb[0].mxu0 %v4103
  %v5692 = vpop.f32.mrb[0].mxu0
  %v5693 = vadd.f32 %v5581, %v5692
  %v5694 = vpop.f32.mrb[0].mxu0
  %v5695 = vpop.f32.mrb[0].mxu0
  %v5696 = vadd.f32 %v5584, %v5695
  %v5697 = vpop.f32.mrb[0].mxu0
  %5698 = vmatprep.mubr.bf16.mxu0 %v4189
  %5699 = vmatmul.mubr.bf16.gmra.mrb[0].mxu0 %v4109
  %v5700 = vpop.f32.mrb[0].mxu0
  %v5701 = vadd.f32 %v5589, %v5700
  %v5702 = vpop.f32.mrb[0].mxu0
  %v5703 = vpop.f32.mrb[0].mxu0
  %v5704 = vpop.f32.mrb[0].mxu0
  %5705 = vdwg.mxu0
  %v5706 = vmax.f32 %v2604, %v4488
  %v5707 = vmax.f32 %v2606, %v4490
  %v5708 = vmax.f32 %v2997, %v4881
  %v5709 = vmax.f32 %v2999, %v4883
  %v5710 = vmax.f32 %v3390, %v5274
  %v5711 = vmax.f32 %v3392, %v5276
  %v5712 = vmax.f32 %v3745, %v5629
  %v5713 = vmax.f32 %v2608, %v4492
  %v5714 = vmax.f32 %v2610, %v4494
  %v5715 = vmax.f32 %v3001, %v4885
  %v5716 = vmax.f32 %v3003, %v4887
  %v5717 = vmax.f32 %v3394, %v5278
  %v5718 = vmax.f32 %v3396, %v5280
  %v5719 = vmax.f32 %v3748, %v5632
  %v5720 = vmax.f32 %v2614, %v4498
  %v5721 = vmax.f32 %v2616, %v4500
  %v5722 = vmax.f32 %v3007, %v4891
  %v5723 = vmax.f32 %v3009, %v4893
  %v5724 = vmax.f32 %v3400, %v5284
  %v5725 = vmax.f32 %v3402, %v5286
  %v5726 = vmax.f32 %v3753, %v5637
  %v5727 = vmax.f32 %v2618, %v4502
  %v5728 = vmax.f32 %v2620, %v4504
  %v5729 = vmax.f32 %v3011, %v4895
  %v5730 = vmax.f32 %v3013, %v4897
  %v5731 = vmax.f32 %v3404, %v5288
  %v5732 = vmax.f32 %v3406, %v5290
  %v5733 = vmax.f32 %v3756, %v5640
  %v5734 = vmax.f32 %v2624, %v4508
  %v5735 = vmax.f32 %v2626, %v4510
  %v5736 = vmax.f32 %v3017, %v4901
  %v5737 = vmax.f32 %v3019, %v4903
  %v5738 = vmax.f32 %v3410, %v5294
  %v5739 = vmax.f32 %v3412, %v5296
  %v5740 = vmax.f32 %v3761, %v5645
  %v5741 = vmax.f32 %v2628, %v4512
  %v5742 = vmax.f32 %v2630, %v4514
  %v5743 = vmax.f32 %v3021, %v4905
  %v5744 = vmax.f32 %v3023, %v4907
  %v5745 = vmax.f32 %v3414, %v5298
  %v5746 = vmax.f32 %v3416, %v5300
  %v5747 = vmax.f32 %v3764, %v5648
  %v5748 = vmax.f32 %v2634, %v4518
  %v5749 = vmax.f32 %v2636, %v4520
  %v5750 = vmax.f32 %v3027, %v4911
  %v5751 = vmax.f32 %v3029, %v4913
  %v5752 = vmax.f32 %v3420, %v5304
  %v5753 = vmax.f32 %v3422, %v5306
  %v5754 = vmax.f32 %v3769, %v5653
  %v5755 = vmax.f32 %v2638, %v4522
  %v5756 = vmax.f32 %v2640, %v4524
  %v5757 = vmax.f32 %v3031, %v4915
  %v5758 = vmax.f32 %v3033, %v4917
  %v5759 = vmax.f32 %v3424, %v5308
  %v5760 = vmax.f32 %v3426, %v5310
  %v5761 = vmax.f32 %v3772, %v5656
  %v5762 = vmax.f32 %v2644, %v4528
  %v5763 = vmax.f32 %v2646, %v4530
  %v5764 = vmax.f32 %v3037, %v4921
  %v5765 = vmax.f32 %v3039, %v4923
  %v5766 = vmax.f32 %v3430, %v5314
  %v5767 = vmax.f32 %v3432, %v5316
  %v5768 = vmax.f32 %v3777, %v5661
  %v5769 = vmax.f32 %v2648, %v4532
  %v5770 = vmax.f32 %v2650, %v4534
  %v5771 = vmax.f32 %v3041, %v4925
  %v5772 = vmax.f32 %v3043, %v4927
  %v5773 = vmax.f32 %v3434, %v5318
  %v5774 = vmax.f32 %v3436, %v5320
  %v5775 = vmax.f32 %v3780, %v5664
  %v5776 = vmax.f32 %v2654, %v4538
  %v5777 = vmax.f32 %v2656, %v4540
  %v5778 = vmax.f32 %v3047, %v4931
  %v5779 = vmax.f32 %v3049, %v4933
  %v5780 = vmax.f32 %v3440, %v5324
  %v5781 = vmax.f32 %v3442, %v5326
  %v5782 = vmax.f32 %v3785, %v5669
  %v5783 = vmax.f32 %v2658, %v4542
  %v5784 = vmax.f32 %v2660, %v4544
  %v5785 = vmax.f32 %v3051, %v4935
  %v5786 = vmax.f32 %v3053, %v4937
  %v5787 = vmax.f32 %v3444, %v5328
  %v5788 = vmax.f32 %v3446, %v5330
  %v5789 = vmax.f32 %v3788, %v5672
  %v5790 = vmax.f32 %v2664, %v4548
  %v5791 = vmax.f32 %v2666, %v4550
  %v5792 = vmax.f32 %v3057, %v4941
  %v5793 = vmax.f32 %v3059, %v4943
  %v5794 = vmax.f32 %v3450, %v5334
  %v5795 = vmax.f32 %v3452, %v5336
  %v5796 = vmax.f32 %v3793, %v5677
  %v5797 = vmax.f32 %v2668, %v4552
  %v5798 = vmax.f32 %v2670, %v4554
  %v5799 = vmax.f32 %v3061, %v4945
  %v5800 = vmax.f32 %v3063, %v4947
  %v5801 = vmax.f32 %v3454, %v5338
  %v5802 = vmax.f32 %v3456, %v5340
  %v5803 = vmax.f32 %v3796, %v5680
  %v5804 = vmax.f32 %v2674, %v4558
  %v5805 = vmax.f32 %v2676, %v4560
  %v5806 = vmax.f32 %v3067, %v4951
  %v5807 = vmax.f32 %v3069, %v4953
  %v5808 = vmax.f32 %v3460, %v5344
  %v5809 = vmax.f32 %v3462, %v5346
  %v5810 = vmax.f32 %v3801, %v5685
  %v5811 = vmax.f32 %v2678, %v4562
  %v5812 = vmax.f32 %v2680, %v4564
  %v5813 = vmax.f32 %v3071, %v4955
  %v5814 = vmax.f32 %v3073, %v4957
  %v5815 = vmax.f32 %v3464, %v5348
  %v5816 = vmax.f32 %v3466, %v5350
  %v5817 = vmax.f32 %v3804, %v5688
  %v5818 = vmax.f32 %v2684, %v4568
  %v5819 = vmax.f32 %v2686, %v4570
  %v5820 = vmax.f32 %v3077, %v4961
  %v5821 = vmax.f32 %v3079, %v4963
  %v5822 = vmax.f32 %v3470, %v5354
  %v5823 = vmax.f32 %v3472, %v5356
  %v5824 = vmax.f32 %v3809, %v5693
  %v5825 = vmax.f32 %v2688, %v4572
  %v5826 = vmax.f32 %v2690, %v4574
  %v5827 = vmax.f32 %v3081, %v4965
  %v5828 = vmax.f32 %v3083, %v4967
  %v5829 = vmax.f32 %v3474, %v5358
  %v5830 = vmax.f32 %v3476, %v5360
  %v5831 = vmax.f32 %v3812, %v5696
  %v5832 = vmax.f32 %v2694, %v4578
  %v5833 = vmax.f32 %v2696, %v4580
  %v5834 = vmax.f32 %v3087, %v4971
  %v5835 = vmax.f32 %v3089, %v4973
  %v5836 = vmax.f32 %v3480, %v5364
  %v5837 = vmax.f32 %v3482, %v5366
  %v5838 = vmax.f32 %v3817, %v5701
  %s5839 = scalar_lea.vmem %s0, 912
  %v5840 = vld [vmem:[%s5839] sm:$0xff]
  %v5841 = vld [vmem:[%s5839 + $0x8] sm:$0xff]
  %v5842 = vld [vmem:[%s5839 + $0x10] sm:$0xff]
  %v5843 = vld [vmem:[%s5839 + $0x18] sm:$0xff]
  %v5844 = vld [vmem:[%s5839 + $0x20] sm:$0xff]
  %v5845 = vld [vmem:[%s5839 + $0x28] sm:$0xff]
  %v5846 = vld [vmem:[%s5839 + $0x30] sm:$0xff]
  %v5847 = vld [vmem:[%s5839 + $0x38] sm:$0xff]
  %v5848 = vld [vmem:[%s5839 + $0x40] sm:$0xff]
  %v5849 = vld [vmem:[%s5839 + $0x48] sm:$0xff]
  %v5850 = vld [vmem:[%s5839 + $0x50] sm:$0xff]
  %v5851 = vld [vmem:[%s5839 + $0x58] sm:$0xff]
  %v5852 = vld [vmem:[%s5839 + $0x60] sm:$0xff]
  %v5853 = vld [vmem:[%s5839 + $0x68] sm:$0xff]
  %v5854 = vld [vmem:[%s5839 + $0x70] sm:$0xff]
  %v5855 = vld [vmem:[%s5839 + $0x78] sm:$0xff]
  %v5856 = vld [vmem:[%s5839 + $0x80] sm:$0xff]
  %v5857 = vld [vmem:[%s5839 + $0x88] sm:$0xff]
  %v5858 = vld [vmem:[%s5839 + $0x90] sm:$0xff]
  %v5859 = vld [vmem:[%s5839 + $0x98] sm:$0xff]
  %v5860 = vld [vmem:[%s5839 + $0xa0] sm:$0xff]
  %v5861 = vld [vmem:[%s5839 + $0xa8] sm:$0xff]
  %v5862 = vld [vmem:[%s5839 + $0xb0] sm:$0xff]
  %v5863 = vld [vmem:[%s5839 + $0xb8] sm:$0xff]
  %v5864 = vld [vmem:[%s5839 + $0xc0] sm:$0xff]
  %v5865 = vld [vmem:[%s5839 + $0xc8] sm:$0xff]
  %v5866 = vld [vmem:[%s5839 + $0xd0] sm:$0xff]
  %v5867 = vld [vmem:[%s5839 + $0xd8] sm:$0xff]
  %v5868 = vld [vmem:[%s5839 + $0xe0] sm:$0xff]
  %v5869 = vld [vmem:[%s5839 + $0xe8] sm:$0xff]
  %v5870 = vld [vmem:[%s5839 + $0xf0] sm:$0xff]
  %v5871 = vld [vmem:[%s5839 + $0xf8] sm:$0xff]
  %v5872 = vld [vmem:[%s5839 + $0x100] sm:$0xff]
  %v5873 = vld [vmem:[%s5839 + $0x108] sm:$0xff]
  %v5874 = vld [vmem:[%s5839 + $0x110] sm:$0xff]
  %v5875 = vld [vmem:[%s5839 + $0x118] sm:$0xff]
  %v5876 = vld [vmem:[%s5839 + $0x120] sm:$0xff]
  %v5877 = vld [vmem:[%s5839 + $0x128] sm:$0xff]
  %v5878 = vld [vmem:[%s5839 + $0x130] sm:$0xff]
  %v5879 = vld [vmem:[%s5839 + $0x138] sm:$0xff]
  %v5880 = vld [vmem:[%s5839 + $0x140] sm:$0xff]
  %v5881 = vld [vmem:[%s5839 + $0x148] sm:$0xff]
  %v5882 = vld [vmem:[%s5839 + $0x150] sm:$0xff]
  %v5883 = vld [vmem:[%s5839 + $0x158] sm:$0xff]
  %v5884 = vld [vmem:[%s5839 + $0x160] sm:$0xff]
  %v5885 = vld [vmem:[%s5839 + $0x168] sm:$0xff]
  %v5886 = vld [vmem:[%s5839 + $0x170] sm:$0xff]
  %v5887 = vld [vmem:[%s5839 + $0x178] sm:$0xff]
  %v5888 = vld [vmem:[%s5839 + $0x180] sm:$0xff]
  %v5889 = vld [vmem:[%s5839 + $0x188] sm:$0xff]
  %v5890 = vld [vmem:[%s5839 + $0x190] sm:$0xff]
  %v5891 = vld [vmem:[%s5839 + $0x198] sm:$0xff]
  %v5892 = vld [vmem:[%s5839 + $0x1a0] sm:$0xff]
  %v5893 = vld [vmem:[%s5839 + $0x1a8] sm:$0xff]
  %v5894 = vld [vmem:[%s5839 + $0x1b0] sm:$0xff]
  %v5895 = vld [vmem:[%s5839 + $0x1b8] sm:$0xff]
  %v5896 = vld [vmem:[%s5839 + $0x1c0] sm:$0xff]
  %v5954 = vunpack.c.l.b16 %v5840
  %v5955 = vunpack.c.h.b16 %v5840
  %v5956 = vunpack.c.l.b16 %v5841
  %v5957 = vunpack.c.h.b16 %v5841
  %v5958 = vunpack.c.l.b16 %v5842
  %v5959 = vunpack.c.h.b16 %v5842
  %v5960 = vunpack.c.l.b16 %v5843
  %v5961 = vunpack.c.h.b16 %v5843
  %v5962 = vunpack.c.l.b16 %v5844
  %v5963 = vunpack.c.h.b16 %v5844
  %v5964 = vunpack.c.l.b16 %v5845
  %v5965 = vunpack.c.h.b16 %v5845
  %v5966 = vunpack.c.l.b16 %v5846
  %v5967 = vunpack.c.h.b16 %v5846
  %v5968 = vunpack.c.l.b16 %v5847
  %v5969 = vunpack.c.h.b16 %v5847
  %v5970 = vunpack.c.l.b16 %v5848
  %v5971 = vunpack.c.h.b16 %v5848
  %v5972 = vunpack.c.l.b16 %v5849
  %v5973 = vunpack.c.h.b16 %v5849
  %v5974 = vunpack.c.l.b16 %v5850
  %v5975 = vunpack.c.h.b16 %v5850
  %v5976 = vunpack.c.l.b16 %v5851
  %v5977 = vunpack.c.h.b16 %v5851
  %v5978 = vunpack.c.l.b16 %v5852
  %v5979 = vunpack.c.h.b16 %v5852
  %v5980 = vunpack.c.l.b16 %v5853
  %v5981 = vunpack.c.h.b16 %v5853
  %v5982 = vunpack.c.l.b16 %v5854
  %v5983 = vunpack.c.h.b16 %v5854
  %v5984 = vunpack.c.l.b16 %v5855
  %v5985 = vunpack.c.h.b16 %v5855
  %v5986 = vunpack.c.l.b16 %v5856
  %v5987 = vunpack.c.h.b16 %v5856
  %v5988 = vunpack.c.l.b16 %v5857
  %v5989 = vunpack.c.h.b16 %v5857
  %v5990 = vunpack.c.l.b16 %v5858
  %v5991 = vunpack.c.h.b16 %v5858
  %v5992 = vunpack.c.l.b16 %v5859
  %v5993 = vunpack.c.h.b16 %v5859
  %v5994 = vunpack.c.l.b16 %v5860
  %v5995 = vunpack.c.h.b16 %v5860
  %v5996 = vunpack.c.l.b16 %v5861
  %v5997 = vunpack.c.h.b16 %v5861
  %v5998 = vunpack.c.l.b16 %v5862
  %v5999 = vunpack.c.h.b16 %v5862
  %v6000 = vunpack.c.l.b16 %v5863
  %v6001 = vunpack.c.h.b16 %v5863
  %v6002 = vunpack.c.l.b16 %v5864
  %v6003 = vunpack.c.h.b16 %v5864
  %v6004 = vunpack.c.l.b16 %v5865
  %v6005 = vunpack.c.h.b16 %v5865
  %v6006 = vunpack.c.l.b16 %v5866
  %v6007 = vunpack.c.h.b16 %v5866
  %v6008 = vunpack.c.l.b16 %v5867
  %v6009 = vunpack.c.h.b16 %v5867
  %v6010 = vunpack.c.l.b16 %v5868
  %v6011 = vunpack.c.h.b16 %v5868
  %v6012 = vunpack.c.l.b16 %v5869
  %v6013 = vunpack.c.h.b16 %v5869
  %v6014 = vunpack.c.l.b16 %v5870
  %v6015 = vunpack.c.h.b16 %v5870
  %v6016 = vunpack.c.l.b16 %v5871
  %v6017 = vunpack.c.h.b16 %v5871
  %v6018 = vunpack.c.l.b16 %v5872
  %v6019 = vunpack.c.h.b16 %v5872
  %v6020 = vunpack.c.l.b16 %v5873
  %v6021 = vunpack.c.h.b16 %v5873
  %v6022 = vunpack.c.l.b16 %v5874
  %v6023 = vunpack.c.h.b16 %v5874
  %v6024 = vunpack.c.l.b16 %v5875
  %v6025 = vunpack.c.h.b16 %v5875
  %v6026 = vunpack.c.l.b16 %v5876
  %v6027 = vunpack.c.h.b16 %v5876
  %v6028 = vunpack.c.l.b16 %v5877
  %v6029 = vunpack.c.h.b16 %v5877
  %v6030 = vunpack.c.l.b16 %v5878
  %v6031 = vunpack.c.h.b16 %v5878
  %v6032 = vunpack.c.l.b16 %v5879
  %v6033 = vunpack.c.h.b16 %v5879
  %v6034 = vunpack.c.l.b16 %v5880
  %v6035 = vunpack.c.h.b16 %v5880
  %v6036 = vunpack.c.l.b16 %v5881
  %v6037 = vunpack.c.h.b16 %v5881
  %v6038 = vunpack.c.l.b16 %v5882
  %v6039 = vunpack.c.h.b16 %v5882
  %v6040 = vunpack.c.l.b16 %v5883
  %v6041 = vunpack.c.h.b16 %v5883
  %v6042 = vunpack.c.l.b16 %v5884
  %v6043 = vunpack.c.h.b16 %v5884
  %v6044 = vunpack.c.l.b16 %v5885
  %v6045 = vunpack.c.h.b16 %v5885
  %v6046 = vunpack.c.l.b16 %v5886
  %v6047 = vunpack.c.h.b16 %v5886
  %v6048 = vunpack.c.l.b16 %v5887
  %v6049 = vunpack.c.h.b16 %v5887
  %v6050 = vunpack.c.l.b16 %v5888
  %v6051 = vunpack.c.h.b16 %v5888
  %v6052 = vunpack.c.l.b16 %v5889
  %v6053 = vunpack.c.h.b16 %v5889
  %v6054 = vunpack.c.l.b16 %v5890
  %v6055 = vunpack.c.h.b16 %v5890
  %v6056 = vunpack.c.l.b16 %v5891
  %v6057 = vunpack.c.h.b16 %v5891
  %v6058 = vunpack.c.l.b16 %v5892
  %v6059 = vunpack.c.h.b16 %v5892
  %v6060 = vunpack.c.l.b16 %v5893
  %v6061 = vunpack.c.h.b16 %v5893
  %v6062 = vunpack.c.l.b16 %v5894
  %v6063 = vunpack.c.h.b16 %v5894
  %v6064 = vunpack.c.l.b16 %v5895
  %v6065 = vunpack.c.h.b16 %v5895
  %v6066 = vunpack.c.l.b16 %v5896
  %v6067 = vunpack.c.h.b16 %v5896
  %v6068 = vpack.c.b16 %v5960, %v5954
  %v6069 = vpack.c.b16 %v5961, %v5955
  %v6070 = vpack.c.b16 %v5962, %v5956
  %v6071 = vpack.c.b16 %v5963, %v5957
  %v6072 = vpack.c.b16 %v5964, %v5958
  %v6073 = vpack.c.b16 %v5965, %v5959
  %v6074 = vpack.c.b16 %v5972, %v5966
  %v6075 = vpack.c.b16 %v5973, %v5967
  %v6076 = vpack.c.b16 %v5974, %v5968
  %v6077 = vpack.c.b16 %v5975, %v5969
  %v6078 = vpack.c.b16 %v5976, %v5970
  %v6079 = vpack.c.b16 %v5977, %v5971
  %v6080 = vpack.c.b16 %v5984, %v5978
  %v6081 = vpack.c.b16 %v5985, %v5979
  %v6082 = vpack.c.b16 %v5986, %v5980
  %v6083 = vpack.c.b16 %v5987, %v5981
  %v6084 = vpack.c.b16 %v5988, %v5982
  %v6085 = vpack.c.b16 %v5989, %v5983
  %v6086 = vpack.c.b16 %v5996, %v5990
  %v6087 = vpack.c.b16 %v5997, %v5991
  %v6088 = vpack.c.b16 %v5998, %v5992
  %v6089 = vpack.c.b16 %v5999, %v5993
  %v6090 = vpack.c.b16 %v6000, %v5994
  %v6091 = vpack.c.b16 %v6001, %v5995
  %v6092 = vpack.c.b16 %v6008, %v6002
  %v6093 = vpack.c.b16 %v6009, %v6003
  %v6094 = vpack.c.b16 %v6010, %v6004
  %v6095 = vpack.c.b16 %v6011, %v6005
  %v6096 = vpack.c.b16 %v6012, %v6006
  %v6097 = vpack.c.b16 %v6013, %v6007
  %v6098 = vpack.c.b16 %v6020, %v6014
  %v6099 = vpack.c.b16 %v6021, %v6015
  %v6100 = vpack.c.b16 %v6022, %v6016
  %v6101 = vpack.c.b16 %v6023, %v6017
  %v6102 = vpack.c.b16 %v6024, %v6018
  %v6103 = vpack.c.b16 %v6025, %v6019
  %v6104 = vpack.c.b16 %v6032, %v6026
  %v6105 = vpack.c.b16 %v6033, %v6027
  %v6106 = vpack.c.b16 %v6034, %v6028
  %v6107 = vpack.c.b16 %v6035, %v6029
  %v6108 = vpack.c.b16 %v6036, %v6030
  %v6109 = vpack.c.b16 %v6037, %v6031
  %v6110 = vpack.c.b16 %v6044, %v6038
  %v6111 = vpack.c.b16 %v6045, %v6039
  %v6112 = vpack.c.b16 %v6046, %v6040
  %v6113 = vpack.c.b16 %v6047, %v6041
  %v6114 = vpack.c.b16 %v6048, %v6042
  %v6115 = vpack.c.b16 %v6049, %v6043
  %v6116 = vpack.c.b16 %v6056, %v6050
  %v6117 = vpack.c.b16 %v6057, %v6051
  %v6118 = vpack.c.b16 %v6058, %v6052
  %v6119 = vpack.c.b16 %v6059, %v6053
  %v6120 = vpack.c.b16 %v6060, %v6054
  %v6121 = vpack.c.b16 %v6061, %v6055
  %v6122 = vpack.c.b16 %v6062, %v6062
  %v6123 = vpack.c.b16 %v6063, %v6063
  %v6124 = vpack.c.b16 %v6064, %v6064
  %v6125 = vpack.c.b16 %v6065, %v6065
  %v6126 = vpack.c.b16 %v6066, %v6066
  %v6127 = vpack.c.b16 %v6067, %v6067
  %v6179 = vsel %vm2251, %v6073, 0
  %v6182 = vsel %vm2251, %v6079, 0
  %v6185 = vsel %vm2251, %v6085, 0
  %v6188 = vsel %vm2251, %v6091, 0
  %v6191 = vsel %vm2251, %v6097, 0
  %v6194 = vsel %vm2251, %v6103, 0
  %v6197 = vsel %vm2251, %v6109, 0
  %v6200 = vsel %vm2251, %v6115, 0
  %v6203 = vsel %vm2251, %v6121, 0
  %v6206 = vsel %vm2251, %v6127, 0
  %6208 = vmatprep.subr.bf16.mxu0 %v1657
  %6209 = vmatpush1.bf16.msra.mxu0 %v1656
  %6210 = vmatprep.subr.bf16.mxu0 %v1664
  %6211 = vmatpush1.bf16.msra.mxu0 %v1663
  %6212 = vmatprep.subr.bf16.mxu0 %v1671
  %6213 = vmatpush1.bf16.msra.mxu0 %v1670
  %6214 = vmatprep.subr.bf16.mxu0 %v1678
  %6215 = vmatpush1.bf16.msra.mxu0 %v1677
  %6216 = vmatprep.subr.bf16.mxu0 %v1685
  %6217 = vmatpush1.bf16.msra.mxu0 %v1684
  %6218 = vmatprep.subr.bf16.mxu0 %v1692
  %6219 = vmatpush1.bf16.msra.mxu0 %v1691
  %6220 = vmatprep.subr.bf16.mxu0 %v1699
  %6221 = vmatpush1.bf16.msra.mxu0 %v1698
  %6222 = vmatprep.subr.bf16.mxu0 %v1706
  %6223 = vmatpush1.bf16.msra.mxu0 %v1705
  %6224 = vmatprep.subr.bf16.mxu0 %v1713
  %6225 = vmatpush1.bf16.msra.mxu0 %v1712
  %6226 = vmatprep.subr.bf16.mxu0 %v1720
  %6227 = vmatpush1.bf16.msra.mxu0 %v1719
  %6228 = vmatprep.subr.bf16.mxu0 %v1727
  %6229 = vmatpush1.bf16.msra.mxu0 %v1726
  %6230 = vmatprep.subr.bf16.mxu0 %v1734
  %6231 = vmatpush1.bf16.msra.mxu0 %v1733
  %6232 = vmatprep.subr.bf16.mxu0 %v1741
  %6233 = vmatpush1.bf16.msra.mxu0 %v1740
  %6234 = vmatprep.subr.bf16.mxu0 %v1748
  %6235 = vmatpush1.bf16.msra.mxu0 %v1747
  %6236 = vmatprep.subr.bf16.mxu0 %v1755
  %6237 = vmatpush1.bf16.msra.mxu0 %v1754
  %6238 = vmatprep.subr.bf16.mxu0 %v1762
  %6239 = vmatpush1.bf16.msra.mxu0 %v1761
  %6240 = vmatprep.mubr.bf16.mxu0 %v6069
  %6241 = vmatmul.mubr.bf16.gmra.mrb[0].mxu0 %v6068
  %v6242 = vpop.f32.mrb[0].mxu0
  %v6243 = vadd.f32 0.0, %v6242
  %v6244 = vpop.f32.mrb[0].mxu0
  %v6245 = vadd.f32 0.0, %v6244
  %v6246 = vpop.f32.mrb[0].mxu0
  %v6247 = vadd.f32 0.0, %v6246
  %v6248 = vpop.f32.mrb[0].mxu0
  %v6249 = vadd.f32 0.0, %v6248
  %6250 = vmatprep.mubr.bf16.mxu0 %v6075
  %6251 = vmatmul.mubr.bf16.gmra.mrb[0].mxu0 %v6074
  %v6252 = vpop.f32.mrb[0].mxu0
  %v6253 = vadd.f32 0.0, %v6252
  %v6254 = vpop.f32.mrb[0].mxu0
  %v6255 = vadd.f32 0.0, %v6254
  %v6256 = vpop.f32.mrb[0].mxu0
  %v6257 = vadd.f32 0.0, %v6256
  %v6258 = vpop.f32.mrb[0].mxu0
  %v6259 = vadd.f32 0.0, %v6258
  %6260 = vmatprep.mubr.bf16.mxu0 %v6081
  %6261 = vmatmul.mubr.bf16.gmra.mrb[0].mxu0 %v6080
  %v6262 = vpop.f32.mrb[0].mxu0
  %v6263 = vadd.f32 0.0, %v6262
  %v6264 = vpop.f32.mrb[0].mxu0
  %v6265 = vadd.f32 0.0, %v6264
  %v6266 = vpop.f32.mrb[0].mxu0
  %v6267 = vadd.f32 0.0, %v6266
  %v6268 = vpop.f32.mrb[0].mxu0
  %v6269 = vadd.f32 0.0, %v6268
  %6270 = vmatprep.mubr.bf16.mxu0 %v6087
  %6271 = vmatmul.mubr.bf16.gmra.mrb[0].mxu0 %v6086
  %v6272 = vpop.f32.mrb[0].mxu0
  %v6273 = vadd.f32 0.0, %v6272
  %v6274 = vpop.f32.mrb[0].mxu0
  %v6275 = vadd.f32 0.0, %v6274
  %v6276 = vpop.f32.mrb[0].mxu0
  %v6277 = vadd.f32 0.0, %v6276
  %v6278 = vpop.f32.mrb[0].mxu0
  %v6279 = vadd.f32 0.0, %v6278
  %6280 = vmatprep.mubr.bf16.mxu0 %v6093
  %6281 = vmatmul.mubr.bf16.gmra.mrb[0].mxu0 %v6092
  %v6282 = vpop.f32.mrb[0].mxu0
  %v6283 = vadd.f32 0.0, %v6282
  %v6284 = vpop.f32.mrb[0].mxu0
  %v6285 = vadd.f32 0.0, %v6284
  %v6286 = vpop.f32.mrb[0].mxu0
  %v6287 = vadd.f32 0.0, %v6286
  %v6288 = vpop.f32.mrb[0].mxu0
  %v6289 = vadd.f32 0.0, %v6288
  %6290 = vmatprep.mubr.bf16.mxu0 %v6099
  %6291 = vmatmul.mubr.bf16.gmra.mrb[0].mxu0 %v6098
  %v6292 = vpop.f32.mrb[0].mxu0
  %v6293 = vadd.f32 0.0, %v6292
  %v6294 = vpop.f32.mrb[0].mxu0
  %v6295 = vadd.f32 0.0, %v6294
  %v6296 = vpop.f32.mrb[0].mxu0
  %v6297 = vadd.f32 0.0, %v6296
  %v6298 = vpop.f32.mrb[0].mxu0
  %v6299 = vadd.f32 0.0, %v6298
  %6300 = vmatprep.mubr.bf16.mxu0 %v6105
  %6301 = vmatmul.mubr.bf16.gmra.mrb[0].mxu0 %v6104
  %v6302 = vpop.f32.mrb[0].mxu0
  %v6303 = vadd.f32 0.0, %v6302
  %v6304 = vpop.f32.mrb[0].mxu0
  %v6305 = vadd.f32 0.0, %v6304
  %v6306 = vpop.f32.mrb[0].mxu0
  %v6307 = vadd.f32 0.0, %v6306
  %v6308 = vpop.f32.mrb[0].mxu0
  %v6309 = vadd.f32 0.0, %v6308
  %6310 = vmatprep.mubr.bf16.mxu0 %v6111
  %6311 = vmatmul.mubr.bf16.gmra.mrb[0].mxu0 %v6110
  %v6312 = vpop.f32.mrb[0].mxu0
  %v6313 = vadd.f32 0.0, %v6312
  %v6314 = vpop.f32.mrb[0].mxu0
  %v6315 = vadd.f32 0.0, %v6314
  %v6316 = vpop.f32.mrb[0].mxu0
  %v6317 = vadd.f32 0.0, %v6316
  %v6318 = vpop.f32.mrb[0].mxu0
  %v6319 = vadd.f32 0.0, %v6318
  %6320 = vmatprep.mubr.bf16.mxu0 %v6117
  %6321 = vmatmul.mubr.bf16.gmra.mrb[0].mxu0 %v6116
  %v6322 = vpop.f32.mrb[0].mxu0
  %v6323 = vadd.f32 0.0, %v6322
  %v6324 = vpop.f32.mrb[0].mxu0
  %v6325 = vadd.f32 0.0, %v6324
  %v6326 = vpop.f32.mrb[0].mxu0
  %v6327 = vadd.f32 0.0, %v6326
  %v6328 = vpop.f32.mrb[0].mxu0
  %v6329 = vadd.f32 0.0, %v6328
  %6330 = vmatprep.mubr.bf16.mxu0 %v6123
  %6331 = vmatmul.mubr.bf16.gmra.mrb[0].mxu0 %v6122
  %v6332 = vpop.f32.mrb[0].mxu0
  %v6333 = vadd.f32 0.0, %v6332
  %v6334 = vpop.f32.mrb[0].mxu0
  %v6335 = vadd.f32 0.0, %v6334
  %v6336 = vpop.f32.mrb[0].mxu0
  %v6337 = vpop.f32.mrb[0].mxu0
  %6338 = vdwg.mxu0
  %6339 = vmatprep.subr.bf16.mxu0 %v1769
  %6340 = vmatpush1.bf16.msra.mxu0 %v1768
  %6341 = vmatprep.subr.bf16.mxu0 %v1776
  %6342 = vmatpush1.bf16.msra.mxu0 %v1775
  %6343 = vmatprep.subr.bf16.mxu0 %v1783
  %6344 = vmatpush1.bf16.msra.mxu0 %v1782
  %6345 = vmatprep.subr.bf16.mxu0 %v1790
  %6346 = vmatpush1.bf16.msra.mxu0 %v1789
  %6347 = vmatprep.subr.bf16.mxu0 %v1797
  %6348 = vmatpush1.bf16.msra.mxu0 %v1796
  %6349 = vmatprep.subr.bf16.mxu0 %v1804
  %6350 = vmatpush1.bf16.msra.mxu0 %v1803
  %6351 = vmatprep.subr.bf16.mxu0 %v1811
  %6352 = vmatpush1.bf16.msra.mxu0 %v1810
  %6353 = vmatprep.subr.bf16.mxu0 %v1818
  %6354 = vmatpush1.bf16.msra.mxu0 %v1817
  %6355 = vmatprep.subr.bf16.mxu0 %v1825
  %6356 = vmatpush1.bf16.msra.mxu0 %v1824
  %6357 = vmatprep.subr.bf16.mxu0 %v1832
  %6358 = vmatpush1.bf16.msra.mxu0 %v1831
  %6359 = vmatprep.subr.bf16.mxu0 %v1839
  %6360 = vmatpush1.bf16.msra.mxu0 %v1838
  %6361 = vmatprep.subr.bf16.mxu0 %v1846
  %6362 = vmatpush1.bf16.msra.mxu0 %v1845
  %6363 = vmatprep.subr.bf16.mxu0 %v1853
  %6364 = vmatpush1.bf16.msra.mxu0 %v1852
  %6365 = vmatprep.subr.bf16.mxu0 %v1860
  %6366 = vmatpush1.bf16.msra.mxu0 %v1859
  %6367 = vmatprep.subr.bf16.mxu0 %v1867
  %6368 = vmatpush1.bf16.msra.mxu0 %v1866
  %6369 = vmatprep.subr.bf16.mxu0 %v1874
  %6370 = vmatpush1.bf16.msra.mxu0 %v1873
  %6371 = vmatprep.mubr.bf16.mxu0 %v6071
  %6372 = vmatmul.mubr.bf16.gmra.mrb[0].mxu0 %v6070
  %v6373 = vpop.f32.mrb[0].mxu0
  %v6374 = vadd.f32 %v6243, %v6373
  %v6375 = vpop.f32.mrb[0].mxu0
  %v6376 = vadd.f32 %v6245, %v6375
  %v6377 = vpop.f32.mrb[0].mxu0
  %v6378 = vadd.f32 %v6247, %v6377
  %v6379 = vpop.f32.mrb[0].mxu0
  %v6380 = vadd.f32 %v6249, %v6379
  %6381 = vmatprep.mubr.bf16.mxu0 %v6077
  %6382 = vmatmul.mubr.bf16.gmra.mrb[0].mxu0 %v6076
  %v6383 = vpop.f32.mrb[0].mxu0
  %v6384 = vadd.f32 %v6253, %v6383
  %v6385 = vpop.f32.mrb[0].mxu0
  %v6386 = vadd.f32 %v6255, %v6385
  %v6387 = vpop.f32.mrb[0].mxu0
  %v6388 = vadd.f32 %v6257, %v6387
  %v6389 = vpop.f32.mrb[0].mxu0
  %v6390 = vadd.f32 %v6259, %v6389
  %6391 = vmatprep.mubr.bf16.mxu0 %v6083
  %6392 = vmatmul.mubr.bf16.gmra.mrb[0].mxu0 %v6082
  %v6393 = vpop.f32.mrb[0].mxu0
  %v6394 = vadd.f32 %v6263, %v6393
  %v6395 = vpop.f32.mrb[0].mxu0
  %v6396 = vadd.f32 %v6265, %v6395
  %v6397 = vpop.f32.mrb[0].mxu0
  %v6398 = vadd.f32 %v6267, %v6397
  %v6399 = vpop.f32.mrb[0].mxu0
  %v6400 = vadd.f32 %v6269, %v6399
  %6401 = vmatprep.mubr.bf16.mxu0 %v6089
  %6402 = vmatmul.mubr.bf16.gmra.mrb[0].mxu0 %v6088
  %v6403 = vpop.f32.mrb[0].mxu0
  %v6404 = vadd.f32 %v6273, %v6403
  %v6405 = vpop.f32.mrb[0].mxu0
  %v6406 = vadd.f32 %v6275, %v6405
  %v6407 = vpop.f32.mrb[0].mxu0
  %v6408 = vadd.f32 %v6277, %v6407
  %v6409 = vpop.f32.mrb[0].mxu0
  %v6410 = vadd.f32 %v6279, %v6409
  %6411 = vmatprep.mubr.bf16.mxu0 %v6095
  %6412 = vmatmul.mubr.bf16.gmra.mrb[0].mxu0 %v6094
  %v6413 = vpop.f32.mrb[0].mxu0
  %v6414 = vadd.f32 %v6283, %v6413
  %v6415 = vpop.f32.mrb[0].mxu0
  %v6416 = vadd.f32 %v6285, %v6415
  %v6417 = vpop.f32.mrb[0].mxu0
  %v6418 = vadd.f32 %v6287, %v6417
  %v6419 = vpop.f32.mrb[0].mxu0
  %v6420 = vadd.f32 %v6289, %v6419
  %6421 = vmatprep.mubr.bf16.mxu0 %v6101
  %6422 = vmatmul.mubr.bf16.gmra.mrb[0].mxu0 %v6100
  %v6423 = vpop.f32.mrb[0].mxu0
  %v6424 = vadd.f32 %v6293, %v6423
  %v6425 = vpop.f32.mrb[0].mxu0
  %v6426 = vadd.f32 %v6295, %v6425
  %v6427 = vpop.f32.mrb[0].mxu0
  %v6428 = vadd.f32 %v6297, %v6427
  %v6429 = vpop.f32.mrb[0].mxu0
  %v6430 = vadd.f32 %v6299, %v6429
  %6431 = vmatprep.mubr.bf16.mxu0 %v6107
  %6432 = vmatmul.mubr.bf16.gmra.mrb[0].mxu0 %v6106
  %v6433 = vpop.f32.mrb[0].mxu0
  %v6434 = vadd.f32 %v6303, %v6433
  %v6435 = vpop.f32.mrb[0].mxu0
  %v6436 = vadd.f32 %v6305, %v6435
  %v6437 = vpop.f32.mrb[0].mxu0
  %v6438 = vadd.f32 %v6307, %v6437
  %v6439 = vpop.f32.mrb[0].mxu0
  %v6440 = vadd.f32 %v6309, %v6439
  %6441 = vmatprep.mubr.bf16.mxu0 %v6113
  %6442 = vmatmul.mubr.bf16.gmra.mrb[0].mxu0 %v6112
  %v6443 = vpop.f32.mrb[0].mxu0
  %v6444 = vadd.f32 %v6313, %v6443
  %v6445 = vpop.f32.mrb[0].mxu0
  %v6446 = vadd.f32 %v6315, %v6445
  %v6447 = vpop.f32.mrb[0].mxu0
  %v6448 = vadd.f32 %v6317, %v6447
  %v6449 = vpop.f32.mrb[0].mxu0
  %v6450 = vadd.f32 %v6319, %v6449
  %6451 = vmatprep.mubr.bf16.mxu0 %v6119
  %6452 = vmatmul.mubr.bf16.gmra.mrb[0].mxu0 %v6118
  %v6453 = vpop.f32.mrb[0].mxu0
  %v6454 = vadd.f32 %v6323, %v6453
  %v6455 = vpop.f32.mrb[0].mxu0
  %v6456 = vadd.f32 %v6325, %v6455
  %v6457 = vpop.f32.mrb[0].mxu0
  %v6458 = vadd.f32 %v6327, %v6457
  %v6459 = vpop.f32.mrb[0].mxu0
  %v6460 = vadd.f32 %v6329, %v6459
  %6461 = vmatprep.mubr.bf16.mxu0 %v6125
  %6462 = vmatmul.mubr.bf16.gmra.mrb[0].mxu0 %v6124
  %v6463 = vpop.f32.mrb[0].mxu0
  %v6464 = vadd.f32 %v6333, %v6463
  %v6465 = vpop.f32.mrb[0].mxu0
  %v6466 = vadd.f32 %v6335, %v6465
  %v6467 = vpop.f32.mrb[0].mxu0
  %v6468 = vpop.f32.mrb[0].mxu0
  %6469 = vdwg.mxu0
  %6470 = vmatprep.subr.bf16.mxu0 %v1881
  %6471 = vmatpush1.bf16.msra.mxu0 %v1880
  %6472 = vmatprep.subr.bf16.mxu0 %v1888
  %6473 = vmatpush1.bf16.msra.mxu0 %v1887
  %6474 = vmatprep.subr.bf16.mxu0 %v1895
  %6475 = vmatpush1.bf16.msra.mxu0 %v1894
  %6476 = vmatprep.subr.bf16.mxu0 %v1902
  %6477 = vmatpush1.bf16.msra.mxu0 %v1901
  %6478 = vmatprep.subr.bf16.mxu0 %v1909
  %6479 = vmatpush1.bf16.msra.mxu0 %v1908
  %6480 = vmatprep.subr.bf16.mxu0 %v1916
  %6481 = vmatpush1.bf16.msra.mxu0 %v1915
  %6482 = vmatprep.subr.bf16.mxu0 %v1923
  %6483 = vmatpush1.bf16.msra.mxu0 %v1922
  %6484 = vmatprep.subr.bf16.mxu0 %v1930
  %6485 = vmatpush1.bf16.msra.mxu0 %v1929
  %6486 = vmatprep.subr.bf16.mxu0 %v1937
  %6487 = vmatpush1.bf16.msra.mxu0 %v1936
  %6488 = vmatprep.subr.bf16.mxu0 %v1944
  %6489 = vmatpush1.bf16.msra.mxu0 %v1943
  %6490 = vmatprep.subr.bf16.mxu0 %v2290
  %6491 = vmatpush1.bf16.msra.mxu0 %v2287
  %6492 = vmatprep.subr.bf16.mxu0 0
  %6493 = vmatpush1.bf16.msra.mxu0 0
  %6494 = vmatprep.subr.bf16.mxu0 0
  %6495 = vmatpush1.bf16.msra.mxu0 0
  %6496 = vmatprep.subr.bf16.mxu0 0
  %6497 = vmatpush1.bf16.msra.mxu0 0
  %6498 = vmatprep.subr.bf16.mxu0 0
  %6499 = vmatpush1.bf16.msra.mxu0 0
  %6500 = vmatprep.subr.bf16.mxu0 0
  %6501 = vmatpush1.bf16.msra.mxu0 0
  %6502 = vmatprep.mubr.bf16.mxu0 %v6179
  %6503 = vmatmul.mubr.bf16.gmra.mrb[0].mxu0 %v6072
  %v6504 = vpop.f32.mrb[0].mxu0
  %v6505 = vadd.f32 %v6374, %v6504
  %v6506 = vpop.f32.mrb[0].mxu0
  %v6507 = vadd.f32 %v6376, %v6506
  %v6508 = vpop.f32.mrb[0].mxu0
  %v6509 = vadd.f32 %v6378, %v6508
  %v6510 = vpop.f32.mrb[0].mxu0
  %v6511 = vadd.f32 %v6380, %v6510
  %6512 = vmatprep.mubr.bf16.mxu0 %v6182
  %6513 = vmatmul.mubr.bf16.gmra.mrb[0].mxu0 %v6078
  %v6514 = vpop.f32.mrb[0].mxu0
  %v6515 = vadd.f32 %v6384, %v6514
  %v6516 = vpop.f32.mrb[0].mxu0
  %v6517 = vadd.f32 %v6386, %v6516
  %v6518 = vpop.f32.mrb[0].mxu0
  %v6519 = vadd.f32 %v6388, %v6518
  %v6520 = vpop.f32.mrb[0].mxu0
  %v6521 = vadd.f32 %v6390, %v6520
  %6522 = vmatprep.mubr.bf16.mxu0 %v6185
  %6523 = vmatmul.mubr.bf16.gmra.mrb[0].mxu0 %v6084
  %v6524 = vpop.f32.mrb[0].mxu0
  %v6525 = vadd.f32 %v6394, %v6524
  %v6526 = vpop.f32.mrb[0].mxu0
  %v6527 = vadd.f32 %v6396, %v6526
  %v6528 = vpop.f32.mrb[0].mxu0
  %v6529 = vadd.f32 %v6398, %v6528
  %v6530 = vpop.f32.mrb[0].mxu0
  %v6531 = vadd.f32 %v6400, %v6530
  %6532 = vmatprep.mubr.bf16.mxu0 %v6188
  %6533 = vmatmul.mubr.bf16.gmra.mrb[0].mxu0 %v6090
  %v6534 = vpop.f32.mrb[0].mxu0
  %v6535 = vadd.f32 %v6404, %v6534
  %v6536 = vpop.f32.mrb[0].mxu0
  %v6537 = vadd.f32 %v6406, %v6536
  %v6538 = vpop.f32.mrb[0].mxu0
  %v6539 = vadd.f32 %v6408, %v6538
  %v6540 = vpop.f32.mrb[0].mxu0
  %v6541 = vadd.f32 %v6410, %v6540
  %6542 = vmatprep.mubr.bf16.mxu0 %v6191
  %6543 = vmatmul.mubr.bf16.gmra.mrb[0].mxu0 %v6096
  %v6544 = vpop.f32.mrb[0].mxu0
  %v6545 = vadd.f32 %v6414, %v6544
  %v6546 = vpop.f32.mrb[0].mxu0
  %v6547 = vadd.f32 %v6416, %v6546
  %v6548 = vpop.f32.mrb[0].mxu0
  %v6549 = vadd.f32 %v6418, %v6548
  %v6550 = vpop.f32.mrb[0].mxu0
  %v6551 = vadd.f32 %v6420, %v6550
  %6552 = vmatprep.mubr.bf16.mxu0 %v6194
  %6553 = vmatmul.mubr.bf16.gmra.mrb[0].mxu0 %v6102
  %v6554 = vpop.f32.mrb[0].mxu0
  %v6555 = vadd.f32 %v6424, %v6554
  %v6556 = vpop.f32.mrb[0].mxu0
  %v6557 = vadd.f32 %v6426, %v6556
  %v6558 = vpop.f32.mrb[0].mxu0
  %v6559 = vadd.f32 %v6428, %v6558
  %v6560 = vpop.f32.mrb[0].mxu0
  %v6561 = vadd.f32 %v6430, %v6560
  %6562 = vmatprep.mubr.bf16.mxu0 %v6197
  %6563 = vmatmul.mubr.bf16.gmra.mrb[0].mxu0 %v6108
  %v6564 = vpop.f32.mrb[0].mxu0
  %v6565 = vadd.f32 %v6434, %v6564
  %v6566 = vpop.f32.mrb[0].mxu0
  %v6567 = vadd.f32 %v6436, %v6566
  %v6568 = vpop.f32.mrb[0].mxu0
  %v6569 = vadd.f32 %v6438, %v6568
  %v6570 = vpop.f32.mrb[0].mxu0
  %v6571 = vadd.f32 %v6440, %v6570
  %6572 = vmatprep.mubr.bf16.mxu0 %v6200
  %6573 = vmatmul.mubr.bf16.gmra.mrb[0].mxu0 %v6114
  %v6574 = vpop.f32.mrb[0].mxu0
  %v6575 = vadd.f32 %v6444, %v6574
  %v6576 = vpop.f32.mrb[0].mxu0
  %v6577 = vadd.f32 %v6446, %v6576
  %v6578 = vpop.f32.mrb[0].mxu0
  %v6579 = vadd.f32 %v6448, %v6578
  %v6580 = vpop.f32.mrb[0].mxu0
  %v6581 = vadd.f32 %v6450, %v6580
  %6582 = vmatprep.mubr.bf16.mxu0 %v6203
  %6583 = vmatmul.mubr.bf16.gmra.mrb[0].mxu0 %v6120
  %v6584 = vpop.f32.mrb[0].mxu0
  %v6585 = vadd.f32 %v6454, %v6584
  %v6586 = vpop.f32.mrb[0].mxu0
  %v6587 = vadd.f32 %v6456, %v6586
  %v6588 = vpop.f32.mrb[0].mxu0
  %v6589 = vadd.f32 %v6458, %v6588
  %v6590 = vpop.f32.mrb[0].mxu0
  %v6591 = vadd.f32 %v6460, %v6590
  %6592 = vmatprep.mubr.bf16.mxu0 %v6206
  %6593 = vmatmul.mubr.bf16.gmra.mrb[0].mxu0 %v6126
  %v6594 = vpop.f32.mrb[0].mxu0
  %v6595 = vadd.f32 %v6464, %v6594
  %v6596 = vpop.f32.mrb[0].mxu0
  %v6597 = vadd.f32 %v6466, %v6596
  %v6598 = vpop.f32.mrb[0].mxu0
  %v6599 = vpop.f32.mrb[0].mxu0
  %6600 = vdwg.mxu0
  %6601 = vmatprep.subr.bf16.mxu0 %v1659
  %6602 = vmatpush1.bf16.msra.mxu0 %v1658
  %6603 = vmatprep.subr.bf16.mxu0 %v1666
  %6604 = vmatpush1.bf16.msra.mxu0 %v1665
  %6605 = vmatprep.subr.bf16.mxu0 %v1673
  %6606 = vmatpush1.bf16.msra.mxu0 %v1672
  %6607 = vmatprep.subr.bf16.mxu0 %v1680
  %6608 = vmatpush1.bf16.msra.mxu0 %v1679
  %6609 = vmatprep.subr.bf16.mxu0 %v1687
  %6610 = vmatpush1.bf16.msra.mxu0 %v1686
  %6611 = vmatprep.subr.bf16.mxu0 %v1694
  %6612 = vmatpush1.bf16.msra.mxu0 %v1693
  %6613 = vmatprep.subr.bf16.mxu0 %v1701
  %6614 = vmatpush1.bf16.msra.mxu0 %v1700
  %6615 = vmatprep.subr.bf16.mxu0 %v1708
  %6616 = vmatpush1.bf16.msra.mxu0 %v1707
  %6617 = vmatprep.subr.bf16.mxu0 %v1715
  %6618 = vmatpush1.bf16.msra.mxu0 %v1714
  %6619 = vmatprep.subr.bf16.mxu0 %v1722
  %6620 = vmatpush1.bf16.msra.mxu0 %v1721
  %6621 = vmatprep.subr.bf16.mxu0 %v1729
  %6622 = vmatpush1.bf16.msra.mxu0 %v1728
  %6623 = vmatprep.subr.bf16.mxu0 %v1736
  %6624 = vmatpush1.bf16.msra.mxu0 %v1735
  %6625 = vmatprep.subr.bf16.mxu0 %v1743
  %6626 = vmatpush1.bf16.msra.mxu0 %v1742
  %6627 = vmatprep.subr.bf16.mxu0 %v1750
  %6628 = vmatpush1.bf16.msra.mxu0 %v1749
  %6629 = vmatprep.subr.bf16.mxu0 %v1757
  %6630 = vmatpush1.bf16.msra.mxu0 %v1756
  %6631 = vmatprep.subr.bf16.mxu0 %v1764
  %6632 = vmatpush1.bf16.msra.mxu0 %v1763
  %6633 = vmatprep.mubr.bf16.mxu0 %v6069
  %6634 = vmatmul.mubr.bf16.gmra.mrb[0].mxu0 %v6068
  %v6635 = vpop.f32.mrb[0].mxu0
  %v6636 = vadd.f32 0.0, %v6635
  %v6637 = vpop.f32.mrb[0].mxu0
  %v6638 = vadd.f32 0.0, %v6637
  %v6639 = vpop.f32.mrb[0].mxu0
  %v6640 = vadd.f32 0.0, %v6639
  %v6641 = vpop.f32.mrb[0].mxu0
  %v6642 = vadd.f32 0.0, %v6641
  %6643 = vmatprep.mubr.bf16.mxu0 %v6075
  %6644 = vmatmul.mubr.bf16.gmra.mrb[0].mxu0 %v6074
  %v6645 = vpop.f32.mrb[0].mxu0
  %v6646 = vadd.f32 0.0, %v6645
  %v6647 = vpop.f32.mrb[0].mxu0
  %v6648 = vadd.f32 0.0, %v6647
  %v6649 = vpop.f32.mrb[0].mxu0
  %v6650 = vadd.f32 0.0, %v6649
  %v6651 = vpop.f32.mrb[0].mxu0
  %v6652 = vadd.f32 0.0, %v6651
  %6653 = vmatprep.mubr.bf16.mxu0 %v6081
  %6654 = vmatmul.mubr.bf16.gmra.mrb[0].mxu0 %v6080
  %v6655 = vpop.f32.mrb[0].mxu0
  %v6656 = vadd.f32 0.0, %v6655
  %v6657 = vpop.f32.mrb[0].mxu0
  %v6658 = vadd.f32 0.0, %v6657
  %v6659 = vpop.f32.mrb[0].mxu0
  %v6660 = vadd.f32 0.0, %v6659
  %v6661 = vpop.f32.mrb[0].mxu0
  %v6662 = vadd.f32 0.0, %v6661
  %6663 = vmatprep.mubr.bf16.mxu0 %v6087
  %6664 = vmatmul.mubr.bf16.gmra.mrb[0].mxu0 %v6086
  %v6665 = vpop.f32.mrb[0].mxu0
  %v6666 = vadd.f32 0.0, %v6665
  %v6667 = vpop.f32.mrb[0].mxu0
  %v6668 = vadd.f32 0.0, %v6667
  %v6669 = vpop.f32.mrb[0].mxu0
  %v6670 = vadd.f32 0.0, %v6669
  %v6671 = vpop.f32.mrb[0].mxu0
  %v6672 = vadd.f32 0.0, %v6671
  %6673 = vmatprep.mubr.bf16.mxu0 %v6093
  %6674 = vmatmul.mubr.bf16.gmra.mrb[0].mxu0 %v6092
  %v6675 = vpop.f32.mrb[0].mxu0
  %v6676 = vadd.f32 0.0, %v6675
  %v6677 = vpop.f32.mrb[0].mxu0
  %v6678 = vadd.f32 0.0, %v6677
  %v6679 = vpop.f32.mrb[0].mxu0
  %v6680 = vadd.f32 0.0, %v6679
  %v6681 = vpop.f32.mrb[0].mxu0
  %v6682 = vadd.f32 0.0, %v6681
  %6683 = vmatprep.mubr.bf16.mxu0 %v6099
  %6684 = vmatmul.mubr.bf16.gmra.mrb[0].mxu0 %v6098
  %v6685 = vpop.f32.mrb[0].mxu0
  %v6686 = vadd.f32 0.0, %v6685
  %v6687 = vpop.f32.mrb[0].mxu0
  %v6688 = vadd.f32 0.0, %v6687
  %v6689 = vpop.f32.mrb[0].mxu0
  %v6690 = vadd.f32 0.0, %v6689
  %v6691 = vpop.f32.mrb[0].mxu0
  %v6692 = vadd.f32 0.0, %v6691
  %6693 = vmatprep.mubr.bf16.mxu0 %v6105
  %6694 = vmatmul.mubr.bf16.gmra.mrb[0].mxu0 %v6104
  %v6695 = vpop.f32.mrb[0].mxu0
  %v6696 = vadd.f32 0.0, %v6695
  %v6697 = vpop.f32.mrb[0].mxu0
  %v6698 = vadd.f32 0.0, %v6697
  %v6699 = vpop.f32.mrb[0].mxu0
  %v6700 = vadd.f32 0.0, %v6699
  %v6701 = vpop.f32.mrb[0].mxu0
  %v6702 = vadd.f32 0.0, %v6701
  %6703 = vmatprep.mubr.bf16.mxu0 %v6111
  %6704 = vmatmul.mubr.bf16.gmra.mrb[0].mxu0 %v6110
  %v6705 = vpop.f32.mrb[0].mxu0
  %v6706 = vadd.f32 0.0, %v6705
  %v6707 = vpop.f32.mrb[0].mxu0
  %v6708 = vadd.f32 0.0, %v6707
  %v6709 = vpop.f32.mrb[0].mxu0
  %v6710 = vadd.f32 0.0, %v6709
  %v6711 = vpop.f32.mrb[0].mxu0
  %v6712 = vadd.f32 0.0, %v6711
  %6713 = vmatprep.mubr.bf16.mxu0 %v6117
  %6714 = vmatmul.mubr.bf16.gmra.mrb[0].mxu0 %v6116
  %v6715 = vpop.f32.mrb[0].mxu0
  %v6716 = vadd.f32 0.0, %v6715
  %v6717 = vpop.f32.mrb[0].mxu0
  %v6718 = vadd.f32 0.0, %v6717
  %v6719 = vpop.f32.mrb[0].mxu0
  %v6720 = vadd.f32 0.0, %v6719
  %v6721 = vpop.f32.mrb[0].mxu0
  %v6722 = vadd.f32 0.0, %v6721
  %6723 = vmatprep.mubr.bf16.mxu0 %v6123
  %6724 = vmatmul.mubr.bf16.gmra.mrb[0].mxu0 %v6122
  %v6725 = vpop.f32.mrb[0].mxu0
  %v6726 = vadd.f32 0.0, %v6725
  %v6727 = vpop.f32.mrb[0].mxu0
  %v6728 = vadd.f32 0.0, %v6727
  %v6729 = vpop.f32.mrb[0].mxu0
  %v6730 = vpop.f32.mrb[0].mxu0
  %6731 = vdwg.mxu0
  %6732 = vmatprep.subr.bf16.mxu0 %v1771
  %6733 = vmatpush1.bf16.msra.mxu0 %v1770
  %6734 = vmatprep.subr.bf16.mxu0 %v1778
  %6735 = vmatpush1.bf16.msra.mxu0 %v1777
  %6736 = vmatprep.subr.bf16.mxu0 %v1785
  %6737 = vmatpush1.bf16.msra.mxu0 %v1784
  %6738 = vmatprep.subr.bf16.mxu0 %v1792
  %6739 = vmatpush1.bf16.msra.mxu0 %v1791
  %6740 = vmatprep.subr.bf16.mxu0 %v1799
  %6741 = vmatpush1.bf16.msra.mxu0 %v1798
  %6742 = vmatprep.subr.bf16.mxu0 %v1806
  %6743 = vmatpush1.bf16.msra.mxu0 %v1805
  %6744 = vmatprep.subr.bf16.mxu0 %v1813
  %6745 = vmatpush1.bf16.msra.mxu0 %v1812
  %6746 = vmatprep.subr.bf16.mxu0 %v1820
  %6747 = vmatpush1.bf16.msra.mxu0 %v1819
  %6748 = vmatprep.subr.bf16.mxu0 %v1827
  %6749 = vmatpush1.bf16.msra.mxu0 %v1826
  %6750 = vmatprep.subr.bf16.mxu0 %v1834
  %6751 = vmatpush1.bf16.msra.mxu0 %v1833
  %6752 = vmatprep.subr.bf16.mxu0 %v1841
  %6753 = vmatpush1.bf16.msra.mxu0 %v1840
  %6754 = vmatprep.subr.bf16.mxu0 %v1848
  %6755 = vmatpush1.bf16.msra.mxu0 %v1847
  %6756 = vmatprep.subr.bf16.mxu0 %v1855
  %6757 = vmatpush1.bf16.msra.mxu0 %v1854
  %6758 = vmatprep.subr.bf16.mxu0 %v1862
  %6759 = vmatpush1.bf16.msra.mxu0 %v1861
  %6760 = vmatprep.subr.bf16.mxu0 %v1869
  %6761 = vmatpush1.bf16.msra.mxu0 %v1868
  %6762 = vmatprep.subr.bf16.mxu0 %v1876
  %6763 = vmatpush1.bf16.msra.mxu0 %v1875
  %6764 = vmatprep.mubr.bf16.mxu0 %v6071
  %6765 = vmatmul.mubr.bf16.gmra.mrb[0].mxu0 %v6070
  %v6766 = vpop.f32.mrb[0].mxu0
  %v6767 = vadd.f32 %v6636, %v6766
  %v6768 = vpop.f32.mrb[0].mxu0
  %v6769 = vadd.f32 %v6638, %v6768
  %v6770 = vpop.f32.mrb[0].mxu0
  %v6771 = vadd.f32 %v6640, %v6770
  %v6772 = vpop.f32.mrb[0].mxu0
  %v6773 = vadd.f32 %v6642, %v6772
  %6774 = vmatprep.mubr.bf16.mxu0 %v6077
  %6775 = vmatmul.mubr.bf16.gmra.mrb[0].mxu0 %v6076
  %v6776 = vpop.f32.mrb[0].mxu0
  %v6777 = vadd.f32 %v6646, %v6776
  %v6778 = vpop.f32.mrb[0].mxu0
  %v6779 = vadd.f32 %v6648, %v6778
  %v6780 = vpop.f32.mrb[0].mxu0
  %v6781 = vadd.f32 %v6650, %v6780
  %v6782 = vpop.f32.mrb[0].mxu0
  %v6783 = vadd.f32 %v6652, %v6782
  %6784 = vmatprep.mubr.bf16.mxu0 %v6083
  %6785 = vmatmul.mubr.bf16.gmra.mrb[0].mxu0 %v6082
  %v6786 = vpop.f32.mrb[0].mxu0
  %v6787 = vadd.f32 %v6656, %v6786
  %v6788 = vpop.f32.mrb[0].mxu0
  %v6789 = vadd.f32 %v6658, %v6788
  %v6790 = vpop.f32.mrb[0].mxu0
  %v6791 = vadd.f32 %v6660, %v6790
  %v6792 = vpop.f32.mrb[0].mxu0
  %v6793 = vadd.f32 %v6662, %v6792
  %6794 = vmatprep.mubr.bf16.mxu0 %v6089
  %6795 = vmatmul.mubr.bf16.gmra.mrb[0].mxu0 %v6088
  %v6796 = vpop.f32.mrb[0].mxu0
  %v6797 = vadd.f32 %v6666, %v6796
  %v6798 = vpop.f32.mrb[0].mxu0
  %v6799 = vadd.f32 %v6668, %v6798
  %v6800 = vpop.f32.mrb[0].mxu0
  %v6801 = vadd.f32 %v6670, %v6800
  %v6802 = vpop.f32.mrb[0].mxu0
  %v6803 = vadd.f32 %v6672, %v6802
  %6804 = vmatprep.mubr.bf16.mxu0 %v6095
  %6805 = vmatmul.mubr.bf16.gmra.mrb[0].mxu0 %v6094
  %v6806 = vpop.f32.mrb[0].mxu0
  %v6807 = vadd.f32 %v6676, %v6806
  %v6808 = vpop.f32.mrb[0].mxu0
  %v6809 = vadd.f32 %v6678, %v6808
  %v6810 = vpop.f32.mrb[0].mxu0
  %v6811 = vadd.f32 %v6680, %v6810
  %v6812 = vpop.f32.mrb[0].mxu0
  %v6813 = vadd.f32 %v6682, %v6812
  %6814 = vmatprep.mubr.bf16.mxu0 %v6101
  %6815 = vmatmul.mubr.bf16.gmra.mrb[0].mxu0 %v6100
  %v6816 = vpop.f32.mrb[0].mxu0
  %v6817 = vadd.f32 %v6686, %v6816
  %v6818 = vpop.f32.mrb[0].mxu0
  %v6819 = vadd.f32 %v6688, %v6818
  %v6820 = vpop.f32.mrb[0].mxu0
  %v6821 = vadd.f32 %v6690, %v6820
  %v6822 = vpop.f32.mrb[0].mxu0
  %v6823 = vadd.f32 %v6692, %v6822
  %6824 = vmatprep.mubr.bf16.mxu0 %v6107
  %6825 = vmatmul.mubr.bf16.gmra.mrb[0].mxu0 %v6106
  %v6826 = vpop.f32.mrb[0].mxu0
  %v6827 = vadd.f32 %v6696, %v6826
  %v6828 = vpop.f32.mrb[0].mxu0
  %v6829 = vadd.f32 %v6698, %v6828
  %v6830 = vpop.f32.mrb[0].mxu0
  %v6831 = vadd.f32 %v6700, %v6830
  %v6832 = vpop.f32.mrb[0].mxu0
  %v6833 = vadd.f32 %v6702, %v6832
  %6834 = vmatprep.mubr.bf16.mxu0 %v6113
  %6835 = vmatmul.mubr.bf16.gmra.mrb[0].mxu0 %v6112
  %v6836 = vpop.f32.mrb[0].mxu0
  %v6837 = vadd.f32 %v6706, %v6836
  %v6838 = vpop.f32.mrb[0].mxu0
  %v6839 = vadd.f32 %v6708, %v6838
  %v6840 = vpop.f32.mrb[0].mxu0
  %v6841 = vadd.f32 %v6710, %v6840
  %v6842 = vpop.f32.mrb[0].mxu0
  %v6843 = vadd.f32 %v6712, %v6842
  %6844 = vmatprep.mubr.bf16.mxu0 %v6119
  %6845 = vmatmul.mubr.bf16.gmra.mrb[0].mxu0 %v6118
  %v6846 = vpop.f32.mrb[0].mxu0
  %v6847 = vadd.f32 %v6716, %v6846
  %v6848 = vpop.f32.mrb[0].mxu0
  %v6849 = vadd.f32 %v6718, %v6848
  %v6850 = vpop.f32.mrb[0].mxu0
  %v6851 = vadd.f32 %v6720, %v6850
  %v6852 = vpop.f32.mrb[0].mxu0
  %v6853 = vadd.f32 %v6722, %v6852
  %6854 = vmatprep.mubr.bf16.mxu0 %v6125
  %6855 = vmatmul.mubr.bf16.gmra.mrb[0].mxu0 %v6124
  %v6856 = vpop.f32.mrb[0].mxu0
  %v6857 = vadd.f32 %v6726, %v6856
  %v6858 = vpop.f32.mrb[0].mxu0
  %v6859 = vadd.f32 %v6728, %v6858
  %v6860 = vpop.f32.mrb[0].mxu0
  %v6861 = vpop.f32.mrb[0].mxu0
  %6862 = vdwg.mxu0
  %6863 = vmatprep.subr.bf16.mxu0 %v1883
  %6864 = vmatpush1.bf16.msra.mxu0 %v1882
  %6865 = vmatprep.subr.bf16.mxu0 %v1890
  %6866 = vmatpush1.bf16.msra.mxu0 %v1889
  %6867 = vmatprep.subr.bf16.mxu0 %v1897
  %6868 = vmatpush1.bf16.msra.mxu0 %v1896
  %6869 = vmatprep.subr.bf16.mxu0 %v1904
  %6870 = vmatpush1.bf16.msra.mxu0 %v1903
  %6871 = vmatprep.subr.bf16.mxu0 %v1911
  %6872 = vmatpush1.bf16.msra.mxu0 %v1910
  %6873 = vmatprep.subr.bf16.mxu0 %v1918
  %6874 = vmatpush1.bf16.msra.mxu0 %v1917
  %6875 = vmatprep.subr.bf16.mxu0 %v1925
  %6876 = vmatpush1.bf16.msra.mxu0 %v1924
  %6877 = vmatprep.subr.bf16.mxu0 %v1932
  %6878 = vmatpush1.bf16.msra.mxu0 %v1931
  %6879 = vmatprep.subr.bf16.mxu0 %v1939
  %6880 = vmatpush1.bf16.msra.mxu0 %v1938
  %6881 = vmatprep.subr.bf16.mxu0 %v1946
  %6882 = vmatpush1.bf16.msra.mxu0 %v1945
  %6883 = vmatprep.subr.bf16.mxu0 %v2296
  %6884 = vmatpush1.bf16.msra.mxu0 %v2293
  %6885 = vmatprep.subr.bf16.mxu0 0
  %6886 = vmatpush1.bf16.msra.mxu0 0
  %6887 = vmatprep.subr.bf16.mxu0 0
  %6888 = vmatpush1.bf16.msra.mxu0 0
  %6889 = vmatprep.subr.bf16.mxu0 0
  %6890 = vmatpush1.bf16.msra.mxu0 0
  %6891 = vmatprep.subr.bf16.mxu0 0
  %6892 = vmatpush1.bf16.msra.mxu0 0
  %6893 = vmatprep.subr.bf16.mxu0 0
  %6894 = vmatpush1.bf16.msra.mxu0 0
  %6895 = vmatprep.mubr.bf16.mxu0 %v6179
  %6896 = vmatmul.mubr.bf16.gmra.mrb[0].mxu0 %v6072
  %v6897 = vpop.f32.mrb[0].mxu0
  %v6898 = vadd.f32 %v6767, %v6897
  %v6899 = vpop.f32.mrb[0].mxu0
  %v6900 = vadd.f32 %v6769, %v6899
  %v6901 = vpop.f32.mrb[0].mxu0
  %v6902 = vadd.f32 %v6771, %v6901
  %v6903 = vpop.f32.mrb[0].mxu0
  %v6904 = vadd.f32 %v6773, %v6903
  %6905 = vmatprep.mubr.bf16.mxu0 %v6182
  %6906 = vmatmul.mubr.bf16.gmra.mrb[0].mxu0 %v6078
  %v6907 = vpop.f32.mrb[0].mxu0
  %v6908 = vadd.f32 %v6777, %v6907
  %v6909 = vpop.f32.mrb[0].mxu0
  %v6910 = vadd.f32 %v6779, %v6909
  %v6911 = vpop.f32.mrb[0].mxu0
  %v6912 = vadd.f32 %v6781, %v6911
  %v6913 = vpop.f32.mrb[0].mxu0
  %v6914 = vadd.f32 %v6783, %v6913
  %6915 = vmatprep.mubr.bf16.mxu0 %v6185
  %6916 = vmatmul.mubr.bf16.gmra.mrb[0].mxu0 %v6084
  %v6917 = vpop.f32.mrb[0].mxu0
  %v6918 = vadd.f32 %v6787, %v6917
  %v6919 = vpop.f32.mrb[0].mxu0
  %v6920 = vadd.f32 %v6789, %v6919
  %v6921 = vpop.f32.mrb[0].mxu0
  %v6922 = vadd.f32 %v6791, %v6921
  %v6923 = vpop.f32.mrb[0].mxu0
  %v6924 = vadd.f32 %v6793, %v6923
  %6925 = vmatprep.mubr.bf16.mxu0 %v6188
  %6926 = vmatmul.mubr.bf16.gmra.mrb[0].mxu0 %v6090
  %v6927 = vpop.f32.mrb[0].mxu0
  %v6928 = vadd.f32 %v6797, %v6927
  %v6929 = vpop.f32.mrb[0].mxu0
  %v6930 = vadd.f32 %v6799, %v6929
  %v6931 = vpop.f32.mrb[0].mxu0
  %v6932 = vadd.f32 %v6801, %v6931
  %v6933 = vpop.f32.mrb[0].mxu0
  %v6934 = vadd.f32 %v6803, %v6933
  %6935 = vmatprep.mubr.bf16.mxu0 %v6191
  %6936 = vmatmul.mubr.bf16.gmra.mrb[0].mxu0 %v6096
  %v6937 = vpop.f32.mrb[0].mxu0
  %v6938 = vadd.f32 %v6807, %v6937
  %v6939 = vpop.f32.mrb[0].mxu0
  %v6940 = vadd.f32 %v6809, %v6939
  %v6941 = vpop.f32.mrb[0].mxu0
  %v6942 = vadd.f32 %v6811, %v6941
  %v6943 = vpop.f32.mrb[0].mxu0
  %v6944 = vadd.f32 %v6813, %v6943
  %6945 = vmatprep.mubr.bf16.mxu0 %v6194
  %6946 = vmatmul.mubr.bf16.gmra.mrb[0].mxu0 %v6102
  %v6947 = vpop.f32.mrb[0].mxu0
  %v6948 = vadd.f32 %v6817, %v6947
  %v6949 = vpop.f32.mrb[0].mxu0
  %v6950 = vadd.f32 %v6819, %v6949
  %v6951 = vpop.f32.mrb[0].mxu0
  %v6952 = vadd.f32 %v6821, %v6951
  %v6953 = vpop.f32.mrb[0].mxu0
  %v6954 = vadd.f32 %v6823, %v6953
  %6955 = vmatprep.mubr.bf16.mxu0 %v6197
  %6956 = vmatmul.mubr.bf16.gmra.mrb[0].mxu0 %v6108
  %v6957 = vpop.f32.mrb[0].mxu0
  %v6958 = vadd.f32 %v6827, %v6957
  %v6959 = vpop.f32.mrb[0].mxu0
  %v6960 = vadd.f32 %v6829, %v6959
  %v6961 = vpop.f32.mrb[0].mxu0
  %v6962 = vadd.f32 %v6831, %v6961
  %v6963 = vpop.f32.mrb[0].mxu0
  %v6964 = vadd.f32 %v6833, %v6963
  %6965 = vmatprep.mubr.bf16.mxu0 %v6200
  %6966 = vmatmul.mubr.bf16.gmra.mrb[0].mxu0 %v6114
  %v6967 = vpop.f32.mrb[0].mxu0
  %v6968 = vadd.f32 %v6837, %v6967
  %v6969 = vpop.f32.mrb[0].mxu0
  %v6970 = vadd.f32 %v6839, %v6969
  %v6971 = vpop.f32.mrb[0].mxu0
  %v6972 = vadd.f32 %v6841, %v6971
  %v6973 = vpop.f32.mrb[0].mxu0
  %v6974 = vadd.f32 %v6843, %v6973
  %6975 = vmatprep.mubr.bf16.mxu0 %v6203
  %6976 = vmatmul.mubr.bf16.gmra.mrb[0].mxu0 %v6120
  %v6977 = vpop.f32.mrb[0].mxu0
  %v6978 = vadd.f32 %v6847, %v6977
  %v6979 = vpop.f32.mrb[0].mxu0
  %v6980 = vadd.f32 %v6849, %v6979
  %v6981 = vpop.f32.mrb[0].mxu0
  %v6982 = vadd.f32 %v6851, %v6981
  %v6983 = vpop.f32.mrb[0].mxu0
  %v6984 = vadd.f32 %v6853, %v6983
  %6985 = vmatprep.mubr.bf16.mxu0 %v6206
  %6986 = vmatmul.mubr.bf16.gmra.mrb[0].mxu0 %v6126
  %v6987 = vpop.f32.mrb[0].mxu0
  %v6988 = vadd.f32 %v6857, %v6987
  %v6989 = vpop.f32.mrb[0].mxu0
  %v6990 = vadd.f32 %v6859, %v6989
  %v6991 = vpop.f32.mrb[0].mxu0
  %v6992 = vpop.f32.mrb[0].mxu0
  %6993 = vdwg.mxu0
  %6994 = vmatprep.subr.bf16.mxu0 %v1661
  %6995 = vmatpush1.bf16.msra.mxu0 %v1660
  %6996 = vmatprep.subr.bf16.mxu0 %v1668
  %6997 = vmatpush1.bf16.msra.mxu0 %v1667
  %6998 = vmatprep.subr.bf16.mxu0 %v1675
  %6999 = vmatpush1.bf16.msra.mxu0 %v1674
  %7000 = vmatprep.subr.bf16.mxu0 %v1682
  %7001 = vmatpush1.bf16.msra.mxu0 %v1681
  %7002 = vmatprep.subr.bf16.mxu0 %v1689
  %7003 = vmatpush1.bf16.msra.mxu0 %v1688
  %7004 = vmatprep.subr.bf16.mxu0 %v1696
  %7005 = vmatpush1.bf16.msra.mxu0 %v1695
  %7006 = vmatprep.subr.bf16.mxu0 %v1703
  %7007 = vmatpush1.bf16.msra.mxu0 %v1702
  %7008 = vmatprep.subr.bf16.mxu0 %v1710
  %7009 = vmatpush1.bf16.msra.mxu0 %v1709
  %7010 = vmatprep.subr.bf16.mxu0 %v1717
  %7011 = vmatpush1.bf16.msra.mxu0 %v1716
  %7012 = vmatprep.subr.bf16.mxu0 %v1724
  %7013 = vmatpush1.bf16.msra.mxu0 %v1723
  %7014 = vmatprep.subr.bf16.mxu0 %v1731
  %7015 = vmatpush1.bf16.msra.mxu0 %v1730
  %7016 = vmatprep.subr.bf16.mxu0 %v1738
  %7017 = vmatpush1.bf16.msra.mxu0 %v1737
  %7018 = vmatprep.subr.bf16.mxu0 %v1745
  %7019 = vmatpush1.bf16.msra.mxu0 %v1744
  %7020 = vmatprep.subr.bf16.mxu0 %v1752
  %7021 = vmatpush1.bf16.msra.mxu0 %v1751
  %7022 = vmatprep.subr.bf16.mxu0 %v1759
  %7023 = vmatpush1.bf16.msra.mxu0 %v1758
  %7024 = vmatprep.subr.bf16.mxu0 %v1766
  %7025 = vmatpush1.bf16.msra.mxu0 %v1765
  %7026 = vmatprep.mubr.bf16.mxu0 %v6069
  %7027 = vmatmul.mubr.bf16.gmra.mrb[0].mxu0 %v6068
  %v7028 = vpop.f32.mrb[0].mxu0
  %v7029 = vadd.f32 0.0, %v7028
  %v7030 = vpop.f32.mrb[0].mxu0
  %v7031 = vadd.f32 0.0, %v7030
  %v7032 = vpop.f32.mrb[0].mxu0
  %v7033 = vadd.f32 0.0, %v7032
  %v7034 = vpop.f32.mrb[0].mxu0
  %v7035 = vadd.f32 0.0, %v7034
  %7036 = vmatprep.mubr.bf16.mxu0 %v6075
  %7037 = vmatmul.mubr.bf16.gmra.mrb[0].mxu0 %v6074
  %v7038 = vpop.f32.mrb[0].mxu0
  %v7039 = vadd.f32 0.0, %v7038
  %v7040 = vpop.f32.mrb[0].mxu0
  %v7041 = vadd.f32 0.0, %v7040
  %v7042 = vpop.f32.mrb[0].mxu0
  %v7043 = vadd.f32 0.0, %v7042
  %v7044 = vpop.f32.mrb[0].mxu0
  %v7045 = vadd.f32 0.0, %v7044
  %7046 = vmatprep.mubr.bf16.mxu0 %v6081
  %7047 = vmatmul.mubr.bf16.gmra.mrb[0].mxu0 %v6080
  %v7048 = vpop.f32.mrb[0].mxu0
  %v7049 = vadd.f32 0.0, %v7048
  %v7050 = vpop.f32.mrb[0].mxu0
  %v7051 = vadd.f32 0.0, %v7050
  %v7052 = vpop.f32.mrb[0].mxu0
  %v7053 = vadd.f32 0.0, %v7052
  %v7054 = vpop.f32.mrb[0].mxu0
  %v7055 = vadd.f32 0.0, %v7054
  %7056 = vmatprep.mubr.bf16.mxu0 %v6087
  %7057 = vmatmul.mubr.bf16.gmra.mrb[0].mxu0 %v6086
  %v7058 = vpop.f32.mrb[0].mxu0
  %v7059 = vadd.f32 0.0, %v7058
  %v7060 = vpop.f32.mrb[0].mxu0
  %v7061 = vadd.f32 0.0, %v7060
  %v7062 = vpop.f32.mrb[0].mxu0
  %v7063 = vadd.f32 0.0, %v7062
  %v7064 = vpop.f32.mrb[0].mxu0
  %v7065 = vadd.f32 0.0, %v7064
  %7066 = vmatprep.mubr.bf16.mxu0 %v6093
  %7067 = vmatmul.mubr.bf16.gmra.mrb[0].mxu0 %v6092
  %v7068 = vpop.f32.mrb[0].mxu0
  %v7069 = vadd.f32 0.0, %v7068
  %v7070 = vpop.f32.mrb[0].mxu0
  %v7071 = vadd.f32 0.0, %v7070
  %v7072 = vpop.f32.mrb[0].mxu0
  %v7073 = vadd.f32 0.0, %v7072
  %v7074 = vpop.f32.mrb[0].mxu0
  %v7075 = vadd.f32 0.0, %v7074
  %7076 = vmatprep.mubr.bf16.mxu0 %v6099
  %7077 = vmatmul.mubr.bf16.gmra.mrb[0].mxu0 %v6098
  %v7078 = vpop.f32.mrb[0].mxu0
  %v7079 = vadd.f32 0.0, %v7078
  %v7080 = vpop.f32.mrb[0].mxu0
  %v7081 = vadd.f32 0.0, %v7080
  %v7082 = vpop.f32.mrb[0].mxu0
  %v7083 = vadd.f32 0.0, %v7082
  %v7084 = vpop.f32.mrb[0].mxu0
  %v7085 = vadd.f32 0.0, %v7084
  %7086 = vmatprep.mubr.bf16.mxu0 %v6105
  %7087 = vmatmul.mubr.bf16.gmra.mrb[0].mxu0 %v6104
  %v7088 = vpop.f32.mrb[0].mxu0
  %v7089 = vadd.f32 0.0, %v7088
  %v7090 = vpop.f32.mrb[0].mxu0
  %v7091 = vadd.f32 0.0, %v7090
  %v7092 = vpop.f32.mrb[0].mxu0
  %v7093 = vadd.f32 0.0, %v7092
  %v7094 = vpop.f32.mrb[0].mxu0
  %v7095 = vadd.f32 0.0, %v7094
  %7096 = vmatprep.mubr.bf16.mxu0 %v6111
  %7097 = vmatmul.mubr.bf16.gmra.mrb[0].mxu0 %v6110
  %v7098 = vpop.f32.mrb[0].mxu0
  %v7099 = vadd.f32 0.0, %v7098
  %v7100 = vpop.f32.mrb[0].mxu0
  %v7101 = vadd.f32 0.0, %v7100
  %v7102 = vpop.f32.mrb[0].mxu0
  %v7103 = vadd.f32 0.0, %v7102
  %v7104 = vpop.f32.mrb[0].mxu0
  %v7105 = vadd.f32 0.0, %v7104
  %7106 = vmatprep.mubr.bf16.mxu0 %v6117
  %7107 = vmatmul.mubr.bf16.gmra.mrb[0].mxu0 %v6116
  %v7108 = vpop.f32.mrb[0].mxu0
  %v7109 = vadd.f32 0.0, %v7108
  %v7110 = vpop.f32.mrb[0].mxu0
  %v7111 = vadd.f32 0.0, %v7110
  %v7112 = vpop.f32.mrb[0].mxu0
  %v7113 = vadd.f32 0.0, %v7112
  %v7114 = vpop.f32.mrb[0].mxu0
  %v7115 = vadd.f32 0.0, %v7114
  %7116 = vmatprep.mubr.bf16.mxu0 %v6123
  %7117 = vmatmul.mubr.bf16.gmra.mrb[0].mxu0 %v6122
  %v7118 = vpop.f32.mrb[0].mxu0
  %v7119 = vadd.f32 0.0, %v7118
  %v7120 = vpop.f32.mrb[0].mxu0
  %v7121 = vadd.f32 0.0, %v7120
  %v7122 = vpop.f32.mrb[0].mxu0
  %v7123 = vpop.f32.mrb[0].mxu0
  %7124 = vdwg.mxu0
  %7125 = vmatprep.subr.bf16.mxu0 %v1773
  %7126 = vmatpush1.bf16.msra.mxu0 %v1772
  %7127 = vmatprep.subr.bf16.mxu0 %v1780
  %7128 = vmatpush1.bf16.msra.mxu0 %v1779
  %7129 = vmatprep.subr.bf16.mxu0 %v1787
  %7130 = vmatpush1.bf16.msra.mxu0 %v1786
  %7131 = vmatprep.subr.bf16.mxu0 %v1794
  %7132 = vmatpush1.bf16.msra.mxu0 %v1793
  %7133 = vmatprep.subr.bf16.mxu0 %v1801
  %7134 = vmatpush1.bf16.msra.mxu0 %v1800
  %7135 = vmatprep.subr.bf16.mxu0 %v1808
  %7136 = vmatpush1.bf16.msra.mxu0 %v1807
  %7137 = vmatprep.subr.bf16.mxu0 %v1815
  %7138 = vmatpush1.bf16.msra.mxu0 %v1814
  %7139 = vmatprep.subr.bf16.mxu0 %v1822
  %7140 = vmatpush1.bf16.msra.mxu0 %v1821
  %7141 = vmatprep.subr.bf16.mxu0 %v1829
  %7142 = vmatpush1.bf16.msra.mxu0 %v1828
  %7143 = vmatprep.subr.bf16.mxu0 %v1836
  %7144 = vmatpush1.bf16.msra.mxu0 %v1835
  %7145 = vmatprep.subr.bf16.mxu0 %v1843
  %7146 = vmatpush1.bf16.msra.mxu0 %v1842
  %7147 = vmatprep.subr.bf16.mxu0 %v1850
  %7148 = vmatpush1.bf16.msra.mxu0 %v1849
  %7149 = vmatprep.subr.bf16.mxu0 %v1857
  %7150 = vmatpush1.bf16.msra.mxu0 %v1856
  %7151 = vmatprep.subr.bf16.mxu0 %v1864
  %7152 = vmatpush1.bf16.msra.mxu0 %v1863
  %7153 = vmatprep.subr.bf16.mxu0 %v1871
  %7154 = vmatpush1.bf16.msra.mxu0 %v1870
  %7155 = vmatprep.subr.bf16.mxu0 %v1878
  %7156 = vmatpush1.bf16.msra.mxu0 %v1877
  %7157 = vmatprep.mubr.bf16.mxu0 %v6071
  %7158 = vmatmul.mubr.bf16.gmra.mrb[0].mxu0 %v6070
  %v7159 = vpop.f32.mrb[0].mxu0
  %v7160 = vadd.f32 %v7029, %v7159
  %v7161 = vpop.f32.mrb[0].mxu0
  %v7162 = vadd.f32 %v7031, %v7161
  %v7163 = vpop.f32.mrb[0].mxu0
  %v7164 = vadd.f32 %v7033, %v7163
  %v7165 = vpop.f32.mrb[0].mxu0
  %v7166 = vadd.f32 %v7035, %v7165
  %7167 = vmatprep.mubr.bf16.mxu0 %v6077
  %7168 = vmatmul.mubr.bf16.gmra.mrb[0].mxu0 %v6076
  %v7169 = vpop.f32.mrb[0].mxu0
  %v7170 = vadd.f32 %v7039, %v7169
  %v7171 = vpop.f32.mrb[0].mxu0
  %v7172 = vadd.f32 %v7041, %v7171
  %v7173 = vpop.f32.mrb[0].mxu0
  %v7174 = vadd.f32 %v7043, %v7173
  %v7175 = vpop.f32.mrb[0].mxu0
  %v7176 = vadd.f32 %v7045, %v7175
  %7177 = vmatprep.mubr.bf16.mxu0 %v6083
  %7178 = vmatmul.mubr.bf16.gmra.mrb[0].mxu0 %v6082
  %v7179 = vpop.f32.mrb[0].mxu0
  %v7180 = vadd.f32 %v7049, %v7179
  %v7181 = vpop.f32.mrb[0].mxu0
  %v7182 = vadd.f32 %v7051, %v7181
  %v7183 = vpop.f32.mrb[0].mxu0
  %v7184 = vadd.f32 %v7053, %v7183
  %v7185 = vpop.f32.mrb[0].mxu0
  %v7186 = vadd.f32 %v7055, %v7185
  %7187 = vmatprep.mubr.bf16.mxu0 %v6089
  %7188 = vmatmul.mubr.bf16.gmra.mrb[0].mxu0 %v6088
  %v7189 = vpop.f32.mrb[0].mxu0
  %v7190 = vadd.f32 %v7059, %v7189
  %v7191 = vpop.f32.mrb[0].mxu0
  %v7192 = vadd.f32 %v7061, %v7191
  %v7193 = vpop.f32.mrb[0].mxu0
  %v7194 = vadd.f32 %v7063, %v7193
  %v7195 = vpop.f32.mrb[0].mxu0
  %v7196 = vadd.f32 %v7065, %v7195
  %7197 = vmatprep.mubr.bf16.mxu0 %v6095
  %7198 = vmatmul.mubr.bf16.gmra.mrb[0].mxu0 %v6094
  %v7199 = vpop.f32.mrb[0].mxu0
  %v7200 = vadd.f32 %v7069, %v7199
  %v7201 = vpop.f32.mrb[0].mxu0
  %v7202 = vadd.f32 %v7071, %v7201
  %v7203 = vpop.f32.mrb[0].mxu0
  %v7204 = vadd.f32 %v7073, %v7203
  %v7205 = vpop.f32.mrb[0].mxu0
  %v7206 = vadd.f32 %v7075, %v7205
  %7207 = vmatprep.mubr.bf16.mxu0 %v6101
  %7208 = vmatmul.mubr.bf16.gmra.mrb[0].mxu0 %v6100
  %v7209 = vpop.f32.mrb[0].mxu0
  %v7210 = vadd.f32 %v7079, %v7209
  %v7211 = vpop.f32.mrb[0].mxu0
  %v7212 = vadd.f32 %v7081, %v7211
  %v7213 = vpop.f32.mrb[0].mxu0
  %v7214 = vadd.f32 %v7083, %v7213
  %v7215 = vpop.f32.mrb[0].mxu0
  %v7216 = vadd.f32 %v7085, %v7215
  %7217 = vmatprep.mubr.bf16.mxu0 %v6107
  %7218 = vmatmul.mubr.bf16.gmra.mrb[0].mxu0 %v6106
  %v7219 = vpop.f32.mrb[0].mxu0
  %v7220 = vadd.f32 %v7089, %v7219
  %v7221 = vpop.f32.mrb[0].mxu0
  %v7222 = vadd.f32 %v7091, %v7221
  %v7223 = vpop.f32.mrb[0].mxu0
  %v7224 = vadd.f32 %v7093, %v7223
  %v7225 = vpop.f32.mrb[0].mxu0
  %v7226 = vadd.f32 %v7095, %v7225
  %7227 = vmatprep.mubr.bf16.mxu0 %v6113
  %7228 = vmatmul.mubr.bf16.gmra.mrb[0].mxu0 %v6112
  %v7229 = vpop.f32.mrb[0].mxu0
  %v7230 = vadd.f32 %v7099, %v7229
  %v7231 = vpop.f32.mrb[0].mxu0
  %v7232 = vadd.f32 %v7101, %v7231
  %v7233 = vpop.f32.mrb[0].mxu0
  %v7234 = vadd.f32 %v7103, %v7233
  %v7235 = vpop.f32.mrb[0].mxu0
  %v7236 = vadd.f32 %v7105, %v7235
  %7237 = vmatprep.mubr.bf16.mxu0 %v6119
  %7238 = vmatmul.mubr.bf16.gmra.mrb[0].mxu0 %v6118
  %v7239 = vpop.f32.mrb[0].mxu0
  %v7240 = vadd.f32 %v7109, %v7239
  %v7241 = vpop.f32.mrb[0].mxu0
  %v7242 = vadd.f32 %v7111, %v7241
  %v7243 = vpop.f32.mrb[0].mxu0
  %v7244 = vadd.f32 %v7113, %v7243
  %v7245 = vpop.f32.mrb[0].mxu0
  %v7246 = vadd.f32 %v7115, %v7245
  %7247 = vmatprep.mubr.bf16.mxu0 %v6125
  %7248 = vmatmul.mubr.bf16.gmra.mrb[0].mxu0 %v6124
  %v7249 = vpop.f32.mrb[0].mxu0
  %v7250 = vadd.f32 %v7119, %v7249
  %v7251 = vpop.f32.mrb[0].mxu0
  %v7252 = vadd.f32 %v7121, %v7251
  %v7253 = vpop.f32.mrb[0].mxu0
  %v7254 = vpop.f32.mrb[0].mxu0
  %7255 = vdwg.mxu0
  %7256 = vmatprep.subr.bf16.mxu0 %v1885
  %7257 = vmatpush1.bf16.msra.mxu0 %v1884
  %7258 = vmatprep.subr.bf16.mxu0 %v1892
  %7259 = vmatpush1.bf16.msra.mxu0 %v1891
  %7260 = vmatprep.subr.bf16.mxu0 %v1899
  %7261 = vmatpush1.bf16.msra.mxu0 %v1898
  %7262 = vmatprep.subr.bf16.mxu0 %v1906
  %7263 = vmatpush1.bf16.msra.mxu0 %v1905
  %7264 = vmatprep.subr.bf16.mxu0 %v1913
  %7265 = vmatpush1.bf16.msra.mxu0 %v1912
  %7266 = vmatprep.subr.bf16.mxu0 %v1920
  %7267 = vmatpush1.bf16.msra.mxu0 %v1919
  %7268 = vmatprep.subr.bf16.mxu0 %v1927
  %7269 = vmatpush1.bf16.msra.mxu0 %v1926
  %7270 = vmatprep.subr.bf16.mxu0 %v1934
  %7271 = vmatpush1.bf16.msra.mxu0 %v1933
  %7272 = vmatprep.subr.bf16.mxu0 %v1941
  %7273 = vmatpush1.bf16.msra.mxu0 %v1940
  %7274 = vmatprep.subr.bf16.mxu0 %v1948
  %7275 = vmatpush1.bf16.msra.mxu0 %v1947
  %7276 = vmatprep.subr.bf16.mxu0 %v2302
  %7277 = vmatpush1.bf16.msra.mxu0 %v2299
  %7278 = vmatprep.subr.bf16.mxu0 0
  %7279 = vmatpush1.bf16.msra.mxu0 0
  %7280 = vmatprep.subr.bf16.mxu0 0
  %7281 = vmatpush1.bf16.msra.mxu0 0
  %7282 = vmatprep.subr.bf16.mxu0 0
  %7283 = vmatpush1.bf16.msra.mxu0 0
  %7284 = vmatprep.subr.bf16.mxu0 0
  %7285 = vmatpush1.bf16.msra.mxu0 0
  %7286 = vmatprep.subr.bf16.mxu0 0
  %7287 = vmatpush1.bf16.msra.mxu0 0
  %7288 = vmatprep.mubr.bf16.mxu0 %v6179
  %7289 = vmatmul.mubr.bf16.gmra.mrb[0].mxu0 %v6072
  %v7290 = vpop.f32.mrb[0].mxu0
  %v7291 = vadd.f32 %v7160, %v7290
  %v7292 = vpop.f32.mrb[0].mxu0
  %v7293 = vadd.f32 %v7162, %v7292
  %v7294 = vpop.f32.mrb[0].mxu0
  %v7295 = vadd.f32 %v7164, %v7294
  %v7296 = vpop.f32.mrb[0].mxu0
  %v7297 = vadd.f32 %v7166, %v7296
  %7298 = vmatprep.mubr.bf16.mxu0 %v6182
  %7299 = vmatmul.mubr.bf16.gmra.mrb[0].mxu0 %v6078
  %v7300 = vpop.f32.mrb[0].mxu0
  %v7301 = vadd.f32 %v7170, %v7300
  %v7302 = vpop.f32.mrb[0].mxu0
  %v7303 = vadd.f32 %v7172, %v7302
  %v7304 = vpop.f32.mrb[0].mxu0
  %v7305 = vadd.f32 %v7174, %v7304
  %v7306 = vpop.f32.mrb[0].mxu0
  %v7307 = vadd.f32 %v7176, %v7306
  %7308 = vmatprep.mubr.bf16.mxu0 %v6185
  %7309 = vmatmul.mubr.bf16.gmra.mrb[0].mxu0 %v6084
  %v7310 = vpop.f32.mrb[0].mxu0
  %v7311 = vadd.f32 %v7180, %v7310
  %v7312 = vpop.f32.mrb[0].mxu0
  %v7313 = vadd.f32 %v7182, %v7312
  %v7314 = vpop.f32.mrb[0].mxu0
  %v7315 = vadd.f32 %v7184, %v7314
  %v7316 = vpop.f32.mrb[0].mxu0
  %v7317 = vadd.f32 %v7186, %v7316
  %7318 = vmatprep.mubr.bf16.mxu0 %v6188
  %7319 = vmatmul.mubr.bf16.gmra.mrb[0].mxu0 %v6090
  %v7320 = vpop.f32.mrb[0].mxu0
  %v7321 = vadd.f32 %v7190, %v7320
  %v7322 = vpop.f32.mrb[0].mxu0
  %v7323 = vadd.f32 %v7192, %v7322
  %v7324 = vpop.f32.mrb[0].mxu0
  %v7325 = vadd.f32 %v7194, %v7324
  %v7326 = vpop.f32.mrb[0].mxu0
  %v7327 = vadd.f32 %v7196, %v7326
  %7328 = vmatprep.mubr.bf16.mxu0 %v6191
  %7329 = vmatmul.mubr.bf16.gmra.mrb[0].mxu0 %v6096
  %v7330 = vpop.f32.mrb[0].mxu0
  %v7331 = vadd.f32 %v7200, %v7330
  %v7332 = vpop.f32.mrb[0].mxu0
  %v7333 = vadd.f32 %v7202, %v7332
  %v7334 = vpop.f32.mrb[0].mxu0
  %v7335 = vadd.f32 %v7204, %v7334
  %v7336 = vpop.f32.mrb[0].mxu0
  %v7337 = vadd.f32 %v7206, %v7336
  %7338 = vmatprep.mubr.bf16.mxu0 %v6194
  %7339 = vmatmul.mubr.bf16.gmra.mrb[0].mxu0 %v6102
  %v7340 = vpop.f32.mrb[0].mxu0
  %v7341 = vadd.f32 %v7210, %v7340
  %v7342 = vpop.f32.mrb[0].mxu0
  %v7343 = vadd.f32 %v7212, %v7342
  %v7344 = vpop.f32.mrb[0].mxu0
  %v7345 = vadd.f32 %v7214, %v7344
  %v7346 = vpop.f32.mrb[0].mxu0
  %v7347 = vadd.f32 %v7216, %v7346
  %7348 = vmatprep.mubr.bf16.mxu0 %v6197
  %7349 = vmatmul.mubr.bf16.gmra.mrb[0].mxu0 %v6108
  %v7350 = vpop.f32.mrb[0].mxu0
  %v7351 = vadd.f32 %v7220, %v7350
  %v7352 = vpop.f32.mrb[0].mxu0
  %v7353 = vadd.f32 %v7222, %v7352
  %v7354 = vpop.f32.mrb[0].mxu0
  %v7355 = vadd.f32 %v7224, %v7354
  %v7356 = vpop.f32.mrb[0].mxu0
  %v7357 = vadd.f32 %v7226, %v7356
  %7358 = vmatprep.mubr.bf16.mxu0 %v6200
  %7359 = vmatmul.mubr.bf16.gmra.mrb[0].mxu0 %v6114
  %v7360 = vpop.f32.mrb[0].mxu0
  %v7361 = vadd.f32 %v7230, %v7360
  %v7362 = vpop.f32.mrb[0].mxu0
  %v7363 = vadd.f32 %v7232, %v7362
  %v7364 = vpop.f32.mrb[0].mxu0
  %v7365 = vadd.f32 %v7234, %v7364
  %v7366 = vpop.f32.mrb[0].mxu0
  %v7367 = vadd.f32 %v7236, %v7366
  %7368 = vmatprep.mubr.bf16.mxu0 %v6203
  %7369 = vmatmul.mubr.bf16.gmra.mrb[0].mxu0 %v6120
  %v7370 = vpop.f32.mrb[0].mxu0
  %v7371 = vadd.f32 %v7240, %v7370
  %v7372 = vpop.f32.mrb[0].mxu0
  %v7373 = vadd.f32 %v7242, %v7372
  %v7374 = vpop.f32.mrb[0].mxu0
  %v7375 = vadd.f32 %v7244, %v7374
  %v7376 = vpop.f32.mrb[0].mxu0
  %v7377 = vadd.f32 %v7246, %v7376
  %7378 = vmatprep.mubr.bf16.mxu0 %v6206
  %7379 = vmatmul.mubr.bf16.gmra.mrb[0].mxu0 %v6126
  %v7380 = vpop.f32.mrb[0].mxu0
  %v7381 = vadd.f32 %v7250, %v7380
  %v7382 = vpop.f32.mrb[0].mxu0
  %v7383 = vadd.f32 %v7252, %v7382
  %v7384 = vpop.f32.mrb[0].mxu0
  %v7385 = vpop.f32.mrb[0].mxu0
  %7386 = vdwg.mxu0
  %7387 = vmatprep.subr.bf16.mxu0 0
  %7388 = vmatpush1.bf16.msra.mxu0 %v1662
  %7389 = vmatprep.subr.bf16.mxu0 0
  %7390 = vmatpush1.bf16.msra.mxu0 %v1669
  %7391 = vmatprep.subr.bf16.mxu0 0
  %7392 = vmatpush1.bf16.msra.mxu0 %v1676
  %7393 = vmatprep.subr.bf16.mxu0 0
  %7394 = vmatpush1.bf16.msra.mxu0 %v1683
  %7395 = vmatprep.subr.bf16.mxu0 0
  %7396 = vmatpush1.bf16.msra.mxu0 %v1690
  %7397 = vmatprep.subr.bf16.mxu0 0
  %7398 = vmatpush1.bf16.msra.mxu0 %v1697
  %7399 = vmatprep.subr.bf16.mxu0 0
  %7400 = vmatpush1.bf16.msra.mxu0 %v1704
  %7401 = vmatprep.subr.bf16.mxu0 0
  %7402 = vmatpush1.bf16.msra.mxu0 %v1711
  %7403 = vmatprep.subr.bf16.mxu0 0
  %7404 = vmatpush1.bf16.msra.mxu0 %v1718
  %7405 = vmatprep.subr.bf16.mxu0 0
  %7406 = vmatpush1.bf16.msra.mxu0 %v1725
  %7407 = vmatprep.subr.bf16.mxu0 0
  %7408 = vmatpush1.bf16.msra.mxu0 %v1732
  %7409 = vmatprep.subr.bf16.mxu0 0
  %7410 = vmatpush1.bf16.msra.mxu0 %v1739
  %7411 = vmatprep.subr.bf16.mxu0 0
  %7412 = vmatpush1.bf16.msra.mxu0 %v1746
  %7413 = vmatprep.subr.bf16.mxu0 0
  %7414 = vmatpush1.bf16.msra.mxu0 %v1753
  %7415 = vmatprep.subr.bf16.mxu0 0
  %7416 = vmatpush1.bf16.msra.mxu0 %v1760
  %7417 = vmatprep.subr.bf16.mxu0 0
  %7418 = vmatpush1.bf16.msra.mxu0 %v1767
  %7419 = vmatprep.mubr.bf16.mxu0 %v6069
  %7420 = vmatmul.mubr.bf16.gmra.mrb[0].mxu0 %v6068
  %v7421 = vpop.f32.mrb[0].mxu0
  %v7422 = vadd.f32 0.0, %v7421
  %v7423 = vpop.f32.mrb[0].mxu0
  %v7424 = vpop.f32.mrb[0].mxu0
  %v7425 = vadd.f32 0.0, %v7424
  %v7426 = vpop.f32.mrb[0].mxu0
  %7427 = vmatprep.mubr.bf16.mxu0 %v6075
  %7428 = vmatmul.mubr.bf16.gmra.mrb[0].mxu0 %v6074
  %v7429 = vpop.f32.mrb[0].mxu0
  %v7430 = vadd.f32 0.0, %v7429
  %v7431 = vpop.f32.mrb[0].mxu0
  %v7432 = vpop.f32.mrb[0].mxu0
  %v7433 = vadd.f32 0.0, %v7432
  %v7434 = vpop.f32.mrb[0].mxu0
  %7435 = vmatprep.mubr.bf16.mxu0 %v6081
  %7436 = vmatmul.mubr.bf16.gmra.mrb[0].mxu0 %v6080
  %v7437 = vpop.f32.mrb[0].mxu0
  %v7438 = vadd.f32 0.0, %v7437
  %v7439 = vpop.f32.mrb[0].mxu0
  %v7440 = vpop.f32.mrb[0].mxu0
  %v7441 = vadd.f32 0.0, %v7440
  %v7442 = vpop.f32.mrb[0].mxu0
  %7443 = vmatprep.mubr.bf16.mxu0 %v6087
  %7444 = vmatmul.mubr.bf16.gmra.mrb[0].mxu0 %v6086
  %v7445 = vpop.f32.mrb[0].mxu0
  %v7446 = vadd.f32 0.0, %v7445
  %v7447 = vpop.f32.mrb[0].mxu0
  %v7448 = vpop.f32.mrb[0].mxu0
  %v7449 = vadd.f32 0.0, %v7448
  %v7450 = vpop.f32.mrb[0].mxu0
  %7451 = vmatprep.mubr.bf16.mxu0 %v6093
  %7452 = vmatmul.mubr.bf16.gmra.mrb[0].mxu0 %v6092
  %v7453 = vpop.f32.mrb[0].mxu0
  %v7454 = vadd.f32 0.0, %v7453
  %v7455 = vpop.f32.mrb[0].mxu0
  %v7456 = vpop.f32.mrb[0].mxu0
  %v7457 = vadd.f32 0.0, %v7456
  %v7458 = vpop.f32.mrb[0].mxu0
  %7459 = vmatprep.mubr.bf16.mxu0 %v6099
  %7460 = vmatmul.mubr.bf16.gmra.mrb[0].mxu0 %v6098
  %v7461 = vpop.f32.mrb[0].mxu0
  %v7462 = vadd.f32 0.0, %v7461
  %v7463 = vpop.f32.mrb[0].mxu0
  %v7464 = vpop.f32.mrb[0].mxu0
  %v7465 = vadd.f32 0.0, %v7464
  %v7466 = vpop.f32.mrb[0].mxu0
  %7467 = vmatprep.mubr.bf16.mxu0 %v6105
  %7468 = vmatmul.mubr.bf16.gmra.mrb[0].mxu0 %v6104
  %v7469 = vpop.f32.mrb[0].mxu0
  %v7470 = vadd.f32 0.0, %v7469
  %v7471 = vpop.f32.mrb[0].mxu0
  %v7472 = vpop.f32.mrb[0].mxu0
  %v7473 = vadd.f32 0.0, %v7472
  %v7474 = vpop.f32.mrb[0].mxu0
  %7475 = vmatprep.mubr.bf16.mxu0 %v6111
  %7476 = vmatmul.mubr.bf16.gmra.mrb[0].mxu0 %v6110
  %v7477 = vpop.f32.mrb[0].mxu0
  %v7478 = vadd.f32 0.0, %v7477
  %v7479 = vpop.f32.mrb[0].mxu0
  %v7480 = vpop.f32.mrb[0].mxu0
  %v7481 = vadd.f32 0.0, %v7480
  %v7482 = vpop.f32.mrb[0].mxu0
  %7483 = vmatprep.mubr.bf16.mxu0 %v6117
  %7484 = vmatmul.mubr.bf16.gmra.mrb[0].mxu0 %v6116
  %v7485 = vpop.f32.mrb[0].mxu0
  %v7486 = vadd.f32 0.0, %v7485
  %v7487 = vpop.f32.mrb[0].mxu0
  %v7488 = vpop.f32.mrb[0].mxu0
  %v7489 = vadd.f32 0.0, %v7488
  %v7490 = vpop.f32.mrb[0].mxu0
  %7491 = vmatprep.mubr.bf16.mxu0 %v6123
  %7492 = vmatmul.mubr.bf16.gmra.mrb[0].mxu0 %v6122
  %v7493 = vpop.f32.mrb[0].mxu0
  %v7494 = vadd.f32 0.0, %v7493
  %v7495 = vpop.f32.mrb[0].mxu0
  %v7496 = vpop.f32.mrb[0].mxu0
  %v7497 = vpop.f32.mrb[0].mxu0
  %7498 = vdwg.mxu0
  %7499 = vmatprep.subr.bf16.mxu0 0
  %7500 = vmatpush1.bf16.msra.mxu0 %v1774
  %7501 = vmatprep.subr.bf16.mxu0 0
  %7502 = vmatpush1.bf16.msra.mxu0 %v1781
  %7503 = vmatprep.subr.bf16.mxu0 0
  %7504 = vmatpush1.bf16.msra.mxu0 %v1788
  %7505 = vmatprep.subr.bf16.mxu0 0
  %7506 = vmatpush1.bf16.msra.mxu0 %v1795
  %7507 = vmatprep.subr.bf16.mxu0 0
  %7508 = vmatpush1.bf16.msra.mxu0 %v1802
  %7509 = vmatprep.subr.bf16.mxu0 0
  %7510 = vmatpush1.bf16.msra.mxu0 %v1809
  %7511 = vmatprep.subr.bf16.mxu0 0
  %7512 = vmatpush1.bf16.msra.mxu0 %v1816
  %7513 = vmatprep.subr.bf16.mxu0 0
  %7514 = vmatpush1.bf16.msra.mxu0 %v1823
  %7515 = vmatprep.subr.bf16.mxu0 0
  %7516 = vmatpush1.bf16.msra.mxu0 %v1830
  %7517 = vmatprep.subr.bf16.mxu0 0
  %7518 = vmatpush1.bf16.msra.mxu0 %v1837
  %7519 = vmatprep.subr.bf16.mxu0 0
  %7520 = vmatpush1.bf16.msra.mxu0 %v1844
  %7521 = vmatprep.subr.bf16.mxu0 0
  %7522 = vmatpush1.bf16.msra.mxu0 %v1851
  %7523 = vmatprep.subr.bf16.mxu0 0
  %7524 = vmatpush1.bf16.msra.mxu0 %v1858
  %7525 = vmatprep.subr.bf16.mxu0 0
  %7526 = vmatpush1.bf16.msra.mxu0 %v1865
  %7527 = vmatprep.subr.bf16.mxu0 0
  %7528 = vmatpush1.bf16.msra.mxu0 %v1872
  %7529 = vmatprep.subr.bf16.mxu0 0
  %7530 = vmatpush1.bf16.msra.mxu0 %v1879
  %7531 = vmatprep.mubr.bf16.mxu0 %v6071
  %7532 = vmatmul.mubr.bf16.gmra.mrb[0].mxu0 %v6070
  %v7533 = vpop.f32.mrb[0].mxu0
  %v7534 = vadd.f32 %v7422, %v7533
  %v7535 = vpop.f32.mrb[0].mxu0
  %v7536 = vpop.f32.mrb[0].mxu0
  %v7537 = vadd.f32 %v7425, %v7536
  %v7538 = vpop.f32.mrb[0].mxu0
  %7539 = vmatprep.mubr.bf16.mxu0 %v6077
  %7540 = vmatmul.mubr.bf16.gmra.mrb[0].mxu0 %v6076
  %v7541 = vpop.f32.mrb[0].mxu0
  %v7542 = vadd.f32 %v7430, %v7541
  %v7543 = vpop.f32.mrb[0].mxu0
  %v7544 = vpop.f32.mrb[0].mxu0
  %v7545 = vadd.f32 %v7433, %v7544
  %v7546 = vpop.f32.mrb[0].mxu0
  %7547 = vmatprep.mubr.bf16.mxu0 %v6083
  %7548 = vmatmul.mubr.bf16.gmra.mrb[0].mxu0 %v6082
  %v7549 = vpop.f32.mrb[0].mxu0
  %v7550 = vadd.f32 %v7438, %v7549
  %v7551 = vpop.f32.mrb[0].mxu0
  %v7552 = vpop.f32.mrb[0].mxu0
  %v7553 = vadd.f32 %v7441, %v7552
  %v7554 = vpop.f32.mrb[0].mxu0
  %7555 = vmatprep.mubr.bf16.mxu0 %v6089
  %7556 = vmatmul.mubr.bf16.gmra.mrb[0].mxu0 %v6088
  %v7557 = vpop.f32.mrb[0].mxu0
  %v7558 = vadd.f32 %v7446, %v7557
  %v7559 = vpop.f32.mrb[0].mxu0
  %v7560 = vpop.f32.mrb[0].mxu0
  %v7561 = vadd.f32 %v7449, %v7560
  %v7562 = vpop.f32.mrb[0].mxu0
  %7563 = vmatprep.mubr.bf16.mxu0 %v6095
  %7564 = vmatmul.mubr.bf16.gmra.mrb[0].mxu0 %v6094
  %v7565 = vpop.f32.mrb[0].mxu0
  %v7566 = vadd.f32 %v7454, %v7565
  %v7567 = vpop.f32.mrb[0].mxu0
  %v7568 = vpop.f32.mrb[0].mxu0
  %v7569 = vadd.f32 %v7457, %v7568
  %v7570 = vpop.f32.mrb[0].mxu0
  %7571 = vmatprep.mubr.bf16.mxu0 %v6101
  %7572 = vmatmul.mubr.bf16.gmra.mrb[0].mxu0 %v6100
  %v7573 = vpop.f32.mrb[0].mxu0
  %v7574 = vadd.f32 %v7462, %v7573
  %v7575 = vpop.f32.mrb[0].mxu0
  %v7576 = vpop.f32.mrb[0].mxu0
  %v7577 = vadd.f32 %v7465, %v7576
  %v7578 = vpop.f32.mrb[0].mxu0
  %7579 = vmatprep.mubr.bf16.mxu0 %v6107
  %7580 = vmatmul.mubr.bf16.gmra.mrb[0].mxu0 %v6106
  %v7581 = vpop.f32.mrb[0].mxu0
  %v7582 = vadd.f32 %v7470, %v7581
  %v7583 = vpop.f32.mrb[0].mxu0
  %v7584 = vpop.f32.mrb[0].mxu0
  %v7585 = vadd.f32 %v7473, %v7584
  %v7586 = vpop.f32.mrb[0].mxu0
  %7587 = vmatprep.mubr.bf16.mxu0 %v6113
  %7588 = vmatmul.mubr.bf16.gmra.mrb[0].mxu0 %v6112
  %v7589 = vpop.f32.mrb[0].mxu0
  %v7590 = vadd.f32 %v7478, %v7589
  %v7591 = vpop.f32.mrb[0].mxu0
  %v7592 = vpop.f32.mrb[0].mxu0
  %v7593 = vadd.f32 %v7481, %v7592
  %v7594 = vpop.f32.mrb[0].mxu0
  %7595 = vmatprep.mubr.bf16.mxu0 %v6119
  %7596 = vmatmul.mubr.bf16.gmra.mrb[0].mxu0 %v6118
  %v7597 = vpop.f32.mrb[0].mxu0
  %v7598 = vadd.f32 %v7486, %v7597
  %v7599 = vpop.f32.mrb[0].mxu0
  %v7600 = vpop.f32.mrb[0].mxu0
  %v7601 = vadd.f32 %v7489, %v7600
  %v7602 = vpop.f32.mrb[0].mxu0
  %7603 = vmatprep.mubr.bf16.mxu0 %v6125
  %7604 = vmatmul.mubr.bf16.gmra.mrb[0].mxu0 %v6124
  %v7605 = vpop.f32.mrb[0].mxu0
  %v7606 = vadd.f32 %v7494, %v7605
  %v7607 = vpop.f32.mrb[0].mxu0
  %v7608 = vpop.f32.mrb[0].mxu0
  %v7609 = vpop.f32.mrb[0].mxu0
  %7610 = vdwg.mxu0
  %7611 = vmatprep.subr.bf16.mxu0 0
  %7612 = vmatpush1.bf16.msra.mxu0 %v1886
  %7613 = vmatprep.subr.bf16.mxu0 0
  %7614 = vmatpush1.bf16.msra.mxu0 %v1893
  %7615 = vmatprep.subr.bf16.mxu0 0
  %7616 = vmatpush1.bf16.msra.mxu0 %v1900
  %7617 = vmatprep.subr.bf16.mxu0 0
  %7618 = vmatpush1.bf16.msra.mxu0 %v1907
  %7619 = vmatprep.subr.bf16.mxu0 0
  %7620 = vmatpush1.bf16.msra.mxu0 %v1914
  %7621 = vmatprep.subr.bf16.mxu0 0
  %7622 = vmatpush1.bf16.msra.mxu0 %v1921
  %7623 = vmatprep.subr.bf16.mxu0 0
  %7624 = vmatpush1.bf16.msra.mxu0 %v1928
  %7625 = vmatprep.subr.bf16.mxu0 0
  %7626 = vmatpush1.bf16.msra.mxu0 %v1935
  %7627 = vmatprep.subr.bf16.mxu0 0
  %7628 = vmatpush1.bf16.msra.mxu0 %v1942
  %7629 = vmatprep.subr.bf16.mxu0 0
  %7630 = vmatpush1.bf16.msra.mxu0 %v1949
  %7631 = vmatprep.subr.bf16.mxu0 0
  %7632 = vmatpush1.bf16.msra.mxu0 %v2305
  %7633 = vmatprep.subr.bf16.mxu0 0
  %7634 = vmatpush1.bf16.msra.mxu0 0
  %7635 = vmatprep.subr.bf16.mxu0 0
  %7636 = vmatpush1.bf16.msra.mxu0 0
  %7637 = vmatprep.subr.bf16.mxu0 0
  %7638 = vmatpush1.bf16.msra.mxu0 0
  %7639 = vmatprep.subr.bf16.mxu0 0
  %7640 = vmatpush1.bf16.msra.mxu0 0
  %7641 = vmatprep.subr.bf16.mxu0 0
  %7642 = vmatpush1.bf16.msra.mxu0 0
  %7643 = vmatprep.mubr.bf16.mxu0 %v6179
  %7644 = vmatmul.mubr.bf16.gmra.mrb[0].mxu0 %v6072
  %v7645 = vpop.f32.mrb[0].mxu0
  %v7646 = vadd.f32 %v7534, %v7645
  %v7647 = vpop.f32.mrb[0].mxu0
  %v7648 = vpop.f32.mrb[0].mxu0
  %v7649 = vadd.f32 %v7537, %v7648
  %v7650 = vpop.f32.mrb[0].mxu0
  %7651 = vmatprep.mubr.bf16.mxu0 %v6182
  %7652 = vmatmul.mubr.bf16.gmra.mrb[0].mxu0 %v6078
  %v7653 = vpop.f32.mrb[0].mxu0
  %v7654 = vadd.f32 %v7542, %v7653
  %v7655 = vpop.f32.mrb[0].mxu0
  %v7656 = vpop.f32.mrb[0].mxu0
  %v7657 = vadd.f32 %v7545, %v7656
  %v7658 = vpop.f32.mrb[0].mxu0
  %7659 = vmatprep.mubr.bf16.mxu0 %v6185
  %7660 = vmatmul.mubr.bf16.gmra.mrb[0].mxu0 %v6084
  %v7661 = vpop.f32.mrb[0].mxu0
  %v7662 = vadd.f32 %v7550, %v7661
  %v7663 = vpop.f32.mrb[0].mxu0
  %v7664 = vpop.f32.mrb[0].mxu0
  %v7665 = vadd.f32 %v7553, %v7664
  %v7666 = vpop.f32.mrb[0].mxu0
  %7667 = vmatprep.mubr.bf16.mxu0 %v6188
  %7668 = vmatmul.mubr.bf16.gmra.mrb[0].mxu0 %v6090
  %v7669 = vpop.f32.mrb[0].mxu0
  %v7670 = vadd.f32 %v7558, %v7669
  %v7671 = vpop.f32.mrb[0].mxu0
  %v7672 = vpop.f32.mrb[0].mxu0
  %v7673 = vadd.f32 %v7561, %v7672
  %v7674 = vpop.f32.mrb[0].mxu0
  %7675 = vmatprep.mubr.bf16.mxu0 %v6191
  %7676 = vmatmul.mubr.bf16.gmra.mrb[0].mxu0 %v6096
  %v7677 = vpop.f32.mrb[0].mxu0
  %v7678 = vadd.f32 %v7566, %v7677
  %v7679 = vpop.f32.mrb[0].mxu0
  %v7680 = vpop.f32.mrb[0].mxu0
  %v7681 = vadd.f32 %v7569, %v7680
  %v7682 = vpop.f32.mrb[0].mxu0
  %7683 = vmatprep.mubr.bf16.mxu0 %v6194
  %7684 = vmatmul.mubr.bf16.gmra.mrb[0].mxu0 %v6102
  %v7685 = vpop.f32.mrb[0].mxu0
  %v7686 = vadd.f32 %v7574, %v7685
  %v7687 = vpop.f32.mrb[0].mxu0
  %v7688 = vpop.f32.mrb[0].mxu0
  %v7689 = vadd.f32 %v7577, %v7688
  %v7690 = vpop.f32.mrb[0].mxu0
  %7691 = vmatprep.mubr.bf16.mxu0 %v6197
  %7692 = vmatmul.mubr.bf16.gmra.mrb[0].mxu0 %v6108
  %v7693 = vpop.f32.mrb[0].mxu0
  %v7694 = vadd.f32 %v7582, %v7693
  %v7695 = vpop.f32.mrb[0].mxu0
  %v7696 = vpop.f32.mrb[0].mxu0
  %v7697 = vadd.f32 %v7585, %v7696
  %v7698 = vpop.f32.mrb[0].mxu0
  %7699 = vmatprep.mubr.bf16.mxu0 %v6200
  %7700 = vmatmul.mubr.bf16.gmra.mrb[0].mxu0 %v6114
  %v7701 = vpop.f32.mrb[0].mxu0
  %v7702 = vadd.f32 %v7590, %v7701
  %v7703 = vpop.f32.mrb[0].mxu0
  %v7704 = vpop.f32.mrb[0].mxu0
  %v7705 = vadd.f32 %v7593, %v7704
  %v7706 = vpop.f32.mrb[0].mxu0
  %7707 = vmatprep.mubr.bf16.mxu0 %v6203
  %7708 = vmatmul.mubr.bf16.gmra.mrb[0].mxu0 %v6120
  %v7709 = vpop.f32.mrb[0].mxu0
  %v7710 = vadd.f32 %v7598, %v7709
  %v7711 = vpop.f32.mrb[0].mxu0
  %v7712 = vpop.f32.mrb[0].mxu0
  %v7713 = vadd.f32 %v7601, %v7712
  %v7714 = vpop.f32.mrb[0].mxu0
  %7715 = vmatprep.mubr.bf16.mxu0 %v6206
  %7716 = vmatmul.mubr.bf16.gmra.mrb[0].mxu0 %v6126
  %v7717 = vpop.f32.mrb[0].mxu0
  %v7718 = vadd.f32 %v7606, %v7717
  %v7719 = vpop.f32.mrb[0].mxu0
  %v7720 = vpop.f32.mrb[0].mxu0
  %v7721 = vpop.f32.mrb[0].mxu0
  %7722 = vdwg.mxu0
  %v7723 = vmax.f32 %v5706, %v6505
  %v7724 = vmax.f32 %v5707, %v6507
  %v7725 = vmax.f32 %v5708, %v6898
  %v7726 = vmax.f32 %v5709, %v6900
  %v7727 = vmax.f32 %v5710, %v7291
  %v7728 = vmax.f32 %v5711, %v7293
  %v7729 = vmax.f32 %v5712, %v7646
  %v7730 = vmax.f32 %v5713, %v6509
  %v7731 = vmax.f32 %v5714, %v6511
  %v7732 = vmax.f32 %v5715, %v6902
  %v7733 = vmax.f32 %v5716, %v6904
  %v7734 = vmax.f32 %v5717, %v7295
  %v7735 = vmax.f32 %v5718, %v7297
  %v7736 = vmax.f32 %v5719, %v7649
  %v7737 = vmax.f32 %v5720, %v6515
  %v7738 = vmax.f32 %v5721, %v6517
  %v7739 = vmax.f32 %v5722, %v6908
  %v7740 = vmax.f32 %v5723, %v6910
  %v7741 = vmax.f32 %v5724, %v7301
  %v7742 = vmax.f32 %v5725, %v7303
  %v7743 = vmax.f32 %v5726, %v7654
  %v7744 = vmax.f32 %v5727, %v6519
  %v7745 = vmax.f32 %v5728, %v6521
  %v7746 = vmax.f32 %v5729, %v6912
  %v7747 = vmax.f32 %v5730, %v6914
  %v7748 = vmax.f32 %v5731, %v7305
  %v7749 = vmax.f32 %v5732, %v7307
  %v7750 = vmax.f32 %v5733, %v7657
  %v7751 = vmax.f32 %v5734, %v6525
  %v7752 = vmax.f32 %v5735, %v6527
  %v7753 = vmax.f32 %v5736, %v6918
  %v7754 = vmax.f32 %v5737, %v6920
  %v7755 = vmax.f32 %v5738, %v7311
  %v7756 = vmax.f32 %v5739, %v7313
  %v7757 = vmax.f32 %v5740, %v7662
  %v7758 = vmax.f32 %v5741, %v6529
  %v7759 = vmax.f32 %v5742, %v6531
  %v7760 = vmax.f32 %v5743, %v6922
  %v7761 = vmax.f32 %v5744, %v6924
  %v7762 = vmax.f32 %v5745, %v7315
  %v7763 = vmax.f32 %v5746, %v7317
  %v7764 = vmax.f32 %v5747, %v7665
  %v7765 = vmax.f32 %v5748, %v6535
  %v7766 = vmax.f32 %v5749, %v6537
  %v7767 = vmax.f32 %v5750, %v6928
  %v7768 = vmax.f32 %v5751, %v6930
  %v7769 = vmax.f32 %v5752, %v7321
  %v7770 = vmax.f32 %v5753, %v7323
  %v7771 = vmax.f32 %v5754, %v7670
  %v7772 = vmax.f32 %v5755, %v6539
  %v7773 = vmax.f32 %v5756, %v6541
  %v7774 = vmax.f32 %v5757, %v6932
  %v7775 = vmax.f32 %v5758, %v6934
  %v7776 = vmax.f32 %v5759, %v7325
  %v7777 = vmax.f32 %v5760, %v7327
  %v7778 = vmax.f32 %v5761, %v7673
  %v7779 = vmax.f32 %v5762, %v6545
  %v7780 = vmax.f32 %v5763, %v6547
  %v7781 = vmax.f32 %v5764, %v6938
  %v7782 = vmax.f32 %v5765, %v6940
  %v7783 = vmax.f32 %v5766, %v7331
  %v7784 = vmax.f32 %v5767, %v7333
  %v7785 = vmax.f32 %v5768, %v7678
  %v7786 = vmax.f32 %v5769, %v6549
  %v7787 = vmax.f32 %v5770, %v6551
  %v7788 = vmax.f32 %v5771, %v6942
  %v7789 = vmax.f32 %v5772, %v6944
  %v7790 = vmax.f32 %v5773, %v7335
  %v7791 = vmax.f32 %v5774, %v7337
  %v7792 = vmax.f32 %v5775, %v7681
  %v7793 = vmax.f32 %v5776, %v6555
  %v7794 = vmax.f32 %v5777, %v6557
  %v7795 = vmax.f32 %v5778, %v6948
  %v7796 = vmax.f32 %v5779, %v6950
  %v7797 = vmax.f32 %v5780, %v7341
  %v7798 = vmax.f32 %v5781, %v7343
  %v7799 = vmax.f32 %v5782, %v7686
  %v7800 = vmax.f32 %v5783, %v6559
  %v7801 = vmax.f32 %v5784, %v6561
  %v7802 = vmax.f32 %v5785, %v6952
  %v7803 = vmax.f32 %v5786, %v6954
  %v7804 = vmax.f32 %v5787, %v7345
  %v7805 = vmax.f32 %v5788, %v7347
  %v7806 = vmax.f32 %v5789, %v7689
  %v7807 = vmax.f32 %v5790, %v6565
  %v7808 = vmax.f32 %v5791, %v6567
  %v7809 = vmax.f32 %v5792, %v6958
  %v7810 = vmax.f32 %v5793, %v6960
  %v7811 = vmax.f32 %v5794, %v7351
  %v7812 = vmax.f32 %v5795, %v7353
  %v7813 = vmax.f32 %v5796, %v7694
  %v7814 = vmax.f32 %v5797, %v6569
  %v7815 = vmax.f32 %v5798, %v6571
  %v7816 = vmax.f32 %v5799, %v6962
  %v7817 = vmax.f32 %v5800, %v6964
  %v7818 = vmax.f32 %v5801, %v7355
  %v7819 = vmax.f32 %v5802, %v7357
  %v7820 = vmax.f32 %v5803, %v7697
  %v7821 = vmax.f32 %v5804, %v6575
  %v7822 = vmax.f32 %v5805, %v6577
  %v7823 = vmax.f32 %v5806, %v6968
  %v7824 = vmax.f32 %v5807, %v6970
  %v7825 = vmax.f32 %v5808, %v7361
  %v7826 = vmax.f32 %v5809, %v7363
  %v7827 = vmax.f32 %v5810, %v7702
  %v7828 = vmax.f32 %v5811, %v6579
  %v7829 = vmax.f32 %v5812, %v6581
  %v7830 = vmax.f32 %v5813, %v6972
  %v7831 = vmax.f32 %v5814, %v6974
  %v7832 = vmax.f32 %v5815, %v7365
  %v7833 = vmax.f32 %v5816, %v7367
  %v7834 = vmax.f32 %v5817, %v7705
  %v7835 = vmax.f32 %v5818, %v6585
  %v7836 = vmax.f32 %v5819, %v6587
  %v7837 = vmax.f32 %v5820, %v6978
  %v7838 = vmax.f32 %v5821, %v6980
  %v7839 = vmax.f32 %v5822, %v7371
  %v7840 = vmax.f32 %v5823, %v7373
  %v7841 = vmax.f32 %v5824, %v7710
  %v7842 = vmax.f32 %v5825, %v6589
  %v7843 = vmax.f32 %v5826, %v6591
  %v7844 = vmax.f32 %v5827, %v6982
  %v7845 = vmax.f32 %v5828, %v6984
  %v7846 = vmax.f32 %v5829, %v7375
  %v7847 = vmax.f32 %v5830, %v7377
  %v7848 = vmax.f32 %v5831, %v7713
  %v7849 = vmax.f32 %v5832, %v6595
  %v7850 = vmax.f32 %v5833, %v6597
  %v7851 = vmax.f32 %v5834, %v6988
  %v7852 = vmax.f32 %v5835, %v6990
  %v7853 = vmax.f32 %v5836, %v7381
  %v7854 = vmax.f32 %v5837, %v7383
  %v7855 = vmax.f32 %v5838, %v7718
  %v7856 = vld [vmem:[%s2] sm:$0x7f]
  %v7858 = vlaneseq
  %v7859 = vshrl.u32 %v7858, 7
  %v7860 = vsub.s32 0, %v7859
  %v7861 = vrot.slane %v7856, %v7860
  %v7862 = vlaneseq
  %v7863 = vshrl.u32 %v7862, 7
  %v7864 = vsub.s32 1, %v7863
  %v7865 = vrot.slane %v7856, %v7864
  %v7866 = vlaneseq
  %v7867 = vshrl.u32 %v7866, 7
  %v7868 = vsub.s32 2, %v7867
  %v7869 = vrot.slane %v7856, %v7868
  %v7870 = vlaneseq
  %v7871 = vshrl.u32 %v7870, 7
  %v7872 = vsub.s32 3, %v7871
  %v7873 = vrot.slane %v7856, %v7872
  %v7874 = vlaneseq
  %v7875 = vshrl.u32 %v7874, 7
  %v7876 = vsub.s32 4, %v7875
  %v7877 = vrot.slane %v7856, %v7876
  %v7878 = vlaneseq
  %v7879 = vshrl.u32 %v7878, 7
  %v7880 = vsub.s32 5, %v7879
  %v7881 = vrot.slane %v7856, %v7880
  %v7882 = vlaneseq
  %v7883 = vshrl.u32 %v7882, 7
  %v7884 = vsub.s32 6, %v7883
  %v7885 = vrot.slane %v7856, %v7884
  %v7893 = vadd.f32 %v7723, %v7861
  %v7894 = vadd.f32 %v7724, %v7865
  %v7895 = vadd.f32 %v7725, %v7869
  %v7896 = vadd.f32 %v7726, %v7873
  %v7897 = vadd.f32 %v7727, %v7877
  %v7898 = vadd.f32 %v7728, %v7881
  %v7899 = vadd.f32 %v7729, %v7885
  %v7900 = vadd.f32 %v7730, %v7861
  %v7901 = vadd.f32 %v7731, %v7865
  %v7902 = vadd.f32 %v7732, %v7869
  %v7903 = vadd.f32 %v7733, %v7873
  %v7904 = vadd.f32 %v7734, %v7877
  %v7905 = vadd.f32 %v7735, %v7881
  %v7906 = vadd.f32 %v7736, %v7885
  %v7907 = vadd.f32 %v7737, %v7861
  %v7908 = vadd.f32 %v7738, %v7865
  %v7909 = vadd.f32 %v7739, %v7869
  %v7910 = vadd.f32 %v7740, %v7873
  %v7911 = vadd.f32 %v7741, %v7877
  %v7912 = vadd.f32 %v7742, %v7881
  %v7913 = vadd.f32 %v7743, %v7885
  %v7914 = vadd.f32 %v7744, %v7861
  %v7915 = vadd.f32 %v7745, %v7865
  %v7916 = vadd.f32 %v7746, %v7869
  %v7917 = vadd.f32 %v7747, %v7873
  %v7918 = vadd.f32 %v7748, %v7877
  %v7919 = vadd.f32 %v7749, %v7881
  %v7920 = vadd.f32 %v7750, %v7885
  %v7921 = vadd.f32 %v7751, %v7861
  %v7922 = vadd.f32 %v7752, %v7865
  %v7923 = vadd.f32 %v7753, %v7869
  %v7924 = vadd.f32 %v7754, %v7873
  %v7925 = vadd.f32 %v7755, %v7877
  %v7926 = vadd.f32 %v7756, %v7881
  %v7927 = vadd.f32 %v7757, %v7885
  %v7928 = vadd.f32 %v7758, %v7861
  %v7929 = vadd.f32 %v7759, %v7865
  %v7930 = vadd.f32 %v7760, %v7869
  %v7931 = vadd.f32 %v7761, %v7873
  %v7932 = vadd.f32 %v7762, %v7877
  %v7933 = vadd.f32 %v7763, %v7881
  %v7934 = vadd.f32 %v7764, %v7885
  %v7935 = vadd.f32 %v7765, %v7861
  %v7936 = vadd.f32 %v7766, %v7865
  %v7937 = vadd.f32 %v7767, %v7869
  %v7938 = vadd.f32 %v7768, %v7873
  %v7939 = vadd.f32 %v7769, %v7877
  %v7940 = vadd.f32 %v7770, %v7881
  %v7941 = vadd.f32 %v7771, %v7885
  %v7942 = vadd.f32 %v7772, %v7861
  %v7943 = vadd.f32 %v7773, %v7865
  %v7944 = vadd.f32 %v7774, %v7869
  %v7945 = vadd.f32 %v7775, %v7873
  %v7946 = vadd.f32 %v7776, %v7877
  %v7947 = vadd.f32 %v7777, %v7881
  %v7948 = vadd.f32 %v7778, %v7885
  %v7949 = vadd.f32 %v7779, %v7861
  %v7950 = vadd.f32 %v7780, %v7865
  %v7951 = vadd.f32 %v7781, %v7869
  %v7952 = vadd.f32 %v7782, %v7873
  %v7953 = vadd.f32 %v7783, %v7877
  %v7954 = vadd.f32 %v7784, %v7881
  %v7955 = vadd.f32 %v7785, %v7885
  %v7956 = vadd.f32 %v7786, %v7861
  %v7957 = vadd.f32 %v7787, %v7865
  %v7958 = vadd.f32 %v7788, %v7869
  %v7959 = vadd.f32 %v7789, %v7873
  %v7960 = vadd.f32 %v7790, %v7877
  %v7961 = vadd.f32 %v7791, %v7881
  %v7962 = vadd.f32 %v7792, %v7885
  %v7963 = vadd.f32 %v7793, %v7861
  %v7964 = vadd.f32 %v7794, %v7865
  %v7965 = vadd.f32 %v7795, %v7869
  %v7966 = vadd.f32 %v7796, %v7873
  %v7967 = vadd.f32 %v7797, %v7877
  %v7968 = vadd.f32 %v7798, %v7881
  %v7969 = vadd.f32 %v7799, %v7885
  %v7970 = vadd.f32 %v7800, %v7861
  %v7971 = vadd.f32 %v7801, %v7865
  %v7972 = vadd.f32 %v7802, %v7869
  %v7973 = vadd.f32 %v7803, %v7873
  %v7974 = vadd.f32 %v7804, %v7877
  %v7975 = vadd.f32 %v7805, %v7881
  %v7976 = vadd.f32 %v7806, %v7885
  %v7977 = vadd.f32 %v7807, %v7861
  %v7978 = vadd.f32 %v7808, %v7865
  %v7979 = vadd.f32 %v7809, %v7869
  %v7980 = vadd.f32 %v7810, %v7873
  %v7981 = vadd.f32 %v7811, %v7877
  %v7982 = vadd.f32 %v7812, %v7881
  %v7983 = vadd.f32 %v7813, %v7885
  %v7984 = vadd.f32 %v7814, %v7861
  %v7985 = vadd.f32 %v7815, %v7865
  %v7986 = vadd.f32 %v7816, %v7869
  %v7987 = vadd.f32 %v7817, %v7873
  %v7988 = vadd.f32 %v7818, %v7877
  %v7989 = vadd.f32 %v7819, %v7881
  %v7990 = vadd.f32 %v7820, %v7885
  %v7991 = vadd.f32 %v7821, %v7861
  %v7992 = vadd.f32 %v7822, %v7865
  %v7993 = vadd.f32 %v7823, %v7869
  %v7994 = vadd.f32 %v7824, %v7873
  %v7995 = vadd.f32 %v7825, %v7877
  %v7996 = vadd.f32 %v7826, %v7881
  %v7997 = vadd.f32 %v7827, %v7885
  %v7998 = vadd.f32 %v7828, %v7861
  %v7999 = vadd.f32 %v7829, %v7865
  %v8000 = vadd.f32 %v7830, %v7869
  %v8001 = vadd.f32 %v7831, %v7873
  %v8002 = vadd.f32 %v7832, %v7877
  %v8003 = vadd.f32 %v7833, %v7881
  %v8004 = vadd.f32 %v7834, %v7885
  %v8005 = vadd.f32 %v7835, %v7861
  %v8006 = vadd.f32 %v7836, %v7865
  %v8007 = vadd.f32 %v7837, %v7869
  %v8008 = vadd.f32 %v7838, %v7873
  %v8009 = vadd.f32 %v7839, %v7877
  %v8010 = vadd.f32 %v7840, %v7881
  %v8011 = vadd.f32 %v7841, %v7885
  %v8012 = vadd.f32 %v7842, %v7861
  %v8013 = vadd.f32 %v7843, %v7865
  %v8014 = vadd.f32 %v7844, %v7869
  %v8015 = vadd.f32 %v7845, %v7873
  %v8016 = vadd.f32 %v7846, %v7877
  %v8017 = vadd.f32 %v7847, %v7881
  %v8018 = vadd.f32 %v7848, %v7885
  %v8019 = vadd.f32 %v7849, %v7861
  %v8020 = vadd.f32 %v7850, %v7865
  %v8021 = vadd.f32 %v7851, %v7869
  %v8022 = vadd.f32 %v7852, %v7873
  %v8023 = vadd.f32 %v7853, %v7877
  %v8024 = vadd.f32 %v7854, %v7881
  %v8025 = vadd.f32 %v7855, %v7885
  %v8026 = vmax.f32 %v7893, 0.0
  %v8027 = vmax.f32 %v7894, 0.0
  %v8028 = vmax.f32 %v7895, 0.0
  %v8029 = vmax.f32 %v7896, 0.0
  %v8030 = vmax.f32 %v7897, 0.0
  %v8031 = vmax.f32 %v7898, 0.0
  %v8032 = vmax.f32 %v7899, 0.0
  %v8033 = vmax.f32 %v7900, 0.0
  %v8034 = vmax.f32 %v7901, 0.0
  %v8035 = vmax.f32 %v7902, 0.0
  %v8036 = vmax.f32 %v7903, 0.0
  %v8037 = vmax.f32 %v7904, 0.0
  %v8038 = vmax.f32 %v7905, 0.0
  %v8039 = vmax.f32 %v7906, 0.0
  %v8040 = vmax.f32 %v7907, 0.0
  %v8041 = vmax.f32 %v7908, 0.0
  %v8042 = vmax.f32 %v7909, 0.0
  %v8043 = vmax.f32 %v7910, 0.0
  %v8044 = vmax.f32 %v7911, 0.0
  %v8045 = vmax.f32 %v7912, 0.0
  %v8046 = vmax.f32 %v7913, 0.0
  %v8047 = vmax.f32 %v7914, 0.0
  %v8048 = vmax.f32 %v7915, 0.0
  %v8049 = vmax.f32 %v7916, 0.0
  %v8050 = vmax.f32 %v7917, 0.0
  %v8051 = vmax.f32 %v7918, 0.0
  %v8052 = vmax.f32 %v7919, 0.0
  %v8053 = vmax.f32 %v7920, 0.0
  %v8054 = vmax.f32 %v7921, 0.0
  %v8055 = vmax.f32 %v7922, 0.0
  %v8056 = vmax.f32 %v7923, 0.0
  %v8057 = vmax.f32 %v7924, 0.0
  %v8058 = vmax.f32 %v7925, 0.0
  %v8059 = vmax.f32 %v7926, 0.0
  %v8060 = vmax.f32 %v7927, 0.0
  %v8061 = vmax.f32 %v7928, 0.0
  %v8062 = vmax.f32 %v7929, 0.0
  %v8063 = vmax.f32 %v7930, 0.0
  %v8064 = vmax.f32 %v7931, 0.0
  %v8065 = vmax.f32 %v7932, 0.0
  %v8066 = vmax.f32 %v7933, 0.0
  %v8067 = vmax.f32 %v7934, 0.0
  %v8068 = vmax.f32 %v7935, 0.0
  %v8069 = vmax.f32 %v7936, 0.0
  %v8070 = vmax.f32 %v7937, 0.0
  %v8071 = vmax.f32 %v7938, 0.0
  %v8072 = vmax.f32 %v7939, 0.0
  %v8073 = vmax.f32 %v7940, 0.0
  %v8074 = vmax.f32 %v7941, 0.0
  %v8075 = vmax.f32 %v7942, 0.0
  %v8076 = vmax.f32 %v7943, 0.0
  %v8077 = vmax.f32 %v7944, 0.0
  %v8078 = vmax.f32 %v7945, 0.0
  %v8079 = vmax.f32 %v7946, 0.0
  %v8080 = vmax.f32 %v7947, 0.0
  %v8081 = vmax.f32 %v7948, 0.0
  %v8082 = vmax.f32 %v7949, 0.0
  %v8083 = vmax.f32 %v7950, 0.0
  %v8084 = vmax.f32 %v7951, 0.0
  %v8085 = vmax.f32 %v7952, 0.0
  %v8086 = vmax.f32 %v7953, 0.0
  %v8087 = vmax.f32 %v7954, 0.0
  %v8088 = vmax.f32 %v7955, 0.0
  %v8089 = vmax.f32 %v7956, 0.0
  %v8090 = vmax.f32 %v7957, 0.0
  %v8091 = vmax.f32 %v7958, 0.0
  %v8092 = vmax.f32 %v7959, 0.0
  %v8093 = vmax.f32 %v7960, 0.0
  %v8094 = vmax.f32 %v7961, 0.0
  %v8095 = vmax.f32 %v7962, 0.0
  %v8096 = vmax.f32 %v7963, 0.0
  %v8097 = vmax.f32 %v7964, 0.0
  %v8098 = vmax.f32 %v7965, 0.0
  %v8099 = vmax.f32 %v7966, 0.0
  %v8100 = vmax.f32 %v7967, 0.0
  %v8101 = vmax.f32 %v7968, 0.0
  %v8102 = vmax.f32 %v7969, 0.0
  %v8103 = vmax.f32 %v7970, 0.0
  %v8104 = vmax.f32 %v7971, 0.0
  %v8105 = vmax.f32 %v7972, 0.0
  %v8106 = vmax.f32 %v7973, 0.0
  %v8107 = vmax.f32 %v7974, 0.0
  %v8108 = vmax.f32 %v7975, 0.0
  %v8109 = vmax.f32 %v7976, 0.0
  %v8110 = vmax.f32 %v7977, 0.0
  %v8111 = vmax.f32 %v7978, 0.0
  %v8112 = vmax.f32 %v7979, 0.0
  %v8113 = vmax.f32 %v7980, 0.0
  %v8114 = vmax.f32 %v7981, 0.0
  %v8115 = vmax.f32 %v7982, 0.0
  %v8116 = vmax.f32 %v7983, 0.0
  %v8117 = vmax.f32 %v7984, 0.0
  %v8118 = vmax.f32 %v7985, 0.0
  %v8119 = vmax.f32 %v7986, 0.0
  %v8120 = vmax.f32 %v7987, 0.0
  %v8121 = vmax.f32 %v7988, 0.0
  %v8122 = vmax.f32 %v7989, 0.0
  %v8123 = vmax.f32 %v7990, 0.0
  %v8124 = vmax.f32 %v7991, 0.0
  %v8125 = vmax.f32 %v7992, 0.0
  %v8126 = vmax.f32 %v7993, 0.0
  %v8127 = vmax.f32 %v7994, 0.0
  %v8128 = vmax.f32 %v7995, 0.0
  %v8129 = vmax.f32 %v7996, 0.0
  %v8130 = vmax.f32 %v7997, 0.0
  %v8131 = vmax.f32 %v7998, 0.0
  %v8132 = vmax.f32 %v7999, 0.0
  %v8133 = vmax.f32 %v8000, 0.0
  %v8134 = vmax.f32 %v8001, 0.0
  %v8135 = vmax.f32 %v8002, 0.0
  %v8136 = vmax.f32 %v8003, 0.0
  %v8137 = vmax.f32 %v8004, 0.0
  %v8138 = vmax.f32 %v8005, 0.0
  %v8139 = vmax.f32 %v8006, 0.0
  %v8140 = vmax.f32 %v8007, 0.0
  %v8141 = vmax.f32 %v8008, 0.0
  %v8142 = vmax.f32 %v8009, 0.0
  %v8143 = vmax.f32 %v8010, 0.0
  %v8144 = vmax.f32 %v8011, 0.0
  %v8145 = vmax.f32 %v8012, 0.0
  %v8146 = vmax.f32 %v8013, 0.0
  %v8147 = vmax.f32 %v8014, 0.0
  %v8148 = vmax.f32 %v8015, 0.0
  %v8149 = vmax.f32 %v8016, 0.0
  %v8150 = vmax.f32 %v8017, 0.0
  %v8151 = vmax.f32 %v8018, 0.0
  %v8152 = vmax.f32 %v8019, 0.0
  %v8153 = vmax.f32 %v8020, 0.0
  %v8154 = vmax.f32 %v8021, 0.0
  %v8155 = vmax.f32 %v8022, 0.0
  %v8156 = vmax.f32 %v8023, 0.0
  %v8157 = vmax.f32 %v8024, 0.0
  %v8158 = vmax.f32 %v8025, 0.0
  %v8159 = vpack.c.bf16 %v8033, %v8026
  %v8160 = vpack.c.bf16 %v8034, %v8027
  %v8161 = vpack.c.bf16 %v8035, %v8028
  %v8162 = vpack.c.bf16 %v8036, %v8029
  %v8163 = vpack.c.bf16 %v8037, %v8030
  %v8164 = vpack.c.bf16 %v8038, %v8031
  %v8165 = vpack.c.bf16 %v8039, %v8032
  %v8166 = vpack.c.bf16 %v8047, %v8040
  %v8167 = vpack.c.bf16 %v8048, %v8041
  %v8168 = vpack.c.bf16 %v8049, %v8042
  %v8169 = vpack.c.bf16 %v8050, %v8043
  %v8170 = vpack.c.bf16 %v8051, %v8044
  %v8171 = vpack.c.bf16 %v8052, %v8045
  %v8172 = vpack.c.bf16 %v8053, %v8046
  %v8173 = vpack.c.bf16 %v8061, %v8054
  %v8174 = vpack.c.bf16 %v8062, %v8055
  %v8175 = vpack.c.bf16 %v8063, %v8056
  %v8176 = vpack.c.bf16 %v8064, %v8057
  %v8177 = vpack.c.bf16 %v8065, %v8058
  %v8178 = vpack.c.bf16 %v8066, %v8059
  %v8179 = vpack.c.bf16 %v8067, %v8060
  %v8180 = vpack.c.bf16 %v8075, %v8068
  %v8181 = vpack.c.bf16 %v8076, %v8069
  %v8182 = vpack.c.bf16 %v8077, %v8070
  %v8183 = vpack.c.bf16 %v8078, %v8071
  %v8184 = vpack.c.bf16 %v8079, %v8072
  %v8185 = vpack.c.bf16 %v8080, %v8073
  %v8186 = vpack.c.bf16 %v8081, %v8074
  %v8187 = vpack.c.bf16 %v8089, %v8082
  %v8188 = vpack.c.bf16 %v8090, %v8083
  %v8189 = vpack.c.bf16 %v8091, %v8084
  %v8190 = vpack.c.bf16 %v8092, %v8085
  %v8191 = vpack.c.bf16 %v8093, %v8086
  %v8192 = vpack.c.bf16 %v8094, %v8087
  %v8193 = vpack.c.bf16 %v8095, %v8088
  %v8194 = vpack.c.bf16 %v8103, %v8096
  %v8195 = vpack.c.bf16 %v8104, %v8097
  %v8196 = vpack.c.bf16 %v8105, %v8098
  %v8197 = vpack.c.bf16 %v8106, %v8099
  %v8198 = vpack.c.bf16 %v8107, %v8100
  %v8199 = vpack.c.bf16 %v8108, %v8101
  %v8200 = vpack.c.bf16 %v8109, %v8102
  %v8201 = vpack.c.bf16 %v8117, %v8110
  %v8202 = vpack.c.bf16 %v8118, %v8111
  %v8203 = vpack.c.bf16 %v8119, %v8112
  %v8204 = vpack.c.bf16 %v8120, %v8113
  %v8205 = vpack.c.bf16 %v8121, %v8114
  %v8206 = vpack.c.bf16 %v8122, %v8115
  %v8207 = vpack.c.bf16 %v8123, %v8116
  %v8208 = vpack.c.bf16 %v8131, %v8124
  %v8209 = vpack.c.bf16 %v8132, %v8125
  %v8210 = vpack.c.bf16 %v8133, %v8126
  %v8211 = vpack.c.bf16 %v8134, %v8127
  %v8212 = vpack.c.bf16 %v8135, %v8128
  %v8213 = vpack.c.bf16 %v8136, %v8129
  %v8214 = vpack.c.bf16 %v8137, %v8130
  %v8215 = vpack.c.bf16 %v8145, %v8138
  %v8216 = vpack.c.bf16 %v8146, %v8139
  %v8217 = vpack.c.bf16 %v8147, %v8140
  %v8218 = vpack.c.bf16 %v8148, %v8141
  %v8219 = vpack.c.bf16 %v8149, %v8142
  %v8220 = vpack.c.bf16 %v8150, %v8143
  %v8221 = vpack.c.bf16 %v8151, %v8144
  %v8222 = vpack.c.bf16 %v8152, %v8152
  %v8223 = vpack.c.bf16 %v8153, %v8153
  %v8224 = vpack.c.bf16 %v8154, %v8154
  %v8225 = vpack.c.bf16 %v8155, %v8155
  %v8226 = vpack.c.bf16 %v8156, %v8156
  %v8227 = vpack.c.bf16 %v8157, %v8157
  %v8228 = vpack.c.bf16 %v8158, %v8158
  %v8229 = vld [vmem:[%s3] sm:$0xf]
  %v8230 = vld [vmem:[%s3 + $0x4] sm:$0xf]
  %v8231 = vld [vmem:[%s3 + $0x8] sm:$0xf]
  %v8232 = vld [vmem:[%s3 + $0xc] sm:$0xf]
  %v8233 = vld [vmem:[%s3 + $0x10] sm:$0xf]
  %v8234 = vld [vmem:[%s3 + $0x14] sm:$0xf]
  %v8235 = vld [vmem:[%s3 + $0x18] sm:$0xf]
  %v8236 = vld [vmem:[%s3 + $0x1c] sm:$0xf]
  %v8237 = vld [vmem:[%s3 + $0x20] sm:$0xf]
  %v8238 = vld [vmem:[%s3 + $0x24] sm:$0xf]
  %v8239 = vld [vmem:[%s3 + $0x28] sm:$0xf]
  %v8240 = vld [vmem:[%s3 + $0x2c] sm:$0xf]
  %v8241 = vld [vmem:[%s3 + $0x30] sm:$0xf]
  %v8242 = vld [vmem:[%s3 + $0x34] sm:$0xf]
  %v8243 = vld [vmem:[%s3 + $0x38] sm:$0xf]
  %v8244 = vld [vmem:[%s3 + $0x3c] sm:$0xf]
  %v8245 = vld [vmem:[%s3 + $0x40] sm:$0xf]
  %v8246 = vld [vmem:[%s3 + $0x44] sm:$0xf]
  %v8247 = vld [vmem:[%s3 + $0x48] sm:$0xf]
  %v8248 = vld [vmem:[%s3 + $0x4c] sm:$0xf]
  %v8249 = vld [vmem:[%s3 + $0x50] sm:$0xf]
  %v8250 = vld [vmem:[%s3 + $0x54] sm:$0xf]
  %v8251 = vld [vmem:[%s3 + $0x58] sm:$0xf]
  %v8252 = vld [vmem:[%s3 + $0x5c] sm:$0xf]
  %v8253 = vld [vmem:[%s3 + $0x60] sm:$0xf]
  %v8254 = vld [vmem:[%s3 + $0x64] sm:$0xf]
  %v8255 = vld [vmem:[%s3 + $0x68] sm:$0xf]
  %v8256 = vld [vmem:[%s3 + $0x6c] sm:$0xf]
  %v8257 = vld [vmem:[%s3 + $0x70] sm:$0xf]
  %v8258 = vld [vmem:[%s3 + $0x74] sm:$0xf]
  %v8259 = vld [vmem:[%s3 + $0x78] sm:$0xf]
  %v8260 = vld [vmem:[%s3 + $0x7c] sm:$0xf]
  %v8261 = vld [vmem:[%s3 + $0x80] sm:$0xf]
  %v8262 = vld [vmem:[%s3 + $0x84] sm:$0xf]
  %v8263 = vld [vmem:[%s3 + $0x88] sm:$0xf]
  %v8264 = vld [vmem:[%s3 + $0x8c] sm:$0xf]
  %v8265 = vld [vmem:[%s3 + $0x90] sm:$0xf]
  %v8266 = vld [vmem:[%s3 + $0x94] sm:$0xf]
  %v8267 = vld [vmem:[%s3 + $0x98] sm:$0xf]
  %v8268 = vld [vmem:[%s3 + $0x9c] sm:$0xf]
  %v8269 = vld [vmem:[%s3 + $0xa0] sm:$0xf]
  %v8270 = vld [vmem:[%s3 + $0xa4] sm:$0xf]
  %v8271 = vld [vmem:[%s3 + $0xa8] sm:$0xf]
  %v8272 = vld [vmem:[%s3 + $0xac] sm:$0xf]
  %v8273 = vld [vmem:[%s3 + $0xb0] sm:$0xf]
  %v8274 = vld [vmem:[%s3 + $0xb4] sm:$0xf]
  %v8275 = vld [vmem:[%s3 + $0xb8] sm:$0xf]
  %v8276 = vld [vmem:[%s3 + $0xbc] sm:$0xf]
  %v8277 = vld [vmem:[%s3 + $0xc0] sm:$0xf]
  %v8278 = vld [vmem:[%s3 + $0xc4] sm:$0xf]
  %v8279 = vld [vmem:[%s3 + $0xc8] sm:$0xf]
  %v8280 = vld [vmem:[%s3 + $0xcc] sm:$0xf]
  %v8281 = vld [vmem:[%s3 + $0xd0] sm:$0xf]
  %v8282 = vld [vmem:[%s3 + $0xd4] sm:$0xf]
  %v8283 = vld [vmem:[%s3 + $0xd8] sm:$0xf]
  %v8284 = vld [vmem:[%s3 + $0xdc] sm:$0xf]
  %v8285 = vld [vmem:[%s3 + $0xe0] sm:$0xf]
  %v8286 = vld [vmem:[%s3 + $0xe4] sm:$0xf]
  %v8287 = vld [vmem:[%s3 + $0xe8] sm:$0xf]
  %v8288 = vld [vmem:[%s3 + $0xec] sm:$0xf]
  %v8289 = vld [vmem:[%s3 + $0xf0] sm:$0xf]
  %v8290 = vld [vmem:[%s3 + $0xf4] sm:$0xf]
  %v8291 = vld [vmem:[%s3 + $0xf8] sm:$0xf]
  %v8292 = vld [vmem:[%s3 + $0xfc] sm:$0xf]
  %v8293 = vld [vmem:[%s3 + $0x100] sm:$0xf]
  %v8294 = vld [vmem:[%s3 + $0x104] sm:$0xf]
  %v8295 = vld [vmem:[%s3 + $0x108] sm:$0xf]
  %v8296 = vld [vmem:[%s3 + $0x10c] sm:$0xf]
  %v8297 = vld [vmem:[%s3 + $0x110] sm:$0xf]
  %v8298 = vld [vmem:[%s3 + $0x114] sm:$0xf]
  %v8299 = vld [vmem:[%s3 + $0x118] sm:$0xf]
  %v8300 = vld [vmem:[%s3 + $0x11c] sm:$0xf]
  %v8301 = vld [vmem:[%s3 + $0x120] sm:$0xf]
  %v8302 = vld [vmem:[%s3 + $0x124] sm:$0xf]
  %v8303 = vld [vmem:[%s3 + $0x128] sm:$0xf]
  %v8304 = vld [vmem:[%s3 + $0x12c] sm:$0xf]
  %v8305 = vld [vmem:[%s3 + $0x130] sm:$0xf]
  %v8306 = vld [vmem:[%s3 + $0x134] sm:$0xf]
  %v8307 = vld [vmem:[%s3 + $0x138] sm:$0xf]
  %v8308 = vld [vmem:[%s3 + $0x13c] sm:$0xf]
  %v8309 = vld [vmem:[%s3 + $0x140] sm:$0xf]
  %v8310 = vld [vmem:[%s3 + $0x144] sm:$0xf]
  %v8311 = vld [vmem:[%s3 + $0x148] sm:$0xf]
  %v8312 = vld [vmem:[%s3 + $0x14c] sm:$0xf]
  %v8313 = vld [vmem:[%s3 + $0x150] sm:$0xf]
  %v8314 = vld [vmem:[%s3 + $0x154] sm:$0xf]
  %v8315 = vld [vmem:[%s3 + $0x158] sm:$0xf]
  %v8316 = vld [vmem:[%s3 + $0x15c] sm:$0xf]
  %v8317 = vld [vmem:[%s3 + $0x160] sm:$0xf]
  %v8318 = vld [vmem:[%s3 + $0x164] sm:$0xf]
  %v8319 = vld [vmem:[%s3 + $0x168] sm:$0xf]
  %v8320 = vld [vmem:[%s3 + $0x16c] sm:$0xf]
  %v8321 = vld [vmem:[%s3 + $0x170] sm:$0xf]
  %v8322 = vld [vmem:[%s3 + $0x174] sm:$0xf]
  %v8323 = vld [vmem:[%s3 + $0x178] sm:$0xf]
  %v8324 = vld [vmem:[%s3 + $0x17c] sm:$0xf]
  %v8325 = vld [vmem:[%s3 + $0x180] sm:$0xf]
  %v8326 = vld [vmem:[%s3 + $0x184] sm:$0xf]
  %v8327 = vld [vmem:[%s3 + $0x188] sm:$0xf]
  %v8328 = vld [vmem:[%s3 + $0x18c] sm:$0xf]
  %v8329 = vld [vmem:[%s3 + $0x190] sm:$0xf]
  %v8330 = vld [vmem:[%s3 + $0x194] sm:$0xf]
  %v8331 = vld [vmem:[%s3 + $0x198] sm:$0xf]
  %v8332 = vld [vmem:[%s3 + $0x19c] sm:$0xf]
  %v8333 = vld [vmem:[%s3 + $0x1a0] sm:$0xf]
  %v8334 = vld [vmem:[%s3 + $0x1a4] sm:$0xf]
  %v8335 = vld [vmem:[%s3 + $0x1a8] sm:$0xf]
  %v8336 = vld [vmem:[%s3 + $0x1ac] sm:$0xf]
  %v8445 = vunpack.c.l.b16 %v8229
  %v8446 = vunpack.c.l.b16 %v8230
  %v8447 = vunpack.c.l.b16 %v8231
  %v8448 = vunpack.c.l.b16 %v8232
  %v8449 = vunpack.c.l.b16 %v8233
  %v8450 = vunpack.c.l.b16 %v8234
  %v8451 = vunpack.c.l.b16 %v8235
  %v8452 = vunpack.c.l.b16 %v8236
  %v8453 = vunpack.c.l.b16 %v8237
  %v8454 = vunpack.c.l.b16 %v8238
  %v8455 = vunpack.c.l.b16 %v8239
  %v8456 = vunpack.c.l.b16 %v8240
  %v8457 = vunpack.c.l.b16 %v8241
  %v8458 = vunpack.c.l.b16 %v8242
  %v8459 = vunpack.c.l.b16 %v8243
  %v8460 = vunpack.c.l.b16 %v8244
  %v8461 = vunpack.c.l.b16 %v8245
  %v8462 = vunpack.c.l.b16 %v8246
  %v8463 = vunpack.c.l.b16 %v8247
  %v8464 = vunpack.c.l.b16 %v8248
  %v8465 = vunpack.c.l.b16 %v8249
  %v8466 = vunpack.c.l.b16 %v8250
  %v8467 = vunpack.c.l.b16 %v8251
  %v8468 = vunpack.c.l.b16 %v8252
  %v8469 = vunpack.c.l.b16 %v8253
  %v8470 = vunpack.c.l.b16 %v8254
  %v8471 = vunpack.c.l.b16 %v8255
  %v8472 = vunpack.c.l.b16 %v8256
  %v8473 = vunpack.c.l.b16 %v8257
  %v8474 = vunpack.c.l.b16 %v8258
  %v8475 = vunpack.c.l.b16 %v8259
  %v8476 = vunpack.c.l.b16 %v8260
  %v8477 = vunpack.c.l.b16 %v8261
  %v8478 = vunpack.c.l.b16 %v8262
  %v8479 = vunpack.c.l.b16 %v8263
  %v8480 = vunpack.c.l.b16 %v8264
  %v8481 = vunpack.c.l.b16 %v8265
  %v8482 = vunpack.c.l.b16 %v8266
  %v8483 = vunpack.c.l.b16 %v8267
  %v8484 = vunpack.c.l.b16 %v8268
  %v8485 = vunpack.c.l.b16 %v8269
  %v8486 = vunpack.c.l.b16 %v8270
  %v8487 = vunpack.c.l.b16 %v8271
  %v8488 = vunpack.c.l.b16 %v8272
  %v8489 = vunpack.c.l.b16 %v8273
  %v8490 = vunpack.c.l.b16 %v8274
  %v8491 = vunpack.c.l.b16 %v8275
  %v8492 = vunpack.c.l.b16 %v8276
  %v8493 = vunpack.c.l.b16 %v8277
  %v8494 = vunpack.c.l.b16 %v8278
  %v8495 = vunpack.c.l.b16 %v8279
  %v8496 = vunpack.c.l.b16 %v8280
  %v8497 = vunpack.c.l.b16 %v8281
  %v8498 = vunpack.c.l.b16 %v8282
  %v8499 = vunpack.c.l.b16 %v8283
  %v8500 = vunpack.c.l.b16 %v8284
  %v8501 = vunpack.c.l.b16 %v8285
  %v8502 = vunpack.c.l.b16 %v8286
  %v8503 = vunpack.c.l.b16 %v8287
  %v8504 = vunpack.c.l.b16 %v8288
  %v8505 = vunpack.c.l.b16 %v8289
  %v8506 = vunpack.c.l.b16 %v8290
  %v8507 = vunpack.c.l.b16 %v8291
  %v8508 = vunpack.c.l.b16 %v8292
  %v8509 = vunpack.c.l.b16 %v8293
  %v8510 = vunpack.c.l.b16 %v8294
  %v8511 = vunpack.c.l.b16 %v8295
  %v8512 = vunpack.c.l.b16 %v8296
  %v8513 = vunpack.c.l.b16 %v8297
  %v8514 = vunpack.c.l.b16 %v8298
  %v8515 = vunpack.c.l.b16 %v8299
  %v8516 = vunpack.c.l.b16 %v8300
  %v8517 = vunpack.c.l.b16 %v8301
  %v8518 = vunpack.c.l.b16 %v8302
  %v8519 = vunpack.c.l.b16 %v8303
  %v8520 = vunpack.c.l.b16 %v8304
  %v8521 = vunpack.c.l.b16 %v8305
  %v8522 = vunpack.c.l.b16 %v8306
  %v8523 = vunpack.c.l.b16 %v8307
  %v8524 = vunpack.c.l.b16 %v8308
  %v8525 = vunpack.c.l.b16 %v8309
  %v8526 = vunpack.c.l.b16 %v8310
  %v8527 = vunpack.c.l.b16 %v8311
  %v8528 = vunpack.c.l.b16 %v8312
  %v8529 = vunpack.c.l.b16 %v8313
  %v8530 = vunpack.c.l.b16 %v8314
  %v8531 = vunpack.c.l.b16 %v8315
  %v8532 = vunpack.c.l.b16 %v8316
  %v8533 = vunpack.c.l.b16 %v8317
  %v8534 = vunpack.c.l.b16 %v8318
  %v8535 = vunpack.c.l.b16 %v8319
  %v8536 = vunpack.c.l.b16 %v8320
  %v8537 = vunpack.c.l.b16 %v8321
  %v8538 = vunpack.c.l.b16 %v8322
  %v8539 = vunpack.c.l.b16 %v8323
  %v8540 = vunpack.c.l.b16 %v8324
  %v8541 = vunpack.c.l.b16 %v8325
  %v8542 = vunpack.c.l.b16 %v8326
  %v8543 = vunpack.c.l.b16 %v8327
  %v8544 = vunpack.c.l.b16 %v8328
  %v8545 = vunpack.c.l.b16 %v8329
  %v8546 = vunpack.c.l.b16 %v8330
  %v8547 = vunpack.c.l.b16 %v8331
  %v8548 = vunpack.c.l.b16 %v8332
  %v8549 = vunpack.c.l.b16 %v8333
  %v8550 = vunpack.c.l.b16 %v8334
  %v8551 = vunpack.c.l.b16 %v8335
  %v8552 = vunpack.c.l.b16 %v8336
  %v8553 = vpack.c.b16 %v8446, %v8445
  %v8554 = vpack.c.b16 %v8448, %v8447
  %v8555 = vpack.c.b16 %v8450, %v8449
  %v8556 = vpack.c.b16 %v8452, %v8451
  %v8557 = vpack.c.b16 %v8454, %v8453
  %v8558 = vpack.c.b16 %v8456, %v8455
  %v8559 = vpack.c.b16 %v8458, %v8457
  %v8560 = vpack.c.b16 %v8460, %v8459
  %v8561 = vpack.c.b16 %v8462, %v8461
  %v8562 = vpack.c.b16 %v8464, %v8463
  %v8563 = vpack.c.b16 %v8466, %v8465
  %v8564 = vpack.c.b16 %v8468, %v8467
  %v8565 = vpack.c.b16 %v8470, %v8469
  %v8566 = vpack.c.b16 %v8472, %v8471
  %v8567 = vpack.c.b16 %v8474, %v8473
  %v8568 = vpack.c.b16 %v8476, %v8475
  %v8569 = vpack.c.b16 %v8478, %v8477
  %v8570 = vpack.c.b16 %v8480, %v8479
  %v8571 = vpack.c.b16 %v8482, %v8481
  %v8572 = vpack.c.b16 %v8484, %v8483
  %v8573 = vpack.c.b16 %v8486, %v8485
  %v8574 = vpack.c.b16 %v8488, %v8487
  %v8575 = vpack.c.b16 %v8490, %v8489
  %v8576 = vpack.c.b16 %v8492, %v8491
  %v8577 = vpack.c.b16 %v8494, %v8493
  %v8578 = vpack.c.b16 %v8496, %v8495
  %v8579 = vpack.c.b16 %v8498, %v8497
  %v8580 = vpack.c.b16 %v8500, %v8499
  %v8581 = vpack.c.b16 %v8502, %v8501
  %v8582 = vpack.c.b16 %v8504, %v8503
  %v8583 = vpack.c.b16 %v8506, %v8505
  %v8584 = vpack.c.b16 %v8508, %v8507
  %v8585 = vpack.c.b16 %v8510, %v8509
  %v8586 = vpack.c.b16 %v8512, %v8511
  %v8587 = vpack.c.b16 %v8514, %v8513
  %v8588 = vpack.c.b16 %v8516, %v8515
  %v8589 = vpack.c.b16 %v8518, %v8517
  %v8590 = vpack.c.b16 %v8520, %v8519
  %v8591 = vpack.c.b16 %v8522, %v8521
  %v8592 = vpack.c.b16 %v8524, %v8523
  %v8593 = vpack.c.b16 %v8526, %v8525
  %v8594 = vpack.c.b16 %v8528, %v8527
  %v8595 = vpack.c.b16 %v8530, %v8529
  %v8596 = vpack.c.b16 %v8532, %v8531
  %v8597 = vpack.c.b16 %v8534, %v8533
  %v8598 = vpack.c.b16 %v8536, %v8535
  %v8599 = vpack.c.b16 %v8538, %v8537
  %v8600 = vpack.c.b16 %v8540, %v8539
  %v8601 = vpack.c.b16 %v8542, %v8541
  %v8602 = vpack.c.b16 %v8544, %v8543
  %v8603 = vpack.c.b16 %v8546, %v8545
  %v8604 = vpack.c.b16 %v8548, %v8547
  %v8605 = vpack.c.b16 %v8550, %v8549
  %v8606 = vpack.c.b16 %v8552, %v8551
  %vm8661 = vcmask 785408
  %v8663 = vsel %vm8661, %v8165, 0
  %v8666 = vsel %vm8661, %v8172, 0
  %v8669 = vsel %vm8661, %v8179, 0
  %v8672 = vsel %vm8661, %v8186, 0
  %v8675 = vsel %vm8661, %v8193, 0
  %v8678 = vsel %vm8661, %v8200, 0
  %v8681 = vsel %vm8661, %v8207, 0
  %v8684 = vsel %vm8661, %v8214, 0
  %v8687 = vsel %vm8661, %v8221, 0
  %v8690 = vsel %vm8661, %v8228, 0
  %8692 = vmatprep.subr.bf16.mxu0 0
  %8693 = vmatpush1.bf16.msra.mxu0 %v8553
  %8694 = vmatprep.subr.bf16.mxu0 0
  %8695 = vmatpush1.bf16.msra.mxu0 %v8554
  %8696 = vmatprep.subr.bf16.mxu0 0
  %8697 = vmatpush1.bf16.msra.mxu0 %v8555
  %8698 = vmatprep.subr.bf16.mxu0 0
  %8699 = vmatpush1.bf16.msra.mxu0 %v8556
  %8700 = vmatprep.subr.bf16.mxu0 0
  %8701 = vmatpush1.bf16.msra.mxu0 %v8557
  %8702 = vmatprep.subr.bf16.mxu0 0
  %8703 = vmatpush1.bf16.msra.mxu0 %v8558
  %8704 = vmatprep.subr.bf16.mxu0 0
  %8705 = vmatpush1.bf16.msra.mxu0 %v8559
  %8706 = vmatprep.subr.bf16.mxu0 0
  %8707 = vmatpush1.bf16.msra.mxu0 %v8560
  %8708 = vmatprep.subr.bf16.mxu0 0
  %8709 = vmatpush1.bf16.msra.mxu0 %v8561
  %8710 = vmatprep.subr.bf16.mxu0 0
  %8711 = vmatpush1.bf16.msra.mxu0 %v8562
  %8712 = vmatprep.subr.bf16.mxu0 0
  %8713 = vmatpush1.bf16.msra.mxu0 %v8563
  %8714 = vmatprep.subr.bf16.mxu0 0
  %8715 = vmatpush1.bf16.msra.mxu0 %v8564
  %8716 = vmatprep.subr.bf16.mxu0 0
  %8717 = vmatpush1.bf16.msra.mxu0 %v8565
  %8718 = vmatprep.subr.bf16.mxu0 0
  %8719 = vmatpush1.bf16.msra.mxu0 %v8566
  %8720 = vmatprep.subr.bf16.mxu0 0
  %8721 = vmatpush1.bf16.msra.mxu0 %v8567
  %8722 = vmatprep.subr.bf16.mxu0 0
  %8723 = vmatpush1.bf16.msra.mxu0 %v8568
  %8724 = vmatprep.mubr.bf16.mxu0 %v8160
  %8725 = vmatmul.mubr.bf16.gmra.mrb[0].mxu0 %v8159
  %v8726 = vpop.f32.mrb[0].mxu0
  %v8727 = vadd.f32 0.0, %v8726
  %v8728 = vpop.f32.mrb[0].mxu0
  %v8729 = vpop.f32.mrb[0].mxu0
  %v8730 = vadd.f32 0.0, %v8729
  %v8731 = vpop.f32.mrb[0].mxu0
  %8732 = vmatprep.mubr.bf16.mxu0 %v8167
  %8733 = vmatmul.mubr.bf16.gmra.mrb[0].mxu0 %v8166
  %v8734 = vpop.f32.mrb[0].mxu0
  %v8735 = vadd.f32 0.0, %v8734
  %v8736 = vpop.f32.mrb[0].mxu0
  %v8737 = vpop.f32.mrb[0].mxu0
  %v8738 = vadd.f32 0.0, %v8737
  %v8739 = vpop.f32.mrb[0].mxu0
  %8740 = vmatprep.mubr.bf16.mxu0 %v8174
  %8741 = vmatmul.mubr.bf16.gmra.mrb[0].mxu0 %v8173
  %v8742 = vpop.f32.mrb[0].mxu0
  %v8743 = vadd.f32 0.0, %v8742
  %v8744 = vpop.f32.mrb[0].mxu0
  %v8745 = vpop.f32.mrb[0].mxu0
  %v8746 = vadd.f32 0.0, %v8745
  %v8747 = vpop.f32.mrb[0].mxu0
  %8748 = vmatprep.mubr.bf16.mxu0 %v8181
  %8749 = vmatmul.mubr.bf16.gmra.mrb[0].mxu0 %v8180
  %v8750 = vpop.f32.mrb[0].mxu0
  %v8751 = vadd.f32 0.0, %v8750
  %v8752 = vpop.f32.mrb[0].mxu0
  %v8753 = vpop.f32.mrb[0].mxu0
  %v8754 = vadd.f32 0.0, %v8753
  %v8755 = vpop.f32.mrb[0].mxu0
  %8756 = vmatprep.mubr.bf16.mxu0 %v8188
  %8757 = vmatmul.mubr.bf16.gmra.mrb[0].mxu0 %v8187
  %v8758 = vpop.f32.mrb[0].mxu0
  %v8759 = vadd.f32 0.0, %v8758
  %v8760 = vpop.f32.mrb[0].mxu0
  %v8761 = vpop.f32.mrb[0].mxu0
  %v8762 = vadd.f32 0.0, %v8761
  %v8763 = vpop.f32.mrb[0].mxu0
  %8764 = vmatprep.mubr.bf16.mxu0 %v8195
  %8765 = vmatmul.mubr.bf16.gmra.mrb[0].mxu0 %v8194
  %v8766 = vpop.f32.mrb[0].mxu0
  %v8767 = vadd.f32 0.0, %v8766
  %v8768 = vpop.f32.mrb[0].mxu0
  %v8769 = vpop.f32.mrb[0].mxu0
  %v8770 = vadd.f32 0.0, %v8769
  %v8771 = vpop.f32.mrb[0].mxu0
  %8772 = vmatprep.mubr.bf16.mxu0 %v8202
  %8773 = vmatmul.mubr.bf16.gmra.mrb[0].mxu0 %v8201
  %v8774 = vpop.f32.mrb[0].mxu0
  %v8775 = vadd.f32 0.0, %v8774
  %v8776 = vpop.f32.mrb[0].mxu0
  %v8777 = vpop.f32.mrb[0].mxu0
  %v8778 = vadd.f32 0.0, %v8777
  %v8779 = vpop.f32.mrb[0].mxu0
  %8780 = vmatprep.mubr.bf16.mxu0 %v8209
  %8781 = vmatmul.mubr.bf16.gmra.mrb[0].mxu0 %v8208
  %v8782 = vpop.f32.mrb[0].mxu0
  %v8783 = vadd.f32 0.0, %v8782
  %v8784 = vpop.f32.mrb[0].mxu0
  %v8785 = vpop.f32.mrb[0].mxu0
  %v8786 = vadd.f32 0.0, %v8785
  %v8787 = vpop.f32.mrb[0].mxu0
  %8788 = vmatprep.mubr.bf16.mxu0 %v8216
  %8789 = vmatmul.mubr.bf16.gmra.mrb[0].mxu0 %v8215
  %v8790 = vpop.f32.mrb[0].mxu0
  %v8791 = vadd.f32 0.0, %v8790
  %v8792 = vpop.f32.mrb[0].mxu0
  %v8793 = vpop.f32.mrb[0].mxu0
  %v8794 = vadd.f32 0.0, %v8793
  %v8795 = vpop.f32.mrb[0].mxu0
  %8796 = vmatprep.mubr.bf16.mxu0 %v8223
  %8797 = vmatmul.mubr.bf16.gmra.mrb[0].mxu0 %v8222
  %v8798 = vpop.f32.mrb[0].mxu0
  %v8799 = vadd.f32 0.0, %v8798
  %v8800 = vpop.f32.mrb[0].mxu0
  %v8801 = vpop.f32.mrb[0].mxu0
  %v8802 = vpop.f32.mrb[0].mxu0
  %8803 = vdwg.mxu0
  %8804 = vmatprep.subr.bf16.mxu0 0
  %8805 = vmatpush1.bf16.msra.mxu0 %v8569
  %8806 = vmatprep.subr.bf16.mxu0 0
  %8807 = vmatpush1.bf16.msra.mxu0 %v8570
  %8808 = vmatprep.subr.bf16.mxu0 0
  %8809 = vmatpush1.bf16.msra.mxu0 %v8571
  %8810 = vmatprep.subr.bf16.mxu0 0
  %8811 = vmatpush1.bf16.msra.mxu0 %v8572
  %8812 = vmatprep.subr.bf16.mxu0 0
  %8813 = vmatpush1.bf16.msra.mxu0 %v8573
  %8814 = vmatprep.subr.bf16.mxu0 0
  %8815 = vmatpush1.bf16.msra.mxu0 %v8574
  %8816 = vmatprep.subr.bf16.mxu0 0
  %8817 = vmatpush1.bf16.msra.mxu0 %v8575
  %8818 = vmatprep.subr.bf16.mxu0 0
  %8819 = vmatpush1.bf16.msra.mxu0 %v8576
  %8820 = vmatprep.subr.bf16.mxu0 0
  %8821 = vmatpush1.bf16.msra.mxu0 %v8577
  %8822 = vmatprep.subr.bf16.mxu0 0
  %8823 = vmatpush1.bf16.msra.mxu0 %v8578
  %8824 = vmatprep.subr.bf16.mxu0 0
  %8825 = vmatpush1.bf16.msra.mxu0 %v8579
  %8826 = vmatprep.subr.bf16.mxu0 0
  %8827 = vmatpush1.bf16.msra.mxu0 %v8580
  %8828 = vmatprep.subr.bf16.mxu0 0
  %8829 = vmatpush1.bf16.msra.mxu0 %v8581
  %8830 = vmatprep.subr.bf16.mxu0 0
  %8831 = vmatpush1.bf16.msra.mxu0 %v8582
  %8832 = vmatprep.subr.bf16.mxu0 0
  %8833 = vmatpush1.bf16.msra.mxu0 %v8583
  %8834 = vmatprep.subr.bf16.mxu0 0
  %8835 = vmatpush1.bf16.msra.mxu0 %v8584
  %8836 = vmatprep.mubr.bf16.mxu0 %v8162
  %8837 = vmatmul.mubr.bf16.gmra.mrb[0].mxu0 %v8161
  %v8838 = vpop.f32.mrb[0].mxu0
  %v8839 = vadd.f32 %v8727, %v8838
  %v8840 = vpop.f32.mrb[0].mxu0
  %v8841 = vpop.f32.mrb[0].mxu0
  %v8842 = vadd.f32 %v8730, %v8841
  %v8843 = vpop.f32.mrb[0].mxu0
  %8844 = vmatprep.mubr.bf16.mxu0 %v8169
  %8845 = vmatmul.mubr.bf16.gmra.mrb[0].mxu0 %v8168
  %v8846 = vpop.f32.mrb[0].mxu0
  %v8847 = vadd.f32 %v8735, %v8846
  %v8848 = vpop.f32.mrb[0].mxu0
  %v8849 = vpop.f32.mrb[0].mxu0
  %v8850 = vadd.f32 %v8738, %v8849
  %v8851 = vpop.f32.mrb[0].mxu0
  %8852 = vmatprep.mubr.bf16.mxu0 %v8176
  %8853 = vmatmul.mubr.bf16.gmra.mrb[0].mxu0 %v8175
  %v8854 = vpop.f32.mrb[0].mxu0
  %v8855 = vadd.f32 %v8743, %v8854
  %v8856 = vpop.f32.mrb[0].mxu0
  %v8857 = vpop.f32.mrb[0].mxu0
  %v8858 = vadd.f32 %v8746, %v8857
  %v8859 = vpop.f32.mrb[0].mxu0
  %8860 = vmatprep.mubr.bf16.mxu0 %v8183
  %8861 = vmatmul.mubr.bf16.gmra.mrb[0].mxu0 %v8182
  %v8862 = vpop.f32.mrb[0].mxu0
  %v8863 = vadd.f32 %v8751, %v8862
  %v8864 = vpop.f32.mrb[0].mxu0
  %v8865 = vpop.f32.mrb[0].mxu0
  %v8866 = vadd.f32 %v8754, %v8865
  %v8867 = vpop.f32.mrb[0].mxu0
  %8868 = vmatprep.mubr.bf16.mxu0 %v8190
  %8869 = vmatmul.mubr.bf16.gmra.mrb[0].mxu0 %v8189
  %v8870 = vpop.f32.mrb[0].mxu0
  %v8871 = vadd.f32 %v8759, %v8870
  %v8872 = vpop.f32.mrb[0].mxu0
  %v8873 = vpop.f32.mrb[0].mxu0
  %v8874 = vadd.f32 %v8762, %v8873
  %v8875 = vpop.f32.mrb[0].mxu0
  %8876 = vmatprep.mubr.bf16.mxu0 %v8197
  %8877 = vmatmul.mubr.bf16.gmra.mrb[0].mxu0 %v8196
  %v8878 = vpop.f32.mrb[0].mxu0
  %v8879 = vadd.f32 %v8767, %v8878
  %v8880 = vpop.f32.mrb[0].mxu0
  %v8881 = vpop.f32.mrb[0].mxu0
  %v8882 = vadd.f32 %v8770, %v8881
  %v8883 = vpop.f32.mrb[0].mxu0
  %8884 = vmatprep.mubr.bf16.mxu0 %v8204
  %8885 = vmatmul.mubr.bf16.gmra.mrb[0].mxu0 %v8203
  %v8886 = vpop.f32.mrb[0].mxu0
  %v8887 = vadd.f32 %v8775, %v8886
  %v8888 = vpop.f32.mrb[0].mxu0
  %v8889 = vpop.f32.mrb[0].mxu0
  %v8890 = vadd.f32 %v8778, %v8889
  %v8891 = vpop.f32.mrb[0].mxu0
  %8892 = vmatprep.mubr.bf16.mxu0 %v8211
  %8893 = vmatmul.mubr.bf16.gmra.mrb[0].mxu0 %v8210
  %v8894 = vpop.f32.mrb[0].mxu0
  %v8895 = vadd.f32 %v8783, %v8894
  %v8896 = vpop.f32.mrb[0].mxu0
  %v8897 = vpop.f32.mrb[0].mxu0
  %v8898 = vadd.f32 %v8786, %v8897
  %v8899 = vpop.f32.mrb[0].mxu0
  %8900 = vmatprep.mubr.bf16.mxu0 %v8218
  %8901 = vmatmul.mubr.bf16.gmra.mrb[0].mxu0 %v8217
  %v8902 = vpop.f32.mrb[0].mxu0
  %v8903 = vadd.f32 %v8791, %v8902
  %v8904 = vpop.f32.mrb[0].mxu0
  %v8905 = vpop.f32.mrb[0].mxu0
  %v8906 = vadd.f32 %v8794, %v8905
  %v8907 = vpop.f32.mrb[0].mxu0
  %8908 = vmatprep.mubr.bf16.mxu0 %v8225
  %8909 = vmatmul.mubr.bf16.gmra.mrb[0].mxu0 %v8224
  %v8910 = vpop.f32.mrb[0].mxu0
  %v8911 = vadd.f32 %v8799, %v8910
  %v8912 = vpop.f32.mrb[0].mxu0
  %v8913 = vpop.f32.mrb[0].mxu0
  %v8914 = vpop.f32.mrb[0].mxu0
  %8915 = vdwg.mxu0
  %8916 = vmatprep.subr.bf16.mxu0 0
  %8917 = vmatpush1.bf16.msra.mxu0 %v8585
  %8918 = vmatprep.subr.bf16.mxu0 0
  %8919 = vmatpush1.bf16.msra.mxu0 %v8586
  %8920 = vmatprep.subr.bf16.mxu0 0
  %8921 = vmatpush1.bf16.msra.mxu0 %v8587
  %8922 = vmatprep.subr.bf16.mxu0 0
  %8923 = vmatpush1.bf16.msra.mxu0 %v8588
  %8924 = vmatprep.subr.bf16.mxu0 0
  %8925 = vmatpush1.bf16.msra.mxu0 %v8589
  %8926 = vmatprep.subr.bf16.mxu0 0
  %8927 = vmatpush1.bf16.msra.mxu0 %v8590
  %8928 = vmatprep.subr.bf16.mxu0 0
  %8929 = vmatpush1.bf16.msra.mxu0 %v8591
  %8930 = vmatprep.subr.bf16.mxu0 0
  %8931 = vmatpush1.bf16.msra.mxu0 %v8592
  %8932 = vmatprep.subr.bf16.mxu0 0
  %8933 = vmatpush1.bf16.msra.mxu0 %v8593
  %8934 = vmatprep.subr.bf16.mxu0 0
  %8935 = vmatpush1.bf16.msra.mxu0 %v8594
  %8936 = vmatprep.subr.bf16.mxu0 0
  %8937 = vmatpush1.bf16.msra.mxu0 %v8595
  %8938 = vmatprep.subr.bf16.mxu0 0
  %8939 = vmatpush1.bf16.msra.mxu0 %v8596
  %8940 = vmatprep.subr.bf16.mxu0 0
  %8941 = vmatpush1.bf16.msra.mxu0 %v8597
  %8942 = vmatprep.subr.bf16.mxu0 0
  %8943 = vmatpush1.bf16.msra.mxu0 %v8598
  %8944 = vmatprep.subr.bf16.mxu0 0
  %8945 = vmatpush1.bf16.msra.mxu0 %v8599
  %8946 = vmatprep.subr.bf16.mxu0 0
  %8947 = vmatpush1.bf16.msra.mxu0 %v8600
  %8948 = vmatprep.mubr.bf16.mxu0 %v8164
  %8949 = vmatmul.mubr.bf16.gmra.mrb[0].mxu0 %v8163
  %v8950 = vpop.f32.mrb[0].mxu0
  %v8951 = vadd.f32 %v8839, %v8950
  %v8952 = vpop.f32.mrb[0].mxu0
  %v8953 = vpop.f32.mrb[0].mxu0
  %v8954 = vadd.f32 %v8842, %v8953
  %v8955 = vpop.f32.mrb[0].mxu0
  %8956 = vmatprep.mubr.bf16.mxu0 %v8171
  %8957 = vmatmul.mubr.bf16.gmra.mrb[0].mxu0 %v8170
  %v8958 = vpop.f32.mrb[0].mxu0
  %v8959 = vadd.f32 %v8847, %v8958
  %v8960 = vpop.f32.mrb[0].mxu0
  %v8961 = vpop.f32.mrb[0].mxu0
  %v8962 = vadd.f32 %v8850, %v8961
  %v8963 = vpop.f32.mrb[0].mxu0
  %8964 = vmatprep.mubr.bf16.mxu0 %v8178
  %8965 = vmatmul.mubr.bf16.gmra.mrb[0].mxu0 %v8177
  %v8966 = vpop.f32.mrb[0].mxu0
  %v8967 = vadd.f32 %v8855, %v8966
  %v8968 = vpop.f32.mrb[0].mxu0
  %v8969 = vpop.f32.mrb[0].mxu0
  %v8970 = vadd.f32 %v8858, %v8969
  %v8971 = vpop.f32.mrb[0].mxu0
  %8972 = vmatprep.mubr.bf16.mxu0 %v8185
  %8973 = vmatmul.mubr.bf16.gmra.mrb[0].mxu0 %v8184
  %v8974 = vpop.f32.mrb[0].mxu0
  %v8975 = vadd.f32 %v8863, %v8974
  %v8976 = vpop.f32.mrb[0].mxu0
  %v8977 = vpop.f32.mrb[0].mxu0
  %v8978 = vadd.f32 %v8866, %v8977
  %v8979 = vpop.f32.mrb[0].mxu0
  %8980 = vmatprep.mubr.bf16.mxu0 %v8192
  %8981 = vmatmul.mubr.bf16.gmra.mrb[0].mxu0 %v8191
  %v8982 = vpop.f32.mrb[0].mxu0
  %v8983 = vadd.f32 %v8871, %v8982
  %v8984 = vpop.f32.mrb[0].mxu0
  %v8985 = vpop.f32.mrb[0].mxu0
  %v8986 = vadd.f32 %v8874, %v8985
  %v8987 = vpop.f32.mrb[0].mxu0
  %8988 = vmatprep.mubr.bf16.mxu0 %v8199
  %8989 = vmatmul.mubr.bf16.gmra.mrb[0].mxu0 %v8198
  %v8990 = vpop.f32.mrb[0].mxu0
  %v8991 = vadd.f32 %v8879, %v8990
  %v8992 = vpop.f32.mrb[0].mxu0
  %v8993 = vpop.f32.mrb[0].mxu0
  %v8994 = vadd.f32 %v8882, %v8993
  %v8995 = vpop.f32.mrb[0].mxu0
  %8996 = vmatprep.mubr.bf16.mxu0 %v8206
  %8997 = vmatmul.mubr.bf16.gmra.mrb[0].mxu0 %v8205
  %v8998 = vpop.f32.mrb[0].mxu0
  %v8999 = vadd.f32 %v8887, %v8998
  %v9000 = vpop.f32.mrb[0].mxu0
  %v9001 = vpop.f32.mrb[0].mxu0
  %v9002 = vadd.f32 %v8890, %v9001
  %v9003 = vpop.f32.mrb[0].mxu0
  %9004 = vmatprep.mubr.bf16.mxu0 %v8213
  %9005 = vmatmul.mubr.bf16.gmra.mrb[0].mxu0 %v8212
  %v9006 = vpop.f32.mrb[0].mxu0
  %v9007 = vadd.f32 %v8895, %v9006
  %v9008 = vpop.f32.mrb[0].mxu0
  %v9009 = vpop.f32.mrb[0].mxu0
  %v9010 = vadd.f32 %v8898, %v9009
  %v9011 = vpop.f32.mrb[0].mxu0
  %9012 = vmatprep.mubr.bf16.mxu0 %v8220
  %9013 = vmatmul.mubr.bf16.gmra.mrb[0].mxu0 %v8219
  %v9014 = vpop.f32.mrb[0].mxu0
  %v9015 = vadd.f32 %v8903, %v9014
  %v9016 = vpop.f32.mrb[0].mxu0
  %v9017 = vpop.f32.mrb[0].mxu0
  %v9018 = vadd.f32 %v8906, %v9017
  %v9019 = vpop.f32.mrb[0].mxu0
  %9020 = vmatprep.mubr.bf16.mxu0 %v8227
  %9021 = vmatmul.mubr.bf16.gmra.mrb[0].mxu0 %v8226
  %v9022 = vpop.f32.mrb[0].mxu0
  %v9023 = vadd.f32 %v8911, %v9022
  %v9024 = vpop.f32.mrb[0].mxu0
  %v9025 = vpop.f32.mrb[0].mxu0
  %v9026 = vpop.f32.mrb[0].mxu0
  %9027 = vdwg.mxu0
  %9028 = vmatprep.subr.bf16.mxu0 0
  %9029 = vmatpush1.bf16.msra.mxu0 %v8601
  %9030 = vmatprep.subr.bf16.mxu0 0
  %9031 = vmatpush1.bf16.msra.mxu0 %v8602
  %9032 = vmatprep.subr.bf16.mxu0 0
  %9033 = vmatpush1.bf16.msra.mxu0 %v8603
  %9034 = vmatprep.subr.bf16.mxu0 0
  %9035 = vmatpush1.bf16.msra.mxu0 %v8604
  %9036 = vmatprep.subr.bf16.mxu0 0
  %9037 = vmatpush1.bf16.msra.mxu0 %v8605
  %9038 = vmatprep.subr.bf16.mxu0 0
  %9039 = vmatpush1.bf16.msra.mxu0 %v8606
  %9040 = vmatprep.subr.bf16.mxu0 0
  %9041 = vmatpush1.bf16.msra.mxu0 0
  %9042 = vmatprep.subr.bf16.mxu0 0
  %9043 = vmatpush1.bf16.msra.mxu0 0
  %9044 = vmatprep.subr.bf16.mxu0 0
  %9045 = vmatpush1.bf16.msra.mxu0 0
  %9046 = vmatprep.subr.bf16.mxu0 0
  %9047 = vmatpush1.bf16.msra.mxu0 0
  %9048 = vmatprep.subr.bf16.mxu0 0
  %9049 = vmatpush1.bf16.msra.mxu0 0
  %9050 = vmatprep.subr.bf16.mxu0 0
  %9051 = vmatpush1.bf16.msra.mxu0 0
  %9052 = vmatprep.subr.bf16.mxu0 0
  %9053 = vmatpush1.bf16.msra.mxu0 0
  %9054 = vmatprep.subr.bf16.mxu0 0
  %9055 = vmatpush1.bf16.msra.mxu0 0
  %9056 = vmatprep.subr.bf16.mxu0 0
  %9057 = vmatpush1.bf16.msra.mxu0 0
  %9058 = vmatprep.subr.bf16.mxu0 0
  %9059 = vmatpush1.bf16.msra.mxu0 0
  %9060 = vmatprep.mubr.bf16.mxu0 0
  %9061 = vmatmul.mubr.bf16.gmra.mrb[0].mxu0 %v8663
  %v9062 = vpop.f32.mrb[0].mxu0
  %v9063 = vadd.f32 %v8951, %v9062
  %v9064 = vpop.f32.mrb[0].mxu0
  %v9065 = vpop.f32.mrb[0].mxu0
  %v9066 = vadd.f32 %v8954, %v9065
  %v9067 = vpop.f32.mrb[0].mxu0
  %9068 = vmatprep.mubr.bf16.mxu0 0
  %9069 = vmatmul.mubr.bf16.gmra.mrb[0].mxu0 %v8666
  %v9070 = vpop.f32.mrb[0].mxu0
  %v9071 = vadd.f32 %v8959, %v9070
  %v9072 = vpop.f32.mrb[0].mxu0
  %v9073 = vpop.f32.mrb[0].mxu0
  %v9074 = vadd.f32 %v8962, %v9073
  %v9075 = vpop.f32.mrb[0].mxu0
  %9076 = vmatprep.mubr.bf16.mxu0 0
  %9077 = vmatmul.mubr.bf16.gmra.mrb[0].mxu0 %v8669
  %v9078 = vpop.f32.mrb[0].mxu0
  %v9079 = vadd.f32 %v8967, %v9078
  %v9080 = vpop.f32.mrb[0].mxu0
  %v9081 = vpop.f32.mrb[0].mxu0
  %v9082 = vadd.f32 %v8970, %v9081
  %v9083 = vpop.f32.mrb[0].mxu0
  %9084 = vmatprep.mubr.bf16.mxu0 0
  %9085 = vmatmul.mubr.bf16.gmra.mrb[0].mxu0 %v8672
  %v9086 = vpop.f32.mrb[0].mxu0
  %v9087 = vadd.f32 %v8975, %v9086
  %v9088 = vpop.f32.mrb[0].mxu0
  %v9089 = vpop.f32.mrb[0].mxu0
  %v9090 = vadd.f32 %v8978, %v9089
  %v9091 = vpop.f32.mrb[0].mxu0
  %9092 = vmatprep.mubr.bf16.mxu0 0
  %9093 = vmatmul.mubr.bf16.gmra.mrb[0].mxu0 %v8675
  %v9094 = vpop.f32.mrb[0].mxu0
  %v9095 = vadd.f32 %v8983, %v9094
  %v9096 = vpop.f32.mrb[0].mxu0
  %v9097 = vpop.f32.mrb[0].mxu0
  %v9098 = vadd.f32 %v8986, %v9097
  %v9099 = vpop.f32.mrb[0].mxu0
  %9100 = vmatprep.mubr.bf16.mxu0 0
  %9101 = vmatmul.mubr.bf16.gmra.mrb[0].mxu0 %v8678
  %v9102 = vpop.f32.mrb[0].mxu0
  %v9103 = vadd.f32 %v8991, %v9102
  %v9104 = vpop.f32.mrb[0].mxu0
  %v9105 = vpop.f32.mrb[0].mxu0
  %v9106 = vadd.f32 %v8994, %v9105
  %v9107 = vpop.f32.mrb[0].mxu0
  %9108 = vmatprep.mubr.bf16.mxu0 0
  %9109 = vmatmul.mubr.bf16.gmra.mrb[0].mxu0 %v8681
  %v9110 = vpop.f32.mrb[0].mxu0
  %v9111 = vadd.f32 %v8999, %v9110
  %v9112 = vpop.f32.mrb[0].mxu0
  %v9113 = vpop.f32.mrb[0].mxu0
  %v9114 = vadd.f32 %v9002, %v9113
  %v9115 = vpop.f32.mrb[0].mxu0
  %9116 = vmatprep.mubr.bf16.mxu0 0
  %9117 = vmatmul.mubr.bf16.gmra.mrb[0].mxu0 %v8684
  %v9118 = vpop.f32.mrb[0].mxu0
  %v9119 = vadd.f32 %v9007, %v9118
  %v9120 = vpop.f32.mrb[0].mxu0
  %v9121 = vpop.f32.mrb[0].mxu0
  %v9122 = vadd.f32 %v9010, %v9121
  %v9123 = vpop.f32.mrb[0].mxu0
  %9124 = vmatprep.mubr.bf16.mxu0 0
  %9125 = vmatmul.mubr.bf16.gmra.mrb[0].mxu0 %v8687
  %v9126 = vpop.f32.mrb[0].mxu0
  %v9127 = vadd.f32 %v9015, %v9126
  %v9128 = vpop.f32.mrb[0].mxu0
  %v9129 = vpop.f32.mrb[0].mxu0
  %v9130 = vadd.f32 %v9018, %v9129
  %v9131 = vpop.f32.mrb[0].mxu0
  %9132 = vmatprep.mubr.bf16.mxu0 0
  %9133 = vmatmul.mubr.bf16.gmra.mrb[0].mxu0 %v8690
  %v9134 = vpop.f32.mrb[0].mxu0
  %v9135 = vadd.f32 %v9023, %v9134
  %v9136 = vpop.f32.mrb[0].mxu0
  %v9137 = vpop.f32.mrb[0].mxu0
  %v9138 = vpop.f32.mrb[0].mxu0
  %9139 = vdwg.mxu0
  %s9140 = scalar_lea.vmem %s3, 432
  %v9141 = vld [vmem:[%s9140] sm:$0xf]
  %v9142 = vld [vmem:[%s9140 + $0x4] sm:$0xf]
  %v9143 = vld [vmem:[%s9140 + $0x8] sm:$0xf]
  %v9144 = vld [vmem:[%s9140 + $0xc] sm:$0xf]
  %v9145 = vld [vmem:[%s9140 + $0x10] sm:$0xf]
  %v9146 = vld [vmem:[%s9140 + $0x14] sm:$0xf]
  %v9147 = vld [vmem:[%s9140 + $0x18] sm:$0xf]
  %v9148 = vld [vmem:[%s9140 + $0x1c] sm:$0xf]
  %v9149 = vld [vmem:[%s9140 + $0x20] sm:$0xf]
  %v9150 = vld [vmem:[%s9140 + $0x24] sm:$0xf]
  %v9151 = vld [vmem:[%s9140 + $0x28] sm:$0xf]
  %v9152 = vld [vmem:[%s9140 + $0x2c] sm:$0xf]
  %v9153 = vld [vmem:[%s9140 + $0x30] sm:$0xf]
  %v9154 = vld [vmem:[%s9140 + $0x34] sm:$0xf]
  %v9155 = vld [vmem:[%s9140 + $0x38] sm:$0xf]
  %v9156 = vld [vmem:[%s9140 + $0x3c] sm:$0xf]
  %v9157 = vld [vmem:[%s9140 + $0x40] sm:$0xf]
  %v9158 = vld [vmem:[%s9140 + $0x44] sm:$0xf]
  %v9159 = vld [vmem:[%s9140 + $0x48] sm:$0xf]
  %v9160 = vld [vmem:[%s9140 + $0x4c] sm:$0xf]
  %v9161 = vld [vmem:[%s9140 + $0x50] sm:$0xf]
  %v9162 = vld [vmem:[%s9140 + $0x54] sm:$0xf]
  %v9163 = vld [vmem:[%s9140 + $0x58] sm:$0xf]
  %v9164 = vld [vmem:[%s9140 + $0x5c] sm:$0xf]
  %v9165 = vld [vmem:[%s9140 + $0x60] sm:$0xf]
  %v9166 = vld [vmem:[%s9140 + $0x64] sm:$0xf]
  %v9167 = vld [vmem:[%s9140 + $0x68] sm:$0xf]
  %v9168 = vld [vmem:[%s9140 + $0x6c] sm:$0xf]
  %v9169 = vld [vmem:[%s9140 + $0x70] sm:$0xf]
  %v9170 = vld [vmem:[%s9140 + $0x74] sm:$0xf]
  %v9171 = vld [vmem:[%s9140 + $0x78] sm:$0xf]
  %v9172 = vld [vmem:[%s9140 + $0x7c] sm:$0xf]
  %v9173 = vld [vmem:[%s9140 + $0x80] sm:$0xf]
  %v9174 = vld [vmem:[%s9140 + $0x84] sm:$0xf]
  %v9175 = vld [vmem:[%s9140 + $0x88] sm:$0xf]
  %v9176 = vld [vmem:[%s9140 + $0x8c] sm:$0xf]
  %v9177 = vld [vmem:[%s9140 + $0x90] sm:$0xf]
  %v9178 = vld [vmem:[%s9140 + $0x94] sm:$0xf]
  %v9179 = vld [vmem:[%s9140 + $0x98] sm:$0xf]
  %v9180 = vld [vmem:[%s9140 + $0x9c] sm:$0xf]
  %v9181 = vld [vmem:[%s9140 + $0xa0] sm:$0xf]
  %v9182 = vld [vmem:[%s9140 + $0xa4] sm:$0xf]
  %v9183 = vld [vmem:[%s9140 + $0xa8] sm:$0xf]
  %v9184 = vld [vmem:[%s9140 + $0xac] sm:$0xf]
  %v9185 = vld [vmem:[%s9140 + $0xb0] sm:$0xf]
  %v9186 = vld [vmem:[%s9140 + $0xb4] sm:$0xf]
  %v9187 = vld [vmem:[%s9140 + $0xb8] sm:$0xf]
  %v9188 = vld [vmem:[%s9140 + $0xbc] sm:$0xf]
  %v9189 = vld [vmem:[%s9140 + $0xc0] sm:$0xf]
  %v9190 = vld [vmem:[%s9140 + $0xc4] sm:$0xf]
  %v9191 = vld [vmem:[%s9140 + $0xc8] sm:$0xf]
  %v9192 = vld [vmem:[%s9140 + $0xcc] sm:$0xf]
  %v9193 = vld [vmem:[%s9140 + $0xd0] sm:$0xf]
  %v9194 = vld [vmem:[%s9140 + $0xd4] sm:$0xf]
  %v9195 = vld [vmem:[%s9140 + $0xd8] sm:$0xf]
  %v9196 = vld [vmem:[%s9140 + $0xdc] sm:$0xf]
  %v9197 = vld [vmem:[%s9140 + $0xe0] sm:$0xf]
  %v9198 = vld [vmem:[%s9140 + $0xe4] sm:$0xf]
  %v9199 = vld [vmem:[%s9140 + $0xe8] sm:$0xf]
  %v9200 = vld [vmem:[%s9140 + $0xec] sm:$0xf]
  %v9201 = vld [vmem:[%s9140 + $0xf0] sm:$0xf]
  %v9202 = vld [vmem:[%s9140 + $0xf4] sm:$0xf]
  %v9203 = vld [vmem:[%s9140 + $0xf8] sm:$0xf]
  %v9204 = vld [vmem:[%s9140 + $0xfc] sm:$0xf]
  %v9205 = vld [vmem:[%s9140 + $0x100] sm:$0xf]
  %v9206 = vld [vmem:[%s9140 + $0x104] sm:$0xf]
  %v9207 = vld [vmem:[%s9140 + $0x108] sm:$0xf]
  %v9208 = vld [vmem:[%s9140 + $0x10c] sm:$0xf]
  %v9209 = vld [vmem:[%s9140 + $0x110] sm:$0xf]
  %v9210 = vld [vmem:[%s9140 + $0x114] sm:$0xf]
  %v9211 = vld [vmem:[%s9140 + $0x118] sm:$0xf]
  %v9212 = vld [vmem:[%s9140 + $0x11c] sm:$0xf]
  %v9213 = vld [vmem:[%s9140 + $0x120] sm:$0xf]
  %v9214 = vld [vmem:[%s9140 + $0x124] sm:$0xf]
  %v9215 = vld [vmem:[%s9140 + $0x128] sm:$0xf]
  %v9216 = vld [vmem:[%s9140 + $0x12c] sm:$0xf]
  %v9217 = vld [vmem:[%s9140 + $0x130] sm:$0xf]
  %v9218 = vld [vmem:[%s9140 + $0x134] sm:$0xf]
  %v9219 = vld [vmem:[%s9140 + $0x138] sm:$0xf]
  %v9220 = vld [vmem:[%s9140 + $0x13c] sm:$0xf]
  %v9221 = vld [vmem:[%s9140 + $0x140] sm:$0xf]
  %v9222 = vld [vmem:[%s9140 + $0x144] sm:$0xf]
  %v9223 = vld [vmem:[%s9140 + $0x148] sm:$0xf]
  %v9224 = vld [vmem:[%s9140 + $0x14c] sm:$0xf]
  %v9225 = vld [vmem:[%s9140 + $0x150] sm:$0xf]
  %v9226 = vld [vmem:[%s9140 + $0x154] sm:$0xf]
  %v9227 = vld [vmem:[%s9140 + $0x158] sm:$0xf]
  %v9228 = vld [vmem:[%s9140 + $0x15c] sm:$0xf]
  %v9229 = vld [vmem:[%s9140 + $0x160] sm:$0xf]
  %v9230 = vld [vmem:[%s9140 + $0x164] sm:$0xf]
  %v9231 = vld [vmem:[%s9140 + $0x168] sm:$0xf]
  %v9232 = vld [vmem:[%s9140 + $0x16c] sm:$0xf]
  %v9233 = vld [vmem:[%s9140 + $0x170] sm:$0xf]
  %v9234 = vld [vmem:[%s9140 + $0x174] sm:$0xf]
  %v9235 = vld [vmem:[%s9140 + $0x178] sm:$0xf]
  %v9236 = vld [vmem:[%s9140 + $0x17c] sm:$0xf]
  %v9237 = vld [vmem:[%s9140 + $0x180] sm:$0xf]
  %v9238 = vld [vmem:[%s9140 + $0x184] sm:$0xf]
  %v9239 = vld [vmem:[%s9140 + $0x188] sm:$0xf]
  %v9240 = vld [vmem:[%s9140 + $0x18c] sm:$0xf]
  %v9241 = vld [vmem:[%s9140 + $0x190] sm:$0xf]
  %v9242 = vld [vmem:[%s9140 + $0x194] sm:$0xf]
  %v9243 = vld [vmem:[%s9140 + $0x198] sm:$0xf]
  %v9244 = vld [vmem:[%s9140 + $0x19c] sm:$0xf]
  %v9245 = vld [vmem:[%s9140 + $0x1a0] sm:$0xf]
  %v9246 = vld [vmem:[%s9140 + $0x1a4] sm:$0xf]
  %v9247 = vld [vmem:[%s9140 + $0x1a8] sm:$0xf]
  %v9248 = vld [vmem:[%s9140 + $0x1ac] sm:$0xf]
  %v9357 = vunpack.c.l.b16 %v9141
  %v9358 = vunpack.c.l.b16 %v9142
  %v9359 = vunpack.c.l.b16 %v9143
  %v9360 = vunpack.c.l.b16 %v9144
  %v9361 = vunpack.c.l.b16 %v9145
  %v9362 = vunpack.c.l.b16 %v9146
  %v9363 = vunpack.c.l.b16 %v9147
  %v9364 = vunpack.c.l.b16 %v9148
  %v9365 = vunpack.c.l.b16 %v9149
  %v9366 = vunpack.c.l.b16 %v9150
  %v9367 = vunpack.c.l.b16 %v9151
  %v9368 = vunpack.c.l.b16 %v9152
  %v9369 = vunpack.c.l.b16 %v9153
  %v9370 = vunpack.c.l.b16 %v9154
  %v9371 = vunpack.c.l.b16 %v9155
  %v9372 = vunpack.c.l.b16 %v9156
  %v9373 = vunpack.c.l.b16 %v9157
  %v9374 = vunpack.c.l.b16 %v9158
  %v9375 = vunpack.c.l.b16 %v9159
  %v9376 = vunpack.c.l.b16 %v9160
  %v9377 = vunpack.c.l.b16 %v9161
  %v9378 = vunpack.c.l.b16 %v9162
  %v9379 = vunpack.c.l.b16 %v9163
  %v9380 = vunpack.c.l.b16 %v9164
  %v9381 = vunpack.c.l.b16 %v9165
  %v9382 = vunpack.c.l.b16 %v9166
  %v9383 = vunpack.c.l.b16 %v9167
  %v9384 = vunpack.c.l.b16 %v9168
  %v9385 = vunpack.c.l.b16 %v9169
  %v9386 = vunpack.c.l.b16 %v9170
  %v9387 = vunpack.c.l.b16 %v9171
  %v9388 = vunpack.c.l.b16 %v9172
  %v9389 = vunpack.c.l.b16 %v9173
  %v9390 = vunpack.c.l.b16 %v9174
  %v9391 = vunpack.c.l.b16 %v9175
  %v9392 = vunpack.c.l.b16 %v9176
  %v9393 = vunpack.c.l.b16 %v9177
  %v9394 = vunpack.c.l.b16 %v9178
  %v9395 = vunpack.c.l.b16 %v9179
  %v9396 = vunpack.c.l.b16 %v9180
  %v9397 = vunpack.c.l.b16 %v9181
  %v9398 = vunpack.c.l.b16 %v9182
  %v9399 = vunpack.c.l.b16 %v9183
  %v9400 = vunpack.c.l.b16 %v9184
  %v9401 = vunpack.c.l.b16 %v9185
  %v9402 = vunpack.c.l.b16 %v9186
  %v9403 = vunpack.c.l.b16 %v9187
  %v9404 = vunpack.c.l.b16 %v9188
  %v9405 = vunpack.c.l.b16 %v9189
  %v9406 = vunpack.c.l.b16 %v9190
  %v9407 = vunpack.c.l.b16 %v9191
  %v9408 = vunpack.c.l.b16 %v9192
  %v9409 = vunpack.c.l.b16 %v9193
  %v9410 = vunpack.c.l.b16 %v9194
  %v9411 = vunpack.c.l.b16 %v9195
  %v9412 = vunpack.c.l.b16 %v9196
  %v9413 = vunpack.c.l.b16 %v9197
  %v9414 = vunpack.c.l.b16 %v9198
  %v9415 = vunpack.c.l.b16 %v9199
  %v9416 = vunpack.c.l.b16 %v9200
  %v9417 = vunpack.c.l.b16 %v9201
  %v9418 = vunpack.c.l.b16 %v9202
  %v9419 = vunpack.c.l.b16 %v9203
  %v9420 = vunpack.c.l.b16 %v9204
  %v9421 = vunpack.c.l.b16 %v9205
  %v9422 = vunpack.c.l.b16 %v9206
  %v9423 = vunpack.c.l.b16 %v9207
  %v9424 = vunpack.c.l.b16 %v9208
  %v9425 = vunpack.c.l.b16 %v9209
  %v9426 = vunpack.c.l.b16 %v9210
  %v9427 = vunpack.c.l.b16 %v9211
  %v9428 = vunpack.c.l.b16 %v9212
  %v9429 = vunpack.c.l.b16 %v9213
  %v9430 = vunpack.c.l.b16 %v9214
  %v9431 = vunpack.c.l.b16 %v9215
  %v9432 = vunpack.c.l.b16 %v9216
  %v9433 = vunpack.c.l.b16 %v9217
  %v9434 = vunpack.c.l.b16 %v9218
  %v9435 = vunpack.c.l.b16 %v9219
  %v9436 = vunpack.c.l.b16 %v9220
  %v9437 = vunpack.c.l.b16 %v9221
  %v9438 = vunpack.c.l.b16 %v9222
  %v9439 = vunpack.c.l.b16 %v9223
  %v9440 = vunpack.c.l.b16 %v9224
  %v9441 = vunpack.c.l.b16 %v9225
  %v9442 = vunpack.c.l.b16 %v9226
  %v9443 = vunpack.c.l.b16 %v9227
  %v9444 = vunpack.c.l.b16 %v9228
  %v9445 = vunpack.c.l.b16 %v9229
  %v9446 = vunpack.c.l.b16 %v9230
  %v9447 = vunpack.c.l.b16 %v9231
  %v9448 = vunpack.c.l.b16 %v9232
  %v9449 = vunpack.c.l.b16 %v9233
  %v9450 = vunpack.c.l.b16 %v9234
  %v9451 = vunpack.c.l.b16 %v9235
  %v9452 = vunpack.c.l.b16 %v9236
  %v9453 = vunpack.c.l.b16 %v9237
  %v9454 = vunpack.c.l.b16 %v9238
  %v9455 = vunpack.c.l.b16 %v9239
  %v9456 = vunpack.c.l.b16 %v9240
  %v9457 = vunpack.c.l.b16 %v9241
  %v9458 = vunpack.c.l.b16 %v9242
  %v9459 = vunpack.c.l.b16 %v9243
  %v9460 = vunpack.c.l.b16 %v9244
  %v9461 = vunpack.c.l.b16 %v9245
  %v9462 = vunpack.c.l.b16 %v9246
  %v9463 = vunpack.c.l.b16 %v9247
  %v9464 = vunpack.c.l.b16 %v9248
  %v9465 = vpack.c.b16 %v9358, %v9357
  %v9466 = vpack.c.b16 %v9360, %v9359
  %v9467 = vpack.c.b16 %v9362, %v9361
  %v9468 = vpack.c.b16 %v9364, %v9363
  %v9469 = vpack.c.b16 %v9366, %v9365
  %v9470 = vpack.c.b16 %v9368, %v9367
  %v9471 = vpack.c.b16 %v9370, %v9369
  %v9472 = vpack.c.b16 %v9372, %v9371
  %v9473 = vpack.c.b16 %v9374, %v9373
  %v9474 = vpack.c.b16 %v9376, %v9375
  %v9475 = vpack.c.b16 %v9378, %v9377
  %v9476 = vpack.c.b16 %v9380, %v9379
  %v9477 = vpack.c.b16 %v9382, %v9381
  %v9478 = vpack.c.b16 %v9384, %v9383
  %v9479 = vpack.c.b16 %v9386, %v9385
  %v9480 = vpack.c.b16 %v9388, %v9387
  %v9481 = vpack.c.b16 %v9390, %v9389
  %v9482 = vpack.c.b16 %v9392, %v9391
  %v9483 = vpack.c.b16 %v9394, %v9393
  %v9484 = vpack.c.b16 %v9396, %v9395
  %v9485 = vpack.c.b16 %v9398, %v9397
  %v9486 = vpack.c.b16 %v9400, %v9399
  %v9487 = vpack.c.b16 %v9402, %v9401
  %v9488 = vpack.c.b16 %v9404, %v9403
  %v9489 = vpack.c.b16 %v9406, %v9405
  %v9490 = vpack.c.b16 %v9408, %v9407
  %v9491 = vpack.c.b16 %v9410, %v9409
  %v9492 = vpack.c.b16 %v9412, %v9411
  %v9493 = vpack.c.b16 %v9414, %v9413
  %v9494 = vpack.c.b16 %v9416, %v9415
  %v9495 = vpack.c.b16 %v9418, %v9417
  %v9496 = vpack.c.b16 %v9420, %v9419
  %v9497 = vpack.c.b16 %v9422, %v9421
  %v9498 = vpack.c.b16 %v9424, %v9423
  %v9499 = vpack.c.b16 %v9426, %v9425
  %v9500 = vpack.c.b16 %v9428, %v9427
  %v9501 = vpack.c.b16 %v9430, %v9429
  %v9502 = vpack.c.b16 %v9432, %v9431
  %v9503 = vpack.c.b16 %v9434, %v9433
  %v9504 = vpack.c.b16 %v9436, %v9435
  %v9505 = vpack.c.b16 %v9438, %v9437
  %v9506 = vpack.c.b16 %v9440, %v9439
  %v9507 = vpack.c.b16 %v9442, %v9441
  %v9508 = vpack.c.b16 %v9444, %v9443
  %v9509 = vpack.c.b16 %v9446, %v9445
  %v9510 = vpack.c.b16 %v9448, %v9447
  %v9511 = vpack.c.b16 %v9450, %v9449
  %v9512 = vpack.c.b16 %v9452, %v9451
  %v9513 = vpack.c.b16 %v9454, %v9453
  %v9514 = vpack.c.b16 %v9456, %v9455
  %v9515 = vpack.c.b16 %v9458, %v9457
  %v9516 = vpack.c.b16 %v9460, %v9459
  %v9517 = vpack.c.b16 %v9462, %v9461
  %v9518 = vpack.c.b16 %v9464, %v9463
  %9573 = vmatprep.subr.bf16.mxu0 0
  %9574 = vmatpush1.bf16.msra.mxu0 %v9465
  %9575 = vmatprep.subr.bf16.mxu0 0
  %9576 = vmatpush1.bf16.msra.mxu0 %v9466
  %9577 = vmatprep.subr.bf16.mxu0 0
  %9578 = vmatpush1.bf16.msra.mxu0 %v9467
  %9579 = vmatprep.subr.bf16.mxu0 0
  %9580 = vmatpush1.bf16.msra.mxu0 %v9468
  %9581 = vmatprep.subr.bf16.mxu0 0
  %9582 = vmatpush1.bf16.msra.mxu0 %v9469
  %9583 = vmatprep.subr.bf16.mxu0 0
  %9584 = vmatpush1.bf16.msra.mxu0 %v9470
  %9585 = vmatprep.subr.bf16.mxu0 0
  %9586 = vmatpush1.bf16.msra.mxu0 %v9471
  %9587 = vmatprep.subr.bf16.mxu0 0
  %9588 = vmatpush1.bf16.msra.mxu0 %v9472
  %9589 = vmatprep.subr.bf16.mxu0 0
  %9590 = vmatpush1.bf16.msra.mxu0 %v9473
  %9591 = vmatprep.subr.bf16.mxu0 0
  %9592 = vmatpush1.bf16.msra.mxu0 %v9474
  %9593 = vmatprep.subr.bf16.mxu0 0
  %9594 = vmatpush1.bf16.msra.mxu0 %v9475
  %9595 = vmatprep.subr.bf16.mxu0 0
  %9596 = vmatpush1.bf16.msra.mxu0 %v9476
  %9597 = vmatprep.subr.bf16.mxu0 0
  %9598 = vmatpush1.bf16.msra.mxu0 %v9477
  %9599 = vmatprep.subr.bf16.mxu0 0
  %9600 = vmatpush1.bf16.msra.mxu0 %v9478
  %9601 = vmatprep.subr.bf16.mxu0 0
  %9602 = vmatpush1.bf16.msra.mxu0 %v9479
  %9603 = vmatprep.subr.bf16.mxu0 0
  %9604 = vmatpush1.bf16.msra.mxu0 %v9480
  %9605 = vmatprep.mubr.bf16.mxu0 %v8160
  %9606 = vmatmul.mubr.bf16.gmra.mrb[0].mxu0 %v8159
  %v9607 = vpop.f32.mrb[0].mxu0
  %v9608 = vadd.f32 0.0, %v9607
  %v9609 = vpop.f32.mrb[0].mxu0
  %v9610 = vpop.f32.mrb[0].mxu0
  %v9611 = vadd.f32 0.0, %v9610
  %v9612 = vpop.f32.mrb[0].mxu0
  %9613 = vmatprep.mubr.bf16.mxu0 %v8167
  %9614 = vmatmul.mubr.bf16.gmra.mrb[0].mxu0 %v8166
  %v9615 = vpop.f32.mrb[0].mxu0
  %v9616 = vadd.f32 0.0, %v9615
  %v9617 = vpop.f32.mrb[0].mxu0
  %v9618 = vpop.f32.mrb[0].mxu0
  %v9619 = vadd.f32 0.0, %v9618
  %v9620 = vpop.f32.mrb[0].mxu0
  %9621 = vmatprep.mubr.bf16.mxu0 %v8174
  %9622 = vmatmul.mubr.bf16.gmra.mrb[0].mxu0 %v8173
  %v9623 = vpop.f32.mrb[0].mxu0
  %v9624 = vadd.f32 0.0, %v9623
  %v9625 = vpop.f32.mrb[0].mxu0
  %v9626 = vpop.f32.mrb[0].mxu0
  %v9627 = vadd.f32 0.0, %v9626
  %v9628 = vpop.f32.mrb[0].mxu0
  %9629 = vmatprep.mubr.bf16.mxu0 %v8181
  %9630 = vmatmul.mubr.bf16.gmra.mrb[0].mxu0 %v8180
  %v9631 = vpop.f32.mrb[0].mxu0
  %v9632 = vadd.f32 0.0, %v9631
  %v9633 = vpop.f32.mrb[0].mxu0
  %v9634 = vpop.f32.mrb[0].mxu0
  %v9635 = vadd.f32 0.0, %v9634
  %v9636 = vpop.f32.mrb[0].mxu0
  %9637 = vmatprep.mubr.bf16.mxu0 %v8188
  %9638 = vmatmul.mubr.bf16.gmra.mrb[0].mxu0 %v8187
  %v9639 = vpop.f32.mrb[0].mxu0
  %v9640 = vadd.f32 0.0, %v9639
  %v9641 = vpop.f32.mrb[0].mxu0
  %v9642 = vpop.f32.mrb[0].mxu0
  %v9643 = vadd.f32 0.0, %v9642
  %v9644 = vpop.f32.mrb[0].mxu0
  %9645 = vmatprep.mubr.bf16.mxu0 %v8195
  %9646 = vmatmul.mubr.bf16.gmra.mrb[0].mxu0 %v8194
  %v9647 = vpop.f32.mrb[0].mxu0
  %v9648 = vadd.f32 0.0, %v9647
  %v9649 = vpop.f32.mrb[0].mxu0
  %v9650 = vpop.f32.mrb[0].mxu0
  %v9651 = vadd.f32 0.0, %v9650
  %v9652 = vpop.f32.mrb[0].mxu0
  %9653 = vmatprep.mubr.bf16.mxu0 %v8202
  %9654 = vmatmul.mubr.bf16.gmra.mrb[0].mxu0 %v8201
  %v9655 = vpop.f32.mrb[0].mxu0
  %v9656 = vadd.f32 0.0, %v9655
  %v9657 = vpop.f32.mrb[0].mxu0
  %v9658 = vpop.f32.mrb[0].mxu0
  %v9659 = vadd.f32 0.0, %v9658
  %v9660 = vpop.f32.mrb[0].mxu0
  %9661 = vmatprep.mubr.bf16.mxu0 %v8209
  %9662 = vmatmul.mubr.bf16.gmra.mrb[0].mxu0 %v8208
  %v9663 = vpop.f32.mrb[0].mxu0
  %v9664 = vadd.f32 0.0, %v9663
  %v9665 = vpop.f32.mrb[0].mxu0
  %v9666 = vpop.f32.mrb[0].mxu0
  %v9667 = vadd.f32 0.0, %v9666
  %v9668 = vpop.f32.mrb[0].mxu0
  %9669 = vmatprep.mubr.bf16.mxu0 %v8216
  %9670 = vmatmul.mubr.bf16.gmra.mrb[0].mxu0 %v8215
  %v9671 = vpop.f32.mrb[0].mxu0
  %v9672 = vadd.f32 0.0, %v9671
  %v9673 = vpop.f32.mrb[0].mxu0
  %v9674 = vpop.f32.mrb[0].mxu0
  %v9675 = vadd.f32 0.0, %v9674
  %v9676 = vpop.f32.mrb[0].mxu0
  %9677 = vmatprep.mubr.bf16.mxu0 %v8223
  %9678 = vmatmul.mubr.bf16.gmra.mrb[0].mxu0 %v8222
  %v9679 = vpop.f32.mrb[0].mxu0
  %v9680 = vadd.f32 0.0, %v9679
  %v9681 = vpop.f32.mrb[0].mxu0
  %v9682 = vpop.f32.mrb[0].mxu0
  %v9683 = vpop.f32.mrb[0].mxu0
  %9684 = vdwg.mxu0
  %9685 = vmatprep.subr.bf16.mxu0 0
  %9686 = vmatpush1.bf16.msra.mxu0 %v9481
  %9687 = vmatprep.subr.bf16.mxu0 0
  %9688 = vmatpush1.bf16.msra.mxu0 %v9482
  %9689 = vmatprep.subr.bf16.mxu0 0
  %9690 = vmatpush1.bf16.msra.mxu0 %v9483
  %9691 = vmatprep.subr.bf16.mxu0 0
  %9692 = vmatpush1.bf16.msra.mxu0 %v9484
  %9693 = vmatprep.subr.bf16.mxu0 0
  %9694 = vmatpush1.bf16.msra.mxu0 %v9485
  %9695 = vmatprep.subr.bf16.mxu0 0
  %9696 = vmatpush1.bf16.msra.mxu0 %v9486
  %9697 = vmatprep.subr.bf16.mxu0 0
  %9698 = vmatpush1.bf16.msra.mxu0 %v9487
  %9699 = vmatprep.subr.bf16.mxu0 0
  %9700 = vmatpush1.bf16.msra.mxu0 %v9488
  %9701 = vmatprep.subr.bf16.mxu0 0
  %9702 = vmatpush1.bf16.msra.mxu0 %v9489
  %9703 = vmatprep.subr.bf16.mxu0 0
  %9704 = vmatpush1.bf16.msra.mxu0 %v9490
  %9705 = vmatprep.subr.bf16.mxu0 0
  %9706 = vmatpush1.bf16.msra.mxu0 %v9491
  %9707 = vmatprep.subr.bf16.mxu0 0
  %9708 = vmatpush1.bf16.msra.mxu0 %v9492
  %9709 = vmatprep.subr.bf16.mxu0 0
  %9710 = vmatpush1.bf16.msra.mxu0 %v9493
  %9711 = vmatprep.subr.bf16.mxu0 0
  %9712 = vmatpush1.bf16.msra.mxu0 %v9494
  %9713 = vmatprep.subr.bf16.mxu0 0
  %9714 = vmatpush1.bf16.msra.mxu0 %v9495
  %9715 = vmatprep.subr.bf16.mxu0 0
  %9716 = vmatpush1.bf16.msra.mxu0 %v9496
  %9717 = vmatprep.mubr.bf16.mxu0 %v8162
  %9718 = vmatmul.mubr.bf16.gmra.mrb[0].mxu0 %v8161
  %v9719 = vpop.f32.mrb[0].mxu0
  %v9720 = vadd.f32 %v9608, %v9719
  %v9721 = vpop.f32.mrb[0].mxu0
  %v9722 = vpop.f32.mrb[0].mxu0
  %v9723 = vadd.f32 %v9611, %v9722
  %v9724 = vpop.f32.mrb[0].mxu0
  %9725 = vmatprep.mubr.bf16.mxu0 %v8169
  %9726 = vmatmul.mubr.bf16.gmra.mrb[0].mxu0 %v8168
  %v9727 = vpop.f32.mrb[0].mxu0
  %v9728 = vadd.f32 %v9616, %v9727
  %v9729 = vpop.f32.mrb[0].mxu0
  %v9730 = vpop.f32.mrb[0].mxu0
  %v9731 = vadd.f32 %v9619, %v9730
  %v9732 = vpop.f32.mrb[0].mxu0
  %9733 = vmatprep.mubr.bf16.mxu0 %v8176
  %9734 = vmatmul.mubr.bf16.gmra.mrb[0].mxu0 %v8175
  %v9735 = vpop.f32.mrb[0].mxu0
  %v9736 = vadd.f32 %v9624, %v9735
  %v9737 = vpop.f32.mrb[0].mxu0
  %v9738 = vpop.f32.mrb[0].mxu0
  %v9739 = vadd.f32 %v9627, %v9738
  %v9740 = vpop.f32.mrb[0].mxu0
  %9741 = vmatprep.mubr.bf16.mxu0 %v8183
  %9742 = vmatmul.mubr.bf16.gmra.mrb[0].mxu0 %v8182
  %v9743 = vpop.f32.mrb[0].mxu0
  %v9744 = vadd.f32 %v9632, %v9743
  %v9745 = vpop.f32.mrb[0].mxu0
  %v9746 = vpop.f32.mrb[0].mxu0
  %v9747 = vadd.f32 %v9635, %v9746
  %v9748 = vpop.f32.mrb[0].mxu0
  %9749 = vmatprep.mubr.bf16.mxu0 %v8190
  %9750 = vmatmul.mubr.bf16.gmra.mrb[0].mxu0 %v8189
  %v9751 = vpop.f32.mrb[0].mxu0
  %v9752 = vadd.f32 %v9640, %v9751
  %v9753 = vpop.f32.mrb[0].mxu0
  %v9754 = vpop.f32.mrb[0].mxu0
  %v9755 = vadd.f32 %v9643, %v9754
  %v9756 = vpop.f32.mrb[0].mxu0
  %9757 = vmatprep.mubr.bf16.mxu0 %v8197
  %9758 = vmatmul.mubr.bf16.gmra.mrb[0].mxu0 %v8196
  %v9759 = vpop.f32.mrb[0].mxu0
  %v9760 = vadd.f32 %v9648, %v9759
  %v9761 = vpop.f32.mrb[0].mxu0
  %v9762 = vpop.f32.mrb[0].mxu0
  %v9763 = vadd.f32 %v9651, %v9762
  %v9764 = vpop.f32.mrb[0].mxu0
  %9765 = vmatprep.mubr.bf16.mxu0 %v8204
  %9766 = vmatmul.mubr.bf16.gmra.mrb[0].mxu0 %v8203
  %v9767 = vpop.f32.mrb[0].mxu0
  %v9768 = vadd.f32 %v9656, %v9767
  %v9769 = vpop.f32.mrb[0].mxu0
  %v9770 = vpop.f32.mrb[0].mxu0
  %v9771 = vadd.f32 %v9659, %v9770
  %v9772 = vpop.f32.mrb[0].mxu0
  %9773 = vmatprep.mubr.bf16.mxu0 %v8211
  %9774 = vmatmul.mubr.bf16.gmra.mrb[0].mxu0 %v8210
  %v9775 = vpop.f32.mrb[0].mxu0
  %v9776 = vadd.f32 %v9664, %v9775
  %v9777 = vpop.f32.mrb[0].mxu0
  %v9778 = vpop.f32.mrb[0].mxu0
  %v9779 = vadd.f32 %v9667, %v9778
  %v9780 = vpop.f32.mrb[0].mxu0
  %9781 = vmatprep.mubr.bf16.mxu0 %v8218
  %9782 = vmatmul.mubr.bf16.gmra.mrb[0].mxu0 %v8217
  %v9783 = vpop.f32.mrb[0].mxu0
  %v9784 = vadd.f32 %v9672, %v9783
  %v9785 = vpop.f32.mrb[0].mxu0
  %v9786 = vpop.f32.mrb[0].mxu0
  %v9787 = vadd.f32 %v9675, %v9786
  %v9788 = vpop.f32.mrb[0].mxu0
  %9789 = vmatprep.mubr.bf16.mxu0 %v8225
  %9790 = vmatmul.mubr.bf16.gmra.mrb[0].mxu0 %v8224
  %v9791 = vpop.f32.mrb[0].mxu0
  %v9792 = vadd.f32 %v9680, %v9791
  %v9793 = vpop.f32.mrb[0].mxu0
  %v9794 = vpop.f32.mrb[0].mxu0
  %v9795 = vpop.f32.mrb[0].mxu0
  %9796 = vdwg.mxu0
  %9797 = vmatprep.subr.bf16.mxu0 0
  %9798 = vmatpush1.bf16.msra.mxu0 %v9497
  %9799 = vmatprep.subr.bf16.mxu0 0
  %9800 = vmatpush1.bf16.msra.mxu0 %v9498
  %9801 = vmatprep.subr.bf16.mxu0 0
  %9802 = vmatpush1.bf16.msra.mxu0 %v9499
  %9803 = vmatprep.subr.bf16.mxu0 0
  %9804 = vmatpush1.bf16.msra.mxu0 %v9500
  %9805 = vmatprep.subr.bf16.mxu0 0
  %9806 = vmatpush1.bf16.msra.mxu0 %v9501
  %9807 = vmatprep.subr.bf16.mxu0 0
  %9808 = vmatpush1.bf16.msra.mxu0 %v9502
  %9809 = vmatprep.subr.bf16.mxu0 0
  %9810 = vmatpush1.bf16.msra.mxu0 %v9503
  %9811 = vmatprep.subr.bf16.mxu0 0
  %9812 = vmatpush1.bf16.msra.mxu0 %v9504
  %9813 = vmatprep.subr.bf16.mxu0 0
  %9814 = vmatpush1.bf16.msra.mxu0 %v9505
  %9815 = vmatprep.subr.bf16.mxu0 0
  %9816 = vmatpush1.bf16.msra.mxu0 %v9506
  %9817 = vmatprep.subr.bf16.mxu0 0
  %9818 = vmatpush1.bf16.msra.mxu0 %v9507
  %9819 = vmatprep.subr.bf16.mxu0 0
  %9820 = vmatpush1.bf16.msra.mxu0 %v9508
  %9821 = vmatprep.subr.bf16.mxu0 0
  %9822 = vmatpush1.bf16.msra.mxu0 %v9509
  %9823 = vmatprep.subr.bf16.mxu0 0
  %9824 = vmatpush1.bf16.msra.mxu0 %v9510
  %9825 = vmatprep.subr.bf16.mxu0 0
  %9826 = vmatpush1.bf16.msra.mxu0 %v9511
  %9827 = vmatprep.subr.bf16.mxu0 0
  %9828 = vmatpush1.bf16.msra.mxu0 %v9512
  %9829 = vmatprep.mubr.bf16.mxu0 %v8164
  %9830 = vmatmul.mubr.bf16.gmra.mrb[0].mxu0 %v8163
  %v9831 = vpop.f32.mrb[0].mxu0
  %v9832 = vadd.f32 %v9720, %v9831
  %v9833 = vpop.f32.mrb[0].mxu0
  %v9834 = vpop.f32.mrb[0].mxu0
  %v9835 = vadd.f32 %v9723, %v9834
  %v9836 = vpop.f32.mrb[0].mxu0
  %9837 = vmatprep.mubr.bf16.mxu0 %v8171
  %9838 = vmatmul.mubr.bf16.gmra.mrb[0].mxu0 %v8170
  %v9839 = vpop.f32.mrb[0].mxu0
  %v9840 = vadd.f32 %v9728, %v9839
  %v9841 = vpop.f32.mrb[0].mxu0
  %v9842 = vpop.f32.mrb[0].mxu0
  %v9843 = vadd.f32 %v9731, %v9842
  %v9844 = vpop.f32.mrb[0].mxu0
  %9845 = vmatprep.mubr.bf16.mxu0 %v8178
  %9846 = vmatmul.mubr.bf16.gmra.mrb[0].mxu0 %v8177
  %v9847 = vpop.f32.mrb[0].mxu0
  %v9848 = vadd.f32 %v9736, %v9847
  %v9849 = vpop.f32.mrb[0].mxu0
  %v9850 = vpop.f32.mrb[0].mxu0
  %v9851 = vadd.f32 %v9739, %v9850
  %v9852 = vpop.f32.mrb[0].mxu0
  %9853 = vmatprep.mubr.bf16.mxu0 %v8185
  %9854 = vmatmul.mubr.bf16.gmra.mrb[0].mxu0 %v8184
  %v9855 = vpop.f32.mrb[0].mxu0
  %v9856 = vadd.f32 %v9744, %v9855
  %v9857 = vpop.f32.mrb[0].mxu0
  %v9858 = vpop.f32.mrb[0].mxu0
  %v9859 = vadd.f32 %v9747, %v9858
  %v9860 = vpop.f32.mrb[0].mxu0
  %9861 = vmatprep.mubr.bf16.mxu0 %v8192
  %9862 = vmatmul.mubr.bf16.gmra.mrb[0].mxu0 %v8191
  %v9863 = vpop.f32.mrb[0].mxu0
  %v9864 = vadd.f32 %v9752, %v9863
  %v9865 = vpop.f32.mrb[0].mxu0
  %v9866 = vpop.f32.mrb[0].mxu0
  %v9867 = vadd.f32 %v9755, %v9866
  %v9868 = vpop.f32.mrb[0].mxu0
  %9869 = vmatprep.mubr.bf16.mxu0 %v8199
  %9870 = vmatmul.mubr.bf16.gmra.mrb[0].mxu0 %v8198
  %v9871 = vpop.f32.mrb[0].mxu0
  %v9872 = vadd.f32 %v9760, %v9871
  %v9873 = vpop.f32.mrb[0].mxu0
  %v9874 = vpop.f32.mrb[0].mxu0
  %v9875 = vadd.f32 %v9763, %v9874
  %v9876 = vpop.f32.mrb[0].mxu0
  %9877 = vmatprep.mubr.bf16.mxu0 %v8206
  %9878 = vmatmul.mubr.bf16.gmra.mrb[0].mxu0 %v8205
  %v9879 = vpop.f32.mrb[0].mxu0
  %v9880 = vadd.f32 %v9768, %v9879
  %v9881 = vpop.f32.mrb[0].mxu0
  %v9882 = vpop.f32.mrb[0].mxu0
  %v9883 = vadd.f32 %v9771, %v9882
  %v9884 = vpop.f32.mrb[0].mxu0
  %9885 = vmatprep.mubr.bf16.mxu0 %v8213
  %9886 = vmatmul.mubr.bf16.gmra.mrb[0].mxu0 %v8212
  %v9887 = vpop.f32.mrb[0].mxu0
  %v9888 = vadd.f32 %v9776, %v9887
  %v9889 = vpop.f32.mrb[0].mxu0
  %v9890 = vpop.f32.mrb[0].mxu0
  %v9891 = vadd.f32 %v9779, %v9890
  %v9892 = vpop.f32.mrb[0].mxu0
  %9893 = vmatprep.mubr.bf16.mxu0 %v8220
  %9894 = vmatmul.mubr.bf16.gmra.mrb[0].mxu0 %v8219
  %v9895 = vpop.f32.mrb[0].mxu0
  %v9896 = vadd.f32 %v9784, %v9895
  %v9897 = vpop.f32.mrb[0].mxu0
  %v9898 = vpop.f32.mrb[0].mxu0
  %v9899 = vadd.f32 %v9787, %v9898
  %v9900 = vpop.f32.mrb[0].mxu0
  %9901 = vmatprep.mubr.bf16.mxu0 %v8227
  %9902 = vmatmul.mubr.bf16.gmra.mrb[0].mxu0 %v8226
  %v9903 = vpop.f32.mrb[0].mxu0
  %v9904 = vadd.f32 %v9792, %v9903
  %v9905 = vpop.f32.mrb[0].mxu0
  %v9906 = vpop.f32.mrb[0].mxu0
  %v9907 = vpop.f32.mrb[0].mxu0
  %9908 = vdwg.mxu0
  %9909 = vmatprep.subr.bf16.mxu0 0
  %9910 = vmatpush1.bf16.msra.mxu0 %v9513
  %9911 = vmatprep.subr.bf16.mxu0 0
  %9912 = vmatpush1.bf16.msra.mxu0 %v9514
  %9913 = vmatprep.subr.bf16.mxu0 0
  %9914 = vmatpush1.bf16.msra.mxu0 %v9515
  %9915 = vmatprep.subr.bf16.mxu0 0
  %9916 = vmatpush1.bf16.msra.mxu0 %v9516
  %9917 = vmatprep.subr.bf16.mxu0 0
  %9918 = vmatpush1.bf16.msra.mxu0 %v9517
  %9919 = vmatprep.subr.bf16.mxu0 0
  %9920 = vmatpush1.bf16.msra.mxu0 %v9518
  %9921 = vmatprep.subr.bf16.mxu0 0
  %9922 = vmatpush1.bf16.msra.mxu0 0
  %9923 = vmatprep.subr.bf16.mxu0 0
  %9924 = vmatpush1.bf16.msra.mxu0 0
  %9925 = vmatprep.subr.bf16.mxu0 0
  %9926 = vmatpush1.bf16.msra.mxu0 0
  %9927 = vmatprep.subr.bf16.mxu0 0
  %9928 = vmatpush1.bf16.msra.mxu0 0
  %9929 = vmatprep.subr.bf16.mxu0 0
  %9930 = vmatpush1.bf16.msra.mxu0 0
  %9931 = vmatprep.subr.bf16.mxu0 0
  %9932 = vmatpush1.bf16.msra.mxu0 0
  %9933 = vmatprep.subr.bf16.mxu0 0
  %9934 = vmatpush1.bf16.msra.mxu0 0
  %9935 = vmatprep.subr.bf16.mxu0 0
  %9936 = vmatpush1.bf16.msra.mxu0 0
  %9937 = vmatprep.subr.bf16.mxu0 0
  %9938 = vmatpush1.bf16.msra.mxu0 0
  %9939 = vmatprep.subr.bf16.mxu0 0
  %9940 = vmatpush1.bf16.msra.mxu0 0
  %9941 = vmatprep.mubr.bf16.mxu0 0
  %9942 = vmatmul.mubr.bf16.gmra.mrb[0].mxu0 %v8663
  %v9943 = vpop.f32.mrb[0].mxu0
  %v9944 = vadd.f32 %v9832, %v9943
  %v9945 = vpop.f32.mrb[0].mxu0
  %v9946 = vpop.f32.mrb[0].mxu0
  %v9947 = vadd.f32 %v9835, %v9946
  %v9948 = vpop.f32.mrb[0].mxu0
  %9949 = vmatprep.mubr.bf16.mxu0 0
  %9950 = vmatmul.mubr.bf16.gmra.mrb[0].mxu0 %v8666
  %v9951 = vpop.f32.mrb[0].mxu0
  %v9952 = vadd.f32 %v9840, %v9951
  %v9953 = vpop.f32.mrb[0].mxu0
  %v9954 = vpop.f32.mrb[0].mxu0
  %v9955 = vadd.f32 %v9843, %v9954
  %v9956 = vpop.f32.mrb[0].mxu0
  %9957 = vmatprep.mubr.bf16.mxu0 0
  %9958 = vmatmul.mubr.bf16.gmra.mrb[0].mxu0 %v8669
  %v9959 = vpop.f32.mrb[0].mxu0
  %v9960 = vadd.f32 %v9848, %v9959
  %v9961 = vpop.f32.mrb[0].mxu0
  %v9962 = vpop.f32.mrb[0].mxu0
  %v9963 = vadd.f32 %v9851, %v9962
  %v9964 = vpop.f32.mrb[0].mxu0
  %9965 = vmatprep.mubr.bf16.mxu0 0
  %9966 = vmatmul.mubr.bf16.gmra.mrb[0].mxu0 %v8672
  %v9967 = vpop.f32.mrb[0].mxu0
  %v9968 = vadd.f32 %v9856, %v9967
  %v9969 = vpop.f32.mrb[0].mxu0
  %v9970 = vpop.f32.mrb[0].mxu0
  %v9971 = vadd.f32 %v9859, %v9970
  %v9972 = vpop.f32.mrb[0].mxu0
  %9973 = vmatprep.mubr.bf16.mxu0 0
  %9974 = vmatmul.mubr.bf16.gmra.mrb[0].mxu0 %v8675
  %v9975 = vpop.f32.mrb[0].mxu0
  %v9976 = vadd.f32 %v9864, %v9975
  %v9977 = vpop.f32.mrb[0].mxu0
  %v9978 = vpop.f32.mrb[0].mxu0
  %v9979 = vadd.f32 %v9867, %v9978
  %v9980 = vpop.f32.mrb[0].mxu0
  %9981 = vmatprep.mubr.bf16.mxu0 0
  %9982 = vmatmul.mubr.bf16.gmra.mrb[0].mxu0 %v8678
  %v9983 = vpop.f32.mrb[0].mxu0
  %v9984 = vadd.f32 %v9872, %v9983
  %v9985 = vpop.f32.mrb[0].mxu0
  %v9986 = vpop.f32.mrb[0].mxu0
  %v9987 = vadd.f32 %v9875, %v9986
  %v9988 = vpop.f32.mrb[0].mxu0
  %9989 = vmatprep.mubr.bf16.mxu0 0
  %9990 = vmatmul.mubr.bf16.gmra.mrb[0].mxu0 %v8681
  %v9991 = vpop.f32.mrb[0].mxu0
  %v9992 = vadd.f32 %v9880, %v9991
  %v9993 = vpop.f32.mrb[0].mxu0
  %v9994 = vpop.f32.mrb[0].mxu0
  %v9995 = vadd.f32 %v9883, %v9994
  %v9996 = vpop.f32.mrb[0].mxu0
  %9997 = vmatprep.mubr.bf16.mxu0 0
  %9998 = vmatmul.mubr.bf16.gmra.mrb[0].mxu0 %v8684
  %v9999 = vpop.f32.mrb[0].mxu0
  %v10000 = vadd.f32 %v9888, %v9999
  %v10001 = vpop.f32.mrb[0].mxu0
  %v10002 = vpop.f32.mrb[0].mxu0
  %v10003 = vadd.f32 %v9891, %v10002
  %v10004 = vpop.f32.mrb[0].mxu0
  %10005 = vmatprep.mubr.bf16.mxu0 0
  %10006 = vmatmul.mubr.bf16.gmra.mrb[0].mxu0 %v8687
  %v10007 = vpop.f32.mrb[0].mxu0
  %v10008 = vadd.f32 %v9896, %v10007
  %v10009 = vpop.f32.mrb[0].mxu0
  %v10010 = vpop.f32.mrb[0].mxu0
  %v10011 = vadd.f32 %v9899, %v10010
  %v10012 = vpop.f32.mrb[0].mxu0
  %10013 = vmatprep.mubr.bf16.mxu0 0
  %10014 = vmatmul.mubr.bf16.gmra.mrb[0].mxu0 %v8690
  %v10015 = vpop.f32.mrb[0].mxu0
  %v10016 = vadd.f32 %v9904, %v10015
  %v10017 = vpop.f32.mrb[0].mxu0
  %v10018 = vpop.f32.mrb[0].mxu0
  %v10019 = vpop.f32.mrb[0].mxu0
  %10020 = vdwg.mxu0
  %v10021 = vmax.f32 %v9063, %v9944
  %v10022 = vmax.f32 %v9066, %v9947
  %v10023 = vmax.f32 %v9071, %v9952
  %v10024 = vmax.f32 %v9074, %v9955
  %v10025 = vmax.f32 %v9079, %v9960
  %v10026 = vmax.f32 %v9082, %v9963
  %v10027 = vmax.f32 %v9087, %v9968
  %v10028 = vmax.f32 %v9090, %v9971
  %v10029 = vmax.f32 %v9095, %v9976
  %v10030 = vmax.f32 %v9098, %v9979
  %v10031 = vmax.f32 %v9103, %v9984
  %v10032 = vmax.f32 %v9106, %v9987
  %v10033 = vmax.f32 %v9111, %v9992
  %v10034 = vmax.f32 %v9114, %v9995
  %v10035 = vmax.f32 %v9119, %v10000
  %v10036 = vmax.f32 %v9122, %v10003
  %v10037 = vmax.f32 %v9127, %v10008
  %v10038 = vmax.f32 %v9130, %v10011
  %v10039 = vmax.f32 %v9135, %v10016
  %s10040 = scalar_lea.vmem %s3, 864
  %v10041 = vld [vmem:[%s10040] sm:$0xf]
  %v10042 = vld [vmem:[%s10040 + $0x4] sm:$0xf]
  %v10043 = vld [vmem:[%s10040 + $0x8] sm:$0xf]
  %v10044 = vld [vmem:[%s10040 + $0xc] sm:$0xf]
  %v10045 = vld [vmem:[%s10040 + $0x10] sm:$0xf]
  %v10046 = vld [vmem:[%s10040 + $0x14] sm:$0xf]
  %v10047 = vld [vmem:[%s10040 + $0x18] sm:$0xf]
  %v10048 = vld [vmem:[%s10040 + $0x1c] sm:$0xf]
  %v10049 = vld [vmem:[%s10040 + $0x20] sm:$0xf]
  %v10050 = vld [vmem:[%s10040 + $0x24] sm:$0xf]
  %v10051 = vld [vmem:[%s10040 + $0x28] sm:$0xf]
  %v10052 = vld [vmem:[%s10040 + $0x2c] sm:$0xf]
  %v10053 = vld [vmem:[%s10040 + $0x30] sm:$0xf]
  %v10054 = vld [vmem:[%s10040 + $0x34] sm:$0xf]
  %v10055 = vld [vmem:[%s10040 + $0x38] sm:$0xf]
  %v10056 = vld [vmem:[%s10040 + $0x3c] sm:$0xf]
  %v10057 = vld [vmem:[%s10040 + $0x40] sm:$0xf]
  %v10058 = vld [vmem:[%s10040 + $0x44] sm:$0xf]
  %v10059 = vld [vmem:[%s10040 + $0x48] sm:$0xf]
  %v10060 = vld [vmem:[%s10040 + $0x4c] sm:$0xf]
  %v10061 = vld [vmem:[%s10040 + $0x50] sm:$0xf]
  %v10062 = vld [vmem:[%s10040 + $0x54] sm:$0xf]
  %v10063 = vld [vmem:[%s10040 + $0x58] sm:$0xf]
  %v10064 = vld [vmem:[%s10040 + $0x5c] sm:$0xf]
  %v10065 = vld [vmem:[%s10040 + $0x60] sm:$0xf]
  %v10066 = vld [vmem:[%s10040 + $0x64] sm:$0xf]
  %v10067 = vld [vmem:[%s10040 + $0x68] sm:$0xf]
  %v10068 = vld [vmem:[%s10040 + $0x6c] sm:$0xf]
  %v10069 = vld [vmem:[%s10040 + $0x70] sm:$0xf]
  %v10070 = vld [vmem:[%s10040 + $0x74] sm:$0xf]
  %v10071 = vld [vmem:[%s10040 + $0x78] sm:$0xf]
  %v10072 = vld [vmem:[%s10040 + $0x7c] sm:$0xf]
  %v10073 = vld [vmem:[%s10040 + $0x80] sm:$0xf]
  %v10074 = vld [vmem:[%s10040 + $0x84] sm:$0xf]
  %v10075 = vld [vmem:[%s10040 + $0x88] sm:$0xf]
  %v10076 = vld [vmem:[%s10040 + $0x8c] sm:$0xf]
  %v10077 = vld [vmem:[%s10040 + $0x90] sm:$0xf]
  %v10078 = vld [vmem:[%s10040 + $0x94] sm:$0xf]
  %v10079 = vld [vmem:[%s10040 + $0x98] sm:$0xf]
  %v10080 = vld [vmem:[%s10040 + $0x9c] sm:$0xf]
  %v10081 = vld [vmem:[%s10040 + $0xa0] sm:$0xf]
  %v10082 = vld [vmem:[%s10040 + $0xa4] sm:$0xf]
  %v10083 = vld [vmem:[%s10040 + $0xa8] sm:$0xf]
  %v10084 = vld [vmem:[%s10040 + $0xac] sm:$0xf]
  %v10085 = vld [vmem:[%s10040 + $0xb0] sm:$0xf]
  %v10086 = vld [vmem:[%s10040 + $0xb4] sm:$0xf]
  %v10087 = vld [vmem:[%s10040 + $0xb8] sm:$0xf]
  %v10088 = vld [vmem:[%s10040 + $0xbc] sm:$0xf]
  %v10089 = vld [vmem:[%s10040 + $0xc0] sm:$0xf]
  %v10090 = vld [vmem:[%s10040 + $0xc4] sm:$0xf]
  %v10091 = vld [vmem:[%s10040 + $0xc8] sm:$0xf]
  %v10092 = vld [vmem:[%s10040 + $0xcc] sm:$0xf]
  %v10093 = vld [vmem:[%s10040 + $0xd0] sm:$0xf]
  %v10094 = vld [vmem:[%s10040 + $0xd4] sm:$0xf]
  %v10095 = vld [vmem:[%s10040 + $0xd8] sm:$0xf]
  %v10096 = vld [vmem:[%s10040 + $0xdc] sm:$0xf]
  %v10097 = vld [vmem:[%s10040 + $0xe0] sm:$0xf]
  %v10098 = vld [vmem:[%s10040 + $0xe4] sm:$0xf]
  %v10099 = vld [vmem:[%s10040 + $0xe8] sm:$0xf]
  %v10100 = vld [vmem:[%s10040 + $0xec] sm:$0xf]
  %v10101 = vld [vmem:[%s10040 + $0xf0] sm:$0xf]
  %v10102 = vld [vmem:[%s10040 + $0xf4] sm:$0xf]
  %v10103 = vld [vmem:[%s10040 + $0xf8] sm:$0xf]
  %v10104 = vld [vmem:[%s10040 + $0xfc] sm:$0xf]
  %v10105 = vld [vmem:[%s10040 + $0x100] sm:$0xf]
  %v10106 = vld [vmem:[%s10040 + $0x104] sm:$0xf]
  %v10107 = vld [vmem:[%s10040 + $0x108] sm:$0xf]
  %v10108 = vld [vmem:[%s10040 + $0x10c] sm:$0xf]
  %v10109 = vld [vmem:[%s10040 + $0x110] sm:$0xf]
  %v10110 = vld [vmem:[%s10040 + $0x114] sm:$0xf]
  %v10111 = vld [vmem:[%s10040 + $0x118] sm:$0xf]
  %v10112 = vld [vmem:[%s10040 + $0x11c] sm:$0xf]
  %v10113 = vld [vmem:[%s10040 + $0x120] sm:$0xf]
  %v10114 = vld [vmem:[%s10040 + $0x124] sm:$0xf]
  %v10115 = vld [vmem:[%s10040 + $0x128] sm:$0xf]
  %v10116 = vld [vmem:[%s10040 + $0x12c] sm:$0xf]
  %v10117 = vld [vmem:[%s10040 + $0x130] sm:$0xf]
  %v10118 = vld [vmem:[%s10040 + $0x134] sm:$0xf]
  %v10119 = vld [vmem:[%s10040 + $0x138] sm:$0xf]
  %v10120 = vld [vmem:[%s10040 + $0x13c] sm:$0xf]
  %v10121 = vld [vmem:[%s10040 + $0x140] sm:$0xf]
  %v10122 = vld [vmem:[%s10040 + $0x144] sm:$0xf]
  %v10123 = vld [vmem:[%s10040 + $0x148] sm:$0xf]
  %v10124 = vld [vmem:[%s10040 + $0x14c] sm:$0xf]
  %v10125 = vld [vmem:[%s10040 + $0x150] sm:$0xf]
  %v10126 = vld [vmem:[%s10040 + $0x154] sm:$0xf]
  %v10127 = vld [vmem:[%s10040 + $0x158] sm:$0xf]
  %v10128 = vld [vmem:[%s10040 + $0x15c] sm:$0xf]
  %v10129 = vld [vmem:[%s10040 + $0x160] sm:$0xf]
  %v10130 = vld [vmem:[%s10040 + $0x164] sm:$0xf]
  %v10131 = vld [vmem:[%s10040 + $0x168] sm:$0xf]
  %v10132 = vld [vmem:[%s10040 + $0x16c] sm:$0xf]
  %v10133 = vld [vmem:[%s10040 + $0x170] sm:$0xf]
  %v10134 = vld [vmem:[%s10040 + $0x174] sm:$0xf]
  %v10135 = vld [vmem:[%s10040 + $0x178] sm:$0xf]
  %v10136 = vld [vmem:[%s10040 + $0x17c] sm:$0xf]
  %v10137 = vld [vmem:[%s10040 + $0x180] sm:$0xf]
  %v10138 = vld [vmem:[%s10040 + $0x184] sm:$0xf]
  %v10139 = vld [vmem:[%s10040 + $0x188] sm:$0xf]
  %v10140 = vld [vmem:[%s10040 + $0x18c] sm:$0xf]
  %v10141 = vld [vmem:[%s10040 + $0x190] sm:$0xf]
  %v10142 = vld [vmem:[%s10040 + $0x194] sm:$0xf]
  %v10143 = vld [vmem:[%s10040 + $0x198] sm:$0xf]
  %v10144 = vld [vmem:[%s10040 + $0x19c] sm:$0xf]
  %v10145 = vld [vmem:[%s10040 + $0x1a0] sm:$0xf]
  %v10146 = vld [vmem:[%s10040 + $0x1a4] sm:$0xf]
  %v10147 = vld [vmem:[%s10040 + $0x1a8] sm:$0xf]
  %v10148 = vld [vmem:[%s10040 + $0x1ac] sm:$0xf]
  %v10257 = vunpack.c.l.b16 %v10041
  %v10258 = vunpack.c.l.b16 %v10042
  %v10259 = vunpack.c.l.b16 %v10043
  %v10260 = vunpack.c.l.b16 %v10044
  %v10261 = vunpack.c.l.b16 %v10045
  %v10262 = vunpack.c.l.b16 %v10046
  %v10263 = vunpack.c.l.b16 %v10047
  %v10264 = vunpack.c.l.b16 %v10048
  %v10265 = vunpack.c.l.b16 %v10049
  %v10266 = vunpack.c.l.b16 %v10050
  %v10267 = vunpack.c.l.b16 %v10051
  %v10268 = vunpack.c.l.b16 %v10052
  %v10269 = vunpack.c.l.b16 %v10053
  %v10270 = vunpack.c.l.b16 %v10054
  %v10271 = vunpack.c.l.b16 %v10055
  %v10272 = vunpack.c.l.b16 %v10056
  %v10273 = vunpack.c.l.b16 %v10057
  %v10274 = vunpack.c.l.b16 %v10058
  %v10275 = vunpack.c.l.b16 %v10059
  %v10276 = vunpack.c.l.b16 %v10060
  %v10277 = vunpack.c.l.b16 %v10061
  %v10278 = vunpack.c.l.b16 %v10062
  %v10279 = vunpack.c.l.b16 %v10063
  %v10280 = vunpack.c.l.b16 %v10064
  %v10281 = vunpack.c.l.b16 %v10065
  %v10282 = vunpack.c.l.b16 %v10066
  %v10283 = vunpack.c.l.b16 %v10067
  %v10284 = vunpack.c.l.b16 %v10068
  %v10285 = vunpack.c.l.b16 %v10069
  %v10286 = vunpack.c.l.b16 %v10070
  %v10287 = vunpack.c.l.b16 %v10071
  %v10288 = vunpack.c.l.b16 %v10072
  %v10289 = vunpack.c.l.b16 %v10073
  %v10290 = vunpack.c.l.b16 %v10074
  %v10291 = vunpack.c.l.b16 %v10075
  %v10292 = vunpack.c.l.b16 %v10076
  %v10293 = vunpack.c.l.b16 %v10077
  %v10294 = vunpack.c.l.b16 %v10078
  %v10295 = vunpack.c.l.b16 %v10079
  %v10296 = vunpack.c.l.b16 %v10080
  %v10297 = vunpack.c.l.b16 %v10081
  %v10298 = vunpack.c.l.b16 %v10082
  %v10299 = vunpack.c.l.b16 %v10083
  %v10300 = vunpack.c.l.b16 %v10084
  %v10301 = vunpack.c.l.b16 %v10085
  %v10302 = vunpack.c.l.b16 %v10086
  %v10303 = vunpack.c.l.b16 %v10087
  %v10304 = vunpack.c.l.b16 %v10088
  %v10305 = vunpack.c.l.b16 %v10089
  %v10306 = vunpack.c.l.b16 %v10090
  %v10307 = vunpack.c.l.b16 %v10091
  %v10308 = vunpack.c.l.b16 %v10092
  %v10309 = vunpack.c.l.b16 %v10093
  %v10310 = vunpack.c.l.b16 %v10094
  %v10311 = vunpack.c.l.b16 %v10095
  %v10312 = vunpack.c.l.b16 %v10096
  %v10313 = vunpack.c.l.b16 %v10097
  %v10314 = vunpack.c.l.b16 %v10098
  %v10315 = vunpack.c.l.b16 %v10099
  %v10316 = vunpack.c.l.b16 %v10100
  %v10317 = vunpack.c.l.b16 %v10101
  %v10318 = vunpack.c.l.b16 %v10102
  %v10319 = vunpack.c.l.b16 %v10103
  %v10320 = vunpack.c.l.b16 %v10104
  %v10321 = vunpack.c.l.b16 %v10105
  %v10322 = vunpack.c.l.b16 %v10106
  %v10323 = vunpack.c.l.b16 %v10107
  %v10324 = vunpack.c.l.b16 %v10108
  %v10325 = vunpack.c.l.b16 %v10109
  %v10326 = vunpack.c.l.b16 %v10110
  %v10327 = vunpack.c.l.b16 %v10111
  %v10328 = vunpack.c.l.b16 %v10112
  %v10329 = vunpack.c.l.b16 %v10113
  %v10330 = vunpack.c.l.b16 %v10114
  %v10331 = vunpack.c.l.b16 %v10115
  %v10332 = vunpack.c.l.b16 %v10116
  %v10333 = vunpack.c.l.b16 %v10117
  %v10334 = vunpack.c.l.b16 %v10118
  %v10335 = vunpack.c.l.b16 %v10119
  %v10336 = vunpack.c.l.b16 %v10120
  %v10337 = vunpack.c.l.b16 %v10121
  %v10338 = vunpack.c.l.b16 %v10122
  %v10339 = vunpack.c.l.b16 %v10123
  %v10340 = vunpack.c.l.b16 %v10124
  %v10341 = vunpack.c.l.b16 %v10125
  %v10342 = vunpack.c.l.b16 %v10126
  %v10343 = vunpack.c.l.b16 %v10127
  %v10344 = vunpack.c.l.b16 %v10128
  %v10345 = vunpack.c.l.b16 %v10129
  %v10346 = vunpack.c.l.b16 %v10130
  %v10347 = vunpack.c.l.b16 %v10131
  %v10348 = vunpack.c.l.b16 %v10132
  %v10349 = vunpack.c.l.b16 %v10133
  %v10350 = vunpack.c.l.b16 %v10134
  %v10351 = vunpack.c.l.b16 %v10135
  %v10352 = vunpack.c.l.b16 %v10136
  %v10353 = vunpack.c.l.b16 %v10137
  %v10354 = vunpack.c.l.b16 %v10138
  %v10355 = vunpack.c.l.b16 %v10139
  %v10356 = vunpack.c.l.b16 %v10140
  %v10357 = vunpack.c.l.b16 %v10141
  %v10358 = vunpack.c.l.b16 %v10142
  %v10359 = vunpack.c.l.b16 %v10143
  %v10360 = vunpack.c.l.b16 %v10144
  %v10361 = vunpack.c.l.b16 %v10145
  %v10362 = vunpack.c.l.b16 %v10146
  %v10363 = vunpack.c.l.b16 %v10147
  %v10364 = vunpack.c.l.b16 %v10148
  %v10365 = vpack.c.b16 %v10258, %v10257
  %v10366 = vpack.c.b16 %v10260, %v10259
  %v10367 = vpack.c.b16 %v10262, %v10261
  %v10368 = vpack.c.b16 %v10264, %v10263
  %v10369 = vpack.c.b16 %v10266, %v10265
  %v10370 = vpack.c.b16 %v10268, %v10267
  %v10371 = vpack.c.b16 %v10270, %v10269
  %v10372 = vpack.c.b16 %v10272, %v10271
  %v10373 = vpack.c.b16 %v10274, %v10273
  %v10374 = vpack.c.b16 %v10276, %v10275
  %v10375 = vpack.c.b16 %v10278, %v10277
  %v10376 = vpack.c.b16 %v10280, %v10279
  %v10377 = vpack.c.b16 %v10282, %v10281
  %v10378 = vpack.c.b16 %v10284, %v10283
  %v10379 = vpack.c.b16 %v10286, %v10285
  %v10380 = vpack.c.b16 %v10288, %v10287
  %v10381 = vpack.c.b16 %v10290, %v10289
  %v10382 = vpack.c.b16 %v10292, %v10291
  %v10383 = vpack.c.b16 %v10294, %v10293
  %v10384 = vpack.c.b16 %v10296, %v10295
  %v10385 = vpack.c.b16 %v10298, %v10297
  %v10386 = vpack.c.b16 %v10300, %v10299
  %v10387 = vpack.c.b16 %v10302, %v10301
  %v10388 = vpack.c.b16 %v10304, %v10303
  %v10389 = vpack.c.b16 %v10306, %v10305
  %v10390 = vpack.c.b16 %v10308, %v10307
  %v10391 = vpack.c.b16 %v10310, %v10309
  %v10392 = vpack.c.b16 %v10312, %v10311
  %v10393 = vpack.c.b16 %v10314, %v10313
  %v10394 = vpack.c.b16 %v10316, %v10315
  %v10395 = vpack.c.b16 %v10318, %v10317
  %v10396 = vpack.c.b16 %v10320, %v10319
  %v10397 = vpack.c.b16 %v10322, %v10321
  %v10398 = vpack.c.b16 %v10324, %v10323
  %v10399 = vpack.c.b16 %v10326, %v10325
  %v10400 = vpack.c.b16 %v10328, %v10327
  %v10401 = vpack.c.b16 %v10330, %v10329
  %v10402 = vpack.c.b16 %v10332, %v10331
  %v10403 = vpack.c.b16 %v10334, %v10333
  %v10404 = vpack.c.b16 %v10336, %v10335
  %v10405 = vpack.c.b16 %v10338, %v10337
  %v10406 = vpack.c.b16 %v10340, %v10339
  %v10407 = vpack.c.b16 %v10342, %v10341
  %v10408 = vpack.c.b16 %v10344, %v10343
  %v10409 = vpack.c.b16 %v10346, %v10345
  %v10410 = vpack.c.b16 %v10348, %v10347
  %v10411 = vpack.c.b16 %v10350, %v10349
  %v10412 = vpack.c.b16 %v10352, %v10351
  %v10413 = vpack.c.b16 %v10354, %v10353
  %v10414 = vpack.c.b16 %v10356, %v10355
  %v10415 = vpack.c.b16 %v10358, %v10357
  %v10416 = vpack.c.b16 %v10360, %v10359
  %v10417 = vpack.c.b16 %v10362, %v10361
  %v10418 = vpack.c.b16 %v10364, %v10363
  %10473 = vmatprep.subr.bf16.mxu0 0
  %10474 = vmatpush1.bf16.msra.mxu0 %v10365
  %10475 = vmatprep.subr.bf16.mxu0 0
  %10476 = vmatpush1.bf16.msra.mxu0 %v10366
  %10477 = vmatprep.subr.bf16.mxu0 0
  %10478 = vmatpush1.bf16.msra.mxu0 %v10367
  %10479 = vmatprep.subr.bf16.mxu0 0
  %10480 = vmatpush1.bf16.msra.mxu0 %v10368
  %10481 = vmatprep.subr.bf16.mxu0 0
  %10482 = vmatpush1.bf16.msra.mxu0 %v10369
  %10483 = vmatprep.subr.bf16.mxu0 0
  %10484 = vmatpush1.bf16.msra.mxu0 %v10370
  %10485 = vmatprep.subr.bf16.mxu0 0
  %10486 = vmatpush1.bf16.msra.mxu0 %v10371
  %10487 = vmatprep.subr.bf16.mxu0 0
  %10488 = vmatpush1.bf16.msra.mxu0 %v10372
  %10489 = vmatprep.subr.bf16.mxu0 0
  %10490 = vmatpush1.bf16.msra.mxu0 %v10373
  %10491 = vmatprep.subr.bf16.mxu0 0
  %10492 = vmatpush1.bf16.msra.mxu0 %v10374
  %10493 = vmatprep.subr.bf16.mxu0 0
  %10494 = vmatpush1.bf16.msra.mxu0 %v10375
  %10495 = vmatprep.subr.bf16.mxu0 0
  %10496 = vmatpush1.bf16.msra.mxu0 %v10376
  %10497 = vmatprep.subr.bf16.mxu0 0
  %10498 = vmatpush1.bf16.msra.mxu0 %v10377
  %10499 = vmatprep.subr.bf16.mxu0 0
  %10500 = vmatpush1.bf16.msra.mxu0 %v10378
  %10501 = vmatprep.subr.bf16.mxu0 0
  %10502 = vmatpush1.bf16.msra.mxu0 %v10379
  %10503 = vmatprep.subr.bf16.mxu0 0
  %10504 = vmatpush1.bf16.msra.mxu0 %v10380
  %10505 = vmatprep.mubr.bf16.mxu0 %v8160
  %10506 = vmatmul.mubr.bf16.gmra.mrb[0].mxu0 %v8159
  %v10507 = vpop.f32.mrb[0].mxu0
  %v10508 = vadd.f32 0.0, %v10507
  %v10509 = vpop.f32.mrb[0].mxu0
  %v10510 = vpop.f32.mrb[0].mxu0
  %v10511 = vadd.f32 0.0, %v10510
  %v10512 = vpop.f32.mrb[0].mxu0
  %10513 = vmatprep.mubr.bf16.mxu0 %v8167
  %10514 = vmatmul.mubr.bf16.gmra.mrb[0].mxu0 %v8166
  %v10515 = vpop.f32.mrb[0].mxu0
  %v10516 = vadd.f32 0.0, %v10515
  %v10517 = vpop.f32.mrb[0].mxu0
  %v10518 = vpop.f32.mrb[0].mxu0
  %v10519 = vadd.f32 0.0, %v10518
  %v10520 = vpop.f32.mrb[0].mxu0
  %10521 = vmatprep.mubr.bf16.mxu0 %v8174
  %10522 = vmatmul.mubr.bf16.gmra.mrb[0].mxu0 %v8173
  %v10523 = vpop.f32.mrb[0].mxu0
  %v10524 = vadd.f32 0.0, %v10523
  %v10525 = vpop.f32.mrb[0].mxu0
  %v10526 = vpop.f32.mrb[0].mxu0
  %v10527 = vadd.f32 0.0, %v10526
  %v10528 = vpop.f32.mrb[0].mxu0
  %10529 = vmatprep.mubr.bf16.mxu0 %v8181
  %10530 = vmatmul.mubr.bf16.gmra.mrb[0].mxu0 %v8180
  %v10531 = vpop.f32.mrb[0].mxu0
  %v10532 = vadd.f32 0.0, %v10531
  %v10533 = vpop.f32.mrb[0].mxu0
  %v10534 = vpop.f32.mrb[0].mxu0
  %v10535 = vadd.f32 0.0, %v10534
  %v10536 = vpop.f32.mrb[0].mxu0
  %10537 = vmatprep.mubr.bf16.mxu0 %v8188
  %10538 = vmatmul.mubr.bf16.gmra.mrb[0].mxu0 %v8187
  %v10539 = vpop.f32.mrb[0].mxu0
  %v10540 = vadd.f32 0.0, %v10539
  %v10541 = vpop.f32.mrb[0].mxu0
  %v10542 = vpop.f32.mrb[0].mxu0
  %v10543 = vadd.f32 0.0, %v10542
  %v10544 = vpop.f32.mrb[0].mxu0
  %10545 = vmatprep.mubr.bf16.mxu0 %v8195
  %10546 = vmatmul.mubr.bf16.gmra.mrb[0].mxu0 %v8194
  %v10547 = vpop.f32.mrb[0].mxu0
  %v10548 = vadd.f32 0.0, %v10547
  %v10549 = vpop.f32.mrb[0].mxu0
  %v10550 = vpop.f32.mrb[0].mxu0
  %v10551 = vadd.f32 0.0, %v10550
  %v10552 = vpop.f32.mrb[0].mxu0
  %10553 = vmatprep.mubr.bf16.mxu0 %v8202
  %10554 = vmatmul.mubr.bf16.gmra.mrb[0].mxu0 %v8201
  %v10555 = vpop.f32.mrb[0].mxu0
  %v10556 = vadd.f32 0.0, %v10555
  %v10557 = vpop.f32.mrb[0].mxu0
  %v10558 = vpop.f32.mrb[0].mxu0
  %v10559 = vadd.f32 0.0, %v10558
  %v10560 = vpop.f32.mrb[0].mxu0
  %10561 = vmatprep.mubr.bf16.mxu0 %v8209
  %10562 = vmatmul.mubr.bf16.gmra.mrb[0].mxu0 %v8208
  %v10563 = vpop.f32.mrb[0].mxu0
  %v10564 = vadd.f32 0.0, %v10563
  %v10565 = vpop.f32.mrb[0].mxu0
  %v10566 = vpop.f32.mrb[0].mxu0
  %v10567 = vadd.f32 0.0, %v10566
  %v10568 = vpop.f32.mrb[0].mxu0
  %10569 = vmatprep.mubr.bf16.mxu0 %v8216
  %10570 = vmatmul.mubr.bf16.gmra.mrb[0].mxu0 %v8215
  %v10571 = vpop.f32.mrb[0].mxu0
  %v10572 = vadd.f32 0.0, %v10571
  %v10573 = vpop.f32.mrb[0].mxu0
  %v10574 = vpop.f32.mrb[0].mxu0
  %v10575 = vadd.f32 0.0, %v10574
  %v10576 = vpop.f32.mrb[0].mxu0
  %10577 = vmatprep.mubr.bf16.mxu0 %v8223
  %10578 = vmatmul.mubr.bf16.gmra.mrb[0].mxu0 %v8222
  %v10579 = vpop.f32.mrb[0].mxu0
  %v10580 = vadd.f32 0.0, %v10579
  %v10581 = vpop.f32.mrb[0].mxu0
  %v10582 = vpop.f32.mrb[0].mxu0
  %v10583 = vpop.f32.mrb[0].mxu0
  %10584 = vdwg.mxu0
  %10585 = vmatprep.subr.bf16.mxu0 0
  %10586 = vmatpush1.bf16.msra.mxu0 %v10381
  %10587 = vmatprep.subr.bf16.mxu0 0
  %10588 = vmatpush1.bf16.msra.mxu0 %v10382
  %10589 = vmatprep.subr.bf16.mxu0 0
  %10590 = vmatpush1.bf16.msra.mxu0 %v10383
  %10591 = vmatprep.subr.bf16.mxu0 0
  %10592 = vmatpush1.bf16.msra.mxu0 %v10384
  %10593 = vmatprep.subr.bf16.mxu0 0
  %10594 = vmatpush1.bf16.msra.mxu0 %v10385
  %10595 = vmatprep.subr.bf16.mxu0 0
  %10596 = vmatpush1.bf16.msra.mxu0 %v10386
  %10597 = vmatprep.subr.bf16.mxu0 0
  %10598 = vmatpush1.bf16.msra.mxu0 %v10387
  %10599 = vmatprep.subr.bf16.mxu0 0
  %10600 = vmatpush1.bf16.msra.mxu0 %v10388
  %10601 = vmatprep.subr.bf16.mxu0 0
  %10602 = vmatpush1.bf16.msra.mxu0 %v10389
  %10603 = vmatprep.subr.bf16.mxu0 0
  %10604 = vmatpush1.bf16.msra.mxu0 %v10390
  %10605 = vmatprep.subr.bf16.mxu0 0
  %10606 = vmatpush1.bf16.msra.mxu0 %v10391
  %10607 = vmatprep.subr.bf16.mxu0 0
  %10608 = vmatpush1.bf16.msra.mxu0 %v10392
  %10609 = vmatprep.subr.bf16.mxu0 0
  %10610 = vmatpush1.bf16.msra.mxu0 %v10393
  %10611 = vmatprep.subr.bf16.mxu0 0
  %10612 = vmatpush1.bf16.msra.mxu0 %v10394
  %10613 = vmatprep.subr.bf16.mxu0 0
  %10614 = vmatpush1.bf16.msra.mxu0 %v10395
  %10615 = vmatprep.subr.bf16.mxu0 0
  %10616 = vmatpush1.bf16.msra.mxu0 %v10396
  %10617 = vmatprep.mubr.bf16.mxu0 %v8162
  %10618 = vmatmul.mubr.bf16.gmra.mrb[0].mxu0 %v8161
  %v10619 = vpop.f32.mrb[0].mxu0
  %v10620 = vadd.f32 %v10508, %v10619
  %v10621 = vpop.f32.mrb[0].mxu0
  %v10622 = vpop.f32.mrb[0].mxu0
  %v10623 = vadd.f32 %v10511, %v10622
  %v10624 = vpop.f32.mrb[0].mxu0
  %10625 = vmatprep.mubr.bf16.mxu0 %v8169
  %10626 = vmatmul.mubr.bf16.gmra.mrb[0].mxu0 %v8168
  %v10627 = vpop.f32.mrb[0].mxu0
  %v10628 = vadd.f32 %v10516, %v10627
  %v10629 = vpop.f32.mrb[0].mxu0
  %v10630 = vpop.f32.mrb[0].mxu0
  %v10631 = vadd.f32 %v10519, %v10630
  %v10632 = vpop.f32.mrb[0].mxu0
  %10633 = vmatprep.mubr.bf16.mxu0 %v8176
  %10634 = vmatmul.mubr.bf16.gmra.mrb[0].mxu0 %v8175
  %v10635 = vpop.f32.mrb[0].mxu0
  %v10636 = vadd.f32 %v10524, %v10635
  %v10637 = vpop.f32.mrb[0].mxu0
  %v10638 = vpop.f32.mrb[0].mxu0
  %v10639 = vadd.f32 %v10527, %v10638
  %v10640 = vpop.f32.mrb[0].mxu0
  %10641 = vmatprep.mubr.bf16.mxu0 %v8183
  %10642 = vmatmul.mubr.bf16.gmra.mrb[0].mxu0 %v8182
  %v10643 = vpop.f32.mrb[0].mxu0
  %v10644 = vadd.f32 %v10532, %v10643
  %v10645 = vpop.f32.mrb[0].mxu0
  %v10646 = vpop.f32.mrb[0].mxu0
  %v10647 = vadd.f32 %v10535, %v10646
  %v10648 = vpop.f32.mrb[0].mxu0
  %10649 = vmatprep.mubr.bf16.mxu0 %v8190
  %10650 = vmatmul.mubr.bf16.gmra.mrb[0].mxu0 %v8189
  %v10651 = vpop.f32.mrb[0].mxu0
  %v10652 = vadd.f32 %v10540, %v10651
  %v10653 = vpop.f32.mrb[0].mxu0
  %v10654 = vpop.f32.mrb[0].mxu0
  %v10655 = vadd.f32 %v10543, %v10654
  %v10656 = vpop.f32.mrb[0].mxu0
  %10657 = vmatprep.mubr.bf16.mxu0 %v8197
  %10658 = vmatmul.mubr.bf16.gmra.mrb[0].mxu0 %v8196
  %v10659 = vpop.f32.mrb[0].mxu0
  %v10660 = vadd.f32 %v10548, %v10659
  %v10661 = vpop.f32.mrb[0].mxu0
  %v10662 = vpop.f32.mrb[0].mxu0
  %v10663 = vadd.f32 %v10551, %v10662
  %v10664 = vpop.f32.mrb[0].mxu0
  %10665 = vmatprep.mubr.bf16.mxu0 %v8204
  %10666 = vmatmul.mubr.bf16.gmra.mrb[0].mxu0 %v8203
  %v10667 = vpop.f32.mrb[0].mxu0
  %v10668 = vadd.f32 %v10556, %v10667
  %v10669 = vpop.f32.mrb[0].mxu0
  %v10670 = vpop.f32.mrb[0].mxu0
  %v10671 = vadd.f32 %v10559, %v10670
  %v10672 = vpop.f32.mrb[0].mxu0
  %10673 = vmatprep.mubr.bf16.mxu0 %v8211
  %10674 = vmatmul.mubr.bf16.gmra.mrb[0].mxu0 %v8210
  %v10675 = vpop.f32.mrb[0].mxu0
  %v10676 = vadd.f32 %v10564, %v10675
  %v10677 = vpop.f32.mrb[0].mxu0
  %v10678 = vpop.f32.mrb[0].mxu0
  %v10679 = vadd.f32 %v10567, %v10678
  %v10680 = vpop.f32.mrb[0].mxu0
  %10681 = vmatprep.mubr.bf16.mxu0 %v8218
  %10682 = vmatmul.mubr.bf16.gmra.mrb[0].mxu0 %v8217
  %v10683 = vpop.f32.mrb[0].mxu0
  %v10684 = vadd.f32 %v10572, %v10683
  %v10685 = vpop.f32.mrb[0].mxu0
  %v10686 = vpop.f32.mrb[0].mxu0
  %v10687 = vadd.f32 %v10575, %v10686
  %v10688 = vpop.f32.mrb[0].mxu0
  %10689 = vmatprep.mubr.bf16.mxu0 %v8225
  %10690 = vmatmul.mubr.bf16.gmra.mrb[0].mxu0 %v8224
  %v10691 = vpop.f32.mrb[0].mxu0
  %v10692 = vadd.f32 %v10580, %v10691
  %v10693 = vpop.f32.mrb[0].mxu0
  %v10694 = vpop.f32.mrb[0].mxu0
  %v10695 = vpop.f32.mrb[0].mxu0
  %10696 = vdwg.mxu0
  %10697 = vmatprep.subr.bf16.mxu0 0
  %10698 = vmatpush1.bf16.msra.mxu0 %v10397
  %10699 = vmatprep.subr.bf16.mxu0 0
  %10700 = vmatpush1.bf16.msra.mxu0 %v10398
  %10701 = vmatprep.subr.bf16.mxu0 0
  %10702 = vmatpush1.bf16.msra.mxu0 %v10399
  %10703 = vmatprep.subr.bf16.mxu0 0
  %10704 = vmatpush1.bf16.msra.mxu0 %v10400
  %10705 = vmatprep.subr.bf16.mxu0 0
  %10706 = vmatpush1.bf16.msra.mxu0 %v10401
  %10707 = vmatprep.subr.bf16.mxu0 0
  %10708 = vmatpush1.bf16.msra.mxu0 %v10402
  %10709 = vmatprep.subr.bf16.mxu0 0
  %10710 = vmatpush1.bf16.msra.mxu0 %v10403
  %10711 = vmatprep.subr.bf16.mxu0 0
  %10712 = vmatpush1.bf16.msra.mxu0 %v10404
  %10713 = vmatprep.subr.bf16.mxu0 0
  %10714 = vmatpush1.bf16.msra.mxu0 %v10405
  %10715 = vmatprep.subr.bf16.mxu0 0
  %10716 = vmatpush1.bf16.msra.mxu0 %v10406
  %10717 = vmatprep.subr.bf16.mxu0 0
  %10718 = vmatpush1.bf16.msra.mxu0 %v10407
  %10719 = vmatprep.subr.bf16.mxu0 0
  %10720 = vmatpush1.bf16.msra.mxu0 %v10408
  %10721 = vmatprep.subr.bf16.mxu0 0
  %10722 = vmatpush1.bf16.msra.mxu0 %v10409
  %10723 = vmatprep.subr.bf16.mxu0 0
  %10724 = vmatpush1.bf16.msra.mxu0 %v10410
  %10725 = vmatprep.subr.bf16.mxu0 0
  %10726 = vmatpush1.bf16.msra.mxu0 %v10411
  %10727 = vmatprep.subr.bf16.mxu0 0
  %10728 = vmatpush1.bf16.msra.mxu0 %v10412
  %10729 = vmatprep.mubr.bf16.mxu0 %v8164
  %10730 = vmatmul.mubr.bf16.gmra.mrb[0].mxu0 %v8163
  %v10731 = vpop.f32.mrb[0].mxu0
  %v10732 = vadd.f32 %v10620, %v10731
  %v10733 = vpop.f32.mrb[0].mxu0
  %v10734 = vpop.f32.mrb[0].mxu0
  %v10735 = vadd.f32 %v10623, %v10734
  %v10736 = vpop.f32.mrb[0].mxu0
  %10737 = vmatprep.mubr.bf16.mxu0 %v8171
  %10738 = vmatmul.mubr.bf16.gmra.mrb[0].mxu0 %v8170
  %v10739 = vpop.f32.mrb[0].mxu0
  %v10740 = vadd.f32 %v10628, %v10739
  %v10741 = vpop.f32.mrb[0].mxu0
  %v10742 = vpop.f32.mrb[0].mxu0
  %v10743 = vadd.f32 %v10631, %v10742
  %v10744 = vpop.f32.mrb[0].mxu0
  %10745 = vmatprep.mubr.bf16.mxu0 %v8178
  %10746 = vmatmul.mubr.bf16.gmra.mrb[0].mxu0 %v8177
  %v10747 = vpop.f32.mrb[0].mxu0
  %v10748 = vadd.f32 %v10636, %v10747
  %v10749 = vpop.f32.mrb[0].mxu0
  %v10750 = vpop.f32.mrb[0].mxu0
  %v10751 = vadd.f32 %v10639, %v10750
  %v10752 = vpop.f32.mrb[0].mxu0
  %10753 = vmatprep.mubr.bf16.mxu0 %v8185
  %10754 = vmatmul.mubr.bf16.gmra.mrb[0].mxu0 %v8184
  %v10755 = vpop.f32.mrb[0].mxu0
  %v10756 = vadd.f32 %v10644, %v10755
  %v10757 = vpop.f32.mrb[0].mxu0
  %v10758 = vpop.f32.mrb[0].mxu0
  %v10759 = vadd.f32 %v10647, %v10758
  %v10760 = vpop.f32.mrb[0].mxu0
  %10761 = vmatprep.mubr.bf16.mxu0 %v8192
  %10762 = vmatmul.mubr.bf16.gmra.mrb[0].mxu0 %v8191
  %v10763 = vpop.f32.mrb[0].mxu0
  %v10764 = vadd.f32 %v10652, %v10763
  %v10765 = vpop.f32.mrb[0].mxu0
  %v10766 = vpop.f32.mrb[0].mxu0
  %v10767 = vadd.f32 %v10655, %v10766
  %v10768 = vpop.f32.mrb[0].mxu0
  %10769 = vmatprep.mubr.bf16.mxu0 %v8199
  %10770 = vmatmul.mubr.bf16.gmra.mrb[0].mxu0 %v8198
  %v10771 = vpop.f32.mrb[0].mxu0
  %v10772 = vadd.f32 %v10660, %v10771
  %v10773 = vpop.f32.mrb[0].mxu0
  %v10774 = vpop.f32.mrb[0].mxu0
  %v10775 = vadd.f32 %v10663, %v10774
  %v10776 = vpop.f32.mrb[0].mxu0
  %10777 = vmatprep.mubr.bf16.mxu0 %v8206
  %10778 = vmatmul.mubr.bf16.gmra.mrb[0].mxu0 %v8205
  %v10779 = vpop.f32.mrb[0].mxu0
  %v10780 = vadd.f32 %v10668, %v10779
  %v10781 = vpop.f32.mrb[0].mxu0
  %v10782 = vpop.f32.mrb[0].mxu0
  %v10783 = vadd.f32 %v10671, %v10782
  %v10784 = vpop.f32.mrb[0].mxu0
  %10785 = vmatprep.mubr.bf16.mxu0 %v8213
  %10786 = vmatmul.mubr.bf16.gmra.mrb[0].mxu0 %v8212
  %v10787 = vpop.f32.mrb[0].mxu0
  %v10788 = vadd.f32 %v10676, %v10787
  %v10789 = vpop.f32.mrb[0].mxu0
  %v10790 = vpop.f32.mrb[0].mxu0
  %v10791 = vadd.f32 %v10679, %v10790
  %v10792 = vpop.f32.mrb[0].mxu0
  %10793 = vmatprep.mubr.bf16.mxu0 %v8220
  %10794 = vmatmul.mubr.bf16.gmra.mrb[0].mxu0 %v8219
  %v10795 = vpop.f32.mrb[0].mxu0
  %v10796 = vadd.f32 %v10684, %v10795
  %v10797 = vpop.f32.mrb[0].mxu0
  %v10798 = vpop.f32.mrb[0].mxu0
  %v10799 = vadd.f32 %v10687, %v10798
  %v10800 = vpop.f32.mrb[0].mxu0
  %10801 = vmatprep.mubr.bf16.mxu0 %v8227
  %10802 = vmatmul.mubr.bf16.gmra.mrb[0].mxu0 %v8226
  %v10803 = vpop.f32.mrb[0].mxu0
  %v10804 = vadd.f32 %v10692, %v10803
  %v10805 = vpop.f32.mrb[0].mxu0
  %v10806 = vpop.f32.mrb[0].mxu0
  %v10807 = vpop.f32.mrb[0].mxu0
  %10808 = vdwg.mxu0
  %10809 = vmatprep.subr.bf16.mxu0 0
  %10810 = vmatpush1.bf16.msra.mxu0 %v10413
  %10811 = vmatprep.subr.bf16.mxu0 0
  %10812 = vmatpush1.bf16.msra.mxu0 %v10414
  %10813 = vmatprep.subr.bf16.mxu0 0
  %10814 = vmatpush1.bf16.msra.mxu0 %v10415
  %10815 = vmatprep.subr.bf16.mxu0 0
  %10816 = vmatpush1.bf16.msra.mxu0 %v10416
  %10817 = vmatprep.subr.bf16.mxu0 0
  %10818 = vmatpush1.bf16.msra.mxu0 %v10417
  %10819 = vmatprep.subr.bf16.mxu0 0
  %10820 = vmatpush1.bf16.msra.mxu0 %v10418
  %10821 = vmatprep.subr.bf16.mxu0 0
  %10822 = vmatpush1.bf16.msra.mxu0 0
  %10823 = vmatprep.subr.bf16.mxu0 0
  %10824 = vmatpush1.bf16.msra.mxu0 0
  %10825 = vmatprep.subr.bf16.mxu0 0
  %10826 = vmatpush1.bf16.msra.mxu0 0
  %10827 = vmatprep.subr.bf16.mxu0 0
  %10828 = vmatpush1.bf16.msra.mxu0 0
  %10829 = vmatprep.subr.bf16.mxu0 0
  %10830 = vmatpush1.bf16.msra.mxu0 0
  %10831 = vmatprep.subr.bf16.mxu0 0
  %10832 = vmatpush1.bf16.msra.mxu0 0
  %10833 = vmatprep.subr.bf16.mxu0 0
  %10834 = vmatpush1.bf16.msra.mxu0 0
  %10835 = vmatprep.subr.bf16.mxu0 0
  %10836 = vmatpush1.bf16.msra.mxu0 0
  %10837 = vmatprep.subr.bf16.mxu0 0
  %10838 = vmatpush1.bf16.msra.mxu0 0
  %10839 = vmatprep.subr.bf16.mxu0 0
  %10840 = vmatpush1.bf16.msra.mxu0 0
  %10841 = vmatprep.mubr.bf16.mxu0 0
  %10842 = vmatmul.mubr.bf16.gmra.mrb[0].mxu0 %v8663
  %v10843 = vpop.f32.mrb[0].mxu0
  %v10844 = vadd.f32 %v10732, %v10843
  %v10845 = vpop.f32.mrb[0].mxu0
  %v10846 = vpop.f32.mrb[0].mxu0
  %v10847 = vadd.f32 %v10735, %v10846
  %v10848 = vpop.f32.mrb[0].mxu0
  %10849 = vmatprep.mubr.bf16.mxu0 0
  %10850 = vmatmul.mubr.bf16.gmra.mrb[0].mxu0 %v8666
  %v10851 = vpop.f32.mrb[0].mxu0
  %v10852 = vadd.f32 %v10740, %v10851
  %v10853 = vpop.f32.mrb[0].mxu0
  %v10854 = vpop.f32.mrb[0].mxu0
  %v10855 = vadd.f32 %v10743, %v10854
  %v10856 = vpop.f32.mrb[0].mxu0
  %10857 = vmatprep.mubr.bf16.mxu0 0
  %10858 = vmatmul.mubr.bf16.gmra.mrb[0].mxu0 %v8669
  %v10859 = vpop.f32.mrb[0].mxu0
  %v10860 = vadd.f32 %v10748, %v10859
  %v10861 = vpop.f32.mrb[0].mxu0
  %v10862 = vpop.f32.mrb[0].mxu0
  %v10863 = vadd.f32 %v10751, %v10862
  %v10864 = vpop.f32.mrb[0].mxu0
  %10865 = vmatprep.mubr.bf16.mxu0 0
  %10866 = vmatmul.mubr.bf16.gmra.mrb[0].mxu0 %v8672
  %v10867 = vpop.f32.mrb[0].mxu0
  %v10868 = vadd.f32 %v10756, %v10867
  %v10869 = vpop.f32.mrb[0].mxu0
  %v10870 = vpop.f32.mrb[0].mxu0
  %v10871 = vadd.f32 %v10759, %v10870
  %v10872 = vpop.f32.mrb[0].mxu0
  %10873 = vmatprep.mubr.bf16.mxu0 0
  %10874 = vmatmul.mubr.bf16.gmra.mrb[0].mxu0 %v8675
  %v10875 = vpop.f32.mrb[0].mxu0
  %v10876 = vadd.f32 %v10764, %v10875
  %v10877 = vpop.f32.mrb[0].mxu0
  %v10878 = vpop.f32.mrb[0].mxu0
  %v10879 = vadd.f32 %v10767, %v10878
  %v10880 = vpop.f32.mrb[0].mxu0
  %10881 = vmatprep.mubr.bf16.mxu0 0
  %10882 = vmatmul.mubr.bf16.gmra.mrb[0].mxu0 %v8678
  %v10883 = vpop.f32.mrb[0].mxu0
  %v10884 = vadd.f32 %v10772, %v10883
  %v10885 = vpop.f32.mrb[0].mxu0
  %v10886 = vpop.f32.mrb[0].mxu0
  %v10887 = vadd.f32 %v10775, %v10886
  %v10888 = vpop.f32.mrb[0].mxu0
  %10889 = vmatprep.mubr.bf16.mxu0 0
  %10890 = vmatmul.mubr.bf16.gmra.mrb[0].mxu0 %v8681
  %v10891 = vpop.f32.mrb[0].mxu0
  %v10892 = vadd.f32 %v10780, %v10891
  %v10893 = vpop.f32.mrb[0].mxu0
  %v10894 = vpop.f32.mrb[0].mxu0
  %v10895 = vadd.f32 %v10783, %v10894
  %v10896 = vpop.f32.mrb[0].mxu0
  %10897 = vmatprep.mubr.bf16.mxu0 0
  %10898 = vmatmul.mubr.bf16.gmra.mrb[0].mxu0 %v8684
  %v10899 = vpop.f32.mrb[0].mxu0
  %v10900 = vadd.f32 %v10788, %v10899
  %v10901 = vpop.f32.mrb[0].mxu0
  %v10902 = vpop.f32.mrb[0].mxu0
  %v10903 = vadd.f32 %v10791, %v10902
  %v10904 = vpop.f32.mrb[0].mxu0
  %10905 = vmatprep.mubr.bf16.mxu0 0
  %10906 = vmatmul.mubr.bf16.gmra.mrb[0].mxu0 %v8687
  %v10907 = vpop.f32.mrb[0].mxu0
  %v10908 = vadd.f32 %v10796, %v10907
  %v10909 = vpop.f32.mrb[0].mxu0
  %v10910 = vpop.f32.mrb[0].mxu0
  %v10911 = vadd.f32 %v10799, %v10910
  %v10912 = vpop.f32.mrb[0].mxu0
  %10913 = vmatprep.mubr.bf16.mxu0 0
  %10914 = vmatmul.mubr.bf16.gmra.mrb[0].mxu0 %v8690
  %v10915 = vpop.f32.mrb[0].mxu0
  %v10916 = vadd.f32 %v10804, %v10915
  %v10917 = vpop.f32.mrb[0].mxu0
  %v10918 = vpop.f32.mrb[0].mxu0
  %v10919 = vpop.f32.mrb[0].mxu0
  %10920 = vdwg.mxu0
  %v10921 = vmax.f32 %v10021, %v10844
  %v10922 = vmax.f32 %v10022, %v10847
  %v10923 = vmax.f32 %v10023, %v10852
  %v10924 = vmax.f32 %v10024, %v10855
  %v10925 = vmax.f32 %v10025, %v10860
  %v10926 = vmax.f32 %v10026, %v10863
  %v10927 = vmax.f32 %v10027, %v10868
  %v10928 = vmax.f32 %v10028, %v10871
  %v10929 = vmax.f32 %v10029, %v10876
  %v10930 = vmax.f32 %v10030, %v10879
  %v10931 = vmax.f32 %v10031, %v10884
  %v10932 = vmax.f32 %v10032, %v10887
  %v10933 = vmax.f32 %v10033, %v10892
  %v10934 = vmax.f32 %v10034, %v10895
  %v10935 = vmax.f32 %v10035, %v10900
  %v10936 = vmax.f32 %v10036, %v10903
  %v10937 = vmax.f32 %v10037, %v10908
  %v10938 = vmax.f32 %v10038, %v10911
  %v10939 = vmax.f32 %v10039, %v10916
  %v10940 = vld [vmem:[%s4] sm:$0x1]
  %v10942 = vlaneseq
  %v10943 = vshrl.u32 %v10942, 7
  %v10944 = vsub.s32 0, %v10943
  %v10945 = vrot.slane %v10940, %v10944
  %v10947 = vadd.f32 %v10921, %v10945
  %v10948 = vadd.f32 %v10922, %v10945
  %v10949 = vadd.f32 %v10923, %v10945
  %v10950 = vadd.f32 %v10924, %v10945
  %v10951 = vadd.f32 %v10925, %v10945
  %v10952 = vadd.f32 %v10926, %v10945
  %v10953 = vadd.f32 %v10927, %v10945
  %v10954 = vadd.f32 %v10928, %v10945
  %v10955 = vadd.f32 %v10929, %v10945
  %v10956 = vadd.f32 %v10930, %v10945
  %v10957 = vadd.f32 %v10931, %v10945
  %v10958 = vadd.f32 %v10932, %v10945
  %v10959 = vadd.f32 %v10933, %v10945
  %v10960 = vadd.f32 %v10934, %v10945
  %v10961 = vadd.f32 %v10935, %v10945
  %v10962 = vadd.f32 %v10936, %v10945
  %v10963 = vadd.f32 %v10937, %v10945
  %v10964 = vadd.f32 %v10938, %v10945
  %v10965 = vadd.f32 %v10939, %v10945
  %v10966 = vmax.f32 %v10947, 0.0
  %v10967 = vmax.f32 %v10948, 0.0
  %v10968 = vmax.f32 %v10949, 0.0
  %v10969 = vmax.f32 %v10950, 0.0
  %v10970 = vmax.f32 %v10951, 0.0
  %v10971 = vmax.f32 %v10952, 0.0
  %v10972 = vmax.f32 %v10953, 0.0
  %v10973 = vmax.f32 %v10954, 0.0
  %v10974 = vmax.f32 %v10955, 0.0
  %v10975 = vmax.f32 %v10956, 0.0
  %v10976 = vmax.f32 %v10957, 0.0
  %v10977 = vmax.f32 %v10958, 0.0
  %v10978 = vmax.f32 %v10959, 0.0
  %v10979 = vmax.f32 %v10960, 0.0
  %v10980 = vmax.f32 %v10961, 0.0
  %v10981 = vmax.f32 %v10962, 0.0
  %v10982 = vmax.f32 %v10963, 0.0
  %v10983 = vmax.f32 %v10964, 0.0
  %v10984 = vmax.f32 %v10965, 0.0
  %vm10985 = vcmask 523264
  %10986 = vst.msk [vmem:[%s11] sm:$0xff] %vm10985, %v10966
  %10987 = vst.msk [vmem:[%s11 + $0x8] sm:$0xff] %vm10985, %v10967
  %10988 = vst.msk [vmem:[%s11 + $0x10] sm:$0xff] %vm10985, %v10968
  %10989 = vst.msk [vmem:[%s11 + $0x18] sm:$0xff] %vm10985, %v10969
  %10990 = vst.msk [vmem:[%s11 + $0x20] sm:$0xff] %vm10985, %v10970
  %10991 = vst.msk [vmem:[%s11 + $0x28] sm:$0xff] %vm10985, %v10971
  %10992 = vst.msk [vmem:[%s11 + $0x30] sm:$0xff] %vm10985, %v10972
  %10993 = vst.msk [vmem:[%s11 + $0x38] sm:$0xff] %vm10985, %v10973
  %10994 = vst.msk [vmem:[%s11 + $0x40] sm:$0xff] %vm10985, %v10974
  %10995 = vst.msk [vmem:[%s11 + $0x48] sm:$0xff] %vm10985, %v10975
  %10996 = vst.msk [vmem:[%s11 + $0x50] sm:$0xff] %vm10985, %v10976
  %10997 = vst.msk [vmem:[%s11 + $0x58] sm:$0xff] %vm10985, %v10977
  %10998 = vst.msk [vmem:[%s11 + $0x60] sm:$0xff] %vm10985, %v10978
  %10999 = vst.msk [vmem:[%s11 + $0x68] sm:$0xff] %vm10985, %v10979
  %11000 = vst.msk [vmem:[%s11 + $0x70] sm:$0xff] %vm10985, %v10980
  %11001 = vst.msk [vmem:[%s11 + $0x78] sm:$0xff] %vm10985, %v10981
  %11002 = vst.msk [vmem:[%s11 + $0x80] sm:$0xff] %vm10985, %v10982
  %11003 = vst.msk [vmem:[%s11 + $0x88] sm:$0xff] %vm10985, %v10983
  %11004 = vst.msk [vmem:[%s11 + $0x90] sm:$0xff] %vm10985, %v10984
  %v11005 = vld [vmem:[%s5] sm:$0xff]
  %v11006 = vld [vmem:[%s5 + $0x8] sm:$0xff]
  %v11007 = vld [vmem:[%s5 + $0x10] sm:$0xff]
  %v11008 = vld [vmem:[%s5 + $0x18] sm:$0xff]
  %v11009 = vld [vmem:[%s5 + $0x20] sm:$0xff]
  %v11010 = vld [vmem:[%s5 + $0x28] sm:$0xff]
  %v11011 = vld [vmem:[%s5 + $0x30] sm:$0xff]
  %v11012 = vld [vmem:[%s5 + $0x38] sm:$0xff]
  %v11013 = vld [vmem:[#allocation2] sm:$0x1]
  %v11015 = vlaneseq
  %v11016 = vshrl.u32 %v11015, 7
  %v11017 = vsub.s32 0, %v11016
  %v11018 = vrot.slane %v11013, %v11017
  %v11021 = vsel %vm10985, %v10966, 0
  %v11024 = vsel %vm10985, %v10967, 0
  %v11027 = vsel %vm10985, %v10968, 0
  %v11030 = vsel %vm10985, %v10969, 0
  %v11033 = vsel %vm10985, %v10970, 0
  %v11036 = vsel %vm10985, %v10971, 0
  %v11039 = vsel %vm10985, %v10972, 0
  %v11042 = vsel %vm10985, %v10973, 0
  %v11045 = vsel %vm10985, %v10974, 0
  %v11048 = vsel %vm10985, %v10975, 0
  %v11051 = vsel %vm10985, %v10976, 0
  %v11054 = vsel %vm10985, %v10977, 0
  %v11057 = vsel %vm10985, %v10978, 0
  %v11060 = vsel %vm10985, %v10979, 0
  %v11063 = vsel %vm10985, %v10980, 0
  %v11066 = vsel %vm10985, %v10981, 0
  %v11069 = vsel %vm10985, %v10982, 0
  %v11072 = vsel %vm10985, %v10983, 0
  %v11075 = vsel %vm10985, %v10984, 0
  %11077 = vmatprep.subr.mxu0 0.0
  %11078 = vmatpush1.msra.mxu0 %v11005
  %11079 = vmatprep.subr.mxu0 0.0
  %11080 = vmatpush1.msra.mxu0 %v11006
  %11081 = vmatprep.subr.mxu0 0.0
  %11082 = vmatpush1.msra.mxu0 %v11007
  %11083 = vmatprep.subr.mxu0 0.0
  %11084 = vmatpush1.msra.mxu0 %v11008
  %11085 = vmatprep.subr.mxu0 0.0
  %11086 = vmatpush1.msra.mxu0 %v11009
  %11087 = vmatprep.subr.mxu0 0.0
  %11088 = vmatpush1.msra.mxu0 %v11010
  %11089 = vmatprep.subr.mxu0 0.0
  %11090 = vmatpush1.msra.mxu0 %v11011
  %11091 = vmatprep.subr.mxu0 0.0
  %11092 = vmatpush1.msra.mxu0 %v11012
  %11093 = vmatprep.subr.mxu0 0.0
  %11094 = vmatpush1.msra.mxu0 0.0
  %11095 = vmatprep.subr.mxu0 0.0
  %11096 = vmatpush1.msra.mxu0 0.0
  %11097 = vmatprep.subr.mxu0 0.0
  %11098 = vmatpush1.msra.mxu0 0.0
  %11099 = vmatprep.subr.mxu0 0.0
  %11100 = vmatpush1.msra.mxu0 0.0
  %11101 = vmatprep.subr.mxu0 0.0
  %11102 = vmatpush1.msra.mxu0 0.0
  %11103 = vmatprep.subr.mxu0 0.0
  %11104 = vmatpush1.msra.mxu0 0.0
  %11105 = vmatprep.subr.mxu0 0.0
  %11106 = vmatpush1.msra.mxu0 0.0
  %11107 = vmatprep.subr.mxu0 0.0
  %11108 = vmatpush1.msra.mxu0 0.0
  %11109 = vmatprep.subr.mxu0 0.0
  %11110 = vmatpush1.msra.mxu0 0.0
  %11111 = vmatprep.subr.mxu0 0.0
  %11112 = vmatpush1.msra.mxu0 0.0
  %11113 = vmatprep.subr.mxu0 0.0
  %11114 = vmatpush1.msra.mxu0 0.0
  %11115 = vmatprep.subr.mxu0 0.0
  %11116 = vmatpush1.msra.mxu0 0.0
  %11117 = vmatprep.subr.mxu0 0.0
  %11118 = vmatpush1.msra.mxu0 0.0
  %11119 = vmatprep.subr.mxu0 0.0
  %11120 = vmatpush1.msra.mxu0 0.0
  %11121 = vmatprep.subr.mxu0 0.0
  %11122 = vmatpush1.msra.mxu0 0.0
  %11123 = vmatprep.subr.mxu0 0.0
  %11124 = vmatpush1.msra.mxu0 0.0
  %11125 = vmatprep.subr.mxu0 0.0
  %11126 = vmatpush1.msra.mxu0 0.0
  %11127 = vmatprep.subr.mxu0 0.0
  %11128 = vmatpush1.msra.mxu0 0.0
  %11129 = vmatprep.subr.mxu0 0.0
  %11130 = vmatpush1.msra.mxu0 0.0
  %11131 = vmatprep.subr.mxu0 0.0
  %11132 = vmatpush1.msra.mxu0 0.0
  %11133 = vmatprep.subr.mxu0 0.0
  %11134 = vmatpush1.msra.mxu0 0.0
  %11135 = vmatprep.subr.mxu0 0.0
  %11136 = vmatpush1.msra.mxu0 0.0
  %11137 = vmatprep.subr.mxu0 0.0
  %11138 = vmatpush1.msra.mxu0 0.0
  %11139 = vmatprep.subr.mxu0 0.0
  %11140 = vmatpush1.msra.mxu0 0.0
  %11141 = vmatprep.mubr.f32.mxu0 0.0
  %11142 = vmatmul.mubr.f32.gmra.mrb[0].mxu0 %v11021
  %v11143 = vpop.f32.mrb[0].mxu0
  %v11144 = vadd.f32 %v11018, %v11143
  %v11145 = vpop.f32.mrb[0].mxu0
  %11146 = vmatprep.mubr.f32.mxu0 0.0
  %11147 = vmatmul.mubr.f32.gmra.mrb[0].mxu0 %v11024
  %v11148 = vpop.f32.mrb[0].mxu0
  %v11149 = vadd.f32 %v11018, %v11148
  %v11150 = vpop.f32.mrb[0].mxu0
  %11151 = vmatprep.mubr.f32.mxu0 0.0
  %11152 = vmatmul.mubr.f32.gmra.mrb[0].mxu0 %v11027
  %v11153 = vpop.f32.mrb[0].mxu0
  %v11154 = vadd.f32 %v11018, %v11153
  %v11155 = vpop.f32.mrb[0].mxu0
  %11156 = vmatprep.mubr.f32.mxu0 0.0
  %11157 = vmatmul.mubr.f32.gmra.mrb[0].mxu0 %v11030
  %v11158 = vpop.f32.mrb[0].mxu0
  %v11159 = vadd.f32 %v11018, %v11158
  %v11160 = vpop.f32.mrb[0].mxu0
  %11161 = vmatprep.mubr.f32.mxu0 0.0
  %11162 = vmatmul.mubr.f32.gmra.mrb[0].mxu0 %v11033
  %v11163 = vpop.f32.mrb[0].mxu0
  %v11164 = vadd.f32 %v11018, %v11163
  %v11165 = vpop.f32.mrb[0].mxu0
  %11166 = vmatprep.mubr.f32.mxu0 0.0
  %11167 = vmatmul.mubr.f32.gmra.mrb[0].mxu0 %v11036
  %v11168 = vpop.f32.mrb[0].mxu0
  %v11169 = vadd.f32 %v11018, %v11168
  %v11170 = vpop.f32.mrb[0].mxu0
  %11171 = vmatprep.mubr.f32.mxu0 0.0
  %11172 = vmatmul.mubr.f32.gmra.mrb[0].mxu0 %v11039
  %v11173 = vpop.f32.mrb[0].mxu0
  %v11174 = vadd.f32 %v11018, %v11173
  %v11175 = vpop.f32.mrb[0].mxu0
  %11176 = vmatprep.mubr.f32.mxu0 0.0
  %11177 = vmatmul.mubr.f32.gmra.mrb[0].mxu0 %v11042
  %v11178 = vpop.f32.mrb[0].mxu0
  %v11179 = vadd.f32 %v11018, %v11178
  %v11180 = vpop.f32.mrb[0].mxu0
  %11181 = vmatprep.mubr.f32.mxu0 0.0
  %11182 = vmatmul.mubr.f32.gmra.mrb[0].mxu0 %v11045
  %v11183 = vpop.f32.mrb[0].mxu0
  %v11184 = vadd.f32 %v11018, %v11183
  %v11185 = vpop.f32.mrb[0].mxu0
  %11186 = vmatprep.mubr.f32.mxu0 0.0
  %11187 = vmatmul.mubr.f32.gmra.mrb[0].mxu0 %v11048
  %v11188 = vpop.f32.mrb[0].mxu0
  %v11189 = vadd.f32 %v11018, %v11188
  %v11190 = vpop.f32.mrb[0].mxu0
  %11191 = vmatprep.mubr.f32.mxu0 0.0
  %11192 = vmatmul.mubr.f32.gmra.mrb[0].mxu0 %v11051
  %v11193 = vpop.f32.mrb[0].mxu0
  %v11194 = vadd.f32 %v11018, %v11193
  %v11195 = vpop.f32.mrb[0].mxu0
  %11196 = vmatprep.mubr.f32.mxu0 0.0
  %11197 = vmatmul.mubr.f32.gmra.mrb[0].mxu0 %v11054
  %v11198 = vpop.f32.mrb[0].mxu0
  %v11199 = vadd.f32 %v11018, %v11198
  %v11200 = vpop.f32.mrb[0].mxu0
  %11201 = vmatprep.mubr.f32.mxu0 0.0
  %11202 = vmatmul.mubr.f32.gmra.mrb[0].mxu0 %v11057
  %v11203 = vpop.f32.mrb[0].mxu0
  %v11204 = vadd.f32 %v11018, %v11203
  %v11205 = vpop.f32.mrb[0].mxu0
  %11206 = vmatprep.mubr.f32.mxu0 0.0
  %11207 = vmatmul.mubr.f32.gmra.mrb[0].mxu0 %v11060
  %v11208 = vpop.f32.mrb[0].mxu0
  %v11209 = vadd.f32 %v11018, %v11208
  %v11210 = vpop.f32.mrb[0].mxu0
  %11211 = vmatprep.mubr.f32.mxu0 0.0
  %11212 = vmatmul.mubr.f32.gmra.mrb[0].mxu0 %v11063
  %v11213 = vpop.f32.mrb[0].mxu0
  %v11214 = vadd.f32 %v11018, %v11213
  %v11215 = vpop.f32.mrb[0].mxu0
  %11216 = vmatprep.mubr.f32.mxu0 0.0
  %11217 = vmatmul.mubr.f32.gmra.mrb[0].mxu0 %v11066
  %v11218 = vpop.f32.mrb[0].mxu0
  %v11219 = vadd.f32 %v11018, %v11218
  %v11220 = vpop.f32.mrb[0].mxu0
  %11221 = vmatprep.mubr.f32.mxu0 0.0
  %11222 = vmatmul.mubr.f32.gmra.mrb[0].mxu0 %v11069
  %v11223 = vpop.f32.mrb[0].mxu0
  %v11224 = vadd.f32 %v11018, %v11223
  %v11225 = vpop.f32.mrb[0].mxu0
  %11226 = vmatprep.mubr.f32.mxu0 0.0
  %11227 = vmatmul.mubr.f32.gmra.mrb[0].mxu0 %v11072
  %v11228 = vpop.f32.mrb[0].mxu0
  %v11229 = vadd.f32 %v11018, %v11228
  %v11230 = vpop.f32.mrb[0].mxu0
  %11231 = vmatprep.mubr.f32.mxu0 0.0
  %11232 = vmatmul.mubr.f32.gmra.mrb[0].mxu0 %v11075
  %v11233 = vpop.f32.mrb[0].mxu0
  %v11234 = vadd.f32 %v11018, %v11233
  %v11235 = vpop.f32.mrb[0].mxu0
  %11236 = vdwg.mxu0
  %vm11247 = vcmask 1043456
  %v11248 = vrot.slane %v11189, 4
  %v11249 = vrot.slane %v11194, 4
  %v11250 = vsel %vm11247, %v11248, %v11249
  %v11251 = vrot.slane %v11199, 4
  %v11252 = vsel %vm11247, %v11249, %v11251
  %v11253 = vrot.slane %v11204, 4
  %v11254 = vsel %vm11247, %v11251, %v11253
  %v11255 = vrot.slane %v11209, 4
  %v11256 = vsel %vm11247, %v11253, %v11255
  %v11257 = vrot.slane %v11214, 4
  %v11258 = vsel %vm11247, %v11255, %v11257
  %v11259 = vrot.slane %v11219, 4
  %v11260 = vsel %vm11247, %v11257, %v11259
  %v11261 = vrot.slane %v11224, 4
  %v11262 = vsel %vm11247, %v11259, %v11261
  %v11263 = vrot.slane %v11229, 4
  %v11264 = vsel %vm11247, %v11261, %v11263
  %v11265 = vrot.slane %v11234, 4
  %v11266 = vsel %vm11247, %v11263, %v11265
  %11267 = vrot.lane.b32.xlu0 %v11250, 1
  %v11268 = vpop.permute.xlu0 %11267
  %11269 = vrot.lane.b32.xlu0 %v11252, 1
  %v11270 = vpop.permute.xlu0 %11269
  %11271 = vrot.lane.b32.xlu0 %v11254, 1
  %v11272 = vpop.permute.xlu0 %11271
  %11273 = vrot.lane.b32.xlu0 %v11256, 1
  %v11274 = vpop.permute.xlu0 %11273
  %11275 = vrot.lane.b32.xlu0 %v11258, 1
  %v11276 = vpop.permute.xlu0 %11275
  %11277 = vrot.lane.b32.xlu0 %v11260, 1
  %v11278 = vpop.permute.xlu0 %11277
  %11279 = vrot.lane.b32.xlu0 %v11262, 1
  %v11280 = vpop.permute.xlu0 %11279
  %11281 = vrot.lane.b32.xlu0 %v11264, 1
  %v11282 = vpop.permute.xlu0 %11281
  %11283 = vrot.lane.b32.xlu0 %v11266, 1
  %v11284 = vpop.permute.xlu0 %11283
  %11285 = vrot.lane.b32.xlu0 %v11265, 1
  %v11286 = vpop.permute.xlu0 %11285
  %vm11297 = vcmask 7168
  %v11298 = vsel %vm11297, %v11144, %v11268
  %v11299 = vsel %vm11297, %v11149, %v11270
  %v11300 = vsel %vm11297, %v11154, %v11272
  %v11301 = vsel %vm11297, %v11159, %v11274
  %v11302 = vsel %vm11297, %v11164, %v11276
  %v11303 = vsel %vm11297, %v11169, %v11278
  %v11304 = vsel %vm11297, %v11174, %v11280
  %v11305 = vsel %vm11297, %v11179, %v11282
  %v11306 = vsel %vm11297, %v11184, %v11284
  %v11307 = vsel %vm11297, %v11189, %v11286
  %v11308 = vld [vmem:[%s7] sm:$0xff]
  %v11309 = vld [vmem:[%s7 + $0x8] sm:$0xff]
  %v11310 = vld [vmem:[%s7 + $0x10] sm:$0xff]
  %v11311 = vld [vmem:[%s7 + $0x18] sm:$0xff]
  %v11312 = vld [vmem:[%s7 + $0x20] sm:$0xff]
  %v11313 = vld [vmem:[%s7 + $0x28] sm:$0xff]
  %v11314 = vld [vmem:[%s7 + $0x30] sm:$0xff]
  %v11315 = vld [vmem:[%s7 + $0x38] sm:$0xff]
  %v11316 = vld [vmem:[%s7 + $0x40] sm:$0xff]
  %v11317 = vld [vmem:[%s7 + $0x48] sm:$0xff]
  %v11318 = vld [vmem:[%s7 + $0x50] sm:$0xff]
  %v11319 = vld [vmem:[%s7 + $0x58] sm:$0xff]
  %v11320 = vld [vmem:[%s7 + $0x60] sm:$0xff]
  %v11321 = vld [vmem:[%s7 + $0x68] sm:$0xff]
  %v11322 = vld [vmem:[%s7 + $0x70] sm:$0xff]
  %v11323 = vld [vmem:[%s7 + $0x78] sm:$0xff]
  %v11324 = vld [vmem:[%s7 + $0x80] sm:$0xff]
  %v11325 = vld [vmem:[%s7 + $0x88] sm:$0xff]
  %v11326 = vld [vmem:[%s7 + $0x90] sm:$0xff]
  %v11327 = vld [vmem:[%s7 + $0x98] sm:$0xff]
  %v11328 = vld [vmem:[%s7 + $0xa0] sm:$0xff]
  %v11329 = vld [vmem:[%s7 + $0xa8] sm:$0xff]
  %v11330 = vld [vmem:[%s7 + $0xb0] sm:$0xff]
  %v11331 = vld [vmem:[%s7 + $0xb8] sm:$0xff]
  %v11332 = vld [vmem:[%s7 + $0xc0] sm:$0xff]
  %v11333 = vld [vmem:[%s7 + $0xc8] sm:$0xff]
  %v11334 = vld [vmem:[%s7 + $0xd0] sm:$0xff]
  %v11335 = vld [vmem:[%s7 + $0xd8] sm:$0xff]
  %v11336 = vld [vmem:[%s7 + $0xe0] sm:$0xff]
  %v11337 = vld [vmem:[%s7 + $0xe8] sm:$0xff]
  %v11338 = vld [vmem:[%s7 + $0xf0] sm:$0xff]
  %v11339 = vld [vmem:[%s7 + $0xf8] sm:$0xff]
  %v11340 = vld [vmem:[%s7 + $0x100] sm:$0xff]
  %v11341 = vld [vmem:[%s7 + $0x108] sm:$0xff]
  %v11342 = vld [vmem:[%s7 + $0x110] sm:$0xff]
  %v11343 = vld [vmem:[%s7 + $0x118] sm:$0xff]
  %v11344 = vld [vmem:[%s7 + $0x120] sm:$0xff]
  %v11345 = vld [vmem:[%s7 + $0x128] sm:$0xff]
  %v11346 = vld [vmem:[%s7 + $0x130] sm:$0xff]
  %v11347 = vld [vmem:[%s7 + $0x138] sm:$0xff]
  %v11348 = vld [vmem:[%s7 + $0x140] sm:$0xff]
  %v11349 = vld [vmem:[%s7 + $0x148] sm:$0xff]
  %v11350 = vld [vmem:[%s7 + $0x150] sm:$0xff]
  %v11351 = vld [vmem:[%s7 + $0x158] sm:$0xff]
  %v11352 = vld [vmem:[%s7 + $0x160] sm:$0xff]
  %v11353 = vld [vmem:[%s7 + $0x168] sm:$0xff]
  %v11354 = vld [vmem:[%s7 + $0x170] sm:$0xff]
  %v11355 = vld [vmem:[%s7 + $0x178] sm:$0xff]
  %v11356 = vld [vmem:[%s7 + $0x180] sm:$0xff]
  %v11357 = vld [vmem:[%s7 + $0x188] sm:$0xff]
  %v11358 = vld [vmem:[%s7 + $0x190] sm:$0xff]
  %v11359 = vld [vmem:[%s7 + $0x198] sm:$0xff]
  %v11360 = vld [vmem:[%s7 + $0x1a0] sm:$0xff]
  %v11361 = vld [vmem:[%s7 + $0x1a8] sm:$0xff]
  %v11362 = vld [vmem:[%s7 + $0x1b0] sm:$0xff]
  %v11363 = vld [vmem:[%s7 + $0x1b8] sm:$0xff]
  %v11364 = vld [vmem:[%s7 + $0x1c0] sm:$0xff]
  %v11365 = vld [vmem:[%s7 + $0x1c8] sm:$0xff]
  %v11366 = vld [vmem:[%s7 + $0x1d0] sm:$0xff]
  %v11367 = vld [vmem:[%s7 + $0x1d8] sm:$0xff]
  %v11368 = vld [vmem:[%s7 + $0x1e0] sm:$0xff]
  %v11369 = vld [vmem:[%s7 + $0x1e8] sm:$0xff]
  %v11370 = vld [vmem:[%s7 + $0x1f0] sm:$0xff]
  %v11371 = vld [vmem:[%s7 + $0x1f8] sm:$0xff]
  %v11372 = vld [vmem:[%s7 + $0x200] sm:$0xff]
  %v11373 = vld [vmem:[%s7 + $0x208] sm:$0xff]
  %v11374 = vld [vmem:[%s7 + $0x210] sm:$0xff]
  %v11375 = vld [vmem:[%s7 + $0x218] sm:$0xff]
  %v11376 = vld [vmem:[%s7 + $0x220] sm:$0xff]
  %v11377 = vld [vmem:[%s7 + $0x228] sm:$0xff]
  %v11378 = vld [vmem:[%s7 + $0x230] sm:$0xff]
  %v11379 = vld [vmem:[%s7 + $0x238] sm:$0xff]
  %v11380 = vld [vmem:[%s7 + $0x240] sm:$0xff]
  %v11381 = vld [vmem:[%s7 + $0x248] sm:$0xff]
  %v11382 = vld [vmem:[%s7 + $0x250] sm:$0xff]
  %v11383 = vld [vmem:[%s7 + $0x258] sm:$0xff]
  %v11384 = vld [vmem:[%s7 + $0x260] sm:$0xff]
  %v11385 = vld [vmem:[%s7 + $0x268] sm:$0xff]
  %v11386 = vld [vmem:[%s7 + $0x270] sm:$0xff]
  %v11387 = vld [vmem:[%s7 + $0x278] sm:$0xff]
  %v11388 = vld [vmem:[%s7 + $0x280] sm:$0xff]
  %v11389 = vld [vmem:[%s7 + $0x288] sm:$0xff]
  %v11390 = vld [vmem:[%s7 + $0x290] sm:$0xff]
  %v11391 = vld [vmem:[%s7 + $0x298] sm:$0xff]
  %v11392 = vld [vmem:[%s7 + $0x2a0] sm:$0xff]
  %v11393 = vld [vmem:[%s7 + $0x2a8] sm:$0xff]
  %v11394 = vld [vmem:[%s7 + $0x2b0] sm:$0xff]
  %v11395 = vld [vmem:[%s7 + $0x2b8] sm:$0xff]
  %v11396 = vld [vmem:[%s7 + $0x2c0] sm:$0xff]
  %v11397 = vld [vmem:[%s7 + $0x2c8] sm:$0xff]
  %v11398 = vld [vmem:[%s7 + $0x2d0] sm:$0xff]
  %v11399 = vld [vmem:[%s7 + $0x2d8] sm:$0xff]
  %v11400 = vld [vmem:[%s7 + $0x2e0] sm:$0xff]
  %v11401 = vld [vmem:[%s7 + $0x2e8] sm:$0xff]
  %v11402 = vld [vmem:[%s7 + $0x2f0] sm:$0xff]
  %v11403 = vld [vmem:[%s7 + $0x2f8] sm:$0xff]
  %v11404 = vld [vmem:[%s7 + $0x300] sm:$0xff]
  %v11405 = vld [vmem:[%s7 + $0x308] sm:$0xff]
  %v11406 = vld [vmem:[%s7 + $0x310] sm:$0xff]
  %v11407 = vld [vmem:[%s7 + $0x318] sm:$0xff]
  %v11408 = vld [vmem:[%s7 + $0x320] sm:$0xff]
  %v11409 = vld [vmem:[%s7 + $0x328] sm:$0xff]
  %v11410 = vld [vmem:[%s7 + $0x330] sm:$0xff]
  %v11411 = vld [vmem:[%s7 + $0x338] sm:$0xff]
  %v11412 = vld [vmem:[%s7 + $0x340] sm:$0xff]
  %v11413 = vld [vmem:[%s7 + $0x348] sm:$0xff]
  %v11414 = vld [vmem:[%s7 + $0x350] sm:$0xff]
  %v11415 = vld [vmem:[%s7 + $0x358] sm:$0xff]
  %v11416 = vld [vmem:[%s7 + $0x360] sm:$0xff]
  %v11417 = vld [vmem:[%s7 + $0x368] sm:$0xff]
  %v11418 = vld [vmem:[%s7 + $0x370] sm:$0xff]
  %v11419 = vld [vmem:[%s7 + $0x378] sm:$0xff]
  %v11420 = vld [vmem:[%s7 + $0x380] sm:$0xff]
  %v11421 = vld [vmem:[%s7 + $0x388] sm:$0xff]
  %v11422 = vld [vmem:[%s7 + $0x390] sm:$0xff]
  %v11423 = vld [vmem:[%s7 + $0x398] sm:$0xff]
  %v11424 = vld [vmem:[%s7 + $0x3a0] sm:$0xff]
  %v11425 = vld [vmem:[%s7 + $0x3a8] sm:$0xff]
  %v11426 = vld [vmem:[%s7 + $0x3b0] sm:$0xff]
  %v11427 = vld [vmem:[%s7 + $0x3b8] sm:$0xff]
  %v11428 = vld [vmem:[%s7 + $0x3c0] sm:$0xff]
  %v11429 = vld [vmem:[%s7 + $0x3c8] sm:$0xff]
  %v11430 = vld [vmem:[%s7 + $0x3d0] sm:$0xff]
  %v11431 = vld [vmem:[%s7 + $0x3d8] sm:$0xff]
  %v11432 = vld [vmem:[%s7 + $0x3e0] sm:$0xff]
  %v11433 = vld [vmem:[%s7 + $0x3e8] sm:$0xff]
  %v11434 = vld [vmem:[%s7 + $0x3f0] sm:$0xff]
  %v11435 = vld [vmem:[%s7 + $0x3f8] sm:$0xff]
  %v11436 = vld [vmem:[%s8] sm:$0xff]
  %v11437 = vld [vmem:[%s8 + $0x8] sm:$0xff]
  %v11438 = vld [vmem:[%s8 + $0x10] sm:$0xff]
  %v11439 = vld [vmem:[%s8 + $0x18] sm:$0xff]
  %v11440 = vld [vmem:[%s8 + $0x20] sm:$0xff]
  %v11441 = vld [vmem:[%s8 + $0x28] sm:$0xff]
  %v11442 = vld [vmem:[%s8 + $0x30] sm:$0xff]
  %v11443 = vld [vmem:[%s8 + $0x38] sm:$0xff]
  %v11444 = vld [vmem:[%s8 + $0x40] sm:$0xff]
  %v11445 = vld [vmem:[%s8 + $0x48] sm:$0xff]
  %v11446 = vld [vmem:[%s8 + $0x50] sm:$0xff]
  %v11447 = vld [vmem:[%s8 + $0x58] sm:$0xff]
  %v11448 = vld [vmem:[%s8 + $0x60] sm:$0xff]
  %v11449 = vld [vmem:[%s8 + $0x68] sm:$0xff]
  %v11450 = vld [vmem:[%s8 + $0x70] sm:$0xff]
  %v11451 = vld [vmem:[%s8 + $0x78] sm:$0xff]
  %v11452 = vld [vmem:[%s8 + $0x80] sm:$0xff]
  %v11453 = vld [vmem:[%s8 + $0x88] sm:$0xff]
  %v11454 = vld [vmem:[%s8 + $0x90] sm:$0xff]
  %v11455 = vld [vmem:[%s8 + $0x98] sm:$0xff]
  %v11456 = vld [vmem:[%s8 + $0xa0] sm:$0xff]
  %v11457 = vld [vmem:[%s8 + $0xa8] sm:$0xff]
  %v11458 = vld [vmem:[%s8 + $0xb0] sm:$0xff]
  %v11459 = vld [vmem:[%s8 + $0xb8] sm:$0xff]
  %v11460 = vld [vmem:[%s8 + $0xc0] sm:$0xff]
  %v11461 = vld [vmem:[%s8 + $0xc8] sm:$0xff]
  %v11462 = vld [vmem:[%s8 + $0xd0] sm:$0xff]
  %v11463 = vld [vmem:[%s8 + $0xd8] sm:$0xff]
  %v11464 = vld [vmem:[%s8 + $0xe0] sm:$0xff]
  %v11465 = vld [vmem:[%s8 + $0xe8] sm:$0xff]
  %v11466 = vld [vmem:[%s8 + $0xf0] sm:$0xff]
  %v11467 = vld [vmem:[%s8 + $0xf8] sm:$0xff]
  %v11468 = vld [vmem:[%s8 + $0x100] sm:$0xff]
  %v11469 = vld [vmem:[%s8 + $0x108] sm:$0xff]
  %v11470 = vld [vmem:[%s8 + $0x110] sm:$0xff]
  %v11471 = vld [vmem:[%s8 + $0x118] sm:$0xff]
  %v11472 = vld [vmem:[%s8 + $0x120] sm:$0xff]
  %v11473 = vld [vmem:[%s8 + $0x128] sm:$0xff]
  %v11474 = vld [vmem:[%s8 + $0x130] sm:$0xff]
  %v11475 = vld [vmem:[%s8 + $0x138] sm:$0xff]
  %v11476 = vld [vmem:[%s8 + $0x140] sm:$0xff]
  %v11477 = vld [vmem:[%s8 + $0x148] sm:$0xff]
  %v11478 = vld [vmem:[%s8 + $0x150] sm:$0xff]
  %v11479 = vld [vmem:[%s8 + $0x158] sm:$0xff]
  %v11480 = vld [vmem:[%s8 + $0x160] sm:$0xff]
  %v11481 = vld [vmem:[%s8 + $0x168] sm:$0xff]
  %v11482 = vld [vmem:[%s8 + $0x170] sm:$0xff]
  %v11483 = vld [vmem:[%s8 + $0x178] sm:$0xff]
  %v11484 = vld [vmem:[%s8 + $0x180] sm:$0xff]
  %v11485 = vld [vmem:[%s8 + $0x188] sm:$0xff]
  %v11486 = vld [vmem:[%s8 + $0x190] sm:$0xff]
  %v11487 = vld [vmem:[%s8 + $0x198] sm:$0xff]
  %v11488 = vld [vmem:[%s8 + $0x1a0] sm:$0xff]
  %v11489 = vld [vmem:[%s8 + $0x1a8] sm:$0xff]
  %v11490 = vld [vmem:[%s8 + $0x1b0] sm:$0xff]
  %v11491 = vld [vmem:[%s8 + $0x1b8] sm:$0xff]
  %v11492 = vld [vmem:[%s8 + $0x1c0] sm:$0xff]
  %v11493 = vld [vmem:[%s8 + $0x1c8] sm:$0xff]
  %v11494 = vld [vmem:[%s8 + $0x1d0] sm:$0xff]
  %v11495 = vld [vmem:[%s8 + $0x1d8] sm:$0xff]
  %v11496 = vld [vmem:[%s8 + $0x1e0] sm:$0xff]
  %v11497 = vld [vmem:[%s8 + $0x1e8] sm:$0xff]
  %v11498 = vld [vmem:[%s8 + $0x1f0] sm:$0xff]
  %v11499 = vld [vmem:[%s8 + $0x1f8] sm:$0xff]
  %v11500 = vld [vmem:[%s8 + $0x200] sm:$0xff]
  %v11501 = vld [vmem:[%s8 + $0x208] sm:$0xff]
  %v11502 = vld [vmem:[%s8 + $0x210] sm:$0xff]
  %v11503 = vld [vmem:[%s8 + $0x218] sm:$0xff]
  %v11504 = vld [vmem:[%s8 + $0x220] sm:$0xff]
  %v11505 = vld [vmem:[%s8 + $0x228] sm:$0xff]
  %v11506 = vld [vmem:[%s8 + $0x230] sm:$0xff]
  %v11507 = vld [vmem:[%s8 + $0x238] sm:$0xff]
  %v11508 = vld [vmem:[%s8 + $0x240] sm:$0xff]
  %v11509 = vld [vmem:[%s8 + $0x248] sm:$0xff]
  %v11510 = vld [vmem:[%s8 + $0x250] sm:$0xff]
  %v11511 = vld [vmem:[%s8 + $0x258] sm:$0xff]
  %v11512 = vld [vmem:[%s8 + $0x260] sm:$0xff]
  %v11513 = vld [vmem:[%s8 + $0x268] sm:$0xff]
  %v11514 = vld [vmem:[%s8 + $0x270] sm:$0xff]
  %v11515 = vld [vmem:[%s8 + $0x278] sm:$0xff]
  %v11516 = vld [vmem:[%s8 + $0x280] sm:$0xff]
  %v11517 = vld [vmem:[%s8 + $0x288] sm:$0xff]
  %v11518 = vld [vmem:[%s8 + $0x290] sm:$0xff]
  %v11519 = vld [vmem:[%s8 + $0x298] sm:$0xff]
  %v11520 = vld [vmem:[%s8 + $0x2a0] sm:$0xff]
  %v11521 = vld [vmem:[%s8 + $0x2a8] sm:$0xff]
  %v11522 = vld [vmem:[%s8 + $0x2b0] sm:$0xff]
  %v11523 = vld [vmem:[%s8 + $0x2b8] sm:$0xff]
  %v11524 = vld [vmem:[%s8 + $0x2c0] sm:$0xff]
  %v11525 = vld [vmem:[%s8 + $0x2c8] sm:$0xff]
  %v11526 = vld [vmem:[%s8 + $0x2d0] sm:$0xff]
  %v11527 = vld [vmem:[%s8 + $0x2d8] sm:$0xff]
  %v11528 = vld [vmem:[%s8 + $0x2e0] sm:$0xff]
  %v11529 = vld [vmem:[%s8 + $0x2e8] sm:$0xff]
  %v11530 = vld [vmem:[%s8 + $0x2f0] sm:$0xff]
  %v11531 = vld [vmem:[%s8 + $0x2f8] sm:$0xff]
  %v11532 = vld [vmem:[%s8 + $0x300] sm:$0xff]
  %v11533 = vld [vmem:[%s8 + $0x308] sm:$0xff]
  %v11534 = vld [vmem:[%s8 + $0x310] sm:$0xff]
  %v11535 = vld [vmem:[%s8 + $0x318] sm:$0xff]
  %v11536 = vld [vmem:[%s8 + $0x320] sm:$0xff]
  %v11537 = vld [vmem:[%s8 + $0x328] sm:$0xff]
  %v11538 = vld [vmem:[%s8 + $0x330] sm:$0xff]
  %v11539 = vld [vmem:[%s8 + $0x338] sm:$0xff]
  %v11540 = vld [vmem:[%s8 + $0x340] sm:$0xff]
  %v11541 = vld [vmem:[%s8 + $0x348] sm:$0xff]
  %v11542 = vld [vmem:[%s8 + $0x350] sm:$0xff]
  %v11543 = vld [vmem:[%s8 + $0x358] sm:$0xff]
  %v11544 = vld [vmem:[%s8 + $0x360] sm:$0xff]
  %v11545 = vld [vmem:[%s8 + $0x368] sm:$0xff]
  %v11546 = vld [vmem:[%s8 + $0x370] sm:$0xff]
  %v11547 = vld [vmem:[%s8 + $0x378] sm:$0xff]
  %v11548 = vld [vmem:[%s8 + $0x380] sm:$0xff]
  %v11549 = vld [vmem:[%s8 + $0x388] sm:$0xff]
  %v11550 = vld [vmem:[%s8 + $0x390] sm:$0xff]
  %v11551 = vld [vmem:[%s8 + $0x398] sm:$0xff]
  %v11552 = vld [vmem:[%s8 + $0x3a0] sm:$0xff]
  %v11553 = vld [vmem:[%s8 + $0x3a8] sm:$0xff]
  %v11554 = vld [vmem:[%s8 + $0x3b0] sm:$0xff]
  %v11555 = vld [vmem:[%s8 + $0x3b8] sm:$0xff]
  %v11556 = vld [vmem:[%s8 + $0x3c0] sm:$0xff]
  %v11557 = vld [vmem:[%s8 + $0x3c8] sm:$0xff]
  %v11558 = vld [vmem:[%s8 + $0x3d0] sm:$0xff]
  %v11559 = vld [vmem:[%s8 + $0x3d8] sm:$0xff]
  %v11560 = vld [vmem:[%s8 + $0x3e0] sm:$0xff]
  %v11561 = vld [vmem:[%s8 + $0x3e8] sm:$0xff]
  %v11562 = vld [vmem:[%s8 + $0x3f0] sm:$0xff]
  %v11563 = vld [vmem:[%s8 + $0x3f8] sm:$0xff]
  %11565 = vset.pattern.permute.xlu0 0
  %11566 = vperm.xlu0 %11565, %v11436
  %v11567 = vpop.permute.xlu0 %11566
  %11570 = vset.pattern.permute.xlu0 0
  %11571 = vperm.xlu0 %11570, %v11437
  %v11572 = vpop.permute.xlu0 %11571
  %11575 = vset.pattern.permute.xlu0 0
  %11576 = vperm.xlu0 %11575, %v11438
  %v11577 = vpop.permute.xlu0 %11576
  %11580 = vset.pattern.permute.xlu0 0
  %11581 = vperm.xlu0 %11580, %v11439
  %v11582 = vpop.permute.xlu0 %11581
  %11585 = vset.pattern.permute.xlu0 0
  %11586 = vperm.xlu0 %11585, %v11440
  %v11587 = vpop.permute.xlu0 %11586
  %11590 = vset.pattern.permute.xlu0 0
  %11591 = vperm.xlu0 %11590, %v11441
  %v11592 = vpop.permute.xlu0 %11591
  %11595 = vset.pattern.permute.xlu0 0
  %11596 = vperm.xlu0 %11595, %v11442
  %v11597 = vpop.permute.xlu0 %11596
  %11600 = vset.pattern.permute.xlu0 0
  %11601 = vperm.xlu0 %11600, %v11443
  %v11602 = vpop.permute.xlu0 %11601
  %11605 = vset.pattern.permute.xlu0 0
  %11606 = vperm.xlu0 %11605, %v11444
  %v11607 = vpop.permute.xlu0 %11606
  %11610 = vset.pattern.permute.xlu0 0
  %11611 = vperm.xlu0 %11610, %v11445
  %v11612 = vpop.permute.xlu0 %11611
  %11615 = vset.pattern.permute.xlu0 0
  %11616 = vperm.xlu0 %11615, %v11446
  %v11617 = vpop.permute.xlu0 %11616
  %11620 = vset.pattern.permute.xlu0 0
  %11621 = vperm.xlu0 %11620, %v11447
  %v11622 = vpop.permute.xlu0 %11621
  %11625 = vset.pattern.permute.xlu0 0
  %11626 = vperm.xlu0 %11625, %v11448
  %v11627 = vpop.permute.xlu0 %11626
  %11630 = vset.pattern.permute.xlu0 0
  %11631 = vperm.xlu0 %11630, %v11449
  %v11632 = vpop.permute.xlu0 %11631
  %11635 = vset.pattern.permute.xlu0 0
  %11636 = vperm.xlu0 %11635, %v11450
  %v11637 = vpop.permute.xlu0 %11636
  %11640 = vset.pattern.permute.xlu0 0
  %11641 = vperm.xlu0 %11640, %v11451
  %v11642 = vpop.permute.xlu0 %11641
  %11645 = vset.pattern.permute.xlu0 0
  %11646 = vperm.xlu0 %11645, %v11452
  %v11647 = vpop.permute.xlu0 %11646
  %11650 = vset.pattern.permute.xlu0 0
  %11651 = vperm.xlu0 %11650, %v11453
  %v11652 = vpop.permute.xlu0 %11651
  %11655 = vset.pattern.permute.xlu0 0
  %11656 = vperm.xlu0 %11655, %v11454
  %v11657 = vpop.permute.xlu0 %11656
  %11660 = vset.pattern.permute.xlu0 0
  %11661 = vperm.xlu0 %11660, %v11455
  %v11662 = vpop.permute.xlu0 %11661
  %11665 = vset.pattern.permute.xlu0 0
  %11666 = vperm.xlu0 %11665, %v11456
  %v11667 = vpop.permute.xlu0 %11666
  %11670 = vset.pattern.permute.xlu0 0
  %11671 = vperm.xlu0 %11670, %v11457
  %v11672 = vpop.permute.xlu0 %11671
  %11675 = vset.pattern.permute.xlu0 0
  %11676 = vperm.xlu0 %11675, %v11458
  %v11677 = vpop.permute.xlu0 %11676
  %11680 = vset.pattern.permute.xlu0 0
  %11681 = vperm.xlu0 %11680, %v11459
  %v11682 = vpop.permute.xlu0 %11681
  %11685 = vset.pattern.permute.xlu0 0
  %11686 = vperm.xlu0 %11685, %v11460
  %v11687 = vpop.permute.xlu0 %11686
  %11690 = vset.pattern.permute.xlu0 0
  %11691 = vperm.xlu0 %11690, %v11461
  %v11692 = vpop.permute.xlu0 %11691
  %11695 = vset.pattern.permute.xlu0 0
  %11696 = vperm.xlu0 %11695, %v11462
  %v11697 = vpop.permute.xlu0 %11696
  %11700 = vset.pattern.permute.xlu0 0
  %11701 = vperm.xlu0 %11700, %v11463
  %v11702 = vpop.permute.xlu0 %11701
  %11705 = vset.pattern.permute.xlu0 0
  %11706 = vperm.xlu0 %11705, %v11464
  %v11707 = vpop.permute.xlu0 %11706
  %11710 = vset.pattern.permute.xlu0 0
  %11711 = vperm.xlu0 %11710, %v11465
  %v11712 = vpop.permute.xlu0 %11711
  %11715 = vset.pattern.permute.xlu0 0
  %11716 = vperm.xlu0 %11715, %v11466
  %v11717 = vpop.permute.xlu0 %11716
  %11720 = vset.pattern.permute.xlu0 0
  %11721 = vperm.xlu0 %11720, %v11467
  %v11722 = vpop.permute.xlu0 %11721
  %11725 = vset.pattern.permute.xlu0 0
  %11726 = vperm.xlu0 %11725, %v11468
  %v11727 = vpop.permute.xlu0 %11726
  %11730 = vset.pattern.permute.xlu0 0
  %11731 = vperm.xlu0 %11730, %v11469
  %v11732 = vpop.permute.xlu0 %11731
  %11735 = vset.pattern.permute.xlu0 0
  %11736 = vperm.xlu0 %11735, %v11470
  %v11737 = vpop.permute.xlu0 %11736
  %11740 = vset.pattern.permute.xlu0 0
  %11741 = vperm.xlu0 %11740, %v11471
  %v11742 = vpop.permute.xlu0 %11741
  %11745 = vset.pattern.permute.xlu0 0
  %11746 = vperm.xlu0 %11745, %v11472
  %v11747 = vpop.permute.xlu0 %11746
  %11750 = vset.pattern.permute.xlu0 0
  %11751 = vperm.xlu0 %11750, %v11473
  %v11752 = vpop.permute.xlu0 %11751
  %11755 = vset.pattern.permute.xlu0 0
  %11756 = vperm.xlu0 %11755, %v11474
  %v11757 = vpop.permute.xlu0 %11756
  %11760 = vset.pattern.permute.xlu0 0
  %11761 = vperm.xlu0 %11760, %v11475
  %v11762 = vpop.permute.xlu0 %11761
  %11765 = vset.pattern.permute.xlu0 0
  %11766 = vperm.xlu0 %11765, %v11476
  %v11767 = vpop.permute.xlu0 %11766
  %11770 = vset.pattern.permute.xlu0 0
  %11771 = vperm.xlu0 %11770, %v11477
  %v11772 = vpop.permute.xlu0 %11771
  %11775 = vset.pattern.permute.xlu0 0
  %11776 = vperm.xlu0 %11775, %v11478
  %v11777 = vpop.permute.xlu0 %11776
  %11780 = vset.pattern.permute.xlu0 0
  %11781 = vperm.xlu0 %11780, %v11479
  %v11782 = vpop.permute.xlu0 %11781
  %11785 = vset.pattern.permute.xlu0 0
  %11786 = vperm.xlu0 %11785, %v11480
  %v11787 = vpop.permute.xlu0 %11786
  %11790 = vset.pattern.permute.xlu0 0
  %11791 = vperm.xlu0 %11790, %v11481
  %v11792 = vpop.permute.xlu0 %11791
  %11795 = vset.pattern.permute.xlu0 0
  %11796 = vperm.xlu0 %11795, %v11482
  %v11797 = vpop.permute.xlu0 %11796
  %11800 = vset.pattern.permute.xlu0 0
  %11801 = vperm.xlu0 %11800, %v11483
  %v11802 = vpop.permute.xlu0 %11801
  %11805 = vset.pattern.permute.xlu0 0
  %11806 = vperm.xlu0 %11805, %v11484
  %v11807 = vpop.permute.xlu0 %11806
  %11810 = vset.pattern.permute.xlu0 0
  %11811 = vperm.xlu0 %11810, %v11485
  %v11812 = vpop.permute.xlu0 %11811
  %11815 = vset.pattern.permute.xlu0 0
  %11816 = vperm.xlu0 %11815, %v11486
  %v11817 = vpop.permute.xlu0 %11816
  %11820 = vset.pattern.permute.xlu0 0
  %11821 = vperm.xlu0 %11820, %v11487
  %v11822 = vpop.permute.xlu0 %11821
  %11825 = vset.pattern.permute.xlu0 0
  %11826 = vperm.xlu0 %11825, %v11488
  %v11827 = vpop.permute.xlu0 %11826
  %11830 = vset.pattern.permute.xlu0 0
  %11831 = vperm.xlu0 %11830, %v11489
  %v11832 = vpop.permute.xlu0 %11831
  %11835 = vset.pattern.permute.xlu0 0
  %11836 = vperm.xlu0 %11835, %v11490
  %v11837 = vpop.permute.xlu0 %11836
  %11840 = vset.pattern.permute.xlu0 0
  %11841 = vperm.xlu0 %11840, %v11491
  %v11842 = vpop.permute.xlu0 %11841
  %11845 = vset.pattern.permute.xlu0 0
  %11846 = vperm.xlu0 %11845, %v11492
  %v11847 = vpop.permute.xlu0 %11846
  %11850 = vset.pattern.permute.xlu0 0
  %11851 = vperm.xlu0 %11850, %v11493
  %v11852 = vpop.permute.xlu0 %11851
  %11855 = vset.pattern.permute.xlu0 0
  %11856 = vperm.xlu0 %11855, %v11494
  %v11857 = vpop.permute.xlu0 %11856
  %11860 = vset.pattern.permute.xlu0 0
  %11861 = vperm.xlu0 %11860, %v11495
  %v11862 = vpop.permute.xlu0 %11861
  %11865 = vset.pattern.permute.xlu0 0
  %11866 = vperm.xlu0 %11865, %v11496
  %v11867 = vpop.permute.xlu0 %11866
  %11870 = vset.pattern.permute.xlu0 0
  %11871 = vperm.xlu0 %11870, %v11497
  %v11872 = vpop.permute.xlu0 %11871
  %11875 = vset.pattern.permute.xlu0 0
  %11876 = vperm.xlu0 %11875, %v11498
  %v11877 = vpop.permute.xlu0 %11876
  %11880 = vset.pattern.permute.xlu0 0
  %11881 = vperm.xlu0 %11880, %v11499
  %v11882 = vpop.permute.xlu0 %11881
  %11885 = vset.pattern.permute.xlu0 0
  %11886 = vperm.xlu0 %11885, %v11500
  %v11887 = vpop.permute.xlu0 %11886
  %11890 = vset.pattern.permute.xlu0 0
  %11891 = vperm.xlu0 %11890, %v11501
  %v11892 = vpop.permute.xlu0 %11891
  %11895 = vset.pattern.permute.xlu0 0
  %11896 = vperm.xlu0 %11895, %v11502
  %v11897 = vpop.permute.xlu0 %11896
  %11900 = vset.pattern.permute.xlu0 0
  %11901 = vperm.xlu0 %11900, %v11503
  %v11902 = vpop.permute.xlu0 %11901
  %11905 = vset.pattern.permute.xlu0 0
  %11906 = vperm.xlu0 %11905, %v11504
  %v11907 = vpop.permute.xlu0 %11906
  %11910 = vset.pattern.permute.xlu0 0
  %11911 = vperm.xlu0 %11910, %v11505
  %v11912 = vpop.permute.xlu0 %11911
  %11915 = vset.pattern.permute.xlu0 0
  %11916 = vperm.xlu0 %11915, %v11506
  %v11917 = vpop.permute.xlu0 %11916
  %11920 = vset.pattern.permute.xlu0 0
  %11921 = vperm.xlu0 %11920, %v11507
  %v11922 = vpop.permute.xlu0 %11921
  %11925 = vset.pattern.permute.xlu0 0
  %11926 = vperm.xlu0 %11925, %v11508
  %v11927 = vpop.permute.xlu0 %11926
  %11930 = vset.pattern.permute.xlu0 0
  %11931 = vperm.xlu0 %11930, %v11509
  %v11932 = vpop.permute.xlu0 %11931
  %11935 = vset.pattern.permute.xlu0 0
  %11936 = vperm.xlu0 %11935, %v11510
  %v11937 = vpop.permute.xlu0 %11936
  %11940 = vset.pattern.permute.xlu0 0
  %11941 = vperm.xlu0 %11940, %v11511
  %v11942 = vpop.permute.xlu0 %11941
  %11945 = vset.pattern.permute.xlu0 0
  %11946 = vperm.xlu0 %11945, %v11512
  %v11947 = vpop.permute.xlu0 %11946
  %11950 = vset.pattern.permute.xlu0 0
  %11951 = vperm.xlu0 %11950, %v11513
  %v11952 = vpop.permute.xlu0 %11951
  %11955 = vset.pattern.permute.xlu0 0
  %11956 = vperm.xlu0 %11955, %v11514
  %v11957 = vpop.permute.xlu0 %11956
  %11960 = vset.pattern.permute.xlu0 0
  %11961 = vperm.xlu0 %11960, %v11515
  %v11962 = vpop.permute.xlu0 %11961
  %11965 = vset.pattern.permute.xlu0 0
  %11966 = vperm.xlu0 %11965, %v11516
  %v11967 = vpop.permute.xlu0 %11966
  %11970 = vset.pattern.permute.xlu0 0
  %11971 = vperm.xlu0 %11970, %v11517
  %v11972 = vpop.permute.xlu0 %11971
  %11975 = vset.pattern.permute.xlu0 0
  %11976 = vperm.xlu0 %11975, %v11518
  %v11977 = vpop.permute.xlu0 %11976
  %11980 = vset.pattern.permute.xlu0 0
  %11981 = vperm.xlu0 %11980, %v11519
  %v11982 = vpop.permute.xlu0 %11981
  %11985 = vset.pattern.permute.xlu0 0
  %11986 = vperm.xlu0 %11985, %v11520
  %v11987 = vpop.permute.xlu0 %11986
  %11990 = vset.pattern.permute.xlu0 0
  %11991 = vperm.xlu0 %11990, %v11521
  %v11992 = vpop.permute.xlu0 %11991
  %11995 = vset.pattern.permute.xlu0 0
  %11996 = vperm.xlu0 %11995, %v11522
  %v11997 = vpop.permute.xlu0 %11996
  %12000 = vset.pattern.permute.xlu0 0
  %12001 = vperm.xlu0 %12000, %v11523
  %v12002 = vpop.permute.xlu0 %12001
  %12005 = vset.pattern.permute.xlu0 0
  %12006 = vperm.xlu0 %12005, %v11524
  %v12007 = vpop.permute.xlu0 %12006
  %12010 = vset.pattern.permute.xlu0 0
  %12011 = vperm.xlu0 %12010, %v11525
  %v12012 = vpop.permute.xlu0 %12011
  %12015 = vset.pattern.permute.xlu0 0
  %12016 = vperm.xlu0 %12015, %v11526
  %v12017 = vpop.permute.xlu0 %12016
  %12020 = vset.pattern.permute.xlu0 0
  %12021 = vperm.xlu0 %12020, %v11527
  %v12022 = vpop.permute.xlu0 %12021
  %12025 = vset.pattern.permute.xlu0 0
  %12026 = vperm.xlu0 %12025, %v11528
  %v12027 = vpop.permute.xlu0 %12026
  %12030 = vset.pattern.permute.xlu0 0
  %12031 = vperm.xlu0 %12030, %v11529
  %v12032 = vpop.permute.xlu0 %12031
  %12035 = vset.pattern.permute.xlu0 0
  %12036 = vperm.xlu0 %12035, %v11530
  %v12037 = vpop.permute.xlu0 %12036
  %12040 = vset.pattern.permute.xlu0 0
  %12041 = vperm.xlu0 %12040, %v11531
  %v12042 = vpop.permute.xlu0 %12041
  %12045 = vset.pattern.permute.xlu0 0
  %12046 = vperm.xlu0 %12045, %v11532
  %v12047 = vpop.permute.xlu0 %12046
  %12050 = vset.pattern.permute.xlu0 0
  %12051 = vperm.xlu0 %12050, %v11533
  %v12052 = vpop.permute.xlu0 %12051
  %12055 = vset.pattern.permute.xlu0 0
  %12056 = vperm.xlu0 %12055, %v11534
  %v12057 = vpop.permute.xlu0 %12056
  %12060 = vset.pattern.permute.xlu0 0
  %12061 = vperm.xlu0 %12060, %v11535
  %v12062 = vpop.permute.xlu0 %12061
  %12065 = vset.pattern.permute.xlu0 0
  %12066 = vperm.xlu0 %12065, %v11536
  %v12067 = vpop.permute.xlu0 %12066
  %12070 = vset.pattern.permute.xlu0 0
  %12071 = vperm.xlu0 %12070, %v11537
  %v12072 = vpop.permute.xlu0 %12071
  %12075 = vset.pattern.permute.xlu0 0
  %12076 = vperm.xlu0 %12075, %v11538
  %v12077 = vpop.permute.xlu0 %12076
  %12080 = vset.pattern.permute.xlu0 0
  %12081 = vperm.xlu0 %12080, %v11539
  %v12082 = vpop.permute.xlu0 %12081
  %12085 = vset.pattern.permute.xlu0 0
  %12086 = vperm.xlu0 %12085, %v11540
  %v12087 = vpop.permute.xlu0 %12086
  %12090 = vset.pattern.permute.xlu0 0
  %12091 = vperm.xlu0 %12090, %v11541
  %v12092 = vpop.permute.xlu0 %12091
  %12095 = vset.pattern.permute.xlu0 0
  %12096 = vperm.xlu0 %12095, %v11542
  %v12097 = vpop.permute.xlu0 %12096
  %12100 = vset.pattern.permute.xlu0 0
  %12101 = vperm.xlu0 %12100, %v11543
  %v12102 = vpop.permute.xlu0 %12101
  %12105 = vset.pattern.permute.xlu0 0
  %12106 = vperm.xlu0 %12105, %v11544
  %v12107 = vpop.permute.xlu0 %12106
  %12110 = vset.pattern.permute.xlu0 0
  %12111 = vperm.xlu0 %12110, %v11545
  %v12112 = vpop.permute.xlu0 %12111
  %12115 = vset.pattern.permute.xlu0 0
  %12116 = vperm.xlu0 %12115, %v11546
  %v12117 = vpop.permute.xlu0 %12116
  %12120 = vset.pattern.permute.xlu0 0
  %12121 = vperm.xlu0 %12120, %v11547
  %v12122 = vpop.permute.xlu0 %12121
  %12125 = vset.pattern.permute.xlu0 0
  %12126 = vperm.xlu0 %12125, %v11548
  %v12127 = vpop.permute.xlu0 %12126
  %12130 = vset.pattern.permute.xlu0 0
  %12131 = vperm.xlu0 %12130, %v11549
  %v12132 = vpop.permute.xlu0 %12131
  %12135 = vset.pattern.permute.xlu0 0
  %12136 = vperm.xlu0 %12135, %v11550
  %v12137 = vpop.permute.xlu0 %12136
  %12140 = vset.pattern.permute.xlu0 0
  %12141 = vperm.xlu0 %12140, %v11551
  %v12142 = vpop.permute.xlu0 %12141
  %12145 = vset.pattern.permute.xlu0 0
  %12146 = vperm.xlu0 %12145, %v11552
  %v12147 = vpop.permute.xlu0 %12146
  %12150 = vset.pattern.permute.xlu0 0
  %12151 = vperm.xlu0 %12150, %v11553
  %v12152 = vpop.permute.xlu0 %12151
  %12155 = vset.pattern.permute.xlu0 0
  %12156 = vperm.xlu0 %12155, %v11554
  %v12157 = vpop.permute.xlu0 %12156
  %12160 = vset.pattern.permute.xlu0 0
  %12161 = vperm.xlu0 %12160, %v11555
  %v12162 = vpop.permute.xlu0 %12161
  %12165 = vset.pattern.permute.xlu0 0
  %12166 = vperm.xlu0 %12165, %v11556
  %v12167 = vpop.permute.xlu0 %12166
  %12170 = vset.pattern.permute.xlu0 0
  %12171 = vperm.xlu0 %12170, %v11557
  %v12172 = vpop.permute.xlu0 %12171
  %12175 = vset.pattern.permute.xlu0 0
  %12176 = vperm.xlu0 %12175, %v11558
  %v12177 = vpop.permute.xlu0 %12176
  %12180 = vset.pattern.permute.xlu0 0
  %12181 = vperm.xlu0 %12180, %v11559
  %v12182 = vpop.permute.xlu0 %12181
  %12185 = vset.pattern.permute.xlu0 0
  %12186 = vperm.xlu0 %12185, %v11560
  %v12187 = vpop.permute.xlu0 %12186
  %12190 = vset.pattern.permute.xlu0 0
  %12191 = vperm.xlu0 %12190, %v11561
  %v12192 = vpop.permute.xlu0 %12191
  %12195 = vset.pattern.permute.xlu0 0
  %12196 = vperm.xlu0 %12195, %v11562
  %v12197 = vpop.permute.xlu0 %12196
  %12200 = vset.pattern.permute.xlu0 0
  %12201 = vperm.xlu0 %12200, %v11563
  %v12202 = vpop.permute.xlu0 %12201
  %vm12204 = vcmask 621568
  %v12206 = vsel %vm12204, %v11308, 0
  %v12209 = vsel %vm12204, %v11309, 0
  %v12212 = vsel %vm12204, %v11310, 0
  %v12215 = vsel %vm12204, %v11311, 0
  %v12218 = vsel %vm12204, %v11312, 0
  %v12221 = vsel %vm12204, %v11313, 0
  %v12224 = vsel %vm12204, %v11314, 0
  %v12227 = vsel %vm12204, %v11315, 0
  %v12230 = vsel %vm12204, %v11316, 0
  %v12233 = vsel %vm12204, %v11317, 0
  %v12236 = vsel %vm12204, %v11318, 0
  %v12239 = vsel %vm12204, %v11319, 0
  %v12242 = vsel %vm12204, %v11320, 0
  %v12245 = vsel %vm12204, %v11321, 0
  %v12248 = vsel %vm12204, %v11322, 0
  %v12251 = vsel %vm12204, %v11323, 0
  %v12254 = vsel %vm12204, %v11324, 0
  %v12257 = vsel %vm12204, %v11325, 0
  %v12260 = vsel %vm12204, %v11326, 0
  %v12263 = vsel %vm12204, %v11327, 0
  %v12266 = vsel %vm12204, %v11328, 0
  %v12269 = vsel %vm12204, %v11329, 0
  %v12272 = vsel %vm12204, %v11330, 0
  %v12275 = vsel %vm12204, %v11331, 0
  %v12278 = vsel %vm12204, %v11332, 0
  %v12281 = vsel %vm12204, %v11333, 0
  %v12284 = vsel %vm12204, %v11334, 0
  %v12287 = vsel %vm12204, %v11335, 0
  %v12290 = vsel %vm12204, %v11336, 0
  %v12293 = vsel %vm12204, %v11337, 0
  %v12296 = vsel %vm12204, %v11338, 0
  %v12299 = vsel %vm12204, %v11339, 0
  %v12302 = vsel %vm12204, %v11340, 0
  %v12305 = vsel %vm12204, %v11341, 0
  %v12308 = vsel %vm12204, %v11342, 0
  %v12311 = vsel %vm12204, %v11343, 0
  %v12314 = vsel %vm12204, %v11344, 0
  %v12317 = vsel %vm12204, %v11345, 0
  %v12320 = vsel %vm12204, %v11346, 0
  %v12323 = vsel %vm12204, %v11347, 0
  %v12326 = vsel %vm12204, %v11348, 0
  %v12329 = vsel %vm12204, %v11349, 0
  %v12332 = vsel %vm12204, %v11350, 0
  %v12335 = vsel %vm12204, %v11351, 0
  %v12338 = vsel %vm12204, %v11352, 0
  %v12341 = vsel %vm12204, %v11353, 0
  %v12344 = vsel %vm12204, %v11354, 0
  %v12347 = vsel %vm12204, %v11355, 0
  %v12350 = vsel %vm12204, %v11356, 0
  %v12353 = vsel %vm12204, %v11357, 0
  %v12356 = vsel %vm12204, %v11358, 0
  %v12359 = vsel %vm12204, %v11359, 0
  %v12362 = vsel %vm12204, %v11360, 0
  %v12365 = vsel %vm12204, %v11361, 0
  %v12368 = vsel %vm12204, %v11362, 0
  %v12371 = vsel %vm12204, %v11363, 0
  %v12374 = vsel %vm12204, %v11364, 0
  %v12377 = vsel %vm12204, %v11365, 0
  %v12380 = vsel %vm12204, %v11366, 0
  %v12383 = vsel %vm12204, %v11367, 0
  %v12386 = vsel %vm12204, %v11368, 0
  %v12389 = vsel %vm12204, %v11369, 0
  %v12392 = vsel %vm12204, %v11370, 0
  %v12395 = vsel %vm12204, %v11371, 0
  %v12398 = vsel %vm12204, %v11372, 0
  %v12401 = vsel %vm12204, %v11373, 0
  %v12404 = vsel %vm12204, %v11374, 0
  %v12407 = vsel %vm12204, %v11375, 0
  %v12410 = vsel %vm12204, %v11376, 0
  %v12413 = vsel %vm12204, %v11377, 0
  %v12416 = vsel %vm12204, %v11378, 0
  %v12419 = vsel %vm12204, %v11379, 0
  %v12422 = vsel %vm12204, %v11380, 0
  %v12425 = vsel %vm12204, %v11381, 0
  %v12428 = vsel %vm12204, %v11382, 0
  %v12431 = vsel %vm12204, %v11383, 0
  %v12434 = vsel %vm12204, %v11384, 0
  %v12437 = vsel %vm12204, %v11385, 0
  %v12440 = vsel %vm12204, %v11386, 0
  %v12443 = vsel %vm12204, %v11387, 0
  %v12446 = vsel %vm12204, %v11388, 0
  %v12449 = vsel %vm12204, %v11389, 0
  %v12452 = vsel %vm12204, %v11390, 0
  %v12455 = vsel %vm12204, %v11391, 0
  %v12458 = vsel %vm12204, %v11392, 0
  %v12461 = vsel %vm12204, %v11393, 0
  %v12464 = vsel %vm12204, %v11394, 0
  %v12467 = vsel %vm12204, %v11395, 0
  %v12470 = vsel %vm12204, %v11396, 0
  %v12473 = vsel %vm12204, %v11397, 0
  %v12476 = vsel %vm12204, %v11398, 0
  %v12479 = vsel %vm12204, %v11399, 0
  %v12482 = vsel %vm12204, %v11400, 0
  %v12485 = vsel %vm12204, %v11401, 0
  %v12488 = vsel %vm12204, %v11402, 0
  %v12491 = vsel %vm12204, %v11403, 0
  %v12494 = vsel %vm12204, %v11404, 0
  %v12497 = vsel %vm12204, %v11405, 0
  %v12500 = vsel %vm12204, %v11406, 0
  %v12503 = vsel %vm12204, %v11407, 0
  %v12506 = vsel %vm12204, %v11408, 0
  %v12509 = vsel %vm12204, %v11409, 0
  %v12512 = vsel %vm12204, %v11410, 0
  %v12515 = vsel %vm12204, %v11411, 0
  %v12518 = vsel %vm12204, %v11412, 0
  %v12521 = vsel %vm12204, %v11413, 0
  %v12524 = vsel %vm12204, %v11414, 0
  %v12527 = vsel %vm12204, %v11415, 0
  %v12530 = vsel %vm12204, %v11416, 0
  %v12533 = vsel %vm12204, %v11417, 0
  %v12536 = vsel %vm12204, %v11418, 0
  %v12539 = vsel %vm12204, %v11419, 0
  %v12542 = vsel %vm12204, %v11420, 0
  %v12545 = vsel %vm12204, %v11421, 0
  %v12548 = vsel %vm12204, %v11422, 0
  %v12551 = vsel %vm12204, %v11423, 0
  %v12554 = vsel %vm12204, %v11424, 0
  %v12557 = vsel %vm12204, %v11425, 0
  %v12560 = vsel %vm12204, %v11426, 0
  %v12563 = vsel %vm12204, %v11427, 0
  %v12566 = vsel %vm12204, %v11428, 0
  %v12569 = vsel %vm12204, %v11429, 0
  %v12572 = vsel %vm12204, %v11430, 0
  %v12575 = vsel %vm12204, %v11431, 0
  %v12578 = vsel %vm12204, %v11432, 0
  %v12581 = vsel %vm12204, %v11433, 0
  %v12584 = vsel %vm12204, %v11434, 0
  %v12587 = vsel %vm12204, %v11435, 0
  %v12590 = vsel %vm11247, %v11307, 0
  %12592 = vmatprep.subr.mxu0 0.0
  %12593 = vmatpush1.msra.mxu0 %v11298
  %12594 = vmatprep.subr.mxu0 0.0
  %12595 = vmatpush1.msra.mxu0 %v11299
  %12596 = vmatprep.subr.mxu0 0.0
  %12597 = vmatpush1.msra.mxu0 %v11300
  %12598 = vmatprep.subr.mxu0 0.0
  %12599 = vmatpush1.msra.mxu0 %v11301
  %12600 = vmatprep.subr.mxu0 0.0
  %12601 = vmatpush1.msra.mxu0 %v11302
  %12602 = vmatprep.subr.mxu0 0.0
  %12603 = vmatpush1.msra.mxu0 %v11303
  %12604 = vmatprep.subr.mxu0 0.0
  %12605 = vmatpush1.msra.mxu0 %v11304
  %12606 = vmatprep.subr.mxu0 0.0
  %12607 = vmatpush1.msra.mxu0 %v11305
  %12608 = vmatprep.subr.mxu0 0.0
  %12609 = vmatpush1.msra.mxu0 %v11306
  %12610 = vmatprep.subr.mxu0 0.0
  %12611 = vmatpush1.msra.mxu0 %v12590
  %12612 = vmatprep.subr.mxu0 0.0
  %12613 = vmatpush1.msra.mxu0 0.0
  %12614 = vmatprep.subr.mxu0 0.0
  %12615 = vmatpush1.msra.mxu0 0.0
  %12616 = vmatprep.subr.mxu0 0.0
  %12617 = vmatpush1.msra.mxu0 0.0
  %12618 = vmatprep.subr.mxu0 0.0
  %12619 = vmatpush1.msra.mxu0 0.0
  %12620 = vmatprep.subr.mxu0 0.0
  %12621 = vmatpush1.msra.mxu0 0.0
  %12622 = vmatprep.subr.mxu0 0.0
  %12623 = vmatpush1.msra.mxu0 0.0
  %12624 = vmatprep.subr.mxu0 0.0
  %12625 = vmatpush1.msra.mxu0 0.0
  %12626 = vmatprep.subr.mxu0 0.0
  %12627 = vmatpush1.msra.mxu0 0.0
  %12628 = vmatprep.subr.mxu0 0.0
  %12629 = vmatpush1.msra.mxu0 0.0
  %12630 = vmatprep.subr.mxu0 0.0
  %12631 = vmatpush1.msra.mxu0 0.0
  %12632 = vmatprep.subr.mxu0 0.0
  %12633 = vmatpush1.msra.mxu0 0.0
  %12634 = vmatprep.subr.mxu0 0.0
  %12635 = vmatpush1.msra.mxu0 0.0
  %12636 = vmatprep.subr.mxu0 0.0
  %12637 = vmatpush1.msra.mxu0 0.0
  %12638 = vmatprep.subr.mxu0 0.0
  %12639 = vmatpush1.msra.mxu0 0.0
  %12640 = vmatprep.subr.mxu0 0.0
  %12641 = vmatpush1.msra.mxu0 0.0
  %12642 = vmatprep.subr.mxu0 0.0
  %12643 = vmatpush1.msra.mxu0 0.0
  %12644 = vmatprep.subr.mxu0 0.0
  %12645 = vmatpush1.msra.mxu0 0.0
  %12646 = vmatprep.subr.mxu0 0.0
  %12647 = vmatpush1.msra.mxu0 0.0
  %12648 = vmatprep.subr.mxu0 0.0
  %12649 = vmatpush1.msra.mxu0 0.0
  %12650 = vmatprep.subr.mxu0 0.0
  %12651 = vmatpush1.msra.mxu0 0.0
  %12652 = vmatprep.subr.mxu0 0.0
  %12653 = vmatpush1.msra.mxu0 0.0
  %12654 = vmatprep.subr.mxu0 0.0
  %12655 = vmatpush1.msra.mxu0 0.0
  %12656 = vmatprep.mubr.f32.mxu0 0.0
  %12657 = vmatmul.mubr.f32.gmra.mrb[0].mxu0 %v12206
  %v12658 = vpop.f32.mrb[0].mxu0
  %v12659 = vadd.f32 %v11567, %v12658
  %v12660 = vpop.f32.mrb[0].mxu0
  %12661 = vmatprep.mubr.f32.mxu0 0.0
  %12662 = vmatmul.mubr.f32.gmra.mrb[0].mxu0 %v12209
  %v12663 = vpop.f32.mrb[0].mxu0
  %v12664 = vadd.f32 %v11572, %v12663
  %v12665 = vpop.f32.mrb[0].mxu0
  %12666 = vmatprep.mubr.f32.mxu0 0.0
  %12667 = vmatmul.mubr.f32.gmra.mrb[0].mxu0 %v12212
  %v12668 = vpop.f32.mrb[0].mxu0
  %v12669 = vadd.f32 %v11577, %v12668
  %v12670 = vpop.f32.mrb[0].mxu0
  %12671 = vmatprep.mubr.f32.mxu0 0.0
  %12672 = vmatmul.mubr.f32.gmra.mrb[0].mxu0 %v12215
  %v12673 = vpop.f32.mrb[0].mxu0
  %v12674 = vadd.f32 %v11582, %v12673
  %v12675 = vpop.f32.mrb[0].mxu0
  %12676 = vmatprep.mubr.f32.mxu0 0.0
  %12677 = vmatmul.mubr.f32.gmra.mrb[0].mxu0 %v12218
  %v12678 = vpop.f32.mrb[0].mxu0
  %v12679 = vadd.f32 %v11587, %v12678
  %v12680 = vpop.f32.mrb[0].mxu0
  %12681 = vmatprep.mubr.f32.mxu0 0.0
  %12682 = vmatmul.mubr.f32.gmra.mrb[0].mxu0 %v12221
  %v12683 = vpop.f32.mrb[0].mxu0
  %v12684 = vadd.f32 %v11592, %v12683
  %v12685 = vpop.f32.mrb[0].mxu0
  %12686 = vmatprep.mubr.f32.mxu0 0.0
  %12687 = vmatmul.mubr.f32.gmra.mrb[0].mxu0 %v12224
  %v12688 = vpop.f32.mrb[0].mxu0
  %v12689 = vadd.f32 %v11597, %v12688
  %v12690 = vpop.f32.mrb[0].mxu0
  %12691 = vmatprep.mubr.f32.mxu0 0.0
  %12692 = vmatmul.mubr.f32.gmra.mrb[0].mxu0 %v12227
  %v12693 = vpop.f32.mrb[0].mxu0
  %v12694 = vadd.f32 %v11602, %v12693
  %v12695 = vpop.f32.mrb[0].mxu0
  %12696 = vmatprep.mubr.f32.mxu0 0.0
  %12697 = vmatmul.mubr.f32.gmra.mrb[0].mxu0 %v12230
  %v12698 = vpop.f32.mrb[0].mxu0
  %v12699 = vadd.f32 %v11607, %v12698
  %v12700 = vpop.f32.mrb[0].mxu0
  %12701 = vmatprep.mubr.f32.mxu0 0.0
  %12702 = vmatmul.mubr.f32.gmra.mrb[0].mxu0 %v12233
  %v12703 = vpop.f32.mrb[0].mxu0
  %v12704 = vadd.f32 %v11612, %v12703
  %v12705 = vpop.f32.mrb[0].mxu0
  %12706 = vmatprep.mubr.f32.mxu0 0.0
  %12707 = vmatmul.mubr.f32.gmra.mrb[0].mxu0 %v12236
  %v12708 = vpop.f32.mrb[0].mxu0
  %v12709 = vadd.f32 %v11617, %v12708
  %v12710 = vpop.f32.mrb[0].mxu0
  %12711 = vmatprep.mubr.f32.mxu0 0.0
  %12712 = vmatmul.mubr.f32.gmra.mrb[0].mxu0 %v12239
  %v12713 = vpop.f32.mrb[0].mxu0
  %v12714 = vadd.f32 %v11622, %v12713
  %v12715 = vpop.f32.mrb[0].mxu0
  %12716 = vmatprep.mubr.f32.mxu0 0.0
  %12717 = vmatmul.mubr.f32.gmra.mrb[0].mxu0 %v12242
  %v12718 = vpop.f32.mrb[0].mxu0
  %v12719 = vadd.f32 %v11627, %v12718
  %v12720 = vpop.f32.mrb[0].mxu0
  %12721 = vmatprep.mubr.f32.mxu0 0.0
  %12722 = vmatmul.mubr.f32.gmra.mrb[0].mxu0 %v12245
  %v12723 = vpop.f32.mrb[0].mxu0
  %v12724 = vadd.f32 %v11632, %v12723
  %v12725 = vpop.f32.mrb[0].mxu0
  %12726 = vmatprep.mubr.f32.mxu0 0.0
  %12727 = vmatmul.mubr.f32.gmra.mrb[0].mxu0 %v12248
  %v12728 = vpop.f32.mrb[0].mxu0
  %v12729 = vadd.f32 %v11637, %v12728
  %v12730 = vpop.f32.mrb[0].mxu0
  %12731 = vmatprep.mubr.f32.mxu0 0.0
  %12732 = vmatmul.mubr.f32.gmra.mrb[0].mxu0 %v12251
  %v12733 = vpop.f32.mrb[0].mxu0
  %v12734 = vadd.f32 %v11642, %v12733
  %v12735 = vpop.f32.mrb[0].mxu0
  %12736 = vmatprep.mubr.f32.mxu0 0.0
  %12737 = vmatmul.mubr.f32.gmra.mrb[0].mxu0 %v12254
  %v12738 = vpop.f32.mrb[0].mxu0
  %v12739 = vadd.f32 %v11647, %v12738
  %v12740 = vpop.f32.mrb[0].mxu0
  %12741 = vmatprep.mubr.f32.mxu0 0.0
  %12742 = vmatmul.mubr.f32.gmra.mrb[0].mxu0 %v12257
  %v12743 = vpop.f32.mrb[0].mxu0
  %v12744 = vadd.f32 %v11652, %v12743
  %v12745 = vpop.f32.mrb[0].mxu0
  %12746 = vmatprep.mubr.f32.mxu0 0.0
  %12747 = vmatmul.mubr.f32.gmra.mrb[0].mxu0 %v12260
  %v12748 = vpop.f32.mrb[0].mxu0
  %v12749 = vadd.f32 %v11657, %v12748
  %v12750 = vpop.f32.mrb[0].mxu0
  %12751 = vmatprep.mubr.f32.mxu0 0.0
  %12752 = vmatmul.mubr.f32.gmra.mrb[0].mxu0 %v12263
  %v12753 = vpop.f32.mrb[0].mxu0
  %v12754 = vadd.f32 %v11662, %v12753
  %v12755 = vpop.f32.mrb[0].mxu0
  %12756 = vmatprep.mubr.f32.mxu0 0.0
  %12757 = vmatmul.mubr.f32.gmra.mrb[0].mxu0 %v12266
  %v12758 = vpop.f32.mrb[0].mxu0
  %v12759 = vadd.f32 %v11667, %v12758
  %v12760 = vpop.f32.mrb[0].mxu0
  %12761 = vmatprep.mubr.f32.mxu0 0.0
  %12762 = vmatmul.mubr.f32.gmra.mrb[0].mxu0 %v12269
  %v12763 = vpop.f32.mrb[0].mxu0
  %v12764 = vadd.f32 %v11672, %v12763
  %v12765 = vpop.f32.mrb[0].mxu0
  %12766 = vmatprep.mubr.f32.mxu0 0.0
  %12767 = vmatmul.mubr.f32.gmra.mrb[0].mxu0 %v12272
  %v12768 = vpop.f32.mrb[0].mxu0
  %v12769 = vadd.f32 %v11677, %v12768
  %v12770 = vpop.f32.mrb[0].mxu0
  %12771 = vmatprep.mubr.f32.mxu0 0.0
  %12772 = vmatmul.mubr.f32.gmra.mrb[0].mxu0 %v12275
  %v12773 = vpop.f32.mrb[0].mxu0
  %v12774 = vadd.f32 %v11682, %v12773
  %v12775 = vpop.f32.mrb[0].mxu0
  %12776 = vmatprep.mubr.f32.mxu0 0.0
  %12777 = vmatmul.mubr.f32.gmra.mrb[0].mxu0 %v12278
  %v12778 = vpop.f32.mrb[0].mxu0
  %v12779 = vadd.f32 %v11687, %v12778
  %v12780 = vpop.f32.mrb[0].mxu0
  %12781 = vmatprep.mubr.f32.mxu0 0.0
  %12782 = vmatmul.mubr.f32.gmra.mrb[0].mxu0 %v12281
  %v12783 = vpop.f32.mrb[0].mxu0
  %v12784 = vadd.f32 %v11692, %v12783
  %v12785 = vpop.f32.mrb[0].mxu0
  %12786 = vmatprep.mubr.f32.mxu0 0.0
  %12787 = vmatmul.mubr.f32.gmra.mrb[0].mxu0 %v12284
  %v12788 = vpop.f32.mrb[0].mxu0
  %v12789 = vadd.f32 %v11697, %v12788
  %v12790 = vpop.f32.mrb[0].mxu0
  %12791 = vmatprep.mubr.f32.mxu0 0.0
  %12792 = vmatmul.mubr.f32.gmra.mrb[0].mxu0 %v12287
  %v12793 = vpop.f32.mrb[0].mxu0
  %v12794 = vadd.f32 %v11702, %v12793
  %v12795 = vpop.f32.mrb[0].mxu0
  %12796 = vmatprep.mubr.f32.mxu0 0.0
  %12797 = vmatmul.mubr.f32.gmra.mrb[0].mxu0 %v12290
  %v12798 = vpop.f32.mrb[0].mxu0
  %v12799 = vadd.f32 %v11707, %v12798
  %v12800 = vpop.f32.mrb[0].mxu0
  %12801 = vmatprep.mubr.f32.mxu0 0.0
  %12802 = vmatmul.mubr.f32.gmra.mrb[0].mxu0 %v12293
  %v12803 = vpop.f32.mrb[0].mxu0
  %v12804 = vadd.f32 %v11712, %v12803
  %v12805 = vpop.f32.mrb[0].mxu0
  %12806 = vmatprep.mubr.f32.mxu0 0.0
  %12807 = vmatmul.mubr.f32.gmra.mrb[0].mxu0 %v12296
  %v12808 = vpop.f32.mrb[0].mxu0
  %v12809 = vadd.f32 %v11717, %v12808
  %v12810 = vpop.f32.mrb[0].mxu0
  %12811 = vmatprep.mubr.f32.mxu0 0.0
  %12812 = vmatmul.mubr.f32.gmra.mrb[0].mxu0 %v12299
  %v12813 = vpop.f32.mrb[0].mxu0
  %v12814 = vadd.f32 %v11722, %v12813
  %v12815 = vpop.f32.mrb[0].mxu0
  %12816 = vmatprep.mubr.f32.mxu0 0.0
  %12817 = vmatmul.mubr.f32.gmra.mrb[0].mxu0 %v12302
  %v12818 = vpop.f32.mrb[0].mxu0
  %v12819 = vadd.f32 %v11727, %v12818
  %v12820 = vpop.f32.mrb[0].mxu0
  %12821 = vmatprep.mubr.f32.mxu0 0.0
  %12822 = vmatmul.mubr.f32.gmra.mrb[0].mxu0 %v12305
  %v12823 = vpop.f32.mrb[0].mxu0
  %v12824 = vadd.f32 %v11732, %v12823
  %v12825 = vpop.f32.mrb[0].mxu0
  %12826 = vmatprep.mubr.f32.mxu0 0.0
  %12827 = vmatmul.mubr.f32.gmra.mrb[0].mxu0 %v12308
  %v12828 = vpop.f32.mrb[0].mxu0
  %v12829 = vadd.f32 %v11737, %v12828
  %v12830 = vpop.f32.mrb[0].mxu0
  %12831 = vmatprep.mubr.f32.mxu0 0.0
  %12832 = vmatmul.mubr.f32.gmra.mrb[0].mxu0 %v12311
  %v12833 = vpop.f32.mrb[0].mxu0
  %v12834 = vadd.f32 %v11742, %v12833
  %v12835 = vpop.f32.mrb[0].mxu0
  %12836 = vmatprep.mubr.f32.mxu0 0.0
  %12837 = vmatmul.mubr.f32.gmra.mrb[0].mxu0 %v12314
  %v12838 = vpop.f32.mrb[0].mxu0
  %v12839 = vadd.f32 %v11747, %v12838
  %v12840 = vpop.f32.mrb[0].mxu0
  %12841 = vmatprep.mubr.f32.mxu0 0.0
  %12842 = vmatmul.mubr.f32.gmra.mrb[0].mxu0 %v12317
  %v12843 = vpop.f32.mrb[0].mxu0
  %v12844 = vadd.f32 %v11752, %v12843
  %v12845 = vpop.f32.mrb[0].mxu0
  %12846 = vmatprep.mubr.f32.mxu0 0.0
  %12847 = vmatmul.mubr.f32.gmra.mrb[0].mxu0 %v12320
  %v12848 = vpop.f32.mrb[0].mxu0
  %v12849 = vadd.f32 %v11757, %v12848
  %v12850 = vpop.f32.mrb[0].mxu0
  %12851 = vmatprep.mubr.f32.mxu0 0.0
  %12852 = vmatmul.mubr.f32.gmra.mrb[0].mxu0 %v12323
  %v12853 = vpop.f32.mrb[0].mxu0
  %v12854 = vadd.f32 %v11762, %v12853
  %v12855 = vpop.f32.mrb[0].mxu0
  %12856 = vmatprep.mubr.f32.mxu0 0.0
  %12857 = vmatmul.mubr.f32.gmra.mrb[0].mxu0 %v12326
  %v12858 = vpop.f32.mrb[0].mxu0
  %v12859 = vadd.f32 %v11767, %v12858
  %v12860 = vpop.f32.mrb[0].mxu0
  %12861 = vmatprep.mubr.f32.mxu0 0.0
  %12862 = vmatmul.mubr.f32.gmra.mrb[0].mxu0 %v12329
  %v12863 = vpop.f32.mrb[0].mxu0
  %v12864 = vadd.f32 %v11772, %v12863
  %v12865 = vpop.f32.mrb[0].mxu0
  %12866 = vmatprep.mubr.f32.mxu0 0.0
  %12867 = vmatmul.mubr.f32.gmra.mrb[0].mxu0 %v12332
  %v12868 = vpop.f32.mrb[0].mxu0
  %v12869 = vadd.f32 %v11777, %v12868
  %v12870 = vpop.f32.mrb[0].mxu0
  %12871 = vmatprep.mubr.f32.mxu0 0.0
  %12872 = vmatmul.mubr.f32.gmra.mrb[0].mxu0 %v12335
  %v12873 = vpop.f32.mrb[0].mxu0
  %v12874 = vadd.f32 %v11782, %v12873
  %v12875 = vpop.f32.mrb[0].mxu0
  %12876 = vmatprep.mubr.f32.mxu0 0.0
  %12877 = vmatmul.mubr.f32.gmra.mrb[0].mxu0 %v12338
  %v12878 = vpop.f32.mrb[0].mxu0
  %v12879 = vadd.f32 %v11787, %v12878
  %v12880 = vpop.f32.mrb[0].mxu0
  %12881 = vmatprep.mubr.f32.mxu0 0.0
  %12882 = vmatmul.mubr.f32.gmra.mrb[0].mxu0 %v12341
  %v12883 = vpop.f32.mrb[0].mxu0
  %v12884 = vadd.f32 %v11792, %v12883
  %v12885 = vpop.f32.mrb[0].mxu0
  %12886 = vmatprep.mubr.f32.mxu0 0.0
  %12887 = vmatmul.mubr.f32.gmra.mrb[0].mxu0 %v12344
  %v12888 = vpop.f32.mrb[0].mxu0
  %v12889 = vadd.f32 %v11797, %v12888
  %v12890 = vpop.f32.mrb[0].mxu0
  %12891 = vmatprep.mubr.f32.mxu0 0.0
  %12892 = vmatmul.mubr.f32.gmra.mrb[0].mxu0 %v12347
  %v12893 = vpop.f32.mrb[0].mxu0
  %v12894 = vadd.f32 %v11802, %v12893
  %v12895 = vpop.f32.mrb[0].mxu0
  %12896 = vmatprep.mubr.f32.mxu0 0.0
  %12897 = vmatmul.mubr.f32.gmra.mrb[0].mxu0 %v12350
  %v12898 = vpop.f32.mrb[0].mxu0
  %v12899 = vadd.f32 %v11807, %v12898
  %v12900 = vpop.f32.mrb[0].mxu0
  %12901 = vmatprep.mubr.f32.mxu0 0.0
  %12902 = vmatmul.mubr.f32.gmra.mrb[0].mxu0 %v12353
  %v12903 = vpop.f32.mrb[0].mxu0
  %v12904 = vadd.f32 %v11812, %v12903
  %v12905 = vpop.f32.mrb[0].mxu0
  %12906 = vmatprep.mubr.f32.mxu0 0.0
  %12907 = vmatmul.mubr.f32.gmra.mrb[0].mxu0 %v12356
  %v12908 = vpop.f32.mrb[0].mxu0
  %v12909 = vadd.f32 %v11817, %v12908
  %v12910 = vpop.f32.mrb[0].mxu0
  %12911 = vmatprep.mubr.f32.mxu0 0.0
  %12912 = vmatmul.mubr.f32.gmra.mrb[0].mxu0 %v12359
  %v12913 = vpop.f32.mrb[0].mxu0
  %v12914 = vadd.f32 %v11822, %v12913
  %v12915 = vpop.f32.mrb[0].mxu0
  %12916 = vmatprep.mubr.f32.mxu0 0.0
  %12917 = vmatmul.mubr.f32.gmra.mrb[0].mxu0 %v12362
  %v12918 = vpop.f32.mrb[0].mxu0
  %v12919 = vadd.f32 %v11827, %v12918
  %v12920 = vpop.f32.mrb[0].mxu0
  %12921 = vmatprep.mubr.f32.mxu0 0.0
  %12922 = vmatmul.mubr.f32.gmra.mrb[0].mxu0 %v12365
  %v12923 = vpop.f32.mrb[0].mxu0
  %v12924 = vadd.f32 %v11832, %v12923
  %v12925 = vpop.f32.mrb[0].mxu0
  %12926 = vmatprep.mubr.f32.mxu0 0.0
  %12927 = vmatmul.mubr.f32.gmra.mrb[0].mxu0 %v12368
  %v12928 = vpop.f32.mrb[0].mxu0
  %v12929 = vadd.f32 %v11837, %v12928
  %v12930 = vpop.f32.mrb[0].mxu0
  %12931 = vmatprep.mubr.f32.mxu0 0.0
  %12932 = vmatmul.mubr.f32.gmra.mrb[0].mxu0 %v12371
  %v12933 = vpop.f32.mrb[0].mxu0
  %v12934 = vadd.f32 %v11842, %v12933
  %v12935 = vpop.f32.mrb[0].mxu0
  %12936 = vmatprep.mubr.f32.mxu0 0.0
  %12937 = vmatmul.mubr.f32.gmra.mrb[0].mxu0 %v12374
  %v12938 = vpop.f32.mrb[0].mxu0
  %v12939 = vadd.f32 %v11847, %v12938
  %v12940 = vpop.f32.mrb[0].mxu0
  %12941 = vmatprep.mubr.f32.mxu0 0.0
  %12942 = vmatmul.mubr.f32.gmra.mrb[0].mxu0 %v12377
  %v12943 = vpop.f32.mrb[0].mxu0
  %v12944 = vadd.f32 %v11852, %v12943
  %v12945 = vpop.f32.mrb[0].mxu0
  %12946 = vmatprep.mubr.f32.mxu0 0.0
  %12947 = vmatmul.mubr.f32.gmra.mrb[0].mxu0 %v12380
  %v12948 = vpop.f32.mrb[0].mxu0
  %v12949 = vadd.f32 %v11857, %v12948
  %v12950 = vpop.f32.mrb[0].mxu0
  %12951 = vmatprep.mubr.f32.mxu0 0.0
  %12952 = vmatmul.mubr.f32.gmra.mrb[0].mxu0 %v12383
  %v12953 = vpop.f32.mrb[0].mxu0
  %v12954 = vadd.f32 %v11862, %v12953
  %v12955 = vpop.f32.mrb[0].mxu0
  %12956 = vmatprep.mubr.f32.mxu0 0.0
  %12957 = vmatmul.mubr.f32.gmra.mrb[0].mxu0 %v12386
  %v12958 = vpop.f32.mrb[0].mxu0
  %v12959 = vadd.f32 %v11867, %v12958
  %v12960 = vpop.f32.mrb[0].mxu0
  %12961 = vmatprep.mubr.f32.mxu0 0.0
  %12962 = vmatmul.mubr.f32.gmra.mrb[0].mxu0 %v12389
  %v12963 = vpop.f32.mrb[0].mxu0
  %v12964 = vadd.f32 %v11872, %v12963
  %v12965 = vpop.f32.mrb[0].mxu0
  %12966 = vmatprep.mubr.f32.mxu0 0.0
  %12967 = vmatmul.mubr.f32.gmra.mrb[0].mxu0 %v12392
  %v12968 = vpop.f32.mrb[0].mxu0
  %v12969 = vadd.f32 %v11877, %v12968
  %v12970 = vpop.f32.mrb[0].mxu0
  %12971 = vmatprep.mubr.f32.mxu0 0.0
  %12972 = vmatmul.mubr.f32.gmra.mrb[0].mxu0 %v12395
  %v12973 = vpop.f32.mrb[0].mxu0
  %v12974 = vadd.f32 %v11882, %v12973
  %v12975 = vpop.f32.mrb[0].mxu0
  %12976 = vmatprep.mubr.f32.mxu0 0.0
  %12977 = vmatmul.mubr.f32.gmra.mrb[0].mxu0 %v12398
  %v12978 = vpop.f32.mrb[0].mxu0
  %v12979 = vadd.f32 %v11887, %v12978
  %v12980 = vpop.f32.mrb[0].mxu0
  %12981 = vmatprep.mubr.f32.mxu0 0.0
  %12982 = vmatmul.mubr.f32.gmra.mrb[0].mxu0 %v12401
  %v12983 = vpop.f32.mrb[0].mxu0
  %v12984 = vadd.f32 %v11892, %v12983
  %v12985 = vpop.f32.mrb[0].mxu0
  %12986 = vmatprep.mubr.f32.mxu0 0.0
  %12987 = vmatmul.mubr.f32.gmra.mrb[0].mxu0 %v12404
  %v12988 = vpop.f32.mrb[0].mxu0
  %v12989 = vadd.f32 %v11897, %v12988
  %v12990 = vpop.f32.mrb[0].mxu0
  %12991 = vmatprep.mubr.f32.mxu0 0.0
  %12992 = vmatmul.mubr.f32.gmra.mrb[0].mxu0 %v12407
  %v12993 = vpop.f32.mrb[0].mxu0
  %v12994 = vadd.f32 %v11902, %v12993
  %v12995 = vpop.f32.mrb[0].mxu0
  %12996 = vmatprep.mubr.f32.mxu0 0.0
  %12997 = vmatmul.mubr.f32.gmra.mrb[0].mxu0 %v12410
  %v12998 = vpop.f32.mrb[0].mxu0
  %v12999 = vadd.f32 %v11907, %v12998
  %v13000 = vpop.f32.mrb[0].mxu0
  %13001 = vmatprep.mubr.f32.mxu0 0.0
  %13002 = vmatmul.mubr.f32.gmra.mrb[0].mxu0 %v12413
  %v13003 = vpop.f32.mrb[0].mxu0
  %v13004 = vadd.f32 %v11912, %v13003
  %v13005 = vpop.f32.mrb[0].mxu0
  %13006 = vmatprep.mubr.f32.mxu0 0.0
  %13007 = vmatmul.mubr.f32.gmra.mrb[0].mxu0 %v12416
  %v13008 = vpop.f32.mrb[0].mxu0
  %v13009 = vadd.f32 %v11917, %v13008
  %v13010 = vpop.f32.mrb[0].mxu0
  %13011 = vmatprep.mubr.f32.mxu0 0.0
  %13012 = vmatmul.mubr.f32.gmra.mrb[0].mxu0 %v12419
  %v13013 = vpop.f32.mrb[0].mxu0
  %v13014 = vadd.f32 %v11922, %v13013
  %v13015 = vpop.f32.mrb[0].mxu0
  %13016 = vmatprep.mubr.f32.mxu0 0.0
  %13017 = vmatmul.mubr.f32.gmra.mrb[0].mxu0 %v12422
  %v13018 = vpop.f32.mrb[0].mxu0
  %v13019 = vadd.f32 %v11927, %v13018
  %v13020 = vpop.f32.mrb[0].mxu0
  %13021 = vmatprep.mubr.f32.mxu0 0.0
  %13022 = vmatmul.mubr.f32.gmra.mrb[0].mxu0 %v12425
  %v13023 = vpop.f32.mrb[0].mxu0
  %v13024 = vadd.f32 %v11932, %v13023
  %v13025 = vpop.f32.mrb[0].mxu0
  %13026 = vmatprep.mubr.f32.mxu0 0.0
  %13027 = vmatmul.mubr.f32.gmra.mrb[0].mxu0 %v12428
  %v13028 = vpop.f32.mrb[0].mxu0
  %v13029 = vadd.f32 %v11937, %v13028
  %v13030 = vpop.f32.mrb[0].mxu0
  %13031 = vmatprep.mubr.f32.mxu0 0.0
  %13032 = vmatmul.mubr.f32.gmra.mrb[0].mxu0 %v12431
  %v13033 = vpop.f32.mrb[0].mxu0
  %v13034 = vadd.f32 %v11942, %v13033
  %v13035 = vpop.f32.mrb[0].mxu0
  %13036 = vmatprep.mubr.f32.mxu0 0.0
  %13037 = vmatmul.mubr.f32.gmra.mrb[0].mxu0 %v12434
  %v13038 = vpop.f32.mrb[0].mxu0
  %v13039 = vadd.f32 %v11947, %v13038
  %v13040 = vpop.f32.mrb[0].mxu0
  %13041 = vmatprep.mubr.f32.mxu0 0.0
  %13042 = vmatmul.mubr.f32.gmra.mrb[0].mxu0 %v12437
  %v13043 = vpop.f32.mrb[0].mxu0
  %v13044 = vadd.f32 %v11952, %v13043
  %v13045 = vpop.f32.mrb[0].mxu0
  %13046 = vmatprep.mubr.f32.mxu0 0.0
  %13047 = vmatmul.mubr.f32.gmra.mrb[0].mxu0 %v12440
  %v13048 = vpop.f32.mrb[0].mxu0
  %v13049 = vadd.f32 %v11957, %v13048
  %v13050 = vpop.f32.mrb[0].mxu0
  %13051 = vmatprep.mubr.f32.mxu0 0.0
  %13052 = vmatmul.mubr.f32.gmra.mrb[0].mxu0 %v12443
  %v13053 = vpop.f32.mrb[0].mxu0
  %v13054 = vadd.f32 %v11962, %v13053
  %v13055 = vpop.f32.mrb[0].mxu0
  %13056 = vmatprep.mubr.f32.mxu0 0.0
  %13057 = vmatmul.mubr.f32.gmra.mrb[0].mxu0 %v12446
  %v13058 = vpop.f32.mrb[0].mxu0
  %v13059 = vadd.f32 %v11967, %v13058
  %v13060 = vpop.f32.mrb[0].mxu0
  %13061 = vmatprep.mubr.f32.mxu0 0.0
  %13062 = vmatmul.mubr.f32.gmra.mrb[0].mxu0 %v12449
  %v13063 = vpop.f32.mrb[0].mxu0
  %v13064 = vadd.f32 %v11972, %v13063
  %v13065 = vpop.f32.mrb[0].mxu0
  %13066 = vmatprep.mubr.f32.mxu0 0.0
  %13067 = vmatmul.mubr.f32.gmra.mrb[0].mxu0 %v12452
  %v13068 = vpop.f32.mrb[0].mxu0
  %v13069 = vadd.f32 %v11977, %v13068
  %v13070 = vpop.f32.mrb[0].mxu0
  %13071 = vmatprep.mubr.f32.mxu0 0.0
  %13072 = vmatmul.mubr.f32.gmra.mrb[0].mxu0 %v12455
  %v13073 = vpop.f32.mrb[0].mxu0
  %v13074 = vadd.f32 %v11982, %v13073
  %v13075 = vpop.f32.mrb[0].mxu0
  %13076 = vmatprep.mubr.f32.mxu0 0.0
  %13077 = vmatmul.mubr.f32.gmra.mrb[0].mxu0 %v12458
  %v13078 = vpop.f32.mrb[0].mxu0
  %v13079 = vadd.f32 %v11987, %v13078
  %v13080 = vpop.f32.mrb[0].mxu0
  %13081 = vmatprep.mubr.f32.mxu0 0.0
  %13082 = vmatmul.mubr.f32.gmra.mrb[0].mxu0 %v12461
  %v13083 = vpop.f32.mrb[0].mxu0
  %v13084 = vadd.f32 %v11992, %v13083
  %v13085 = vpop.f32.mrb[0].mxu0
  %13086 = vmatprep.mubr.f32.mxu0 0.0
  %13087 = vmatmul.mubr.f32.gmra.mrb[0].mxu0 %v12464
  %v13088 = vpop.f32.mrb[0].mxu0
  %v13089 = vadd.f32 %v11997, %v13088
  %v13090 = vpop.f32.mrb[0].mxu0
  %13091 = vmatprep.mubr.f32.mxu0 0.0
  %13092 = vmatmul.mubr.f32.gmra.mrb[0].mxu0 %v12467
  %v13093 = vpop.f32.mrb[0].mxu0
  %v13094 = vadd.f32 %v12002, %v13093
  %v13095 = vpop.f32.mrb[0].mxu0
  %13096 = vmatprep.mubr.f32.mxu0 0.0
  %13097 = vmatmul.mubr.f32.gmra.mrb[0].mxu0 %v12470
  %v13098 = vpop.f32.mrb[0].mxu0
  %v13099 = vadd.f32 %v12007, %v13098
  %v13100 = vpop.f32.mrb[0].mxu0
  %13101 = vmatprep.mubr.f32.mxu0 0.0
  %13102 = vmatmul.mubr.f32.gmra.mrb[0].mxu0 %v12473
  %v13103 = vpop.f32.mrb[0].mxu0
  %v13104 = vadd.f32 %v12012, %v13103
  %v13105 = vpop.f32.mrb[0].mxu0
  %13106 = vmatprep.mubr.f32.mxu0 0.0
  %13107 = vmatmul.mubr.f32.gmra.mrb[0].mxu0 %v12476
  %v13108 = vpop.f32.mrb[0].mxu0
  %v13109 = vadd.f32 %v12017, %v13108
  %v13110 = vpop.f32.mrb[0].mxu0
  %13111 = vmatprep.mubr.f32.mxu0 0.0
  %13112 = vmatmul.mubr.f32.gmra.mrb[0].mxu0 %v12479
  %v13113 = vpop.f32.mrb[0].mxu0
  %v13114 = vadd.f32 %v12022, %v13113
  %v13115 = vpop.f32.mrb[0].mxu0
  %13116 = vmatprep.mubr.f32.mxu0 0.0
  %13117 = vmatmul.mubr.f32.gmra.mrb[0].mxu0 %v12482
  %v13118 = vpop.f32.mrb[0].mxu0
  %v13119 = vadd.f32 %v12027, %v13118
  %v13120 = vpop.f32.mrb[0].mxu0
  %13121 = vmatprep.mubr.f32.mxu0 0.0
  %13122 = vmatmul.mubr.f32.gmra.mrb[0].mxu0 %v12485
  %v13123 = vpop.f32.mrb[0].mxu0
  %v13124 = vadd.f32 %v12032, %v13123
  %v13125 = vpop.f32.mrb[0].mxu0
  %13126 = vmatprep.mubr.f32.mxu0 0.0
  %13127 = vmatmul.mubr.f32.gmra.mrb[0].mxu0 %v12488
  %v13128 = vpop.f32.mrb[0].mxu0
  %v13129 = vadd.f32 %v12037, %v13128
  %v13130 = vpop.f32.mrb[0].mxu0
  %13131 = vmatprep.mubr.f32.mxu0 0.0
  %13132 = vmatmul.mubr.f32.gmra.mrb[0].mxu0 %v12491
  %v13133 = vpop.f32.mrb[0].mxu0
  %v13134 = vadd.f32 %v12042, %v13133
  %v13135 = vpop.f32.mrb[0].mxu0
  %13136 = vmatprep.mubr.f32.mxu0 0.0
  %13137 = vmatmul.mubr.f32.gmra.mrb[0].mxu0 %v12494
  %v13138 = vpop.f32.mrb[0].mxu0
  %v13139 = vadd.f32 %v12047, %v13138
  %v13140 = vpop.f32.mrb[0].mxu0
  %13141 = vmatprep.mubr.f32.mxu0 0.0
  %13142 = vmatmul.mubr.f32.gmra.mrb[0].mxu0 %v12497
  %v13143 = vpop.f32.mrb[0].mxu0
  %v13144 = vadd.f32 %v12052, %v13143
  %v13145 = vpop.f32.mrb[0].mxu0
  %13146 = vmatprep.mubr.f32.mxu0 0.0
  %13147 = vmatmul.mubr.f32.gmra.mrb[0].mxu0 %v12500
  %v13148 = vpop.f32.mrb[0].mxu0
  %v13149 = vadd.f32 %v12057, %v13148
  %v13150 = vpop.f32.mrb[0].mxu0
  %13151 = vmatprep.mubr.f32.mxu0 0.0
  %13152 = vmatmul.mubr.f32.gmra.mrb[0].mxu0 %v12503
  %v13153 = vpop.f32.mrb[0].mxu0
  %v13154 = vadd.f32 %v12062, %v13153
  %v13155 = vpop.f32.mrb[0].mxu0
  %13156 = vmatprep.mubr.f32.mxu0 0.0
  %13157 = vmatmul.mubr.f32.gmra.mrb[0].mxu0 %v12506
  %v13158 = vpop.f32.mrb[0].mxu0
  %v13159 = vadd.f32 %v12067, %v13158
  %v13160 = vpop.f32.mrb[0].mxu0
  %13161 = vmatprep.mubr.f32.mxu0 0.0
  %13162 = vmatmul.mubr.f32.gmra.mrb[0].mxu0 %v12509
  %v13163 = vpop.f32.mrb[0].mxu0
  %v13164 = vadd.f32 %v12072, %v13163
  %v13165 = vpop.f32.mrb[0].mxu0
  %13166 = vmatprep.mubr.f32.mxu0 0.0
  %13167 = vmatmul.mubr.f32.gmra.mrb[0].mxu0 %v12512
  %v13168 = vpop.f32.mrb[0].mxu0
  %v13169 = vadd.f32 %v12077, %v13168
  %v13170 = vpop.f32.mrb[0].mxu0
  %13171 = vmatprep.mubr.f32.mxu0 0.0
  %13172 = vmatmul.mubr.f32.gmra.mrb[0].mxu0 %v12515
  %v13173 = vpop.f32.mrb[0].mxu0
  %v13174 = vadd.f32 %v12082, %v13173
  %v13175 = vpop.f32.mrb[0].mxu0
  %13176 = vmatprep.mubr.f32.mxu0 0.0
  %13177 = vmatmul.mubr.f32.gmra.mrb[0].mxu0 %v12518
  %v13178 = vpop.f32.mrb[0].mxu0
  %v13179 = vadd.f32 %v12087, %v13178
  %v13180 = vpop.f32.mrb[0].mxu0
  %13181 = vmatprep.mubr.f32.mxu0 0.0
  %13182 = vmatmul.mubr.f32.gmra.mrb[0].mxu0 %v12521
  %v13183 = vpop.f32.mrb[0].mxu0
  %v13184 = vadd.f32 %v12092, %v13183
  %v13185 = vpop.f32.mrb[0].mxu0
  %13186 = vmatprep.mubr.f32.mxu0 0.0
  %13187 = vmatmul.mubr.f32.gmra.mrb[0].mxu0 %v12524
  %v13188 = vpop.f32.mrb[0].mxu0
  %v13189 = vadd.f32 %v12097, %v13188
  %v13190 = vpop.f32.mrb[0].mxu0
  %13191 = vmatprep.mubr.f32.mxu0 0.0
  %13192 = vmatmul.mubr.f32.gmra.mrb[0].mxu0 %v12527
  %v13193 = vpop.f32.mrb[0].mxu0
  %v13194 = vadd.f32 %v12102, %v13193
  %v13195 = vpop.f32.mrb[0].mxu0
  %13196 = vmatprep.mubr.f32.mxu0 0.0
  %13197 = vmatmul.mubr.f32.gmra.mrb[0].mxu0 %v12530
  %v13198 = vpop.f32.mrb[0].mxu0
  %v13199 = vadd.f32 %v12107, %v13198
  %v13200 = vpop.f32.mrb[0].mxu0
  %13201 = vmatprep.mubr.f32.mxu0 0.0
  %13202 = vmatmul.mubr.f32.gmra.mrb[0].mxu0 %v12533
  %v13203 = vpop.f32.mrb[0].mxu0
  %v13204 = vadd.f32 %v12112, %v13203
  %v13205 = vpop.f32.mrb[0].mxu0
  %13206 = vmatprep.mubr.f32.mxu0 0.0
  %13207 = vmatmul.mubr.f32.gmra.mrb[0].mxu0 %v12536
  %v13208 = vpop.f32.mrb[0].mxu0
  %v13209 = vadd.f32 %v12117, %v13208
  %v13210 = vpop.f32.mrb[0].mxu0
  %13211 = vmatprep.mubr.f32.mxu0 0.0
  %13212 = vmatmul.mubr.f32.gmra.mrb[0].mxu0 %v12539
  %v13213 = vpop.f32.mrb[0].mxu0
  %v13214 = vadd.f32 %v12122, %v13213
  %v13215 = vpop.f32.mrb[0].mxu0
  %13216 = vmatprep.mubr.f32.mxu0 0.0
  %13217 = vmatmul.mubr.f32.gmra.mrb[0].mxu0 %v12542
  %v13218 = vpop.f32.mrb[0].mxu0
  %v13219 = vadd.f32 %v12127, %v13218
  %v13220 = vpop.f32.mrb[0].mxu0
  %13221 = vmatprep.mubr.f32.mxu0 0.0
  %13222 = vmatmul.mubr.f32.gmra.mrb[0].mxu0 %v12545
  %v13223 = vpop.f32.mrb[0].mxu0
  %v13224 = vadd.f32 %v12132, %v13223
  %v13225 = vpop.f32.mrb[0].mxu0
  %13226 = vmatprep.mubr.f32.mxu0 0.0
  %13227 = vmatmul.mubr.f32.gmra.mrb[0].mxu0 %v12548
  %v13228 = vpop.f32.mrb[0].mxu0
  %v13229 = vadd.f32 %v12137, %v13228
  %v13230 = vpop.f32.mrb[0].mxu0
  %13231 = vmatprep.mubr.f32.mxu0 0.0
  %13232 = vmatmul.mubr.f32.gmra.mrb[0].mxu0 %v12551
  %v13233 = vpop.f32.mrb[0].mxu0
  %v13234 = vadd.f32 %v12142, %v13233
  %v13235 = vpop.f32.mrb[0].mxu0
  %13236 = vmatprep.mubr.f32.mxu0 0.0
  %13237 = vmatmul.mubr.f32.gmra.mrb[0].mxu0 %v12554
  %v13238 = vpop.f32.mrb[0].mxu0
  %v13239 = vadd.f32 %v12147, %v13238
  %v13240 = vpop.f32.mrb[0].mxu0
  %13241 = vmatprep.mubr.f32.mxu0 0.0
  %13242 = vmatmul.mubr.f32.gmra.mrb[0].mxu0 %v12557
  %v13243 = vpop.f32.mrb[0].mxu0
  %v13244 = vadd.f32 %v12152, %v13243
  %v13245 = vpop.f32.mrb[0].mxu0
  %13246 = vmatprep.mubr.f32.mxu0 0.0
  %13247 = vmatmul.mubr.f32.gmra.mrb[0].mxu0 %v12560
  %v13248 = vpop.f32.mrb[0].mxu0
  %v13249 = vadd.f32 %v12157, %v13248
  %v13250 = vpop.f32.mrb[0].mxu0
  %13251 = vmatprep.mubr.f32.mxu0 0.0
  %13252 = vmatmul.mubr.f32.gmra.mrb[0].mxu0 %v12563
  %v13253 = vpop.f32.mrb[0].mxu0
  %v13254 = vadd.f32 %v12162, %v13253
  %v13255 = vpop.f32.mrb[0].mxu0
  %13256 = vmatprep.mubr.f32.mxu0 0.0
  %13257 = vmatmul.mubr.f32.gmra.mrb[0].mxu0 %v12566
  %v13258 = vpop.f32.mrb[0].mxu0
  %v13259 = vadd.f32 %v12167, %v13258
  %v13260 = vpop.f32.mrb[0].mxu0
  %13261 = vmatprep.mubr.f32.mxu0 0.0
  %13262 = vmatmul.mubr.f32.gmra.mrb[0].mxu0 %v12569
  %v13263 = vpop.f32.mrb[0].mxu0
  %v13264 = vadd.f32 %v12172, %v13263
  %v13265 = vpop.f32.mrb[0].mxu0
  %13266 = vmatprep.mubr.f32.mxu0 0.0
  %13267 = vmatmul.mubr.f32.gmra.mrb[0].mxu0 %v12572
  %v13268 = vpop.f32.mrb[0].mxu0
  %v13269 = vadd.f32 %v12177, %v13268
  %v13270 = vpop.f32.mrb[0].mxu0
  %13271 = vmatprep.mubr.f32.mxu0 0.0
  %13272 = vmatmul.mubr.f32.gmra.mrb[0].mxu0 %v12575
  %v13273 = vpop.f32.mrb[0].mxu0
  %v13274 = vadd.f32 %v12182, %v13273
  %v13275 = vpop.f32.mrb[0].mxu0
  %13276 = vmatprep.mubr.f32.mxu0 0.0
  %13277 = vmatmul.mubr.f32.gmra.mrb[0].mxu0 %v12578
  %v13278 = vpop.f32.mrb[0].mxu0
  %v13279 = vadd.f32 %v12187, %v13278
  %v13280 = vpop.f32.mrb[0].mxu0
  %13281 = vmatprep.mubr.f32.mxu0 0.0
  %13282 = vmatmul.mubr.f32.gmra.mrb[0].mxu0 %v12581
  %v13283 = vpop.f32.mrb[0].mxu0
  %v13284 = vadd.f32 %v12192, %v13283
  %v13285 = vpop.f32.mrb[0].mxu0
  %13286 = vmatprep.mubr.f32.mxu0 0.0
  %13287 = vmatmul.mubr.f32.gmra.mrb[0].mxu0 %v12584
  %v13288 = vpop.f32.mrb[0].mxu0
  %v13289 = vadd.f32 %v12197, %v13288
  %v13290 = vpop.f32.mrb[0].mxu0
  %13291 = vmatprep.mubr.f32.mxu0 0.0
  %13292 = vmatmul.mubr.f32.gmra.mrb[0].mxu0 %v12587
  %v13293 = vpop.f32.mrb[0].mxu0
  %v13294 = vadd.f32 %v12202, %v13293
  %v13295 = vpop.f32.mrb[0].mxu0
  %13296 = vdwg.mxu0
  %v13297 = vmax.f32 %v12659, 0.0
  %v13298 = vmax.f32 %v12664, 0.0
  %v13299 = vmax.f32 %v12669, 0.0
  %v13300 = vmax.f32 %v12674, 0.0
  %v13301 = vmax.f32 %v12679, 0.0
  %v13302 = vmax.f32 %v12684, 0.0
  %v13303 = vmax.f32 %v12689, 0.0
  %v13304 = vmax.f32 %v12694, 0.0
  %v13305 = vmax.f32 %v12699, 0.0
  %v13306 = vmax.f32 %v12704, 0.0
  %v13307 = vmax.f32 %v12709, 0.0
  %v13308 = vmax.f32 %v12714, 0.0
  %v13309 = vmax.f32 %v12719, 0.0
  %v13310 = vmax.f32 %v12724, 0.0
  %v13311 = vmax.f32 %v12729, 0.0
  %v13312 = vmax.f32 %v12734, 0.0
  %v13313 = vmax.f32 %v12739, 0.0
  %v13314 = vmax.f32 %v12744, 0.0
  %v13315 = vmax.f32 %v12749, 0.0
  %v13316 = vmax.f32 %v12754, 0.0
  %v13317 = vmax.f32 %v12759, 0.0
  %v13318 = vmax.f32 %v12764, 0.0
  %v13319 = vmax.f32 %v12769, 0.0
  %v13320 = vmax.f32 %v12774, 0.0
  %v13321 = vmax.f32 %v12779, 0.0
  %v13322 = vmax.f32 %v12784, 0.0
  %v13323 = vmax.f32 %v12789, 0.0
  %v13324 = vmax.f32 %v12794, 0.0
  %v13325 = vmax.f32 %v12799, 0.0
  %v13326 = vmax.f32 %v12804, 0.0
  %v13327 = vmax.f32 %v12809, 0.0
  %v13328 = vmax.f32 %v12814, 0.0
  %v13329 = vmax.f32 %v12819, 0.0
  %v13330 = vmax.f32 %v12824, 0.0
  %v13331 = vmax.f32 %v12829, 0.0
  %v13332 = vmax.f32 %v12834, 0.0
  %v13333 = vmax.f32 %v12839, 0.0
  %v13334 = vmax.f32 %v12844, 0.0
  %v13335 = vmax.f32 %v12849, 0.0
  %v13336 = vmax.f32 %v12854, 0.0
  %v13337 = vmax.f32 %v12859, 0.0
  %v13338 = vmax.f32 %v12864, 0.0
  %v13339 = vmax.f32 %v12869, 0.0
  %v13340 = vmax.f32 %v12874, 0.0
  %v13341 = vmax.f32 %v12879, 0.0
  %v13342 = vmax.f32 %v12884, 0.0
  %v13343 = vmax.f32 %v12889, 0.0
  %v13344 = vmax.f32 %v12894, 0.0
  %v13345 = vmax.f32 %v12899, 0.0
  %v13346 = vmax.f32 %v12904, 0.0
  %v13347 = vmax.f32 %v12909, 0.0
  %v13348 = vmax.f32 %v12914, 0.0
  %v13349 = vmax.f32 %v12919, 0.0
  %v13350 = vmax.f32 %v12924, 0.0
  %v13351 = vmax.f32 %v12929, 0.0
  %v13352 = vmax.f32 %v12934, 0.0
  %v13353 = vmax.f32 %v12939, 0.0
  %v13354 = vmax.f32 %v12944, 0.0
  %v13355 = vmax.f32 %v12949, 0.0
  %v13356 = vmax.f32 %v12954, 0.0
  %v13357 = vmax.f32 %v12959, 0.0
  %v13358 = vmax.f32 %v12964, 0.0
  %v13359 = vmax.f32 %v12969, 0.0
  %v13360 = vmax.f32 %v12974, 0.0
  %v13361 = vmax.f32 %v12979, 0.0
  %v13362 = vmax.f32 %v12984, 0.0
  %v13363 = vmax.f32 %v12989, 0.0
  %v13364 = vmax.f32 %v12994, 0.0
  %v13365 = vmax.f32 %v12999, 0.0
  %v13366 = vmax.f32 %v13004, 0.0
  %v13367 = vmax.f32 %v13009, 0.0
  %v13368 = vmax.f32 %v13014, 0.0
  %v13369 = vmax.f32 %v13019, 0.0
  %v13370 = vmax.f32 %v13024, 0.0
  %v13371 = vmax.f32 %v13029, 0.0
  %v13372 = vmax.f32 %v13034, 0.0
  %v13373 = vmax.f32 %v13039, 0.0
  %v13374 = vmax.f32 %v13044, 0.0
  %v13375 = vmax.f32 %v13049, 0.0
  %v13376 = vmax.f32 %v13054, 0.0
  %v13377 = vmax.f32 %v13059, 0.0
  %v13378 = vmax.f32 %v13064, 0.0
  %v13379 = vmax.f32 %v13069, 0.0
  %v13380 = vmax.f32 %v13074, 0.0
  %v13381 = vmax.f32 %v13079, 0.0
  %v13382 = vmax.f32 %v13084, 0.0
  %v13383 = vmax.f32 %v13089, 0.0
  %v13384 = vmax.f32 %v13094, 0.0
  %v13385 = vmax.f32 %v13099, 0.0
  %v13386 = vmax.f32 %v13104, 0.0
  %v13387 = vmax.f32 %v13109, 0.0
  %v13388 = vmax.f32 %v13114, 0.0
  %v13389 = vmax.f32 %v13119, 0.0
  %v13390 = vmax.f32 %v13124, 0.0
  %v13391 = vmax.f32 %v13129, 0.0
  %v13392 = vmax.f32 %v13134, 0.0
  %v13393 = vmax.f32 %v13139, 0.0
  %v13394 = vmax.f32 %v13144, 0.0
  %v13395 = vmax.f32 %v13149, 0.0
  %v13396 = vmax.f32 %v13154, 0.0
  %v13397 = vmax.f32 %v13159, 0.0
  %v13398 = vmax.f32 %v13164, 0.0
  %v13399 = vmax.f32 %v13169, 0.0
  %v13400 = vmax.f32 %v13174, 0.0
  %v13401 = vmax.f32 %v13179, 0.0
  %v13402 = vmax.f32 %v13184, 0.0
  %v13403 = vmax.f32 %v13189, 0.0
  %v13404 = vmax.f32 %v13194, 0.0
  %v13405 = vmax.f32 %v13199, 0.0
  %v13406 = vmax.f32 %v13204, 0.0
  %v13407 = vmax.f32 %v13209, 0.0
  %v13408 = vmax.f32 %v13214, 0.0
  %v13409 = vmax.f32 %v13219, 0.0
  %v13410 = vmax.f32 %v13224, 0.0
  %v13411 = vmax.f32 %v13229, 0.0
  %v13412 = vmax.f32 %v13234, 0.0
  %v13413 = vmax.f32 %v13239, 0.0
  %v13414 = vmax.f32 %v13244, 0.0
  %v13415 = vmax.f32 %v13249, 0.0
  %v13416 = vmax.f32 %v13254, 0.0
  %v13417 = vmax.f32 %v13259, 0.0
  %v13418 = vmax.f32 %v13264, 0.0
  %v13419 = vmax.f32 %v13269, 0.0
  %v13420 = vmax.f32 %v13274, 0.0
  %v13421 = vmax.f32 %v13279, 0.0
  %v13422 = vmax.f32 %v13284, 0.0
  %v13423 = vmax.f32 %v13289, 0.0
  %v13424 = vmax.f32 %v13294, 0.0
  %v13425 = vld [vmem:[%s9] sm:$0x77]
  %v13426 = vld [vmem:[%s9 + $0x8] sm:$0x77]
  %v13427 = vld [vmem:[%s9 + $0x10] sm:$0x77]
  %v13428 = vld [vmem:[%s9 + $0x18] sm:$0x77]
  %v13429 = vld [vmem:[%s10] sm:$0x7]
  %13431 = vset.pattern.permute.xlu0 0
  %13432 = vperm.xlu0 %13431, %v13429
  %v13433 = vpop.permute.xlu0 %13432
  %v13439 = vcombine.high %v13425, %v13425
  %v13440 = vcombine.high %v13426, %v13426
  %v13441 = vcombine.high %v13427, %v13427
  %v13442 = vcombine.high %v13428, %v13428
  %13447 = vmatprep.subr.mxu0 0.0
  %13448 = vmatpush1.msra.mxu0 %v13297
  %13449 = vmatprep.subr.mxu0 0.0
  %13450 = vmatpush1.msra.mxu0 %v13298
  %13451 = vmatprep.subr.mxu0 0.0
  %13452 = vmatpush1.msra.mxu0 %v13299
  %13453 = vmatprep.subr.mxu0 0.0
  %13454 = vmatpush1.msra.mxu0 %v13300
  %13455 = vmatprep.subr.mxu0 0.0
  %13456 = vmatpush1.msra.mxu0 %v13301
  %13457 = vmatprep.subr.mxu0 0.0
  %13458 = vmatpush1.msra.mxu0 %v13302
  %13459 = vmatprep.subr.mxu0 0.0
  %13460 = vmatpush1.msra.mxu0 %v13303
  %13461 = vmatprep.subr.mxu0 0.0
  %13462 = vmatpush1.msra.mxu0 %v13304
  %13463 = vmatprep.subr.mxu0 0.0
  %13464 = vmatpush1.msra.mxu0 %v13305
  %13465 = vmatprep.subr.mxu0 0.0
  %13466 = vmatpush1.msra.mxu0 %v13306
  %13467 = vmatprep.subr.mxu0 0.0
  %13468 = vmatpush1.msra.mxu0 %v13307
  %13469 = vmatprep.subr.mxu0 0.0
  %13470 = vmatpush1.msra.mxu0 %v13308
  %13471 = vmatprep.subr.mxu0 0.0
  %13472 = vmatpush1.msra.mxu0 %v13309
  %13473 = vmatprep.subr.mxu0 0.0
  %13474 = vmatpush1.msra.mxu0 %v13310
  %13475 = vmatprep.subr.mxu0 0.0
  %13476 = vmatpush1.msra.mxu0 %v13311
  %13477 = vmatprep.subr.mxu0 0.0
  %13478 = vmatpush1.msra.mxu0 %v13312
  %13479 = vmatprep.subr.mxu0 0.0
  %13480 = vmatpush1.msra.mxu0 %v13313
  %13481 = vmatprep.subr.mxu0 0.0
  %13482 = vmatpush1.msra.mxu0 %v13314
  %13483 = vmatprep.subr.mxu0 0.0
  %13484 = vmatpush1.msra.mxu0 %v13315
  %13485 = vmatprep.subr.mxu0 0.0
  %13486 = vmatpush1.msra.mxu0 %v13316
  %13487 = vmatprep.subr.mxu0 0.0
  %13488 = vmatpush1.msra.mxu0 %v13317
  %13489 = vmatprep.subr.mxu0 0.0
  %13490 = vmatpush1.msra.mxu0 %v13318
  %13491 = vmatprep.subr.mxu0 0.0
  %13492 = vmatpush1.msra.mxu0 %v13319
  %13493 = vmatprep.subr.mxu0 0.0
  %13494 = vmatpush1.msra.mxu0 %v13320
  %13495 = vmatprep.subr.mxu0 0.0
  %13496 = vmatpush1.msra.mxu0 %v13321
  %13497 = vmatprep.subr.mxu0 0.0
  %13498 = vmatpush1.msra.mxu0 %v13322
  %13499 = vmatprep.subr.mxu0 0.0
  %13500 = vmatpush1.msra.mxu0 %v13323
  %13501 = vmatprep.subr.mxu0 0.0
  %13502 = vmatpush1.msra.mxu0 %v13324
  %13503 = vmatprep.subr.mxu0 0.0
  %13504 = vmatpush1.msra.mxu0 %v13325
  %13505 = vmatprep.subr.mxu0 0.0
  %13506 = vmatpush1.msra.mxu0 %v13326
  %13507 = vmatprep.subr.mxu0 0.0
  %13508 = vmatpush1.msra.mxu0 %v13327
  %13509 = vmatprep.subr.mxu0 0.0
  %13510 = vmatpush1.msra.mxu0 %v13328
  %13511 = vmatprep.mubr.f32.mxu0 %v13439
  %13512 = vmatmul.mubr.f32.gmra.mrb[0].mxu0 %v13425
  %v13513 = vpop.f32.mrb[0].mxu0
  %v13514 = vadd.f32 %v13433, %v13513
  %v13515 = vpop.f32.mrb[0].mxu0
  %13516 = vdwg.mxu0
  %13517 = vmatprep.subr.mxu0 0.0
  %13518 = vmatpush1.msra.mxu0 %v13329
  %13519 = vmatprep.subr.mxu0 0.0
  %13520 = vmatpush1.msra.mxu0 %v13330
  %13521 = vmatprep.subr.mxu0 0.0
  %13522 = vmatpush1.msra.mxu0 %v13331
  %13523 = vmatprep.subr.mxu0 0.0
  %13524 = vmatpush1.msra.mxu0 %v13332
  %13525 = vmatprep.subr.mxu0 0.0
  %13526 = vmatpush1.msra.mxu0 %v13333
  %13527 = vmatprep.subr.mxu0 0.0
  %13528 = vmatpush1.msra.mxu0 %v13334
  %13529 = vmatprep.subr.mxu0 0.0
  %13530 = vmatpush1.msra.mxu0 %v13335
  %13531 = vmatprep.subr.mxu0 0.0
  %13532 = vmatpush1.msra.mxu0 %v13336
  %13533 = vmatprep.subr.mxu0 0.0
  %13534 = vmatpush1.msra.mxu0 %v13337
  %13535 = vmatprep.subr.mxu0 0.0
  %13536 = vmatpush1.msra.mxu0 %v13338
  %13537 = vmatprep.subr.mxu0 0.0
  %13538 = vmatpush1.msra.mxu0 %v13339
  %13539 = vmatprep.subr.mxu0 0.0
  %13540 = vmatpush1.msra.mxu0 %v13340
  %13541 = vmatprep.subr.mxu0 0.0
  %13542 = vmatpush1.msra.mxu0 %v13341
  %13543 = vmatprep.subr.mxu0 0.0
  %13544 = vmatpush1.msra.mxu0 %v13342
  %13545 = vmatprep.subr.mxu0 0.0
  %13546 = vmatpush1.msra.mxu0 %v13343
  %13547 = vmatprep.subr.mxu0 0.0
  %13548 = vmatpush1.msra.mxu0 %v13344
  %13549 = vmatprep.subr.mxu0 0.0
  %13550 = vmatpush1.msra.mxu0 %v13345
  %13551 = vmatprep.subr.mxu0 0.0
  %13552 = vmatpush1.msra.mxu0 %v13346
  %13553 = vmatprep.subr.mxu0 0.0
  %13554 = vmatpush1.msra.mxu0 %v13347
  %13555 = vmatprep.subr.mxu0 0.0
  %13556 = vmatpush1.msra.mxu0 %v13348
  %13557 = vmatprep.subr.mxu0 0.0
  %13558 = vmatpush1.msra.mxu0 %v13349
  %13559 = vmatprep.subr.mxu0 0.0
  %13560 = vmatpush1.msra.mxu0 %v13350
  %13561 = vmatprep.subr.mxu0 0.0
  %13562 = vmatpush1.msra.mxu0 %v13351
  %13563 = vmatprep.subr.mxu0 0.0
  %13564 = vmatpush1.msra.mxu0 %v13352
  %13565 = vmatprep.subr.mxu0 0.0
  %13566 = vmatpush1.msra.mxu0 %v13353
  %13567 = vmatprep.subr.mxu0 0.0
  %13568 = vmatpush1.msra.mxu0 %v13354
  %13569 = vmatprep.subr.mxu0 0.0
  %13570 = vmatpush1.msra.mxu0 %v13355
  %13571 = vmatprep.subr.mxu0 0.0
  %13572 = vmatpush1.msra.mxu0 %v13356
  %13573 = vmatprep.subr.mxu0 0.0
  %13574 = vmatpush1.msra.mxu0 %v13357
  %13575 = vmatprep.subr.mxu0 0.0
  %13576 = vmatpush1.msra.mxu0 %v13358
  %13577 = vmatprep.subr.mxu0 0.0
  %13578 = vmatpush1.msra.mxu0 %v13359
  %13579 = vmatprep.subr.mxu0 0.0
  %13580 = vmatpush1.msra.mxu0 %v13360
  %13581 = vmatprep.mubr.f32.mxu0 %v13440
  %13582 = vmatmul.mubr.f32.gmra.mrb[0].mxu0 %v13426
  %v13583 = vpop.f32.mrb[0].mxu0
  %v13584 = vadd.f32 %v13514, %v13583
  %v13585 = vpop.f32.mrb[0].mxu0
  %13586 = vdwg.mxu0
  %13587 = vmatprep.subr.mxu0 0.0
  %13588 = vmatpush1.msra.mxu0 %v13361
  %13589 = vmatprep.subr.mxu0 0.0
  %13590 = vmatpush1.msra.mxu0 %v13362
  %13591 = vmatprep.subr.mxu0 0.0
  %13592 = vmatpush1.msra.mxu0 %v13363
  %13593 = vmatprep.subr.mxu0 0.0
  %13594 = vmatpush1.msra.mxu0 %v13364
  %13595 = vmatprep.subr.mxu0 0.0
  %13596 = vmatpush1.msra.mxu0 %v13365
  %13597 = vmatprep.subr.mxu0 0.0
  %13598 = vmatpush1.msra.mxu0 %v13366
  %13599 = vmatprep.subr.mxu0 0.0
  %13600 = vmatpush1.msra.mxu0 %v13367
  %13601 = vmatprep.subr.mxu0 0.0
  %13602 = vmatpush1.msra.mxu0 %v13368
  %13603 = vmatprep.subr.mxu0 0.0
  %13604 = vmatpush1.msra.mxu0 %v13369
  %13605 = vmatprep.subr.mxu0 0.0
  %13606 = vmatpush1.msra.mxu0 %v13370
  %13607 = vmatprep.subr.mxu0 0.0
  %13608 = vmatpush1.msra.mxu0 %v13371
  %13609 = vmatprep.subr.mxu0 0.0
  %13610 = vmatpush1.msra.mxu0 %v13372
  %13611 = vmatprep.subr.mxu0 0.0
  %13612 = vmatpush1.msra.mxu0 %v13373
  %13613 = vmatprep.subr.mxu0 0.0
  %13614 = vmatpush1.msra.mxu0 %v13374
  %13615 = vmatprep.subr.mxu0 0.0
  %13616 = vmatpush1.msra.mxu0 %v13375
  %13617 = vmatprep.subr.mxu0 0.0
  %13618 = vmatpush1.msra.mxu0 %v13376
  %13619 = vmatprep.subr.mxu0 0.0
  %13620 = vmatpush1.msra.mxu0 %v13377
  %13621 = vmatprep.subr.mxu0 0.0
  %13622 = vmatpush1.msra.mxu0 %v13378
  %13623 = vmatprep.subr.mxu0 0.0
  %13624 = vmatpush1.msra.mxu0 %v13379
  %13625 = vmatprep.subr.mxu0 0.0
  %13626 = vmatpush1.msra.mxu0 %v13380
  %13627 = vmatprep.subr.mxu0 0.0
  %13628 = vmatpush1.msra.mxu0 %v13381
  %13629 = vmatprep.subr.mxu0 0.0
  %13630 = vmatpush1.msra.mxu0 %v13382
  %13631 = vmatprep.subr.mxu0 0.0
  %13632 = vmatpush1.msra.mxu0 %v13383
  %13633 = vmatprep.subr.mxu0 0.0
  %13634 = vmatpush1.msra.mxu0 %v13384
  %13635 = vmatprep.subr.mxu0 0.0
  %13636 = vmatpush1.msra.mxu0 %v13385
  %13637 = vmatprep.subr.mxu0 0.0
  %13638 = vmatpush1.msra.mxu0 %v13386
  %13639 = vmatprep.subr.mxu0 0.0
  %13640 = vmatpush1.msra.mxu0 %v13387
  %13641 = vmatprep.subr.mxu0 0.0
  %13642 = vmatpush1.msra.mxu0 %v13388
  %13643 = vmatprep.subr.mxu0 0.0
  %13644 = vmatpush1.msra.mxu0 %v13389
  %13645 = vmatprep.subr.mxu0 0.0
  %13646 = vmatpush1.msra.mxu0 %v13390
  %13647 = vmatprep.subr.mxu0 0.0
  %13648 = vmatpush1.msra.mxu0 %v13391
  %13649 = vmatprep.subr.mxu0 0.0
  %13650 = vmatpush1.msra.mxu0 %v13392
  %13651 = vmatprep.mubr.f32.mxu0 %v13441
  %13652 = vmatmul.mubr.f32.gmra.mrb[0].mxu0 %v13427
  %v13653 = vpop.f32.mrb[0].mxu0
  %v13654 = vadd.f32 %v13584, %v13653
  %v13655 = vpop.f32.mrb[0].mxu0
  %13656 = vdwg.mxu0
  %13657 = vmatprep.subr.mxu0 0.0
  %13658 = vmatpush1.msra.mxu0 %v13393
  %13659 = vmatprep.subr.mxu0 0.0
  %13660 = vmatpush1.msra.mxu0 %v13394
  %13661 = vmatprep.subr.mxu0 0.0
  %13662 = vmatpush1.msra.mxu0 %v13395
  %13663 = vmatprep.subr.mxu0 0.0
  %13664 = vmatpush1.msra.mxu0 %v13396
  %13665 = vmatprep.subr.mxu0 0.0
  %13666 = vmatpush1.msra.mxu0 %v13397
  %13667 = vmatprep.subr.mxu0 0.0
  %13668 = vmatpush1.msra.mxu0 %v13398
  %13669 = vmatprep.subr.mxu0 0.0
  %13670 = vmatpush1.msra.mxu0 %v13399
  %13671 = vmatprep.subr.mxu0 0.0
  %13672 = vmatpush1.msra.mxu0 %v13400
  %13673 = vmatprep.subr.mxu0 0.0
  %13674 = vmatpush1.msra.mxu0 %v13401
  %13675 = vmatprep.subr.mxu0 0.0
  %13676 = vmatpush1.msra.mxu0 %v13402
  %13677 = vmatprep.subr.mxu0 0.0
  %13678 = vmatpush1.msra.mxu0 %v13403
  %13679 = vmatprep.subr.mxu0 0.0
  %13680 = vmatpush1.msra.mxu0 %v13404
  %13681 = vmatprep.subr.mxu0 0.0
  %13682 = vmatpush1.msra.mxu0 %v13405
  %13683 = vmatprep.subr.mxu0 0.0
  %13684 = vmatpush1.msra.mxu0 %v13406
  %13685 = vmatprep.subr.mxu0 0.0
  %13686 = vmatpush1.msra.mxu0 %v13407
  %13687 = vmatprep.subr.mxu0 0.0
  %13688 = vmatpush1.msra.mxu0 %v13408
  %13689 = vmatprep.subr.mxu0 0.0
  %13690 = vmatpush1.msra.mxu0 %v13409
  %13691 = vmatprep.subr.mxu0 0.0
  %13692 = vmatpush1.msra.mxu0 %v13410
  %13693 = vmatprep.subr.mxu0 0.0
  %13694 = vmatpush1.msra.mxu0 %v13411
  %13695 = vmatprep.subr.mxu0 0.0
  %13696 = vmatpush1.msra.mxu0 %v13412
  %13697 = vmatprep.subr.mxu0 0.0
  %13698 = vmatpush1.msra.mxu0 %v13413
  %13699 = vmatprep.subr.mxu0 0.0
  %13700 = vmatpush1.msra.mxu0 %v13414
  %13701 = vmatprep.subr.mxu0 0.0
  %13702 = vmatpush1.msra.mxu0 %v13415
  %13703 = vmatprep.subr.mxu0 0.0
  %13704 = vmatpush1.msra.mxu0 %v13416
  %13705 = vmatprep.subr.mxu0 0.0
  %13706 = vmatpush1.msra.mxu0 %v13417
  %13707 = vmatprep.subr.mxu0 0.0
  %13708 = vmatpush1.msra.mxu0 %v13418
  %13709 = vmatprep.subr.mxu0 0.0
  %13710 = vmatpush1.msra.mxu0 %v13419
  %13711 = vmatprep.subr.mxu0 0.0
  %13712 = vmatpush1.msra.mxu0 %v13420
  %13713 = vmatprep.subr.mxu0 0.0
  %13714 = vmatpush1.msra.mxu0 %v13421
  %13715 = vmatprep.subr.mxu0 0.0
  %13716 = vmatpush1.msra.mxu0 %v13422
  %13717 = vmatprep.subr.mxu0 0.0
  %13718 = vmatpush1.msra.mxu0 %v13423
  %13719 = vmatprep.subr.mxu0 0.0
  %13720 = vmatpush1.msra.mxu0 %v13424
  %13721 = vmatprep.mubr.f32.mxu0 %v13442
  %13722 = vmatmul.mubr.f32.gmra.mrb[0].mxu0 %v13428
  %v13723 = vpop.f32.mrb[0].mxu0
  %v13724 = vadd.f32 %v13654, %v13723
  %v13725 = vpop.f32.mrb[0].mxu0
  %13726 = vdwg.mxu0
  %vm13727 = vcmask 10240
  %13728 = vst.msk [vmem:[%s12] sm:$0x7] %vm13727, %v13724
  // Predicated region
  $region46: #{traffic_cnn_forward.1} parent=0 // pred_check
    _
  $region47: #{traffic_cnn_forward.1} parent=0 // pred_check_branch
    %13730 = sbr.rel (0) target = $region49
  $region48: #{traffic_cnn_forward.1} parent=0 // pred_region
    _
  $region49: #{traffic_cnn_forward.1} parent=0 // pred_fallthru
    _
  // Predicated region
  $region50: #{traffic_cnn_forward.1} parent=0 // pred_check
    _
  $region51: #{traffic_cnn_forward.1} parent=0 // pred_check_branch
    %13732 = sbr.rel (0) target = $region53
  $region52: #{traffic_cnn_forward.1} parent=0 // pred_region
    _
  $region53: #{traffic_cnn_forward.1} parent=0 // pred_fallthru
    _
  // Predicated region
  $region54: #{traffic_cnn_forward.1} parent=0 // pred_check
    _
  $region55: #{traffic_cnn_forward.1} parent=0 // pred_check_branch
    %13734 = sbr.rel (0) target = $region57
  $region56: #{traffic_cnn_forward.1} parent=0 // pred_region
    _
  $region57: #{traffic_cnn_forward.1} parent=0 // pred_fallthru
    _
  // Predicated region
  $region58: #{traffic_cnn_forward.1} parent=0 // pred_check
    _
  $region59: #{traffic_cnn_forward.1} parent=0 // pred_check_branch
    %13736 = sbr.rel (0) target = $region61
  $region60: #{traffic_cnn_forward.1} parent=0 // pred_region
    _
  $region61: #{traffic_cnn_forward.1} parent=0 // pred_fallthru
    _

</llo_original>
